<compile_context>
chip_gen: v7x
topology: tpu7x:2x2x1
jax: 0.10.0
libtpu: 0.0.40
codegen_flags: <defaults>
</compile_context>

<pallas_src>
import functools

import jax
import jax.numpy as jnp
from jax.experimental import pallas as pl
from jax.experimental.pallas import tpu as pltpu


# ----------------------------------------------------------------------------
# Pallas kernel: full DBlock for a block of `nb` batch elements.
# ----------------------------------------------------------------------------
def _dblock_kernel(x_ref, w_ref, b_ref, o_ref, act_ref, mid_ref,
                   *, H, W, C, num_res, nb):
    # x_ref  : (nb, H, W, C)           input tile (unpadded)
    # w_ref  : (num_res, 2, 9*C, C)    im2col-reshaped conv weights (kh,kw,ci)
    # b_ref  : (num_res, 2, 1, C)      conv biases
    # o_ref  : (nb, H, W, C)           output tile
    # act_ref: (nb, H+2, W+2, C) f32   zero-halo current activation (scratch)
    # mid_ref: (nb, H+2, W+2, C) f32   zero-halo conv1+ReLU intermediate
    M = nb * H * W

    # Zero the halo scratches once per grid step.  Only the 1-pixel border
    # actually needs the zeros (interiors are overwritten below), but a single
    # small memset stays correct when the "parallel" batch axis is sharded
    # across TensorCores, unlike a program_id()==0 guard.
    act_ref[...] = jnp.zeros(act_ref.shape, act_ref.dtype)
    mid_ref[...] = jnp.zeros(mid_ref.shape, mid_ref.dtype)
    act_ref[:, 1:H + 1, 1:W + 1, :] = x_ref[...].astype(jnp.float32)

    def im2col(padded):
        # padded: (nb, H+2, W+2, C) value -> (nb*H*W, 9*C) patch matrix whose
        # column order (kh, kw, cin) matches w.reshape(9*C, C).
        cols = [padded[:, kh:kh + H, kw:kw + W, :].reshape(M, C)
                for kh in range(3) for kw in range(3)]
        return jnp.concatenate(cols, axis=-1)

    for r in range(num_res):                       # static unroll over ResBlocks
        xp = act_ref[...]                          # (nb, H+2, W+2, C) f32

        # ---- conv1 (3x3, pad=1) + bias + ReLU: one MXU matmul, K = 9*C ----
        y1 = jnp.dot(im2col(xp), w_ref[r, 0],
                     preferred_element_type=jnp.float32)
        y1 = jnp.maximum(y1 + b_ref[r, 0], 0.0)
        mid_ref[:, 1:H + 1, 1:W + 1, :] = y1.reshape(nb, H, W, C)

        # ---- conv2 (3x3, pad=1) + bias ----
        y2 = jnp.dot(im2col(mid_ref[...]), w_ref[r, 1],
                     preferred_element_type=jnp.float32)
        y2 = y2 + b_ref[r, 1]

        # ---- residual add; result stays in VMEM for the next ResBlock ----
        act_ref[:, 1:H + 1, 1:W + 1, :] = (
            xp[:, 1:H + 1, 1:W + 1, :] + y2.reshape(nb, H, W, C))

    o_ref[...] = act_ref[:, 1:H + 1, 1:W + 1, :].astype(o_ref.dtype)


# ----------------------------------------------------------------------------
# Wrapper: one pallas_call for the whole DBlock, grid over batch.
# ----------------------------------------------------------------------------
def dblock_apply_nhwc(x_nhwc, w_all, b_all, *, batch_block=1):
    N, H, W, C = x_nhwc.shape
    num_res = w_all.shape[0]
    nb = batch_block
    assert N % nb == 0, "batch must be divisible by batch_block"

    kernel = functools.partial(_dblock_kernel, H=H, W=W, C=C,
                               num_res=num_res, nb=nb)
    return pl.pallas_call(
        kernel,
        out_shape=jax.ShapeDtypeStruct((N, H, W, C), x_nhwc.dtype),
        grid_spec=pltpu.PrefetchScalarGridSpec(
            num_scalar_prefetch=0,
            grid=(N // nb,),
            in_specs=[
                pl.BlockSpec((nb, H, W, C), lambda n: (n, 0, 0, 0)),
                pl.BlockSpec((num_res, 2, 9 * C, C), lambda n: (0, 0, 0, 0)),
                pl.BlockSpec((num_res, 2, 1, C), lambda n: (0, 0, 0, 0)),
            ],
            out_specs=pl.BlockSpec((nb, H, W, C), lambda n: (n, 0, 0, 0)),
            scratch_shapes=[
                pltpu.VMEM((nb, H + 2, W + 2, C), jnp.float32),
                pltpu.VMEM((nb, H + 2, W + 2, C), jnp.float32),
            ],
        ),
        compiler_params=pltpu.CompilerParams(
            dimension_semantics=("parallel",),          # megacore / v7x 2 TCs
            vmem_limit_bytes=48 * 1024 * 1024,          # safe on 64 MiB v7x
        ),
    )(x_nhwc, w_all, b_all)


# ----------------------------------------------------------------------------
# Parameter helpers (weights pre-reshaped to the im2col layout).
# ----------------------------------------------------------------------------
def init_dblock_params(key, channel, num_res):
    params = []
    for _ in range(num_res):
        key, k1, k2, k3, k4 = jax.random.split(key, 5)
        w1 = 0.1 * jax.random.normal(k1, (3, 3, channel, channel), jnp.float32)
        b1 = 0.1 * jax.random.normal(k2, (channel,), jnp.float32)
        w2 = 0.1 * jax.random.normal(k3, (3, 3, channel, channel), jnp.float32)
        b2 = 0.1 * jax.random.normal(k4, (channel,), jnp.float32)
        params.append((w1, b1, w2, b2))
    return params


def pack_dblock_params(params, channel):
    C = channel
    w_all = jnp.stack([
        jnp.stack([w1.reshape(9 * C, C), w2.reshape(9 * C, C)])
        for (w1, b1, w2, b2) in params])                  # (num_res, 2, 9C, C)
    b_all = jnp.stack([
        jnp.stack([b1.reshape(1, C), b2.reshape(1, C)])
        for (w1, b1, w2, b2) in params])                  # (num_res, 2, 1, C)
    return w_all, b_all


def dblock_forward(x_nchw, params, *, batch_block=1):
    # NCHW (PyTorch convention) -> NHWC for the kernel, and back.
    _, C, _, _ = x_nchw.shape
    x = jnp.transpose(x_nchw, (0, 2, 3, 1))
    w_all, b_all = pack_dblock_params(params, C)
    y = dblock_apply_nhwc(x, w_all, b_all, batch_block=batch_block)
    return jnp.transpose(y, (0, 3, 1, 2))


# ----------------------------------------------------------------------------
# Pure-JAX reference (for correctness check).
# ----------------------------------------------------------------------------
def _dblock_ref(x_nchw, params):
    x = jnp.transpose(x_nchw, (0, 2, 3, 1))  # NHWC
    for (w1, b1, w2, b2) in params:
        y = jax.lax.conv_general_dilated(
            x, w1, window_strides=(1, 1), padding="SAME",
            dimension_numbers=("NHWC", "HWIO", "NHWC")) + b1.reshape(1, 1, 1, -1)
        y = jnp.maximum(y, 0.0)
        y = jax.lax.conv_general_dilated(
            y, w2, window_strides=(1, 1), padding="SAME",
            dimension_numbers=("NHWC", "HWIO", "NHWC")) + b2.reshape(1, 1, 1, -1)
        x = x + y
    return jnp.transpose(x, (0, 3, 1, 2))


if __name__ == "__main__":
    key = jax.random.PRNGKey(0)
    batch, channel, spatial, num_res = 2, 4, 16, 2

    kx, kp = jax.random.split(key)
    x = jax.random.normal(kx, (batch, channel, spatial, spatial), jnp.float32)
    params = init_dblock_params(kp, channel, num_res)

    out = dblock_forward(x, params)
    out = jax.block_until_ready(out)

    ref = _dblock_ref(x, params)
    assert out.shape == ref.shape
    max_err = float(jnp.max(jnp.abs(out - ref)))
    assert jnp.allclose(out, ref, atol=2e-2, rtol=2e-2), f"max|err|={max_err}"

    print("KERNEL_OK")
</pallas_src>

<mosaic_0001>
module attributes {stable_mosaic.version = 11 : i64} {
  func.func @_dblock_kernel(%arg0: i32, %arg1: memref<1x16x16x4xf32, #tpu.memory_space<vmem>>, %arg2: memref<2x2x36x4xf32, #tpu.memory_space<vmem>>, %arg3: memref<2x2x1x4xf32, #tpu.memory_space<vmem>>, %arg4: memref<1x16x16x4xf32, #tpu.memory_space<vmem>>, %arg5: memref<1x18x18x4xf32, #tpu.memory_space<vmem>>, %arg6: memref<1x18x18x4xf32, #tpu.memory_space<vmem>>) attributes {dimension_semantics = [#tpu.dimension_semantics<parallel>], iteration_bounds = array<i64: 2>, scalar_prefetch = 0 : i64, scratch_operands = 2 : i64, tpu.core_type = #tpu.core_type<tc>, window_params = [{transform_indices = @transform_0, window_bounds = array<i64: 1, 16, 16, 4>}, {pipeline_mode = #tpu.pipeline_mode<synchronous>, transform_indices = @transform_1, window_bounds = array<i64: 2, 2, 36, 4>}, {pipeline_mode = #tpu.pipeline_mode<synchronous>, transform_indices = @transform_2, window_bounds = array<i64: 2, 2, 1, 4>}, {transform_indices = @transform_3, window_bounds = array<i64: 1, 16, 16, 4>}]} {
    %cst = arith.constant 0.000000e+00 : f32
    %0 = vector.broadcast %cst : f32 to vector<1x18x18x4xf32>
    %c0 = arith.constant 0 : index
    %c0_0 = arith.constant 0 : index
    %c0_1 = arith.constant 0 : index
    %c0_2 = arith.constant 0 : index
    %1 = vector.load %arg5[%c0, %c0_0, %c0_1, %c0_2] : memref<1x18x18x4xf32, #tpu.memory_space<vmem>>, vector<1x18x18x4xf32>
    tpu.vector_store %arg5[%c0, %c0_0, %c0_1, %c0_2], %0 {strides = array<i32>} : memref<1x18x18x4xf32, #tpu.memory_space<vmem>>, vector<1x18x18x4xf32>,
    %cst_3 = arith.constant 0.000000e+00 : f32
    %2 = vector.broadcast %cst_3 : f32 to vector<1x18x18x4xf32>
    %c0_4 = arith.constant 0 : index
    %c0_5 = arith.constant 0 : index
    %c0_6 = arith.constant 0 : index
    %c0_7 = arith.constant 0 : index
    %3 = vector.load %arg6[%c0_4, %c0_5, %c0_6, %c0_7] : memref<1x18x18x4xf32, #tpu.memory_space<vmem>>, vector<1x18x18x4xf32>
    tpu.vector_store %arg6[%c0_4, %c0_5, %c0_6, %c0_7], %2 {strides = array<i32>} : memref<1x18x18x4xf32, #tpu.memory_space<vmem>>, vector<1x18x18x4xf32>,
    %c0_8 = arith.constant 0 : index
    %c0_9 = arith.constant 0 : index
    %c0_10 = arith.constant 0 : index
    %c0_11 = arith.constant 0 : index
    %4 = vector.load %arg1[%c0_8, %c0_9, %c0_10, %c0_11] : memref<1x16x16x4xf32, #tpu.memory_space<vmem>>, vector<1x16x16x4xf32>
    %c0_12 = arith.constant 0 : index
    %c1 = arith.constant 1 : index
    %c1_13 = arith.constant 1 : index
    %c0_14 = arith.constant 0 : index
    %5 = vector.load %arg5[%c0_12, %c1, %c1_13, %c0_14] : memref<1x18x18x4xf32, #tpu.memory_space<vmem>>, vector<1x16x16x4xf32>
    tpu.vector_store %arg5[%c0_12, %c1, %c1_13, %c0_14], %4 {strides = array<i32>} : memref<1x18x18x4xf32, #tpu.memory_space<vmem>>, vector<1x16x16x4xf32>,
    %c0_15 = arith.constant 0 : index
    %c0_16 = arith.constant 0 : index
    %c0_17 = arith.constant 0 : index
    %c0_18 = arith.constant 0 : index
    %6 = vector.load %arg5[%c0_15, %c0_16, %c0_17, %c0_18] : memref<1x18x18x4xf32, #tpu.memory_space<vmem>>, vector<1x18x18x4xf32>
    %7 = vector.extract_strided_slice %6 {offsets = [0, 0, 0, 0], sizes = [1, 16, 16, 4], strides = [1, 1, 1, 1]} : vector<1x18x18x4xf32> to vector<1x16x16x4xf32>
    %8 = vector.shape_cast %7 : vector<1x16x16x4xf32> to vector<256x4xf32>
    %9 = vector.extract_strided_slice %6 {offsets = [0, 0, 1, 0], sizes = [1, 16, 16, 4], strides = [1, 1, 1, 1]} : vector<1x18x18x4xf32> to vector<1x16x16x4xf32>
    %10 = vector.shape_cast %9 : vector<1x16x16x4xf32> to vector<256x4xf32>
    %11 = vector.extract_strided_slice %6 {offsets = [0, 0, 2, 0], sizes = [1, 16, 16, 4], strides = [1, 1, 1, 1]} : vector<1x18x18x4xf32> to vector<1x16x16x4xf32>
    %12 = vector.shape_cast %11 : vector<1x16x16x4xf32> to vector<256x4xf32>
    %13 = vector.extract_strided_slice %6 {offsets = [0, 1, 0, 0], sizes = [1, 16, 16, 4], strides = [1, 1, 1, 1]} : vector<1x18x18x4xf32> to vector<1x16x16x4xf32>
    %14 = vector.shape_cast %13 : vector<1x16x16x4xf32> to vector<256x4xf32>
    %15 = vector.extract_strided_slice %6 {offsets = [0, 1, 1, 0], sizes = [1, 16, 16, 4], strides = [1, 1, 1, 1]} : vector<1x18x18x4xf32> to vector<1x16x16x4xf32>
    %16 = vector.shape_cast %15 : vector<1x16x16x4xf32> to vector<256x4xf32>
    %17 = vector.extract_strided_slice %6 {offsets = [0, 1, 2, 0], sizes = [1, 16, 16, 4], strides = [1, 1, 1, 1]} : vector<1x18x18x4xf32> to vector<1x16x16x4xf32>
    %18 = vector.shape_cast %17 : vector<1x16x16x4xf32> to vector<256x4xf32>
    %19 = vector.extract_strided_slice %6 {offsets = [0, 2, 0, 0], sizes = [1, 16, 16, 4], strides = [1, 1, 1, 1]} : vector<1x18x18x4xf32> to vector<1x16x16x4xf32>
    %20 = vector.shape_cast %19 : vector<1x16x16x4xf32> to vector<256x4xf32>
    %21 = vector.extract_strided_slice %6 {offsets = [0, 2, 1, 0], sizes = [1, 16, 16, 4], strides = [1, 1, 1, 1]} : vector<1x18x18x4xf32> to vector<1x16x16x4xf32>
    %22 = vector.shape_cast %21 : vector<1x16x16x4xf32> to vector<256x4xf32>
    %23 = vector.extract_strided_slice %6 {offsets = [0, 2, 2, 0], sizes = [1, 16, 16, 4], strides = [1, 1, 1, 1]} : vector<1x18x18x4xf32> to vector<1x16x16x4xf32>
    %24 = vector.shape_cast %23 : vector<1x16x16x4xf32> to vector<256x4xf32>
    %25 = tpu.concatenate %8, %10, %12, %14, %16, %18, %20, %22, %24 in 1 : vector<256x4xf32>, vector<256x4xf32>, vector<256x4xf32>, vector<256x4xf32>, vector<256x4xf32>, vector<256x4xf32>, vector<256x4xf32>, vector<256x4xf32>, vector<256x4xf32> -> vector<256x36xf32>
    %c0_19 = arith.constant 0 : index
    %c0_20 = arith.constant 0 : index
    %c0_21 = arith.constant 0 : index
    %c0_22 = arith.constant 0 : index
    %26 = vector.load %arg2[%c0_19, %c0_20, %c0_21, %c0_22] : memref<2x2x36x4xf32, #tpu.memory_space<vmem>>, vector<1x1x36x4xf32>
    %27 = vector.shape_cast %26 : vector<1x1x36x4xf32> to vector<36x4xf32>
    %cst_23 = arith.constant dense<0.000000e+00> : vector<256x4xf32>
    %28 = tpu.matmul %25, %27, %cst_23 {dimension_numbers = #tpu.dot_dimension_numbers<[1], [0], [0], [1], [0, 0, 1, 1], [], []>} : vector<256x36xf32>, vector<36x4xf32>, vector<256x4xf32> -> vector<256x4xf32>
    %c0_24 = arith.constant 0 : index
    %c0_25 = arith.constant 0 : index
    %c0_26 = arith.constant 0 : index
    %c0_27 = arith.constant 0 : index
    %29 = vector.load %arg3[%c0_24, %c0_25, %c0_26, %c0_27] : memref<2x2x1x4xf32, #tpu.memory_space<vmem>>, vector<1x1x1x4xf32>
    %30 = vector.shape_cast %29 : vector<1x1x1x4xf32> to vector<1x4xf32>
    %31 = vector.broadcast %30 : vector<1x4xf32> to vector<256x4xf32>
    %32 = arith.addf %28, %31 : vector<256x4xf32>
    %cst_28 = arith.constant 0.000000e+00 : f32
    %33 = vector.broadcast %cst_28 : f32 to vector<256x4xf32>
    %34 = arith.maximumf %32, %33 : vector<256x4xf32>
    %35 = vector.shape_cast %34 : vector<256x4xf32> to vector<1x16x16x4xf32>
    %c0_29 = arith.constant 0 : index
    %c1_30 = arith.constant 1 : index
    %c1_31 = arith.constant 1 : index
    %c0_32 = arith.constant 0 : index
    %36 = vector.load %arg6[%c0_29, %c1_30, %c1_31, %c0_32] : memref<1x18x18x4xf32, #tpu.memory_space<vmem>>, vector<1x16x16x4xf32>
    tpu.vector_store %arg6[%c0_29, %c1_30, %c1_31, %c0_32], %35 {strides = array<i32>} : memref<1x18x18x4xf32, #tpu.memory_space<vmem>>, vector<1x16x16x4xf32>,
    %c0_33 = arith.constant 0 : index
    %c0_34 = arith.constant 0 : index
    %c0_35 = arith.constant 0 : index
    %c0_36 = arith.constant 0 : index
    %37 = vector.load %arg6[%c0_33, %c0_34, %c0_35, %c0_36] : memref<1x18x18x4xf32, #tpu.memory_space<vmem>>, vector<1x18x18x4xf32>
    %38 = vector.extract_strided_slice %37 {offsets = [0, 0, 0, 0], sizes = [1, 16, 16, 4], strides = [1, 1, 1, 1]} : vector<1x18x18x4xf32> to vector<1x16x16x4xf32>
    %39 = vector.shape_cast %38 : vector<1x16x16x4xf32> to vector<256x4xf32>
    %40 = vector.extract_strided_slice %37 {offsets = [0, 0, 1, 0], sizes = [1, 16, 16, 4], strides = [1, 1, 1, 1]} : vector<1x18x18x4xf32> to vector<1x16x16x4xf32>
    %41 = vector.shape_cast %40 : vector<1x16x16x4xf32> to vector<256x4xf32>
    %42 = vector.extract_strided_slice %37 {offsets = [0, 0, 2, 0], sizes = [1, 16, 16, 4], strides = [1, 1, 1, 1]} : vector<1x18x18x4xf32> to vector<1x16x16x4xf32>
    %43 = vector.shape_cast %42 : vector<1x16x16x4xf32> to vector<256x4xf32>
    %44 = vector.extract_strided_slice %37 {offsets = [0, 1, 0, 0], sizes = [1, 16, 16, 4], strides = [1, 1, 1, 1]} : vector<1x18x18x4xf32> to vector<1x16x16x4xf32>
    %45 = vector.shape_cast %44 : vector<1x16x16x4xf32> to vector<256x4xf32>
    %46 = vector.extract_strided_slice %37 {offsets = [0, 1, 1, 0], sizes = [1, 16, 16, 4], strides = [1, 1, 1, 1]} : vector<1x18x18x4xf32> to vector<1x16x16x4xf32>
    %47 = vector.shape_cast %46 : vector<1x16x16x4xf32> to vector<256x4xf32>
    %48 = vector.extract_strided_slice %37 {offsets = [0, 1, 2, 0], sizes = [1, 16, 16, 4], strides = [1, 1, 1, 1]} : vector<1x18x18x4xf32> to vector<1x16x16x4xf32>
    %49 = vector.shape_cast %48 : vector<1x16x16x4xf32> to vector<256x4xf32>
    %50 = vector.extract_strided_slice %37 {offsets = [0, 2, 0, 0], sizes = [1, 16, 16, 4], strides = [1, 1, 1, 1]} : vector<1x18x18x4xf32> to vector<1x16x16x4xf32>
    %51 = vector.shape_cast %50 : vector<1x16x16x4xf32> to vector<256x4xf32>
    %52 = vector.extract_strided_slice %37 {offsets = [0, 2, 1, 0], sizes = [1, 16, 16, 4], strides = [1, 1, 1, 1]} : vector<1x18x18x4xf32> to vector<1x16x16x4xf32>
    %53 = vector.shape_cast %52 : vector<1x16x16x4xf32> to vector<256x4xf32>
    %54 = vector.extract_strided_slice %37 {offsets = [0, 2, 2, 0], sizes = [1, 16, 16, 4], strides = [1, 1, 1, 1]} : vector<1x18x18x4xf32> to vector<1x16x16x4xf32>
    %55 = vector.shape_cast %54 : vector<1x16x16x4xf32> to vector<256x4xf32>
    %56 = tpu.concatenate %39, %41, %43, %45, %47, %49, %51, %53, %55 in 1 : vector<256x4xf32>, vector<256x4xf32>, vector<256x4xf32>, vector<256x4xf32>, vector<256x4xf32>, vector<256x4xf32>, vector<256x4xf32>, vector<256x4xf32>, vector<256x4xf32> -> vector<256x36xf32>
    %c0_37 = arith.constant 0 : index
    %c1_38 = arith.constant 1 : index
    %c0_39 = arith.constant 0 : index
    %c0_40 = arith.constant 0 : index
    %57 = vector.load %arg2[%c0_37, %c1_38, %c0_39, %c0_40] : memref<2x2x36x4xf32, #tpu.memory_space<vmem>>, vector<1x1x36x4xf32>
    %58 = vector.shape_cast %57 : vector<1x1x36x4xf32> to vector<36x4xf32>
    %cst_41 = arith.constant dense<0.000000e+00> : vector<256x4xf32>
    %59 = tpu.matmul %56, %58, %cst_41 {dimension_numbers = #tpu.dot_dimension_numbers<[1], [0], [0], [1], [0, 0, 1, 1], [], []>} : vector<256x36xf32>, vector<36x4xf32>, vector<256x4xf32> -> vector<256x4xf32>
    %c0_42 = arith.constant 0 : index
    %c1_43 = arith.constant 1 : index
    %c0_44 = arith.constant 0 : index
    %c0_45 = arith.constant 0 : index
    %60 = vector.load %arg3[%c0_42, %c1_43, %c0_44, %c0_45] : memref<2x2x1x4xf32, #tpu.memory_space<vmem>>, vector<1x1x1x4xf32>
    %61 = vector.shape_cast %60 : vector<1x1x1x4xf32> to vector<1x4xf32>
    %62 = vector.broadcast %61 : vector<1x4xf32> to vector<256x4xf32>
    %63 = arith.addf %59, %62 : vector<256x4xf32>
    %64 = vector.extract_strided_slice %6 {offsets = [0, 1, 1, 0], sizes = [1, 16, 16, 4], strides = [1, 1, 1, 1]} : vector<1x18x18x4xf32> to vector<1x16x16x4xf32>
    %65 = vector.shape_cast %63 : vector<256x4xf32> to vector<1x16x16x4xf32>
    %66 = arith.addf %64, %65 : vector<1x16x16x4xf32>
    %c0_46 = arith.constant 0 : index
    %c1_47 = arith.constant 1 : index
    %c1_48 = arith.constant 1 : index
    %c0_49 = arith.constant 0 : index
    %67 = vector.load %arg5[%c0_46, %c1_47, %c1_48, %c0_49] : memref<1x18x18x4xf32, #tpu.memory_space<vmem>>, vector<1x16x16x4xf32>
    tpu.vector_store %arg5[%c0_46, %c1_47, %c1_48, %c0_49], %66 {strides = array<i32>} : memref<1x18x18x4xf32, #tpu.memory_space<vmem>>, vector<1x16x16x4xf32>,
    %c0_50 = arith.constant 0 : index
    %c0_51 = arith.constant 0 : index
    %c0_52 = arith.constant 0 : index
    %c0_53 = arith.constant 0 : index
    %68 = vector.load %arg5[%c0_50, %c0_51, %c0_52, %c0_53] : memref<1x18x18x4xf32, #tpu.memory_space<vmem>>, vector<1x18x18x4xf32>
    %69 = vector.extract_strided_slice %68 {offsets = [0, 0, 0, 0], sizes = [1, 16, 16, 4], strides = [1, 1, 1, 1]} : vector<1x18x18x4xf32> to vector<1x16x16x4xf32>
    %70 = vector.shape_cast %69 : vector<1x16x16x4xf32> to vector<256x4xf32>
    %71 = vector.extract_strided_slice %68 {offsets = [0, 0, 1, 0], sizes = [1, 16, 16, 4], strides = [1, 1, 1, 1]} : vector<1x18x18x4xf32> to vector<1x16x16x4xf32>
    %72 = vector.shape_cast %71 : vector<1x16x16x4xf32> to vector<256x4xf32>
    %73 = vector.extract_strided_slice %68 {offsets = [0, 0, 2, 0], sizes = [1, 16, 16, 4], strides = [1, 1, 1, 1]} : vector<1x18x18x4xf32> to vector<1x16x16x4xf32>
    %74 = vector.shape_cast %73 : vector<1x16x16x4xf32> to vector<256x4xf32>
    %75 = vector.extract_strided_slice %68 {offsets = [0, 1, 0, 0], sizes = [1, 16, 16, 4], strides = [1, 1, 1, 1]} : vector<1x18x18x4xf32> to vector<1x16x16x4xf32>
    %76 = vector.shape_cast %75 : vector<1x16x16x4xf32> to vector<256x4xf32>
    %77 = vector.extract_strided_slice %68 {offsets = [0, 1, 1, 0], sizes = [1, 16, 16, 4], strides = [1, 1, 1, 1]} : vector<1x18x18x4xf32> to vector<1x16x16x4xf32>
    %78 = vector.shape_cast %77 : vector<1x16x16x4xf32> to vector<256x4xf32>
    %79 = vector.extract_strided_slice %68 {offsets = [0, 1, 2, 0], sizes = [1, 16, 16, 4], strides = [1, 1, 1, 1]} : vector<1x18x18x4xf32> to vector<1x16x16x4xf32>
    %80 = vector.shape_cast %79 : vector<1x16x16x4xf32> to vector<256x4xf32>
    %81 = vector.extract_strided_slice %68 {offsets = [0, 2, 0, 0], sizes = [1, 16, 16, 4], strides = [1, 1, 1, 1]} : vector<1x18x18x4xf32> to vector<1x16x16x4xf32>
    %82 = vector.shape_cast %81 : vector<1x16x16x4xf32> to vector<256x4xf32>
    %83 = vector.extract_strided_slice %68 {offsets = [0, 2, 1, 0], sizes = [1, 16, 16, 4], strides = [1, 1, 1, 1]} : vector<1x18x18x4xf32> to vector<1x16x16x4xf32>
    %84 = vector.shape_cast %83 : vector<1x16x16x4xf32> to vector<256x4xf32>
    %85 = vector.extract_strided_slice %68 {offsets = [0, 2, 2, 0], sizes = [1, 16, 16, 4], strides = [1, 1, 1, 1]} : vector<1x18x18x4xf32> to vector<1x16x16x4xf32>
    %86 = vector.shape_cast %85 : vector<1x16x16x4xf32> to vector<256x4xf32>
    %87 = tpu.concatenate %70, %72, %74, %76, %78, %80, %82, %84, %86 in 1 : vector<256x4xf32>, vector<256x4xf32>, vector<256x4xf32>, vector<256x4xf32>, vector<256x4xf32>, vector<256x4xf32>, vector<256x4xf32>, vector<256x4xf32>, vector<256x4xf32> -> vector<256x36xf32>
    %c1_54 = arith.constant 1 : index
    %c0_55 = arith.constant 0 : index
    %c0_56 = arith.constant 0 : index
    %c0_57 = arith.constant 0 : index
    %88 = vector.load %arg2[%c1_54, %c0_55, %c0_56, %c0_57] : memref<2x2x36x4xf32, #tpu.memory_space<vmem>>, vector<1x1x36x4xf32>
    %89 = vector.shape_cast %88 : vector<1x1x36x4xf32> to vector<36x4xf32>
    %cst_58 = arith.constant dense<0.000000e+00> : vector<256x4xf32>
    %90 = tpu.matmul %87, %89, %cst_58 {dimension_numbers = #tpu.dot_dimension_numbers<[1], [0], [0], [1], [0, 0, 1, 1], [], []>} : vector<256x36xf32>, vector<36x4xf32>, vector<256x4xf32> -> vector<256x4xf32>
    %c1_59 = arith.constant 1 : index
    %c0_60 = arith.constant 0 : index
    %c0_61 = arith.constant 0 : index
    %c0_62 = arith.constant 0 : index
    %91 = vector.load %arg3[%c1_59, %c0_60, %c0_61, %c0_62] : memref<2x2x1x4xf32, #tpu.memory_space<vmem>>, vector<1x1x1x4xf32>
    %92 = vector.shape_cast %91 : vector<1x1x1x4xf32> to vector<1x4xf32>
    %93 = vector.broadcast %92 : vector<1x4xf32> to vector<256x4xf32>
    %94 = arith.addf %90, %93 : vector<256x4xf32>
    %cst_63 = arith.constant 0.000000e+00 : f32
    %95 = vector.broadcast %cst_63 : f32 to vector<256x4xf32>
    %96 = arith.maximumf %94, %95 : vector<256x4xf32>
    %97 = vector.shape_cast %96 : vector<256x4xf32> to vector<1x16x16x4xf32>
    %c0_64 = arith.constant 0 : index
    %c1_65 = arith.constant 1 : index
    %c1_66 = arith.constant 1 : index
    %c0_67 = arith.constant 0 : index
    %98 = vector.load %arg6[%c0_64, %c1_65, %c1_66, %c0_67] : memref<1x18x18x4xf32, #tpu.memory_space<vmem>>, vector<1x16x16x4xf32>
    tpu.vector_store %arg6[%c0_64, %c1_65, %c1_66, %c0_67], %97 {strides = array<i32>} : memref<1x18x18x4xf32, #tpu.memory_space<vmem>>, vector<1x16x16x4xf32>,
    %c0_68 = arith.constant 0 : index
    %c0_69 = arith.constant 0 : index
    %c0_70 = arith.constant 0 : index
    %c0_71 = arith.constant 0 : index
    %99 = vector.load %arg6[%c0_68, %c0_69, %c0_70, %c0_71] : memref<1x18x18x4xf32, #tpu.memory_space<vmem>>, vector<1x18x18x4xf32>
    %100 = vector.extract_strided_slice %99 {offsets = [0, 0, 0, 0], sizes = [1, 16, 16, 4], strides = [1, 1, 1, 1]} : vector<1x18x18x4xf32> to vector<1x16x16x4xf32>
    %101 = vector.shape_cast %100 : vector<1x16x16x4xf32> to vector<256x4xf32>
    %102 = vector.extract_strided_slice %99 {offsets = [0, 0, 1, 0], sizes = [1, 16, 16, 4], strides = [1, 1, 1, 1]} : vector<1x18x18x4xf32> to vector<1x16x16x4xf32>
    %103 = vector.shape_cast %102 : vector<1x16x16x4xf32> to vector<256x4xf32>
    %104 = vector.extract_strided_slice %99 {offsets = [0, 0, 2, 0], sizes = [1, 16, 16, 4], strides = [1, 1, 1, 1]} : vector<1x18x18x4xf32> to vector<1x16x16x4xf32>
    %105 = vector.shape_cast %104 : vector<1x16x16x4xf32> to vector<256x4xf32>
    %106 = vector.extract_strided_slice %99 {offsets = [0, 1, 0, 0], sizes = [1, 16, 16, 4], strides = [1, 1, 1, 1]} : vector<1x18x18x4xf32> to vector<1x16x16x4xf32>
    %107 = vector.shape_cast %106 : vector<1x16x16x4xf32> to vector<256x4xf32>
    %108 = vector.extract_strided_slice %99 {offsets = [0, 1, 1, 0], sizes = [1, 16, 16, 4], strides = [1, 1, 1, 1]} : vector<1x18x18x4xf32> to vector<1x16x16x4xf32>
    %109 = vector.shape_cast %108 : vector<1x16x16x4xf32> to vector<256x4xf32>
    %110 = vector.extract_strided_slice %99 {offsets = [0, 1, 2, 0], sizes = [1, 16, 16, 4], strides = [1, 1, 1, 1]} : vector<1x18x18x4xf32> to vector<1x16x16x4xf32>
    %111 = vector.shape_cast %110 : vector<1x16x16x4xf32> to vector<256x4xf32>
    %112 = vector.extract_strided_slice %99 {offsets = [0, 2, 0, 0], sizes = [1, 16, 16, 4], strides = [1, 1, 1, 1]} : vector<1x18x18x4xf32> to vector<1x16x16x4xf32>
    %113 = vector.shape_cast %112 : vector<1x16x16x4xf32> to vector<256x4xf32>
    %114 = vector.extract_strided_slice %99 {offsets = [0, 2, 1, 0], sizes = [1, 16, 16, 4], strides = [1, 1, 1, 1]} : vector<1x18x18x4xf32> to vector<1x16x16x4xf32>
    %115 = vector.shape_cast %114 : vector<1x16x16x4xf32> to vector<256x4xf32>
    %116 = vector.extract_strided_slice %99 {offsets = [0, 2, 2, 0], sizes = [1, 16, 16, 4], strides = [1, 1, 1, 1]} : vector<1x18x18x4xf32> to vector<1x16x16x4xf32>
    %117 = vector.shape_cast %116 : vector<1x16x16x4xf32> to vector<256x4xf32>
    %118 = tpu.concatenate %101, %103, %105, %107, %109, %111, %113, %115, %117 in 1 : vector<256x4xf32>, vector<256x4xf32>, vector<256x4xf32>, vector<256x4xf32>, vector<256x4xf32>, vector<256x4xf32>, vector<256x4xf32>, vector<256x4xf32>, vector<256x4xf32> -> vector<256x36xf32>
    %c1_72 = arith.constant 1 : index
    %c1_73 = arith.constant 1 : index
    %c0_74 = arith.constant 0 : index
    %c0_75 = arith.constant 0 : index
    %119 = vector.load %arg2[%c1_72, %c1_73, %c0_74, %c0_75] : memref<2x2x36x4xf32, #tpu.memory_space<vmem>>, vector<1x1x36x4xf32>
    %120 = vector.shape_cast %119 : vector<1x1x36x4xf32> to vector<36x4xf32>
    %cst_76 = arith.constant dense<0.000000e+00> : vector<256x4xf32>
    %121 = tpu.matmul %118, %120, %cst_76 {dimension_numbers = #tpu.dot_dimension_numbers<[1], [0], [0], [1], [0, 0, 1, 1], [], []>} : vector<256x36xf32>, vector<36x4xf32>, vector<256x4xf32> -> vector<256x4xf32>
    %c1_77 = arith.constant 1 : index
    %c1_78 = arith.constant 1 : index
    %c0_79 = arith.constant 0 : index
    %c0_80 = arith.constant 0 : index
    %122 = vector.load %arg3[%c1_77, %c1_78, %c0_79, %c0_80] : memref<2x2x1x4xf32, #tpu.memory_space<vmem>>, vector<1x1x1x4xf32>
    %123 = vector.shape_cast %122 : vector<1x1x1x4xf32> to vector<1x4xf32>
    %124 = vector.broadcast %123 : vector<1x4xf32> to vector<256x4xf32>
    %125 = arith.addf %121, %124 : vector<256x4xf32>
    %126 = vector.extract_strided_slice %68 {offsets = [0, 1, 1, 0], sizes = [1, 16, 16, 4], strides = [1, 1, 1, 1]} : vector<1x18x18x4xf32> to vector<1x16x16x4xf32>
    %127 = vector.shape_cast %125 : vector<256x4xf32> to vector<1x16x16x4xf32>
    %128 = arith.addf %126, %127 : vector<1x16x16x4xf32>
    %c0_81 = arith.constant 0 : index
    %c1_82 = arith.constant 1 : index
    %c1_83 = arith.constant 1 : index
    %c0_84 = arith.constant 0 : index
    %129 = vector.load %arg5[%c0_81, %c1_82, %c1_83, %c0_84] : memref<1x18x18x4xf32, #tpu.memory_space<vmem>>, vector<1x16x16x4xf32>
    tpu.vector_store %arg5[%c0_81, %c1_82, %c1_83, %c0_84], %128 {strides = array<i32>} : memref<1x18x18x4xf32, #tpu.memory_space<vmem>>, vector<1x16x16x4xf32>,
    %c0_85 = arith.constant 0 : index
    %c1_86 = arith.constant 1 : index
    %c1_87 = arith.constant 1 : index
    %c0_88 = arith.constant 0 : index
    %130 = vector.load %arg5[%c0_85, %c1_86, %c1_87, %c0_88] : memref<1x18x18x4xf32, #tpu.memory_space<vmem>>, vector<1x16x16x4xf32>
    %c0_89 = arith.constant 0 : index
    %c0_90 = arith.constant 0 : index
    %c0_91 = arith.constant 0 : index
    %c0_92 = arith.constant 0 : index
    %131 = vector.load %arg4[%c0_89, %c0_90, %c0_91, %c0_92] : memref<1x16x16x4xf32, #tpu.memory_space<vmem>>, vector<1x16x16x4xf32>
    tpu.vector_store %arg4[%c0_89, %c0_90, %c0_91, %c0_92], %130 {strides = array<i32>} : memref<1x16x16x4xf32, #tpu.memory_space<vmem>>, vector<1x16x16x4xf32>,
    return
  }
  func.func @transform_0(%arg0: i32) -> (i32, i32, i32, i32) {
    %c0_i32 = arith.constant 0 : i32
    %c0_i32_0 = arith.constant 0 : i32
    %c0_i32_1 = arith.constant 0 : i32
    %c0_i32_2 = arith.constant 0 : i32
    return %arg0, %c0_i32, %c0_i32_0, %c0_i32_1 : i32, i32, i32, i32
  }
  func.func @transform_1(%arg0: i32) -> (i32, i32, i32, i32) {
    %c0_i32 = arith.constant 0 : i32
    %c0_i32_0 = arith.constant 0 : i32
    %c0_i32_1 = arith.constant 0 : i32
    %c0_i32_2 = arith.constant 0 : i32
    %c0_i32_3 = arith.constant 0 : i32
    return %c0_i32, %c0_i32_0, %c0_i32_1, %c0_i32_2 : i32, i32, i32, i32
  }
  func.func @transform_2(%arg0: i32) -> (i32, i32, i32, i32) {
    %c0_i32 = arith.constant 0 : i32
    %c0_i32_0 = arith.constant 0 : i32
    %c0_i32_1 = arith.constant 0 : i32
    %c0_i32_2 = arith.constant 0 : i32
    %c0_i32_3 = arith.constant 0 : i32
    return %c0_i32, %c0_i32_0, %c0_i32_1, %c0_i32_2 : i32, i32, i32, i32
  }
  func.func @transform_3(%arg0: i32) -> (i32, i32, i32, i32) {
    %c0_i32 = arith.constant 0 : i32
    %c0_i32_0 = arith.constant 0 : i32
    %c0_i32_1 = arith.constant 0 : i32
    %c0_i32_2 = arith.constant 0 : i32
    return %arg0, %c0_i32, %c0_i32_0, %c0_i32_1 : i32, i32, i32, i32
  }
}

</mosaic_0001>

<llo_original>
// kernel: tpu_custom_call.1
$region0: #{tpu_custom_call.1}
  #allocation0 [shape = 'u32[]', space=smem, size = 0x4, offset = 0x4, fixed_abs, tag = 'smem constant byte address 0x4 - core index']
  #allocation1 [shape = 'u32[144,128]{1,0:T(1,128)}', space=vmem, size = 0x12000, scoped, tag = 'internal scratch']
  #allocation2 [shape = 'f32[1,18,18,4]{3,2,1,0:T(8,128)}', space=vmem, size = 0x36000, scoped, tag = 'scratch operand']
  #allocation3 [shape = 'f32[1,18,18,4]{3,2,1,0:T(8,128)}', space=vmem, size = 0x36000, scoped, tag = 'scratch operand']
  %s0 = inlined_call_operand.vmem [shape: f32[2,16,16,4], index: 0, kind: input, shape index: {}]
  %s1 = inlined_call_operand.vmem [shape: f32[2,2,36,4], index: 1, kind: input, shape index: {}]
  %s2 = inlined_call_operand.vmem [shape: f32[2,2,1,4], index: 2, kind: input, shape index: {}]
  %s3 = inlined_call_operand.vmem [shape: f32[2,16,16,4], index: 3, kind: output, shape index: {}]
  %s4 = sld [smem:[#allocation0]]
  $region45: #{tpu_custom_call.1} parent=0
    _
  %s6 = ssub.s32 1, %s4
  %s7 = scalar_select 0, %s6, %s4
  loop: start=0, step=1, limit=4
  $region2: #{tpu_custom_call.1} parent=0 // loop_pre_header
    _
  $region3: #{tpu_custom_call.1} parent=0 // loop_header
    %s9 = sphi 0, %s13
    %p10 = scmp.ge.s32.totalorder %s9, 4
    %s19 = sphi 0, %s21
    %s22 = sphi 0, %s19
    %s23 = sphi 0, %s22
    %s39 = sphi 0, %s23
    %s43 = sphi 0, %s43
    %s45 = sphi 0, %s43
    %s46 = sphi 0, %s45
    %s60 = sphi 0, %s46
    %s64 = sphi 0, %s64
    %s66 = sphi 0, %s64
    %s67 = sphi 0, %s66
    %s81 = sphi 0, %s67
    %s87 = sphi 0, %s89
    %s90 = sphi 0, %s87
    %s91 = sphi 0, %s90
    %s107 = sphi 0, %s91
  $region4: #{tpu_custom_call.1} parent=0 // loop_header_branch
    %12 = sbr.rel (%p10) target = $region8
  $region5: #{tpu_custom_call.1} parent=0 // loop_body
    %s14 = ssub.s32 %s9, 1
    %s15 = ssub.s32 %s9, 2
    %s16 = sadd.s32 %s9, 1
    %s17 = ssub.s32 %s9, %s16
    %p18 = scmp.eq.s32.totalorder %s17, 0
    %s20 = sadd.s32 %s19, 1
    %s21 = scalar_select %p18, %s19, %s20
    %p24 = pneg %p18
    %p25 = scmp.eq.s32.totalorder %s9, 1
    %p26 = por %p24, %p25
    %p27 = scmp.ne.s32.totalorder %s19, %s22
    %p28 = scmp.eq.s32.totalorder %s9, 0
    %p29 = por %p27, %p28
    %p30 = scmp.ne.s32.totalorder %s19, %s22
    %p31 = scmp.eq.s32.totalorder %s14, 1
    %p32 = por %p30, %p31
    %p33 = scmp.ne.s32.totalorder %s22, %s23
    %p34 = scmp.eq.s32.totalorder %s14, 0
    %p35 = por %p33, %p34
    %p36 = scmp.ne.s32.totalorder %s22, %s23
    %p37 = scmp.eq.s32.totalorder %s15, 1
    %p38 = por %p36, %p37
    %p40 = scmp.ne.s32.totalorder %s23, %s39
    %p41 = scmp.eq.s32.totalorder %s15, 0
    %p42 = por %p40, %p41
    %s44 = sadd.s32 %s43, 1
    %p47 = scmp.eq.s32.totalorder %s9, 1
    %p48 = scmp.ne.s32.totalorder %s43, %s45
    %p49 = scmp.eq.s32.totalorder %s9, 0
    %p50 = por %p48, %p49
    %p51 = scmp.ne.s32.totalorder %s43, %s45
    %p52 = scmp.eq.s32.totalorder %s14, 1
    %p53 = por %p51, %p52
    %p54 = scmp.ne.s32.totalorder %s45, %s46
    %p55 = scmp.eq.s32.totalorder %s14, 0
    %p56 = por %p54, %p55
    %p57 = scmp.ne.s32.totalorder %s45, %s46
    %p58 = scmp.eq.s32.totalorder %s15, 1
    %p59 = por %p57, %p58
    %p61 = scmp.ne.s32.totalorder %s46, %s60
    %p62 = scmp.eq.s32.totalorder %s15, 0
    %p63 = por %p61, %p62
    %s65 = sadd.s32 %s64, 1
    %p68 = scmp.eq.s32.totalorder %s9, 1
    %p69 = scmp.ne.s32.totalorder %s64, %s66
    %p70 = scmp.eq.s32.totalorder %s9, 0
    %p71 = por %p69, %p70
    %p72 = scmp.ne.s32.totalorder %s64, %s66
    %p73 = scmp.eq.s32.totalorder %s14, 1
    %p74 = por %p72, %p73
    %p75 = scmp.ne.s32.totalorder %s66, %s67
    %p76 = scmp.eq.s32.totalorder %s14, 0
    %p77 = por %p75, %p76
    %p78 = scmp.ne.s32.totalorder %s66, %s67
    %p79 = scmp.eq.s32.totalorder %s15, 1
    %p80 = por %p78, %p79
    %p82 = scmp.ne.s32.totalorder %s67, %s81
    %p83 = scmp.eq.s32.totalorder %s15, 0
    %p84 = por %p82, %p83
    %s85 = ssub.s32 %s9, %s16
    %p86 = scmp.eq.s32.totalorder %s85, 0
    %s88 = sadd.s32 %s87, 1
    %s89 = scalar_select %p86, %s87, %s88
    %p92 = pneg %p86
    %p93 = scmp.eq.s32.totalorder %s9, 1
    %p94 = por %p92, %p93
    %p95 = scmp.ne.s32.totalorder %s87, %s90
    %p96 = scmp.eq.s32.totalorder %s9, 0
    %p97 = por %p95, %p96
    %p98 = scmp.ne.s32.totalorder %s87, %s90
    %p99 = scmp.eq.s32.totalorder %s14, 1
    %p100 = por %p98, %p99
    %p101 = scmp.ne.s32.totalorder %s90, %s91
    %p102 = scmp.eq.s32.totalorder %s14, 0
    %p103 = por %p101, %p102
    %p104 = scmp.ne.s32.totalorder %s90, %s91
    %p105 = scmp.eq.s32.totalorder %s15, 1
    %p106 = por %p104, %p105
    %p108 = scmp.ne.s32.totalorder %s91, %s107
    %p109 = scmp.eq.s32.totalorder %s15, 0
    %p110 = por %p108, %p109
    %p111 = scmp.le.s32.totalorder 1, %s9
    %p112 = scmp.lt.s32.totalorder %s9, 3
    %p113 = pnand %p111, %p112
    %p114 = pneg %p113
    // Predicated region
    $region9: #{tpu_custom_call.1} parent=5 // pred_check
      _
    $region10: #{tpu_custom_call.1} parent=5 // pred_check_branch
      %116 = sbr.rel (%p113) target = $region12
    $region11: #{tpu_custom_call.1} parent=5 // pred_region
      %s117 = ssub.s32 %s9, 1
      // Predicated region
      $region13: #{tpu_custom_call.1} parent=11 // pred_check
        %p118 = pneg %p56
      $region14: #{tpu_custom_call.1} parent=11 // pred_check_branch
        %120 = sbr.rel (%p118) target = $region16
      $region15: #{tpu_custom_call.1} parent=11 // pred_region
        _
      $region16: #{tpu_custom_call.1} parent=11 // pred_fallthru
        _
      // Predicated region
      $region17: #{tpu_custom_call.1} parent=11 // pred_check
        %p121 = pneg %p77
      $region18: #{tpu_custom_call.1} parent=11 // pred_check_branch
        %123 = sbr.rel (%p121) target = $region20
      $region19: #{tpu_custom_call.1} parent=11 // pred_region
        _
      $region20: #{tpu_custom_call.1} parent=11 // pred_fallthru
        _
    $region12: #{tpu_custom_call.1} parent=5 // pred_fallthru
      _
    %p124 = scmp.lt.s32.totalorder %s9, 2
    // Predicated region
    $region21: #{tpu_custom_call.1} parent=5 // pred_check
      %p125 = pneg %p124
    $region22: #{tpu_custom_call.1} parent=5 // pred_check_branch
      %127 = sbr.rel (%p125) target = $region24
    $region23: #{tpu_custom_call.1} parent=5 // pred_region
      // Predicated region
      $region25: #{tpu_custom_call.1} parent=23 // pred_check
        %p128 = pneg %p29
      $region26: #{tpu_custom_call.1} parent=23 // pred_check_branch
        %130 = sbr.rel (%p128) target = $region28
      $region27: #{tpu_custom_call.1} parent=23 // pred_region
        %p131 = scmp.lt.s32.totalorder %s9, 1
        %s132 = scalar_select %p131, %s9, 1
        %s133 = smul.addr %s132, 32
        %s134 = smul.addr %s133, 8
        %s135 = scalar_lea.vmem %s0, %s134
      $region28: #{tpu_custom_call.1} parent=23 // pred_fallthru
        _
    $region24: #{tpu_custom_call.1} parent=5 // pred_fallthru
      _
    %p136 = scmp.le.s32.totalorder 1, %s9
    %p137 = scmp.lt.s32.totalorder %s9, 3
    %p138 = pnand %p136, %p137
    %p139 = pneg %p138
    // Predicated region
    $region29: #{tpu_custom_call.1} parent=5 // pred_check
      _
    $region30: #{tpu_custom_call.1} parent=5 // pred_check_branch
      %141 = sbr.rel (%p138) target = $region32
    $region31: #{tpu_custom_call.1} parent=5 // pred_region
      %s142 = ssub.s32 %s9, 1
      %p143 = scmp.lt.s32.totalorder %s14, 1
      %s144 = scalar_select %p143, %s14, 1
      %s145 = smul.addr %s144, 32
      %s146 = smul.addr %s145, 8
      %s147 = scalar_lea.vmem %s0, %s146
      %p148 = pneg %p35
      %p149 = pneg %p32
      %p150 = pneg %p56
      %p151 = pneg %p53
      %p152 = pneg %p77
      %p153 = pneg %p74
      %p154 = pneg %p103
      %p155 = pneg %p100
      %p156 = scmp.lt.s32.totalorder %s14, 1
      %s157 = scalar_select %p156, %s14, 1
      %s158 = smul.addr %s157, 32
      %s159 = smul.addr %s158, 8
      %s160 = scalar_lea.vmem %s3, %s159
      %p161 = scmp.lt.s32.totalorder %s14, 1
      %s162 = scalar_select %p161, %s14, 1
      %s163 = smul.addr %s162, 32
      %s164 = smul.addr %s163, 8
      %s165 = scalar_lea.vmem %s0, %s164
      %p166 = scmp.lt.s32.totalorder %s14, 1
      %s167 = scalar_select %p166, %s14, 1
      %s168 = smul.addr %s167, 32
      %s169 = smul.addr %s168, 8
      %s170 = scalar_lea.vmem %s3, %s169
      %vm171 = vcmask 31744
      %172 = vst.msk [vmem:[#allocation2] sm:$0xff] %vm171, 0.0
      %173 = vst.msk [vmem:[#allocation2 + $0x8] sm:$0xff] %vm171, 0.0
      %vm174 = vcmask 25600
      %175 = vst.msk [vmem:[#allocation2 + $0x10] sm:$0x3] %vm174, 0.0
      %176 = vst.msk [vmem:[#allocation2 + $0x18] sm:$0xff] %vm171, 0.0
      %177 = vst.msk [vmem:[#allocation2 + $0x20] sm:$0xff] %vm171, 0.0
      %178 = vst.msk [vmem:[#allocation2 + $0x28] sm:$0x3] %vm174, 0.0
      %179 = vst.msk [vmem:[#allocation2 + $0x30] sm:$0xff] %vm171, 0.0
      %180 = vst.msk [vmem:[#allocation2 + $0x38] sm:$0xff] %vm171, 0.0
      %181 = vst.msk [vmem:[#allocation2 + $0x40] sm:$0x3] %vm174, 0.0
      %182 = vst.msk [vmem:[#allocation2 + $0x48] sm:$0xff] %vm171, 0.0
      %183 = vst.msk [vmem:[#allocation2 + $0x50] sm:$0xff] %vm171, 0.0
      %184 = vst.msk [vmem:[#allocation2 + $0x58] sm:$0x3] %vm174, 0.0
      %185 = vst.msk [vmem:[#allocation2 + $0x60] sm:$0xff] %vm171, 0.0
      %186 = vst.msk [vmem:[#allocation2 + $0x68] sm:$0xff] %vm171, 0.0
      %187 = vst.msk [vmem:[#allocation2 + $0x70] sm:$0x3] %vm174, 0.0
      %188 = vst.msk [vmem:[#allocation2 + $0x78] sm:$0xff] %vm171, 0.0
      %189 = vst.msk [vmem:[#allocation2 + $0x80] sm:$0xff] %vm171, 0.0
      %190 = vst.msk [vmem:[#allocation2 + $0x88] sm:$0x3] %vm174, 0.0
      %191 = vst.msk [vmem:[#allocation2 + $0x90] sm:$0xff] %vm171, 0.0
      %192 = vst.msk [vmem:[#allocation2 + $0x98] sm:$0xff] %vm171, 0.0
      %193 = vst.msk [vmem:[#allocation2 + $0xa0] sm:$0x3] %vm174, 0.0
      %194 = vst.msk [vmem:[#allocation2 + $0xa8] sm:$0xff] %vm171, 0.0
      %195 = vst.msk [vmem:[#allocation2 + $0xb0] sm:$0xff] %vm171, 0.0
      %196 = vst.msk [vmem:[#allocation2 + $0xb8] sm:$0x3] %vm174, 0.0
      %197 = vst.msk [vmem:[#allocation2 + $0xc0] sm:$0xff] %vm171, 0.0
      %198 = vst.msk [vmem:[#allocation2 + $0xc8] sm:$0xff] %vm171, 0.0
      %199 = vst.msk [vmem:[#allocation2 + $0xd0] sm:$0x3] %vm174, 0.0
      %200 = vst.msk [vmem:[#allocation2 + $0xd8] sm:$0xff] %vm171, 0.0
      %201 = vst.msk [vmem:[#allocation2 + $0xe0] sm:$0xff] %vm171, 0.0
      %202 = vst.msk [vmem:[#allocation2 + $0xe8] sm:$0x3] %vm174, 0.0
      %203 = vst.msk [vmem:[#allocation2 + $0xf0] sm:$0xff] %vm171, 0.0
      %204 = vst.msk [vmem:[#allocation2 + $0xf8] sm:$0xff] %vm171, 0.0
      %205 = vst.msk [vmem:[#allocation2 + $0x100] sm:$0x3] %vm174, 0.0
      %206 = vst.msk [vmem:[#allocation2 + $0x108] sm:$0xff] %vm171, 0.0
      %207 = vst.msk [vmem:[#allocation2 + $0x110] sm:$0xff] %vm171, 0.0
      %208 = vst.msk [vmem:[#allocation2 + $0x118] sm:$0x3] %vm174, 0.0
      %209 = vst.msk [vmem:[#allocation2 + $0x120] sm:$0xff] %vm171, 0.0
      %210 = vst.msk [vmem:[#allocation2 + $0x128] sm:$0xff] %vm171, 0.0
      %211 = vst.msk [vmem:[#allocation2 + $0x130] sm:$0x3] %vm174, 0.0
      %212 = vst.msk [vmem:[#allocation2 + $0x138] sm:$0xff] %vm171, 0.0
      %213 = vst.msk [vmem:[#allocation2 + $0x140] sm:$0xff] %vm171, 0.0
      %214 = vst.msk [vmem:[#allocation2 + $0x148] sm:$0x3] %vm174, 0.0
      %215 = vst.msk [vmem:[#allocation2 + $0x150] sm:$0xff] %vm171, 0.0
      %216 = vst.msk [vmem:[#allocation2 + $0x158] sm:$0xff] %vm171, 0.0
      %217 = vst.msk [vmem:[#allocation2 + $0x160] sm:$0x3] %vm174, 0.0
      %218 = vst.msk [vmem:[#allocation2 + $0x168] sm:$0xff] %vm171, 0.0
      %219 = vst.msk [vmem:[#allocation2 + $0x170] sm:$0xff] %vm171, 0.0
      %220 = vst.msk [vmem:[#allocation2 + $0x178] sm:$0x3] %vm174, 0.0
      %221 = vst.msk [vmem:[#allocation2 + $0x180] sm:$0xff] %vm171, 0.0
      %222 = vst.msk [vmem:[#allocation2 + $0x188] sm:$0xff] %vm171, 0.0
      %223 = vst.msk [vmem:[#allocation2 + $0x190] sm:$0x3] %vm174, 0.0
      %224 = vst.msk [vmem:[#allocation2 + $0x198] sm:$0xff] %vm171, 0.0
      %225 = vst.msk [vmem:[#allocation2 + $0x1a0] sm:$0xff] %vm171, 0.0
      %226 = vst.msk [vmem:[#allocation2 + $0x1a8] sm:$0x3] %vm174, 0.0
      %227 = vst.msk [vmem:[#allocation3] sm:$0xff] %vm171, 0.0
      %228 = vst.msk [vmem:[#allocation3 + $0x8] sm:$0xff] %vm171, 0.0
      %229 = vst.msk [vmem:[#allocation3 + $0x10] sm:$0x3] %vm174, 0.0
      %230 = vst.msk [vmem:[#allocation3 + $0x18] sm:$0xff] %vm171, 0.0
      %231 = vst.msk [vmem:[#allocation3 + $0x20] sm:$0xff] %vm171, 0.0
      %232 = vst.msk [vmem:[#allocation3 + $0x28] sm:$0x3] %vm174, 0.0
      %233 = vst.msk [vmem:[#allocation3 + $0x30] sm:$0xff] %vm171, 0.0
      %234 = vst.msk [vmem:[#allocation3 + $0x38] sm:$0xff] %vm171, 0.0
      %235 = vst.msk [vmem:[#allocation3 + $0x40] sm:$0x3] %vm174, 0.0
      %236 = vst.msk [vmem:[#allocation3 + $0x48] sm:$0xff] %vm171, 0.0
      %237 = vst.msk [vmem:[#allocation3 + $0x50] sm:$0xff] %vm171, 0.0
      %238 = vst.msk [vmem:[#allocation3 + $0x58] sm:$0x3] %vm174, 0.0
      %239 = vst.msk [vmem:[#allocation3 + $0x60] sm:$0xff] %vm171, 0.0
      %240 = vst.msk [vmem:[#allocation3 + $0x68] sm:$0xff] %vm171, 0.0
      %241 = vst.msk [vmem:[#allocation3 + $0x70] sm:$0x3] %vm174, 0.0
      %242 = vst.msk [vmem:[#allocation3 + $0x78] sm:$0xff] %vm171, 0.0
      %243 = vst.msk [vmem:[#allocation3 + $0x80] sm:$0xff] %vm171, 0.0
      %244 = vst.msk [vmem:[#allocation3 + $0x88] sm:$0x3] %vm174, 0.0
      %245 = vst.msk [vmem:[#allocation3 + $0x90] sm:$0xff] %vm171, 0.0
      %246 = vst.msk [vmem:[#allocation3 + $0x98] sm:$0xff] %vm171, 0.0
      %247 = vst.msk [vmem:[#allocation3 + $0xa0] sm:$0x3] %vm174, 0.0
      %248 = vst.msk [vmem:[#allocation3 + $0xa8] sm:$0xff] %vm171, 0.0
      %249 = vst.msk [vmem:[#allocation3 + $0xb0] sm:$0xff] %vm171, 0.0
      %250 = vst.msk [vmem:[#allocation3 + $0xb8] sm:$0x3] %vm174, 0.0
      %251 = vst.msk [vmem:[#allocation3 + $0xc0] sm:$0xff] %vm171, 0.0
      %252 = vst.msk [vmem:[#allocation3 + $0xc8] sm:$0xff] %vm171, 0.0
      %253 = vst.msk [vmem:[#allocation3 + $0xd0] sm:$0x3] %vm174, 0.0
      %254 = vst.msk [vmem:[#allocation3 + $0xd8] sm:$0xff] %vm171, 0.0
      %255 = vst.msk [vmem:[#allocation3 + $0xe0] sm:$0xff] %vm171, 0.0
      %256 = vst.msk [vmem:[#allocation3 + $0xe8] sm:$0x3] %vm174, 0.0
      %257 = vst.msk [vmem:[#allocation3 + $0xf0] sm:$0xff] %vm171, 0.0
      %258 = vst.msk [vmem:[#allocation3 + $0xf8] sm:$0xff] %vm171, 0.0
      %259 = vst.msk [vmem:[#allocation3 + $0x100] sm:$0x3] %vm174, 0.0
      %260 = vst.msk [vmem:[#allocation3 + $0x108] sm:$0xff] %vm171, 0.0
      %261 = vst.msk [vmem:[#allocation3 + $0x110] sm:$0xff] %vm171, 0.0
      %262 = vst.msk [vmem:[#allocation3 + $0x118] sm:$0x3] %vm174, 0.0
      %263 = vst.msk [vmem:[#allocation3 + $0x120] sm:$0xff] %vm171, 0.0
      %264 = vst.msk [vmem:[#allocation3 + $0x128] sm:$0xff] %vm171, 0.0
      %265 = vst.msk [vmem:[#allocation3 + $0x130] sm:$0x3] %vm174, 0.0
      %266 = vst.msk [vmem:[#allocation3 + $0x138] sm:$0xff] %vm171, 0.0
      %267 = vst.msk [vmem:[#allocation3 + $0x140] sm:$0xff] %vm171, 0.0
      %268 = vst.msk [vmem:[#allocation3 + $0x148] sm:$0x3] %vm174, 0.0
      %269 = vst.msk [vmem:[#allocation3 + $0x150] sm:$0xff] %vm171, 0.0
      %270 = vst.msk [vmem:[#allocation3 + $0x158] sm:$0xff] %vm171, 0.0
      %271 = vst.msk [vmem:[#allocation3 + $0x160] sm:$0x3] %vm174, 0.0
      %272 = vst.msk [vmem:[#allocation3 + $0x168] sm:$0xff] %vm171, 0.0
      %273 = vst.msk [vmem:[#allocation3 + $0x170] sm:$0xff] %vm171, 0.0
      %274 = vst.msk [vmem:[#allocation3 + $0x178] sm:$0x3] %vm174, 0.0
      %275 = vst.msk [vmem:[#allocation3 + $0x180] sm:$0xff] %vm171, 0.0
      %276 = vst.msk [vmem:[#allocation3 + $0x188] sm:$0xff] %vm171, 0.0
      %277 = vst.msk [vmem:[#allocation3 + $0x190] sm:$0x3] %vm174, 0.0
      %278 = vst.msk [vmem:[#allocation3 + $0x198] sm:$0xff] %vm171, 0.0
      %279 = vst.msk [vmem:[#allocation3 + $0x1a0] sm:$0xff] %vm171, 0.0
      %280 = vst.msk [vmem:[#allocation3 + $0x1a8] sm:$0x3] %vm174, 0.0
      %v281 = vld [vmem:[%s165] sm:$0xff]
      %v282 = vld [vmem:[%s165 + $0x8] sm:$0xff]
      %v283 = vld [vmem:[%s165 + $0x10] sm:$0xff]
      %v284 = vld [vmem:[%s165 + $0x18] sm:$0xff]
      %v285 = vld [vmem:[%s165 + $0x20] sm:$0xff]
      %v286 = vld [vmem:[%s165 + $0x28] sm:$0xff]
      %v287 = vld [vmem:[%s165 + $0x30] sm:$0xff]
      %v288 = vld [vmem:[%s165 + $0x38] sm:$0xff]
      %v289 = vld [vmem:[%s165 + $0x40] sm:$0xff]
      %v290 = vld [vmem:[%s165 + $0x48] sm:$0xff]
      %v291 = vld [vmem:[%s165 + $0x50] sm:$0xff]
      %v292 = vld [vmem:[%s165 + $0x58] sm:$0xff]
      %v293 = vld [vmem:[%s165 + $0x60] sm:$0xff]
      %v294 = vld [vmem:[%s165 + $0x68] sm:$0xff]
      %v295 = vld [vmem:[%s165 + $0x70] sm:$0xff]
      %v296 = vld [vmem:[%s165 + $0x78] sm:$0xff]
      %v297 = vld [vmem:[%s165 + $0x80] sm:$0xff]
      %v298 = vld [vmem:[%s165 + $0x88] sm:$0xff]
      %v299 = vld [vmem:[%s165 + $0x90] sm:$0xff]
      %v300 = vld [vmem:[%s165 + $0x98] sm:$0xff]
      %v301 = vld [vmem:[%s165 + $0xa0] sm:$0xff]
      %v302 = vld [vmem:[%s165 + $0xa8] sm:$0xff]
      %v303 = vld [vmem:[%s165 + $0xb0] sm:$0xff]
      %v304 = vld [vmem:[%s165 + $0xb8] sm:$0xff]
      %v305 = vld [vmem:[%s165 + $0xc0] sm:$0xff]
      %v306 = vld [vmem:[%s165 + $0xc8] sm:$0xff]
      %v307 = vld [vmem:[%s165 + $0xd0] sm:$0xff]
      %v308 = vld [vmem:[%s165 + $0xd8] sm:$0xff]
      %v309 = vld [vmem:[%s165 + $0xe0] sm:$0xff]
      %v310 = vld [vmem:[%s165 + $0xe8] sm:$0xff]
      %v311 = vld [vmem:[%s165 + $0xf0] sm:$0xff]
      %v312 = vld [vmem:[%s165 + $0xf8] sm:$0xff]
      %s313 = scalar_lea.vmem [#allocation2], 24
      %314 = vst.msk [vmem:[%s313 + $0x1] sm:$0xff] %vm171, %v281
      %315 = vst.msk [vmem:[%s313 + $0x9] sm:$0xff] %vm171, %v282
      %316 = vst.msk [vmem:[%s313 + $0x19] sm:$0xff] %vm171, %v283
      %317 = vst.msk [vmem:[%s313 + $0x21] sm:$0xff] %vm171, %v284
      %318 = vst.msk [vmem:[%s313 + $0x31] sm:$0xff] %vm171, %v285
      %319 = vst.msk [vmem:[%s313 + $0x39] sm:$0xff] %vm171, %v286
      %320 = vst.msk [vmem:[%s313 + $0x49] sm:$0xff] %vm171, %v287
      %321 = vst.msk [vmem:[%s313 + $0x51] sm:$0xff] %vm171, %v288
      %322 = vst.msk [vmem:[%s313 + $0x61] sm:$0xff] %vm171, %v289
      %323 = vst.msk [vmem:[%s313 + $0x69] sm:$0xff] %vm171, %v290
      %324 = vst.msk [vmem:[%s313 + $0x79] sm:$0xff] %vm171, %v291
      %325 = vst.msk [vmem:[%s313 + $0x81] sm:$0xff] %vm171, %v292
      %326 = vst.msk [vmem:[%s313 + $0x91] sm:$0xff] %vm171, %v293
      %327 = vst.msk [vmem:[%s313 + $0x99] sm:$0xff] %vm171, %v294
      %328 = vst.msk [vmem:[%s313 + $0xa9] sm:$0xff] %vm171, %v295
      %329 = vst.msk [vmem:[%s313 + $0xb1] sm:$0xff] %vm171, %v296
      %330 = vst.msk [vmem:[%s313 + $0xc1] sm:$0xff] %vm171, %v297
      %331 = vst.msk [vmem:[%s313 + $0xc9] sm:$0xff] %vm171, %v298
      %332 = vst.msk [vmem:[%s313 + $0xd9] sm:$0xff] %vm171, %v299
      %333 = vst.msk [vmem:[%s313 + $0xe1] sm:$0xff] %vm171, %v300
      %334 = vst.msk [vmem:[%s313 + $0xf1] sm:$0xff] %vm171, %v301
      %335 = vst.msk [vmem:[%s313 + $0xf9] sm:$0xff] %vm171, %v302
      %336 = vst.msk [vmem:[%s313 + $0x109] sm:$0xff] %vm171, %v303
      %337 = vst.msk [vmem:[%s313 + $0x111] sm:$0xff] %vm171, %v304
      %338 = vst.msk [vmem:[%s313 + $0x121] sm:$0xff] %vm171, %v305
      %339 = vst.msk [vmem:[%s313 + $0x129] sm:$0xff] %vm171, %v306
      %340 = vst.msk [vmem:[%s313 + $0x139] sm:$0xff] %vm171, %v307
      %341 = vst.msk [vmem:[%s313 + $0x141] sm:$0xff] %vm171, %v308
      %342 = vst.msk [vmem:[%s313 + $0x151] sm:$0xff] %vm171, %v309
      %343 = vst.msk [vmem:[%s313 + $0x159] sm:$0xff] %vm171, %v310
      %344 = vst.msk [vmem:[%s313 + $0x169] sm:$0xff] %vm171, %v311
      %345 = vst.msk [vmem:[%s313 + $0x171] sm:$0xff] %vm171, %v312
      %v346 = vld [vmem:[#allocation2] sm:$0xff]
      %v347 = vld [vmem:[#allocation2 + $0x8] sm:$0xff]
      %v348 = vld [vmem:[#allocation2 + $0x10] sm:$0x3]
      %v349 = vld [vmem:[#allocation2 + $0x18] sm:$0xff]
      %v350 = vld [vmem:[#allocation2 + $0x20] sm:$0xff]
      %v351 = vld [vmem:[#allocation2 + $0x28] sm:$0x3]
      %v352 = vld [vmem:[#allocation2 + $0x30] sm:$0xff]
      %v353 = vld [vmem:[#allocation2 + $0x38] sm:$0xff]
      %v354 = vld [vmem:[#allocation2 + $0x40] sm:$0x3]
      %v355 = vld [vmem:[#allocation2 + $0x48] sm:$0xff]
      %v356 = vld [vmem:[#allocation2 + $0x50] sm:$0xff]
      %v357 = vld [vmem:[#allocation2 + $0x58] sm:$0x3]
      %v358 = vld [vmem:[#allocation2 + $0x60] sm:$0xff]
      %v359 = vld [vmem:[#allocation2 + $0x68] sm:$0xff]
      %v360 = vld [vmem:[#allocation2 + $0x70] sm:$0x3]
      %v361 = vld [vmem:[#allocation2 + $0x78] sm:$0xff]
      %v362 = vld [vmem:[#allocation2 + $0x80] sm:$0xff]
      %v363 = vld [vmem:[#allocation2 + $0x88] sm:$0x3]
      %v364 = vld [vmem:[#allocation2 + $0x90] sm:$0xff]
      %v365 = vld [vmem:[#allocation2 + $0x98] sm:$0xff]
      %v366 = vld [vmem:[#allocation2 + $0xa0] sm:$0x3]
      %v367 = vld [vmem:[#allocation2 + $0xa8] sm:$0xff]
      %v368 = vld [vmem:[#allocation2 + $0xb0] sm:$0xff]
      %v369 = vld [vmem:[#allocation2 + $0xb8] sm:$0x3]
      %v370 = vld [vmem:[#allocation2 + $0xc0] sm:$0xff]
      %v371 = vld [vmem:[#allocation2 + $0xc8] sm:$0xff]
      %v372 = vld [vmem:[#allocation2 + $0xd0] sm:$0x3]
      %v373 = vld [vmem:[#allocation2 + $0xd8] sm:$0xff]
      %v374 = vld [vmem:[#allocation2 + $0xe0] sm:$0xff]
      %v375 = vld [vmem:[#allocation2 + $0xe8] sm:$0x3]
      %v376 = vld [vmem:[#allocation2 + $0xf0] sm:$0xff]
      %v377 = vld [vmem:[#allocation2 + $0xf8] sm:$0xff]
      %v378 = vld [vmem:[#allocation2 + $0x100] sm:$0x3]
      %v379 = vld [vmem:[#allocation2 + $0x108] sm:$0xff]
      %v380 = vld [vmem:[#allocation2 + $0x110] sm:$0xff]
      %v381 = vld [vmem:[#allocation2 + $0x118] sm:$0x3]
      %v382 = vld [vmem:[#allocation2 + $0x120] sm:$0xff]
      %v383 = vld [vmem:[#allocation2 + $0x128] sm:$0xff]
      %v384 = vld [vmem:[#allocation2 + $0x130] sm:$0x3]
      %v385 = vld [vmem:[#allocation2 + $0x138] sm:$0xff]
      %v386 = vld [vmem:[#allocation2 + $0x140] sm:$0xff]
      %v387 = vld [vmem:[#allocation2 + $0x148] sm:$0x3]
      %v388 = vld [vmem:[#allocation2 + $0x150] sm:$0xff]
      %v389 = vld [vmem:[#allocation2 + $0x158] sm:$0xff]
      %v390 = vld [vmem:[#allocation2 + $0x160] sm:$0x3]
      %v391 = vld [vmem:[#allocation2 + $0x168] sm:$0xff]
      %v392 = vld [vmem:[#allocation2 + $0x170] sm:$0xff]
      %v393 = vld [vmem:[#allocation2 + $0x178] sm:$0x3]
      %v394 = vld [vmem:[#allocation2 + $0x180] sm:$0xff]
      %v395 = vld [vmem:[#allocation2 + $0x188] sm:$0xff]
      %v396 = vld [vmem:[#allocation2 + $0x190] sm:$0x3]
      %v397 = vld [vmem:[#allocation2 + $0x198] sm:$0xff]
      %v398 = vld [vmem:[#allocation2 + $0x1a0] sm:$0xff]
      %v399 = vld [vmem:[#allocation2 + $0x1a8] sm:$0x3]
      %vm448 = vcmask 1046528
      %v449 = vrot.slane %v346, 1
      %v450 = vrot.slane %v347, 1
      %v451 = vsel %vm448, %v449, %v450
      %v452 = vrot.slane %v348, 1
      %v453 = vsel %vm448, %v450, %v452
      %v454 = vrot.slane %v349, 1
      %v455 = vrot.slane %v350, 1
      %v456 = vsel %vm448, %v454, %v455
      %v457 = vrot.slane %v351, 1
      %v458 = vsel %vm448, %v455, %v457
      %v459 = vrot.slane %v352, 1
      %v460 = vrot.slane %v353, 1
      %v461 = vsel %vm448, %v459, %v460
      %v462 = vrot.slane %v354, 1
      %v463 = vsel %vm448, %v460, %v462
      %v464 = vrot.slane %v355, 1
      %v465 = vrot.slane %v356, 1
      %v466 = vsel %vm448, %v464, %v465
      %v467 = vrot.slane %v357, 1
      %v468 = vsel %vm448, %v465, %v467
      %v469 = vrot.slane %v358, 1
      %v470 = vrot.slane %v359, 1
      %v471 = vsel %vm448, %v469, %v470
      %v472 = vrot.slane %v360, 1
      %v473 = vsel %vm448, %v470, %v472
      %v474 = vrot.slane %v361, 1
      %v475 = vrot.slane %v362, 1
      %v476 = vsel %vm448, %v474, %v475
      %v477 = vrot.slane %v363, 1
      %v478 = vsel %vm448, %v475, %v477
      %v479 = vrot.slane %v364, 1
      %v480 = vrot.slane %v365, 1
      %v481 = vsel %vm448, %v479, %v480
      %v482 = vrot.slane %v366, 1
      %v483 = vsel %vm448, %v480, %v482
      %v484 = vrot.slane %v367, 1
      %v485 = vrot.slane %v368, 1
      %v486 = vsel %vm448, %v484, %v485
      %v487 = vrot.slane %v369, 1
      %v488 = vsel %vm448, %v485, %v487
      %v489 = vrot.slane %v370, 1
      %v490 = vrot.slane %v371, 1
      %v491 = vsel %vm448, %v489, %v490
      %v492 = vrot.slane %v372, 1
      %v493 = vsel %vm448, %v490, %v492
      %v494 = vrot.slane %v373, 1
      %v495 = vrot.slane %v374, 1
      %v496 = vsel %vm448, %v494, %v495
      %v497 = vrot.slane %v375, 1
      %v498 = vsel %vm448, %v495, %v497
      %v499 = vrot.slane %v376, 1
      %v500 = vrot.slane %v377, 1
      %v501 = vsel %vm448, %v499, %v500
      %v502 = vrot.slane %v378, 1
      %v503 = vsel %vm448, %v500, %v502
      %v504 = vrot.slane %v379, 1
      %v505 = vrot.slane %v380, 1
      %v506 = vsel %vm448, %v504, %v505
      %v507 = vrot.slane %v381, 1
      %v508 = vsel %vm448, %v505, %v507
      %v509 = vrot.slane %v382, 1
      %v510 = vrot.slane %v383, 1
      %v511 = vsel %vm448, %v509, %v510
      %v512 = vrot.slane %v384, 1
      %v513 = vsel %vm448, %v510, %v512
      %v514 = vrot.slane %v385, 1
      %v515 = vrot.slane %v386, 1
      %v516 = vsel %vm448, %v514, %v515
      %v517 = vrot.slane %v387, 1
      %v518 = vsel %vm448, %v515, %v517
      %v519 = vrot.slane %v388, 1
      %v520 = vrot.slane %v389, 1
      %v521 = vsel %vm448, %v519, %v520
      %v522 = vrot.slane %v390, 1
      %v523 = vsel %vm448, %v520, %v522
      %v524 = vrot.slane %v391, 1
      %v525 = vrot.slane %v392, 1
      %v526 = vsel %vm448, %v524, %v525
      %v527 = vrot.slane %v393, 1
      %v528 = vsel %vm448, %v525, %v527
      %vm529 = vcmask 1045504
      %v530 = vrot.slane %v346, 2
      %v531 = vrot.slane %v347, 2
      %v532 = vsel %vm529, %v530, %v531
      %v533 = vrot.slane %v348, 2
      %v534 = vsel %vm529, %v531, %v533
      %v535 = vrot.slane %v349, 2
      %v536 = vrot.slane %v350, 2
      %v537 = vsel %vm529, %v535, %v536
      %v538 = vrot.slane %v351, 2
      %v539 = vsel %vm529, %v536, %v538
      %v540 = vrot.slane %v352, 2
      %v541 = vrot.slane %v353, 2
      %v542 = vsel %vm529, %v540, %v541
      %v543 = vrot.slane %v354, 2
      %v544 = vsel %vm529, %v541, %v543
      %v545 = vrot.slane %v355, 2
      %v546 = vrot.slane %v356, 2
      %v547 = vsel %vm529, %v545, %v546
      %v548 = vrot.slane %v357, 2
      %v549 = vsel %vm529, %v546, %v548
      %v550 = vrot.slane %v358, 2
      %v551 = vrot.slane %v359, 2
      %v552 = vsel %vm529, %v550, %v551
      %v553 = vrot.slane %v360, 2
      %v554 = vsel %vm529, %v551, %v553
      %v555 = vrot.slane %v361, 2
      %v556 = vrot.slane %v362, 2
      %v557 = vsel %vm529, %v555, %v556
      %v558 = vrot.slane %v363, 2
      %v559 = vsel %vm529, %v556, %v558
      %v560 = vrot.slane %v364, 2
      %v561 = vrot.slane %v365, 2
      %v562 = vsel %vm529, %v560, %v561
      %v563 = vrot.slane %v366, 2
      %v564 = vsel %vm529, %v561, %v563
      %v565 = vrot.slane %v367, 2
      %v566 = vrot.slane %v368, 2
      %v567 = vsel %vm529, %v565, %v566
      %v568 = vrot.slane %v369, 2
      %v569 = vsel %vm529, %v566, %v568
      %v570 = vrot.slane %v370, 2
      %v571 = vrot.slane %v371, 2
      %v572 = vsel %vm529, %v570, %v571
      %v573 = vrot.slane %v372, 2
      %v574 = vsel %vm529, %v571, %v573
      %v575 = vrot.slane %v373, 2
      %v576 = vrot.slane %v374, 2
      %v577 = vsel %vm529, %v575, %v576
      %v578 = vrot.slane %v375, 2
      %v579 = vsel %vm529, %v576, %v578
      %v580 = vrot.slane %v376, 2
      %v581 = vrot.slane %v377, 2
      %v582 = vsel %vm529, %v580, %v581
      %v583 = vrot.slane %v378, 2
      %v584 = vsel %vm529, %v581, %v583
      %v585 = vrot.slane %v379, 2
      %v586 = vrot.slane %v380, 2
      %v587 = vsel %vm529, %v585, %v586
      %v588 = vrot.slane %v381, 2
      %v589 = vsel %vm529, %v586, %v588
      %v590 = vrot.slane %v382, 2
      %v591 = vrot.slane %v383, 2
      %v592 = vsel %vm529, %v590, %v591
      %v593 = vrot.slane %v384, 2
      %v594 = vsel %vm529, %v591, %v593
      %v595 = vrot.slane %v385, 2
      %v596 = vrot.slane %v386, 2
      %v597 = vsel %vm529, %v595, %v596
      %v598 = vrot.slane %v387, 2
      %v599 = vsel %vm529, %v596, %v598
      %v600 = vrot.slane %v388, 2
      %v601 = vrot.slane %v389, 2
      %v602 = vsel %vm529, %v600, %v601
      %v603 = vrot.slane %v390, 2
      %v604 = vsel %vm529, %v601, %v603
      %v605 = vrot.slane %v391, 2
      %v606 = vrot.slane %v392, 2
      %v607 = vsel %vm529, %v605, %v606
      %v608 = vrot.slane %v393, 2
      %v609 = vsel %vm529, %v606, %v608
      %v613 = vrot.slane %v394, 1
      %v614 = vrot.slane %v395, 1
      %v615 = vsel %vm448, %v613, %v614
      %v616 = vrot.slane %v396, 1
      %v617 = vsel %vm448, %v614, %v616
      %v618 = vrot.slane %v394, 2
      %v619 = vrot.slane %v395, 2
      %v620 = vsel %vm529, %v618, %v619
      %v621 = vrot.slane %v396, 2
      %v622 = vsel %vm529, %v619, %v621
      %v626 = vrot.slane %v397, 1
      %v627 = vrot.slane %v398, 1
      %v628 = vsel %vm448, %v626, %v627
      %v629 = vrot.slane %v399, 1
      %v630 = vsel %vm448, %v627, %v629
      %v631 = vrot.slane %v397, 2
      %v632 = vrot.slane %v398, 2
      %v633 = vsel %vm529, %v631, %v632
      %v634 = vrot.slane %v399, 2
      %v635 = vsel %vm529, %v632, %v634
      %636 = vrot.lane.b32.xlu0 %v451, 4
      %v637 = vpop.permute.xlu0 %636
      %638 = vrot.lane.b32.xlu0 %v453, 4
      %v639 = vpop.permute.xlu0 %638
      %640 = vrot.lane.b32.xlu0 %v456, 4
      %v641 = vpop.permute.xlu0 %640
      %642 = vrot.lane.b32.xlu0 %v458, 4
      %v643 = vpop.permute.xlu0 %642
      %644 = vrot.lane.b32.xlu0 %v461, 4
      %v645 = vpop.permute.xlu0 %644
      %646 = vrot.lane.b32.xlu0 %v463, 4
      %v647 = vpop.permute.xlu0 %646
      %648 = vrot.lane.b32.xlu0 %v466, 4
      %v649 = vpop.permute.xlu0 %648
      %650 = vrot.lane.b32.xlu0 %v468, 4
      %v651 = vpop.permute.xlu0 %650
      %652 = vrot.lane.b32.xlu0 %v471, 4
      %v653 = vpop.permute.xlu0 %652
      %654 = vrot.lane.b32.xlu0 %v473, 4
      %v655 = vpop.permute.xlu0 %654
      %656 = vrot.lane.b32.xlu0 %v476, 4
      %v657 = vpop.permute.xlu0 %656
      %658 = vrot.lane.b32.xlu0 %v478, 4
      %v659 = vpop.permute.xlu0 %658
      %660 = vrot.lane.b32.xlu0 %v481, 4
      %v661 = vpop.permute.xlu0 %660
      %662 = vrot.lane.b32.xlu0 %v483, 4
      %v663 = vpop.permute.xlu0 %662
      %664 = vrot.lane.b32.xlu0 %v486, 4
      %v665 = vpop.permute.xlu0 %664
      %666 = vrot.lane.b32.xlu0 %v488, 4
      %v667 = vpop.permute.xlu0 %666
      %668 = vrot.lane.b32.xlu0 %v491, 4
      %v669 = vpop.permute.xlu0 %668
      %670 = vrot.lane.b32.xlu0 %v493, 4
      %v671 = vpop.permute.xlu0 %670
      %672 = vrot.lane.b32.xlu0 %v496, 4
      %v673 = vpop.permute.xlu0 %672
      %674 = vrot.lane.b32.xlu0 %v498, 4
      %v675 = vpop.permute.xlu0 %674
      %676 = vrot.lane.b32.xlu0 %v501, 4
      %v677 = vpop.permute.xlu0 %676
      %678 = vrot.lane.b32.xlu0 %v503, 4
      %v679 = vpop.permute.xlu0 %678
      %680 = vrot.lane.b32.xlu0 %v506, 4
      %v681 = vpop.permute.xlu0 %680
      %682 = vrot.lane.b32.xlu0 %v508, 4
      %v683 = vpop.permute.xlu0 %682
      %684 = vrot.lane.b32.xlu0 %v511, 4
      %v685 = vpop.permute.xlu0 %684
      %686 = vrot.lane.b32.xlu0 %v513, 4
      %v687 = vpop.permute.xlu0 %686
      %688 = vrot.lane.b32.xlu0 %v516, 4
      %v689 = vpop.permute.xlu0 %688
      %690 = vrot.lane.b32.xlu0 %v518, 4
      %v691 = vpop.permute.xlu0 %690
      %692 = vrot.lane.b32.xlu0 %v521, 4
      %v693 = vpop.permute.xlu0 %692
      %694 = vrot.lane.b32.xlu0 %v523, 4
      %v695 = vpop.permute.xlu0 %694
      %696 = vrot.lane.b32.xlu0 %v526, 4
      %v697 = vpop.permute.xlu0 %696
      %698 = vrot.lane.b32.xlu0 %v528, 4
      %v699 = vpop.permute.xlu0 %698
      %732 = vrot.lane.b32.xlu0 %v532, 8
      %v733 = vpop.permute.xlu0 %732
      %734 = vrot.lane.b32.xlu0 %v534, 8
      %v735 = vpop.permute.xlu0 %734
      %736 = vrot.lane.b32.xlu0 %v537, 8
      %v737 = vpop.permute.xlu0 %736
      %738 = vrot.lane.b32.xlu0 %v539, 8
      %v739 = vpop.permute.xlu0 %738
      %740 = vrot.lane.b32.xlu0 %v542, 8
      %v741 = vpop.permute.xlu0 %740
      %742 = vrot.lane.b32.xlu0 %v544, 8
      %v743 = vpop.permute.xlu0 %742
      %744 = vrot.lane.b32.xlu0 %v547, 8
      %v745 = vpop.permute.xlu0 %744
      %746 = vrot.lane.b32.xlu0 %v549, 8
      %v747 = vpop.permute.xlu0 %746
      %748 = vrot.lane.b32.xlu0 %v552, 8
      %v749 = vpop.permute.xlu0 %748
      %750 = vrot.lane.b32.xlu0 %v554, 8
      %v751 = vpop.permute.xlu0 %750
      %752 = vrot.lane.b32.xlu0 %v557, 8
      %v753 = vpop.permute.xlu0 %752
      %754 = vrot.lane.b32.xlu0 %v559, 8
      %v755 = vpop.permute.xlu0 %754
      %756 = vrot.lane.b32.xlu0 %v562, 8
      %v757 = vpop.permute.xlu0 %756
      %758 = vrot.lane.b32.xlu0 %v564, 8
      %v759 = vpop.permute.xlu0 %758
      %760 = vrot.lane.b32.xlu0 %v567, 8
      %v761 = vpop.permute.xlu0 %760
      %762 = vrot.lane.b32.xlu0 %v569, 8
      %v763 = vpop.permute.xlu0 %762
      %764 = vrot.lane.b32.xlu0 %v572, 8
      %v765 = vpop.permute.xlu0 %764
      %766 = vrot.lane.b32.xlu0 %v574, 8
      %v767 = vpop.permute.xlu0 %766
      %768 = vrot.lane.b32.xlu0 %v577, 8
      %v769 = vpop.permute.xlu0 %768
      %770 = vrot.lane.b32.xlu0 %v579, 8
      %v771 = vpop.permute.xlu0 %770
      %772 = vrot.lane.b32.xlu0 %v582, 8
      %v773 = vpop.permute.xlu0 %772
      %774 = vrot.lane.b32.xlu0 %v584, 8
      %v775 = vpop.permute.xlu0 %774
      %776 = vrot.lane.b32.xlu0 %v587, 8
      %v777 = vpop.permute.xlu0 %776
      %778 = vrot.lane.b32.xlu0 %v589, 8
      %v779 = vpop.permute.xlu0 %778
      %780 = vrot.lane.b32.xlu0 %v592, 8
      %v781 = vpop.permute.xlu0 %780
      %782 = vrot.lane.b32.xlu0 %v594, 8
      %v783 = vpop.permute.xlu0 %782
      %784 = vrot.lane.b32.xlu0 %v597, 8
      %v785 = vpop.permute.xlu0 %784
      %786 = vrot.lane.b32.xlu0 %v599, 8
      %v787 = vpop.permute.xlu0 %786
      %788 = vrot.lane.b32.xlu0 %v602, 8
      %v789 = vpop.permute.xlu0 %788
      %790 = vrot.lane.b32.xlu0 %v604, 8
      %v791 = vpop.permute.xlu0 %790
      %792 = vrot.lane.b32.xlu0 %v607, 8
      %v793 = vpop.permute.xlu0 %792
      %794 = vrot.lane.b32.xlu0 %v609, 8
      %v795 = vpop.permute.xlu0 %794
      %828 = vrot.lane.b32.xlu0 %v349, 12
      %v829 = vpop.permute.xlu0 %828
      %830 = vrot.lane.b32.xlu0 %v350, 12
      %v831 = vpop.permute.xlu0 %830
      %832 = vrot.lane.b32.xlu0 %v352, 12
      %v833 = vpop.permute.xlu0 %832
      %834 = vrot.lane.b32.xlu0 %v353, 12
      %v835 = vpop.permute.xlu0 %834
      %836 = vrot.lane.b32.xlu0 %v355, 12
      %v837 = vpop.permute.xlu0 %836
      %838 = vrot.lane.b32.xlu0 %v356, 12
      %v839 = vpop.permute.xlu0 %838
      %840 = vrot.lane.b32.xlu0 %v358, 12
      %v841 = vpop.permute.xlu0 %840
      %842 = vrot.lane.b32.xlu0 %v359, 12
      %v843 = vpop.permute.xlu0 %842
      %844 = vrot.lane.b32.xlu0 %v361, 12
      %v845 = vpop.permute.xlu0 %844
      %846 = vrot.lane.b32.xlu0 %v362, 12
      %v847 = vpop.permute.xlu0 %846
      %848 = vrot.lane.b32.xlu0 %v364, 12
      %v849 = vpop.permute.xlu0 %848
      %850 = vrot.lane.b32.xlu0 %v365, 12
      %v851 = vpop.permute.xlu0 %850
      %852 = vrot.lane.b32.xlu0 %v367, 12
      %v853 = vpop.permute.xlu0 %852
      %854 = vrot.lane.b32.xlu0 %v368, 12
      %v855 = vpop.permute.xlu0 %854
      %856 = vrot.lane.b32.xlu0 %v370, 12
      %v857 = vpop.permute.xlu0 %856
      %858 = vrot.lane.b32.xlu0 %v371, 12
      %v859 = vpop.permute.xlu0 %858
      %860 = vrot.lane.b32.xlu0 %v373, 12
      %v861 = vpop.permute.xlu0 %860
      %862 = vrot.lane.b32.xlu0 %v374, 12
      %v863 = vpop.permute.xlu0 %862
      %864 = vrot.lane.b32.xlu0 %v376, 12
      %v865 = vpop.permute.xlu0 %864
      %866 = vrot.lane.b32.xlu0 %v377, 12
      %v867 = vpop.permute.xlu0 %866
      %868 = vrot.lane.b32.xlu0 %v379, 12
      %v869 = vpop.permute.xlu0 %868
      %870 = vrot.lane.b32.xlu0 %v380, 12
      %v871 = vpop.permute.xlu0 %870
      %872 = vrot.lane.b32.xlu0 %v382, 12
      %v873 = vpop.permute.xlu0 %872
      %874 = vrot.lane.b32.xlu0 %v383, 12
      %v875 = vpop.permute.xlu0 %874
      %876 = vrot.lane.b32.xlu0 %v385, 12
      %v877 = vpop.permute.xlu0 %876
      %878 = vrot.lane.b32.xlu0 %v386, 12
      %v879 = vpop.permute.xlu0 %878
      %880 = vrot.lane.b32.xlu0 %v388, 12
      %v881 = vpop.permute.xlu0 %880
      %882 = vrot.lane.b32.xlu0 %v389, 12
      %v883 = vpop.permute.xlu0 %882
      %884 = vrot.lane.b32.xlu0 %v391, 12
      %v885 = vpop.permute.xlu0 %884
      %886 = vrot.lane.b32.xlu0 %v392, 12
      %v887 = vpop.permute.xlu0 %886
      %888 = vrot.lane.b32.xlu0 %v394, 12
      %v889 = vpop.permute.xlu0 %888
      %890 = vrot.lane.b32.xlu0 %v395, 12
      %v891 = vpop.permute.xlu0 %890
      %924 = vrot.lane.b32.xlu0 %v456, 16
      %v925 = vpop.permute.xlu0 %924
      %926 = vrot.lane.b32.xlu0 %v458, 16
      %v927 = vpop.permute.xlu0 %926
      %928 = vrot.lane.b32.xlu0 %v461, 16
      %v929 = vpop.permute.xlu0 %928
      %930 = vrot.lane.b32.xlu0 %v463, 16
      %v931 = vpop.permute.xlu0 %930
      %932 = vrot.lane.b32.xlu0 %v466, 16
      %v933 = vpop.permute.xlu0 %932
      %934 = vrot.lane.b32.xlu0 %v468, 16
      %v935 = vpop.permute.xlu0 %934
      %936 = vrot.lane.b32.xlu0 %v471, 16
      %v937 = vpop.permute.xlu0 %936
      %938 = vrot.lane.b32.xlu0 %v473, 16
      %v939 = vpop.permute.xlu0 %938
      %940 = vrot.lane.b32.xlu0 %v476, 16
      %v941 = vpop.permute.xlu0 %940
      %942 = vrot.lane.b32.xlu0 %v478, 16
      %v943 = vpop.permute.xlu0 %942
      %944 = vrot.lane.b32.xlu0 %v481, 16
      %v945 = vpop.permute.xlu0 %944
      %946 = vrot.lane.b32.xlu0 %v483, 16
      %v947 = vpop.permute.xlu0 %946
      %948 = vrot.lane.b32.xlu0 %v486, 16
      %v949 = vpop.permute.xlu0 %948
      %950 = vrot.lane.b32.xlu0 %v488, 16
      %v951 = vpop.permute.xlu0 %950
      %952 = vrot.lane.b32.xlu0 %v491, 16
      %v953 = vpop.permute.xlu0 %952
      %954 = vrot.lane.b32.xlu0 %v493, 16
      %v955 = vpop.permute.xlu0 %954
      %956 = vrot.lane.b32.xlu0 %v496, 16
      %v957 = vpop.permute.xlu0 %956
      %958 = vrot.lane.b32.xlu0 %v498, 16
      %v959 = vpop.permute.xlu0 %958
      %960 = vrot.lane.b32.xlu0 %v501, 16
      %v961 = vpop.permute.xlu0 %960
      %962 = vrot.lane.b32.xlu0 %v503, 16
      %v963 = vpop.permute.xlu0 %962
      %964 = vrot.lane.b32.xlu0 %v506, 16
      %v965 = vpop.permute.xlu0 %964
      %966 = vrot.lane.b32.xlu0 %v508, 16
      %v967 = vpop.permute.xlu0 %966
      %968 = vrot.lane.b32.xlu0 %v511, 16
      %v969 = vpop.permute.xlu0 %968
      %970 = vrot.lane.b32.xlu0 %v513, 16
      %v971 = vpop.permute.xlu0 %970
      %972 = vrot.lane.b32.xlu0 %v516, 16
      %v973 = vpop.permute.xlu0 %972
      %974 = vrot.lane.b32.xlu0 %v518, 16
      %v975 = vpop.permute.xlu0 %974
      %976 = vrot.lane.b32.xlu0 %v521, 16
      %v977 = vpop.permute.xlu0 %976
      %978 = vrot.lane.b32.xlu0 %v523, 16
      %v979 = vpop.permute.xlu0 %978
      %980 = vrot.lane.b32.xlu0 %v526, 16
      %v981 = vpop.permute.xlu0 %980
      %982 = vrot.lane.b32.xlu0 %v528, 16
      %v983 = vpop.permute.xlu0 %982
      %984 = vrot.lane.b32.xlu0 %v615, 16
      %v985 = vpop.permute.xlu0 %984
      %986 = vrot.lane.b32.xlu0 %v617, 16
      %v987 = vpop.permute.xlu0 %986
      %1020 = vrot.lane.b32.xlu0 %v537, 20
      %v1021 = vpop.permute.xlu0 %1020
      %1022 = vrot.lane.b32.xlu0 %v539, 20
      %v1023 = vpop.permute.xlu0 %1022
      %1024 = vrot.lane.b32.xlu0 %v542, 20
      %v1025 = vpop.permute.xlu0 %1024
      %1026 = vrot.lane.b32.xlu0 %v544, 20
      %v1027 = vpop.permute.xlu0 %1026
      %1028 = vrot.lane.b32.xlu0 %v547, 20
      %v1029 = vpop.permute.xlu0 %1028
      %1030 = vrot.lane.b32.xlu0 %v549, 20
      %v1031 = vpop.permute.xlu0 %1030
      %1032 = vrot.lane.b32.xlu0 %v552, 20
      %v1033 = vpop.permute.xlu0 %1032
      %1034 = vrot.lane.b32.xlu0 %v554, 20
      %v1035 = vpop.permute.xlu0 %1034
      %1036 = vrot.lane.b32.xlu0 %v557, 20
      %v1037 = vpop.permute.xlu0 %1036
      %1038 = vrot.lane.b32.xlu0 %v559, 20
      %v1039 = vpop.permute.xlu0 %1038
      %1040 = vrot.lane.b32.xlu0 %v562, 20
      %v1041 = vpop.permute.xlu0 %1040
      %1042 = vrot.lane.b32.xlu0 %v564, 20
      %v1043 = vpop.permute.xlu0 %1042
      %1044 = vrot.lane.b32.xlu0 %v567, 20
      %v1045 = vpop.permute.xlu0 %1044
      %1046 = vrot.lane.b32.xlu0 %v569, 20
      %v1047 = vpop.permute.xlu0 %1046
      %1048 = vrot.lane.b32.xlu0 %v572, 20
      %v1049 = vpop.permute.xlu0 %1048
      %1050 = vrot.lane.b32.xlu0 %v574, 20
      %v1051 = vpop.permute.xlu0 %1050
      %1052 = vrot.lane.b32.xlu0 %v577, 20
      %v1053 = vpop.permute.xlu0 %1052
      %1054 = vrot.lane.b32.xlu0 %v579, 20
      %v1055 = vpop.permute.xlu0 %1054
      %1056 = vrot.lane.b32.xlu0 %v582, 20
      %v1057 = vpop.permute.xlu0 %1056
      %1058 = vrot.lane.b32.xlu0 %v584, 20
      %v1059 = vpop.permute.xlu0 %1058
      %1060 = vrot.lane.b32.xlu0 %v587, 20
      %v1061 = vpop.permute.xlu0 %1060
      %1062 = vrot.lane.b32.xlu0 %v589, 20
      %v1063 = vpop.permute.xlu0 %1062
      %1064 = vrot.lane.b32.xlu0 %v592, 20
      %v1065 = vpop.permute.xlu0 %1064
      %1066 = vrot.lane.b32.xlu0 %v594, 20
      %v1067 = vpop.permute.xlu0 %1066
      %1068 = vrot.lane.b32.xlu0 %v597, 20
      %v1069 = vpop.permute.xlu0 %1068
      %1070 = vrot.lane.b32.xlu0 %v599, 20
      %v1071 = vpop.permute.xlu0 %1070
      %1072 = vrot.lane.b32.xlu0 %v602, 20
      %v1073 = vpop.permute.xlu0 %1072
      %1074 = vrot.lane.b32.xlu0 %v604, 20
      %v1075 = vpop.permute.xlu0 %1074
      %1076 = vrot.lane.b32.xlu0 %v607, 20
      %v1077 = vpop.permute.xlu0 %1076
      %1078 = vrot.lane.b32.xlu0 %v609, 20
      %v1079 = vpop.permute.xlu0 %1078
      %1080 = vrot.lane.b32.xlu0 %v620, 20
      %v1081 = vpop.permute.xlu0 %1080
      %1082 = vrot.lane.b32.xlu0 %v622, 20
      %v1083 = vpop.permute.xlu0 %1082
      %1116 = vrot.lane.b32.xlu0 %v352, 24
      %v1117 = vpop.permute.xlu0 %1116
      %1118 = vrot.lane.b32.xlu0 %v353, 24
      %v1119 = vpop.permute.xlu0 %1118
      %1120 = vrot.lane.b32.xlu0 %v355, 24
      %v1121 = vpop.permute.xlu0 %1120
      %1122 = vrot.lane.b32.xlu0 %v356, 24
      %v1123 = vpop.permute.xlu0 %1122
      %1124 = vrot.lane.b32.xlu0 %v358, 24
      %v1125 = vpop.permute.xlu0 %1124
      %1126 = vrot.lane.b32.xlu0 %v359, 24
      %v1127 = vpop.permute.xlu0 %1126
      %1128 = vrot.lane.b32.xlu0 %v361, 24
      %v1129 = vpop.permute.xlu0 %1128
      %1130 = vrot.lane.b32.xlu0 %v362, 24
      %v1131 = vpop.permute.xlu0 %1130
      %1132 = vrot.lane.b32.xlu0 %v364, 24
      %v1133 = vpop.permute.xlu0 %1132
      %1134 = vrot.lane.b32.xlu0 %v365, 24
      %v1135 = vpop.permute.xlu0 %1134
      %1136 = vrot.lane.b32.xlu0 %v367, 24
      %v1137 = vpop.permute.xlu0 %1136
      %1138 = vrot.lane.b32.xlu0 %v368, 24
      %v1139 = vpop.permute.xlu0 %1138
      %1140 = vrot.lane.b32.xlu0 %v370, 24
      %v1141 = vpop.permute.xlu0 %1140
      %1142 = vrot.lane.b32.xlu0 %v371, 24
      %v1143 = vpop.permute.xlu0 %1142
      %1144 = vrot.lane.b32.xlu0 %v373, 24
      %v1145 = vpop.permute.xlu0 %1144
      %1146 = vrot.lane.b32.xlu0 %v374, 24
      %v1147 = vpop.permute.xlu0 %1146
      %1148 = vrot.lane.b32.xlu0 %v376, 24
      %v1149 = vpop.permute.xlu0 %1148
      %1150 = vrot.lane.b32.xlu0 %v377, 24
      %v1151 = vpop.permute.xlu0 %1150
      %1152 = vrot.lane.b32.xlu0 %v379, 24
      %v1153 = vpop.permute.xlu0 %1152
      %1154 = vrot.lane.b32.xlu0 %v380, 24
      %v1155 = vpop.permute.xlu0 %1154
      %1156 = vrot.lane.b32.xlu0 %v382, 24
      %v1157 = vpop.permute.xlu0 %1156
      %1158 = vrot.lane.b32.xlu0 %v383, 24
      %v1159 = vpop.permute.xlu0 %1158
      %1160 = vrot.lane.b32.xlu0 %v385, 24
      %v1161 = vpop.permute.xlu0 %1160
      %1162 = vrot.lane.b32.xlu0 %v386, 24
      %v1163 = vpop.permute.xlu0 %1162
      %1164 = vrot.lane.b32.xlu0 %v388, 24
      %v1165 = vpop.permute.xlu0 %1164
      %1166 = vrot.lane.b32.xlu0 %v389, 24
      %v1167 = vpop.permute.xlu0 %1166
      %1168 = vrot.lane.b32.xlu0 %v391, 24
      %v1169 = vpop.permute.xlu0 %1168
      %1170 = vrot.lane.b32.xlu0 %v392, 24
      %v1171 = vpop.permute.xlu0 %1170
      %1172 = vrot.lane.b32.xlu0 %v394, 24
      %v1173 = vpop.permute.xlu0 %1172
      %1174 = vrot.lane.b32.xlu0 %v395, 24
      %v1175 = vpop.permute.xlu0 %1174
      %1176 = vrot.lane.b32.xlu0 %v397, 24
      %v1177 = vpop.permute.xlu0 %1176
      %1178 = vrot.lane.b32.xlu0 %v398, 24
      %v1179 = vpop.permute.xlu0 %1178
      %1212 = vrot.lane.b32.xlu0 %v461, 28
      %v1213 = vpop.permute.xlu0 %1212
      %1214 = vrot.lane.b32.xlu0 %v463, 28
      %v1215 = vpop.permute.xlu0 %1214
      %1216 = vrot.lane.b32.xlu0 %v466, 28
      %v1217 = vpop.permute.xlu0 %1216
      %1218 = vrot.lane.b32.xlu0 %v468, 28
      %v1219 = vpop.permute.xlu0 %1218
      %1220 = vrot.lane.b32.xlu0 %v471, 28
      %v1221 = vpop.permute.xlu0 %1220
      %1222 = vrot.lane.b32.xlu0 %v473, 28
      %v1223 = vpop.permute.xlu0 %1222
      %1224 = vrot.lane.b32.xlu0 %v476, 28
      %v1225 = vpop.permute.xlu0 %1224
      %1226 = vrot.lane.b32.xlu0 %v478, 28
      %v1227 = vpop.permute.xlu0 %1226
      %1228 = vrot.lane.b32.xlu0 %v481, 28
      %v1229 = vpop.permute.xlu0 %1228
      %1230 = vrot.lane.b32.xlu0 %v483, 28
      %v1231 = vpop.permute.xlu0 %1230
      %1232 = vrot.lane.b32.xlu0 %v486, 28
      %v1233 = vpop.permute.xlu0 %1232
      %1234 = vrot.lane.b32.xlu0 %v488, 28
      %v1235 = vpop.permute.xlu0 %1234
      %1236 = vrot.lane.b32.xlu0 %v491, 28
      %v1237 = vpop.permute.xlu0 %1236
      %1238 = vrot.lane.b32.xlu0 %v493, 28
      %v1239 = vpop.permute.xlu0 %1238
      %1240 = vrot.lane.b32.xlu0 %v496, 28
      %v1241 = vpop.permute.xlu0 %1240
      %1242 = vrot.lane.b32.xlu0 %v498, 28
      %v1243 = vpop.permute.xlu0 %1242
      %1244 = vrot.lane.b32.xlu0 %v501, 28
      %v1245 = vpop.permute.xlu0 %1244
      %1246 = vrot.lane.b32.xlu0 %v503, 28
      %v1247 = vpop.permute.xlu0 %1246
      %1248 = vrot.lane.b32.xlu0 %v506, 28
      %v1249 = vpop.permute.xlu0 %1248
      %1250 = vrot.lane.b32.xlu0 %v508, 28
      %v1251 = vpop.permute.xlu0 %1250
      %1252 = vrot.lane.b32.xlu0 %v511, 28
      %v1253 = vpop.permute.xlu0 %1252
      %1254 = vrot.lane.b32.xlu0 %v513, 28
      %v1255 = vpop.permute.xlu0 %1254
      %1256 = vrot.lane.b32.xlu0 %v516, 28
      %v1257 = vpop.permute.xlu0 %1256
      %1258 = vrot.lane.b32.xlu0 %v518, 28
      %v1259 = vpop.permute.xlu0 %1258
      %1260 = vrot.lane.b32.xlu0 %v521, 28
      %v1261 = vpop.permute.xlu0 %1260
      %1262 = vrot.lane.b32.xlu0 %v523, 28
      %v1263 = vpop.permute.xlu0 %1262
      %1264 = vrot.lane.b32.xlu0 %v526, 28
      %v1265 = vpop.permute.xlu0 %1264
      %1266 = vrot.lane.b32.xlu0 %v528, 28
      %v1267 = vpop.permute.xlu0 %1266
      %1268 = vrot.lane.b32.xlu0 %v615, 28
      %v1269 = vpop.permute.xlu0 %1268
      %1270 = vrot.lane.b32.xlu0 %v617, 28
      %v1271 = vpop.permute.xlu0 %1270
      %1272 = vrot.lane.b32.xlu0 %v628, 28
      %v1273 = vpop.permute.xlu0 %1272
      %1274 = vrot.lane.b32.xlu0 %v630, 28
      %v1275 = vpop.permute.xlu0 %1274
      %1308 = vrot.lane.b32.xlu0 %v542, 32
      %v1309 = vpop.permute.xlu0 %1308
      %1310 = vrot.lane.b32.xlu0 %v544, 32
      %v1311 = vpop.permute.xlu0 %1310
      %1312 = vrot.lane.b32.xlu0 %v547, 32
      %v1313 = vpop.permute.xlu0 %1312
      %1314 = vrot.lane.b32.xlu0 %v549, 32
      %v1315 = vpop.permute.xlu0 %1314
      %1316 = vrot.lane.b32.xlu0 %v552, 32
      %v1317 = vpop.permute.xlu0 %1316
      %1318 = vrot.lane.b32.xlu0 %v554, 32
      %v1319 = vpop.permute.xlu0 %1318
      %1320 = vrot.lane.b32.xlu0 %v557, 32
      %v1321 = vpop.permute.xlu0 %1320
      %1322 = vrot.lane.b32.xlu0 %v559, 32
      %v1323 = vpop.permute.xlu0 %1322
      %1324 = vrot.lane.b32.xlu0 %v562, 32
      %v1325 = vpop.permute.xlu0 %1324
      %1326 = vrot.lane.b32.xlu0 %v564, 32
      %v1327 = vpop.permute.xlu0 %1326
      %1328 = vrot.lane.b32.xlu0 %v567, 32
      %v1329 = vpop.permute.xlu0 %1328
      %1330 = vrot.lane.b32.xlu0 %v569, 32
      %v1331 = vpop.permute.xlu0 %1330
      %1332 = vrot.lane.b32.xlu0 %v572, 32
      %v1333 = vpop.permute.xlu0 %1332
      %1334 = vrot.lane.b32.xlu0 %v574, 32
      %v1335 = vpop.permute.xlu0 %1334
      %1336 = vrot.lane.b32.xlu0 %v577, 32
      %v1337 = vpop.permute.xlu0 %1336
      %1338 = vrot.lane.b32.xlu0 %v579, 32
      %v1339 = vpop.permute.xlu0 %1338
      %1340 = vrot.lane.b32.xlu0 %v582, 32
      %v1341 = vpop.permute.xlu0 %1340
      %1342 = vrot.lane.b32.xlu0 %v584, 32
      %v1343 = vpop.permute.xlu0 %1342
      %1344 = vrot.lane.b32.xlu0 %v587, 32
      %v1345 = vpop.permute.xlu0 %1344
      %1346 = vrot.lane.b32.xlu0 %v589, 32
      %v1347 = vpop.permute.xlu0 %1346
      %1348 = vrot.lane.b32.xlu0 %v592, 32
      %v1349 = vpop.permute.xlu0 %1348
      %1350 = vrot.lane.b32.xlu0 %v594, 32
      %v1351 = vpop.permute.xlu0 %1350
      %1352 = vrot.lane.b32.xlu0 %v597, 32
      %v1353 = vpop.permute.xlu0 %1352
      %1354 = vrot.lane.b32.xlu0 %v599, 32
      %v1355 = vpop.permute.xlu0 %1354
      %1356 = vrot.lane.b32.xlu0 %v602, 32
      %v1357 = vpop.permute.xlu0 %1356
      %1358 = vrot.lane.b32.xlu0 %v604, 32
      %v1359 = vpop.permute.xlu0 %1358
      %1360 = vrot.lane.b32.xlu0 %v607, 32
      %v1361 = vpop.permute.xlu0 %1360
      %1362 = vrot.lane.b32.xlu0 %v609, 32
      %v1363 = vpop.permute.xlu0 %1362
      %1364 = vrot.lane.b32.xlu0 %v620, 32
      %v1365 = vpop.permute.xlu0 %1364
      %1366 = vrot.lane.b32.xlu0 %v622, 32
      %v1367 = vpop.permute.xlu0 %1366
      %1368 = vrot.lane.b32.xlu0 %v633, 32
      %v1369 = vpop.permute.xlu0 %1368
      %1370 = vrot.lane.b32.xlu0 %v635, 32
      %v1371 = vpop.permute.xlu0 %1370
      %v1404 = vsel %vm171, %v346, %v637
      %v1405 = vsel %vm171, %v347, %v639
      %v1406 = vsel %vm171, %v349, %v641
      %v1407 = vsel %vm171, %v350, %v643
      %v1408 = vsel %vm171, %v352, %v645
      %v1409 = vsel %vm171, %v353, %v647
      %v1410 = vsel %vm171, %v355, %v649
      %v1411 = vsel %vm171, %v356, %v651
      %v1412 = vsel %vm171, %v358, %v653
      %v1413 = vsel %vm171, %v359, %v655
      %v1414 = vsel %vm171, %v361, %v657
      %v1415 = vsel %vm171, %v362, %v659
      %v1416 = vsel %vm171, %v364, %v661
      %v1417 = vsel %vm171, %v365, %v663
      %v1418 = vsel %vm171, %v367, %v665
      %v1419 = vsel %vm171, %v368, %v667
      %v1420 = vsel %vm171, %v370, %v669
      %v1421 = vsel %vm171, %v371, %v671
      %v1422 = vsel %vm171, %v373, %v673
      %v1423 = vsel %vm171, %v374, %v675
      %v1424 = vsel %vm171, %v376, %v677
      %v1425 = vsel %vm171, %v377, %v679
      %v1426 = vsel %vm171, %v379, %v681
      %v1427 = vsel %vm171, %v380, %v683
      %v1428 = vsel %vm171, %v382, %v685
      %v1429 = vsel %vm171, %v383, %v687
      %v1430 = vsel %vm171, %v385, %v689
      %v1431 = vsel %vm171, %v386, %v691
      %v1432 = vsel %vm171, %v388, %v693
      %v1433 = vsel %vm171, %v389, %v695
      %v1434 = vsel %vm171, %v391, %v697
      %v1435 = vsel %vm171, %v392, %v699
      %vm1436 = vcmask 64512
      %v1437 = vsel %vm1436, %v1404, %v733
      %v1438 = vsel %vm1436, %v1405, %v735
      %v1439 = vsel %vm1436, %v1406, %v737
      %v1440 = vsel %vm1436, %v1407, %v739
      %v1441 = vsel %vm1436, %v1408, %v741
      %v1442 = vsel %vm1436, %v1409, %v743
      %v1443 = vsel %vm1436, %v1410, %v745
      %v1444 = vsel %vm1436, %v1411, %v747
      %v1445 = vsel %vm1436, %v1412, %v749
      %v1446 = vsel %vm1436, %v1413, %v751
      %v1447 = vsel %vm1436, %v1414, %v753
      %v1448 = vsel %vm1436, %v1415, %v755
      %v1449 = vsel %vm1436, %v1416, %v757
      %v1450 = vsel %vm1436, %v1417, %v759
      %v1451 = vsel %vm1436, %v1418, %v761
      %v1452 = vsel %vm1436, %v1419, %v763
      %v1453 = vsel %vm1436, %v1420, %v765
      %v1454 = vsel %vm1436, %v1421, %v767
      %v1455 = vsel %vm1436, %v1422, %v769
      %v1456 = vsel %vm1436, %v1423, %v771
      %v1457 = vsel %vm1436, %v1424, %v773
      %v1458 = vsel %vm1436, %v1425, %v775
      %v1459 = vsel %vm1436, %v1426, %v777
      %v1460 = vsel %vm1436, %v1427, %v779
      %v1461 = vsel %vm1436, %v1428, %v781
      %v1462 = vsel %vm1436, %v1429, %v783
      %v1463 = vsel %vm1436, %v1430, %v785
      %v1464 = vsel %vm1436, %v1431, %v787
      %v1465 = vsel %vm1436, %v1432, %v789
      %v1466 = vsel %vm1436, %v1433, %v791
      %v1467 = vsel %vm1436, %v1434, %v793
      %v1468 = vsel %vm1436, %v1435, %v795
      %vm1469 = vcmask 97280
      %v1470 = vsel %vm1469, %v1437, %v829
      %v1471 = vsel %vm1469, %v1438, %v831
      %v1472 = vsel %vm1469, %v1439, %v833
      %v1473 = vsel %vm1469, %v1440, %v835
      %v1474 = vsel %vm1469, %v1441, %v837
      %v1475 = vsel %vm1469, %v1442, %v839
      %v1476 = vsel %vm1469, %v1443, %v841
      %v1477 = vsel %vm1469, %v1444, %v843
      %v1478 = vsel %vm1469, %v1445, %v845
      %v1479 = vsel %vm1469, %v1446, %v847
      %v1480 = vsel %vm1469, %v1447, %v849
      %v1481 = vsel %vm1469, %v1448, %v851
      %v1482 = vsel %vm1469, %v1449, %v853
      %v1483 = vsel %vm1469, %v1450, %v855
      %v1484 = vsel %vm1469, %v1451, %v857
      %v1485 = vsel %vm1469, %v1452, %v859
      %v1486 = vsel %vm1469, %v1453, %v861
      %v1487 = vsel %vm1469, %v1454, %v863
      %v1488 = vsel %vm1469, %v1455, %v865
      %v1489 = vsel %vm1469, %v1456, %v867
      %v1490 = vsel %vm1469, %v1457, %v869
      %v1491 = vsel %vm1469, %v1458, %v871
      %v1492 = vsel %vm1469, %v1459, %v873
      %v1493 = vsel %vm1469, %v1460, %v875
      %v1494 = vsel %vm1469, %v1461, %v877
      %v1495 = vsel %vm1469, %v1462, %v879
      %v1496 = vsel %vm1469, %v1463, %v881
      %v1497 = vsel %vm1469, %v1464, %v883
      %v1498 = vsel %vm1469, %v1465, %v885
      %v1499 = vsel %vm1469, %v1466, %v887
      %v1500 = vsel %vm1469, %v1467, %v889
      %v1501 = vsel %vm1469, %v1468, %v891
      %vm1502 = vcmask 130048
      %v1503 = vsel %vm1502, %v1470, %v925
      %v1504 = vsel %vm1502, %v1471, %v927
      %v1505 = vsel %vm1502, %v1472, %v929
      %v1506 = vsel %vm1502, %v1473, %v931
      %v1507 = vsel %vm1502, %v1474, %v933
      %v1508 = vsel %vm1502, %v1475, %v935
      %v1509 = vsel %vm1502, %v1476, %v937
      %v1510 = vsel %vm1502, %v1477, %v939
      %v1511 = vsel %vm1502, %v1478, %v941
      %v1512 = vsel %vm1502, %v1479, %v943
      %v1513 = vsel %vm1502, %v1480, %v945
      %v1514 = vsel %vm1502, %v1481, %v947
      %v1515 = vsel %vm1502, %v1482, %v949
      %v1516 = vsel %vm1502, %v1483, %v951
      %v1517 = vsel %vm1502, %v1484, %v953
      %v1518 = vsel %vm1502, %v1485, %v955
      %v1519 = vsel %vm1502, %v1486, %v957
      %v1520 = vsel %vm1502, %v1487, %v959
      %v1521 = vsel %vm1502, %v1488, %v961
      %v1522 = vsel %vm1502, %v1489, %v963
      %v1523 = vsel %vm1502, %v1490, %v965
      %v1524 = vsel %vm1502, %v1491, %v967
      %v1525 = vsel %vm1502, %v1492, %v969
      %v1526 = vsel %vm1502, %v1493, %v971
      %v1527 = vsel %vm1502, %v1494, %v973
      %v1528 = vsel %vm1502, %v1495, %v975
      %v1529 = vsel %vm1502, %v1496, %v977
      %v1530 = vsel %vm1502, %v1497, %v979
      %v1531 = vsel %vm1502, %v1498, %v981
      %v1532 = vsel %vm1502, %v1499, %v983
      %v1533 = vsel %vm1502, %v1500, %v985
      %v1534 = vsel %vm1502, %v1501, %v987
      %vm1535 = vcmask 162816
      %v1536 = vsel %vm1535, %v1503, %v1021
      %v1537 = vsel %vm1535, %v1504, %v1023
      %v1538 = vsel %vm1535, %v1505, %v1025
      %v1539 = vsel %vm1535, %v1506, %v1027
      %v1540 = vsel %vm1535, %v1507, %v1029
      %v1541 = vsel %vm1535, %v1508, %v1031
      %v1542 = vsel %vm1535, %v1509, %v1033
      %v1543 = vsel %vm1535, %v1510, %v1035
      %v1544 = vsel %vm1535, %v1511, %v1037
      %v1545 = vsel %vm1535, %v1512, %v1039
      %v1546 = vsel %vm1535, %v1513, %v1041
      %v1547 = vsel %vm1535, %v1514, %v1043
      %v1548 = vsel %vm1535, %v1515, %v1045
      %v1549 = vsel %vm1535, %v1516, %v1047
      %v1550 = vsel %vm1535, %v1517, %v1049
      %v1551 = vsel %vm1535, %v1518, %v1051
      %v1552 = vsel %vm1535, %v1519, %v1053
      %v1553 = vsel %vm1535, %v1520, %v1055
      %v1554 = vsel %vm1535, %v1521, %v1057
      %v1555 = vsel %vm1535, %v1522, %v1059
      %v1556 = vsel %vm1535, %v1523, %v1061
      %v1557 = vsel %vm1535, %v1524, %v1063
      %v1558 = vsel %vm1535, %v1525, %v1065
      %v1559 = vsel %vm1535, %v1526, %v1067
      %v1560 = vsel %vm1535, %v1527, %v1069
      %v1561 = vsel %vm1535, %v1528, %v1071
      %v1562 = vsel %vm1535, %v1529, %v1073
      %v1563 = vsel %vm1535, %v1530, %v1075
      %v1564 = vsel %vm1535, %v1531, %v1077
      %v1565 = vsel %vm1535, %v1532, %v1079
      %v1566 = vsel %vm1535, %v1533, %v1081
      %v1567 = vsel %vm1535, %v1534, %v1083
      %vm1568 = vcmask 195584
      %v1569 = vsel %vm1568, %v1536, %v1117
      %v1570 = vsel %vm1568, %v1537, %v1119
      %v1571 = vsel %vm1568, %v1538, %v1121
      %v1572 = vsel %vm1568, %v1539, %v1123
      %v1573 = vsel %vm1568, %v1540, %v1125
      %v1574 = vsel %vm1568, %v1541, %v1127
      %v1575 = vsel %vm1568, %v1542, %v1129
      %v1576 = vsel %vm1568, %v1543, %v1131
      %v1577 = vsel %vm1568, %v1544, %v1133
      %v1578 = vsel %vm1568, %v1545, %v1135
      %v1579 = vsel %vm1568, %v1546, %v1137
      %v1580 = vsel %vm1568, %v1547, %v1139
      %v1581 = vsel %vm1568, %v1548, %v1141
      %v1582 = vsel %vm1568, %v1549, %v1143
      %v1583 = vsel %vm1568, %v1550, %v1145
      %v1584 = vsel %vm1568, %v1551, %v1147
      %v1585 = vsel %vm1568, %v1552, %v1149
      %v1586 = vsel %vm1568, %v1553, %v1151
      %v1587 = vsel %vm1568, %v1554, %v1153
      %v1588 = vsel %vm1568, %v1555, %v1155
      %v1589 = vsel %vm1568, %v1556, %v1157
      %v1590 = vsel %vm1568, %v1557, %v1159
      %v1591 = vsel %vm1568, %v1558, %v1161
      %v1592 = vsel %vm1568, %v1559, %v1163
      %v1593 = vsel %vm1568, %v1560, %v1165
      %v1594 = vsel %vm1568, %v1561, %v1167
      %v1595 = vsel %vm1568, %v1562, %v1169
      %v1596 = vsel %vm1568, %v1563, %v1171
      %v1597 = vsel %vm1568, %v1564, %v1173
      %v1598 = vsel %vm1568, %v1565, %v1175
      %v1599 = vsel %vm1568, %v1566, %v1177
      %v1600 = vsel %vm1568, %v1567, %v1179
      %vm1601 = vcmask 228352
      %v1602 = vsel %vm1601, %v1569, %v1213
      %v1603 = vsel %vm1601, %v1570, %v1215
      %v1604 = vsel %vm1601, %v1571, %v1217
      %v1605 = vsel %vm1601, %v1572, %v1219
      %v1606 = vsel %vm1601, %v1573, %v1221
      %v1607 = vsel %vm1601, %v1574, %v1223
      %v1608 = vsel %vm1601, %v1575, %v1225
      %v1609 = vsel %vm1601, %v1576, %v1227
      %v1610 = vsel %vm1601, %v1577, %v1229
      %v1611 = vsel %vm1601, %v1578, %v1231
      %v1612 = vsel %vm1601, %v1579, %v1233
      %v1613 = vsel %vm1601, %v1580, %v1235
      %v1614 = vsel %vm1601, %v1581, %v1237
      %v1615 = vsel %vm1601, %v1582, %v1239
      %v1616 = vsel %vm1601, %v1583, %v1241
      %v1617 = vsel %vm1601, %v1584, %v1243
      %v1618 = vsel %vm1601, %v1585, %v1245
      %v1619 = vsel %vm1601, %v1586, %v1247
      %v1620 = vsel %vm1601, %v1587, %v1249
      %v1621 = vsel %vm1601, %v1588, %v1251
      %v1622 = vsel %vm1601, %v1589, %v1253
      %v1623 = vsel %vm1601, %v1590, %v1255
      %v1624 = vsel %vm1601, %v1591, %v1257
      %v1625 = vsel %vm1601, %v1592, %v1259
      %v1626 = vsel %vm1601, %v1593, %v1261
      %v1627 = vsel %vm1601, %v1594, %v1263
      %v1628 = vsel %vm1601, %v1595, %v1265
      %v1629 = vsel %vm1601, %v1596, %v1267
      %v1630 = vsel %vm1601, %v1597, %v1269
      %v1631 = vsel %vm1601, %v1598, %v1271
      %v1632 = vsel %vm1601, %v1599, %v1273
      %v1633 = vsel %vm1601, %v1600, %v1275
      %vm1634 = vcmask 261120
      %v1635 = vsel %vm1634, %v1602, %v1309
      %v1636 = vsel %vm1634, %v1603, %v1311
      %v1637 = vsel %vm1634, %v1604, %v1313
      %v1638 = vsel %vm1634, %v1605, %v1315
      %v1639 = vsel %vm1634, %v1606, %v1317
      %v1640 = vsel %vm1634, %v1607, %v1319
      %v1641 = vsel %vm1634, %v1608, %v1321
      %v1642 = vsel %vm1634, %v1609, %v1323
      %v1643 = vsel %vm1634, %v1610, %v1325
      %v1644 = vsel %vm1634, %v1611, %v1327
      %v1645 = vsel %vm1634, %v1612, %v1329
      %v1646 = vsel %vm1634, %v1613, %v1331
      %v1647 = vsel %vm1634, %v1614, %v1333
      %v1648 = vsel %vm1634, %v1615, %v1335
      %v1649 = vsel %vm1634, %v1616, %v1337
      %v1650 = vsel %vm1634, %v1617, %v1339
      %v1651 = vsel %vm1634, %v1618, %v1341
      %v1652 = vsel %vm1634, %v1619, %v1343
      %v1653 = vsel %vm1634, %v1620, %v1345
      %v1654 = vsel %vm1634, %v1621, %v1347
      %v1655 = vsel %vm1634, %v1622, %v1349
      %v1656 = vsel %vm1634, %v1623, %v1351
      %v1657 = vsel %vm1634, %v1624, %v1353
      %v1658 = vsel %vm1634, %v1625, %v1355
      %v1659 = vsel %vm1634, %v1626, %v1357
      %v1660 = vsel %vm1634, %v1627, %v1359
      %v1661 = vsel %vm1634, %v1628, %v1361
      %v1662 = vsel %vm1634, %v1629, %v1363
      %v1663 = vsel %vm1634, %v1630, %v1365
      %v1664 = vsel %vm1634, %v1631, %v1367
      %v1665 = vsel %vm1634, %v1632, %v1369
      %v1666 = vsel %vm1634, %v1633, %v1371
      %v1667 = vld [vmem:[%s1] sm:$0xff]
      %v1668 = vld [vmem:[%s1 + $0x8] sm:$0xff]
      %v1669 = vld [vmem:[%s1 + $0x10] sm:$0xff]
      %v1670 = vld [vmem:[%s1 + $0x18] sm:$0xff]
      %v1671 = vld [vmem:[%s1 + $0x20] sm:$0xf]
      %v1672 = vld [vmem:[%s2] sm:$0x1]
      %v1674 = vlaneseq
      %v1675 = vshrl.u32 %v1674, 7
      %v1676 = vsub.s32 0, %v1675
      %v1677 = vrot.slane %v1672, %v1676
      %vm1679 = vcmask 293888
      %v1681 = vsel %vm1679, %v1635, 0
      %v1684 = vsel %vm1679, %v1636, 0
      %v1687 = vsel %vm1679, %v1637, 0
      %v1690 = vsel %vm1679, %v1638, 0
      %v1693 = vsel %vm1679, %v1639, 0
      %v1696 = vsel %vm1679, %v1640, 0
      %v1699 = vsel %vm1679, %v1641, 0
      %v1702 = vsel %vm1679, %v1642, 0
      %v1705 = vsel %vm1679, %v1643, 0
      %v1708 = vsel %vm1679, %v1644, 0
      %v1711 = vsel %vm1679, %v1645, 0
      %v1714 = vsel %vm1679, %v1646, 0
      %v1717 = vsel %vm1679, %v1647, 0
      %v1720 = vsel %vm1679, %v1648, 0
      %v1723 = vsel %vm1679, %v1649, 0
      %v1726 = vsel %vm1679, %v1650, 0
      %v1729 = vsel %vm1679, %v1651, 0
      %v1732 = vsel %vm1679, %v1652, 0
      %v1735 = vsel %vm1679, %v1653, 0
      %v1738 = vsel %vm1679, %v1654, 0
      %v1741 = vsel %vm1679, %v1655, 0
      %v1744 = vsel %vm1679, %v1656, 0
      %v1747 = vsel %vm1679, %v1657, 0
      %v1750 = vsel %vm1679, %v1658, 0
      %v1753 = vsel %vm1679, %v1659, 0
      %v1756 = vsel %vm1679, %v1660, 0
      %v1759 = vsel %vm1679, %v1661, 0
      %v1762 = vsel %vm1679, %v1662, 0
      %v1765 = vsel %vm1679, %v1663, 0
      %v1768 = vsel %vm1679, %v1664, 0
      %v1771 = vsel %vm1679, %v1665, 0
      %v1774 = vsel %vm1679, %v1666, 0
      %vm1776 = vcmask 1043456
      %v1778 = vsel %vm1776, %v1671, 0
      %1780 = vmatprep.subr.mxu0 0.0
      %1781 = vmatpush1.msra.mxu0 %v1667
      %1782 = vmatprep.subr.mxu0 0.0
      %1783 = vmatpush1.msra.mxu0 %v1668
      %1784 = vmatprep.subr.mxu0 0.0
      %1785 = vmatpush1.msra.mxu0 %v1669
      %1786 = vmatprep.subr.mxu0 0.0
      %1787 = vmatpush1.msra.mxu0 %v1670
      %1788 = vmatprep.subr.mxu0 0.0
      %1789 = vmatpush1.msra.mxu0 %v1778
      %1790 = vmatprep.subr.mxu0 0.0
      %1791 = vmatpush1.msra.mxu0 0.0
      %1792 = vmatprep.subr.mxu0 0.0
      %1793 = vmatpush1.msra.mxu0 0.0
      %1794 = vmatprep.subr.mxu0 0.0
      %1795 = vmatpush1.msra.mxu0 0.0
      %1796 = vmatprep.subr.mxu0 0.0
      %1797 = vmatpush1.msra.mxu0 0.0
      %1798 = vmatprep.subr.mxu0 0.0
      %1799 = vmatpush1.msra.mxu0 0.0
      %1800 = vmatprep.subr.mxu0 0.0
      %1801 = vmatpush1.msra.mxu0 0.0
      %1802 = vmatprep.subr.mxu0 0.0
      %1803 = vmatpush1.msra.mxu0 0.0
      %1804 = vmatprep.subr.mxu0 0.0
      %1805 = vmatpush1.msra.mxu0 0.0
      %1806 = vmatprep.subr.mxu0 0.0
      %1807 = vmatpush1.msra.mxu0 0.0
      %1808 = vmatprep.subr.mxu0 0.0
      %1809 = vmatpush1.msra.mxu0 0.0
      %1810 = vmatprep.subr.mxu0 0.0
      %1811 = vmatpush1.msra.mxu0 0.0
      %1812 = vmatprep.subr.mxu0 0.0
      %1813 = vmatpush1.msra.mxu0 0.0
      %1814 = vmatprep.subr.mxu0 0.0
      %1815 = vmatpush1.msra.mxu0 0.0
      %1816 = vmatprep.subr.mxu0 0.0
      %1817 = vmatpush1.msra.mxu0 0.0
      %1818 = vmatprep.subr.mxu0 0.0
      %1819 = vmatpush1.msra.mxu0 0.0
      %1820 = vmatprep.subr.mxu0 0.0
      %1821 = vmatpush1.msra.mxu0 0.0
      %1822 = vmatprep.subr.mxu0 0.0
      %1823 = vmatpush1.msra.mxu0 0.0
      %1824 = vmatprep.subr.mxu0 0.0
      %1825 = vmatpush1.msra.mxu0 0.0
      %1826 = vmatprep.subr.mxu0 0.0
      %1827 = vmatpush1.msra.mxu0 0.0
      %1828 = vmatprep.subr.mxu0 0.0
      %1829 = vmatpush1.msra.mxu0 0.0
      %1830 = vmatprep.subr.mxu0 0.0
      %1831 = vmatpush1.msra.mxu0 0.0
      %1832 = vmatprep.subr.mxu0 0.0
      %1833 = vmatpush1.msra.mxu0 0.0
      %1834 = vmatprep.subr.mxu0 0.0
      %1835 = vmatpush1.msra.mxu0 0.0
      %1836 = vmatprep.subr.mxu0 0.0
      %1837 = vmatpush1.msra.mxu0 0.0
      %1838 = vmatprep.subr.mxu0 0.0
      %1839 = vmatpush1.msra.mxu0 0.0
      %1840 = vmatprep.subr.mxu0 0.0
      %1841 = vmatpush1.msra.mxu0 0.0
      %1842 = vmatprep.subr.mxu0 0.0
      %1843 = vmatpush1.msra.mxu0 0.0
      %1844 = vmatprep.mubr.f32.mxu0 0.0
      %1845 = vmatmul.mubr.f32.gmra.mrb[0].mxu0 %v1681
      %v1846 = vpop.f32.mrb[0].mxu0
      %v1847 = vadd.f32 %v1677, %v1846
      %v1848 = vpop.f32.mrb[0].mxu0
      %1849 = vmatprep.mubr.f32.mxu0 0.0
      %1850 = vmatmul.mubr.f32.gmra.mrb[0].mxu0 %v1684
      %v1851 = vpop.f32.mrb[0].mxu0
      %v1852 = vadd.f32 %v1677, %v1851
      %v1853 = vpop.f32.mrb[0].mxu0
      %1854 = vmatprep.mubr.f32.mxu0 0.0
      %1855 = vmatmul.mubr.f32.gmra.mrb[0].mxu0 %v1687
      %v1856 = vpop.f32.mrb[0].mxu0
      %v1857 = vadd.f32 %v1677, %v1856
      %v1858 = vpop.f32.mrb[0].mxu0
      %1859 = vmatprep.mubr.f32.mxu0 0.0
      %1860 = vmatmul.mubr.f32.gmra.mrb[0].mxu0 %v1690
      %v1861 = vpop.f32.mrb[0].mxu0
      %v1862 = vadd.f32 %v1677, %v1861
      %v1863 = vpop.f32.mrb[0].mxu0
      %1864 = vmatprep.mubr.f32.mxu0 0.0
      %1865 = vmatmul.mubr.f32.gmra.mrb[0].mxu0 %v1693
      %v1866 = vpop.f32.mrb[0].mxu0
      %v1867 = vadd.f32 %v1677, %v1866
      %v1868 = vpop.f32.mrb[0].mxu0
      %1869 = vmatprep.mubr.f32.mxu0 0.0
      %1870 = vmatmul.mubr.f32.gmra.mrb[0].mxu0 %v1696
      %v1871 = vpop.f32.mrb[0].mxu0
      %v1872 = vadd.f32 %v1677, %v1871
      %v1873 = vpop.f32.mrb[0].mxu0
      %1874 = vmatprep.mubr.f32.mxu0 0.0
      %1875 = vmatmul.mubr.f32.gmra.mrb[0].mxu0 %v1699
      %v1876 = vpop.f32.mrb[0].mxu0
      %v1877 = vadd.f32 %v1677, %v1876
      %v1878 = vpop.f32.mrb[0].mxu0
      %1879 = vmatprep.mubr.f32.mxu0 0.0
      %1880 = vmatmul.mubr.f32.gmra.mrb[0].mxu0 %v1702
      %v1881 = vpop.f32.mrb[0].mxu0
      %v1882 = vadd.f32 %v1677, %v1881
      %v1883 = vpop.f32.mrb[0].mxu0
      %1884 = vmatprep.mubr.f32.mxu0 0.0
      %1885 = vmatmul.mubr.f32.gmra.mrb[0].mxu0 %v1705
      %v1886 = vpop.f32.mrb[0].mxu0
      %v1887 = vadd.f32 %v1677, %v1886
      %v1888 = vpop.f32.mrb[0].mxu0
      %1889 = vmatprep.mubr.f32.mxu0 0.0
      %1890 = vmatmul.mubr.f32.gmra.mrb[0].mxu0 %v1708
      %v1891 = vpop.f32.mrb[0].mxu0
      %v1892 = vadd.f32 %v1677, %v1891
      %v1893 = vpop.f32.mrb[0].mxu0
      %1894 = vmatprep.mubr.f32.mxu0 0.0
      %1895 = vmatmul.mubr.f32.gmra.mrb[0].mxu0 %v1711
      %v1896 = vpop.f32.mrb[0].mxu0
      %v1897 = vadd.f32 %v1677, %v1896
      %v1898 = vpop.f32.mrb[0].mxu0
      %1899 = vmatprep.mubr.f32.mxu0 0.0
      %1900 = vmatmul.mubr.f32.gmra.mrb[0].mxu0 %v1714
      %v1901 = vpop.f32.mrb[0].mxu0
      %v1902 = vadd.f32 %v1677, %v1901
      %v1903 = vpop.f32.mrb[0].mxu0
      %1904 = vmatprep.mubr.f32.mxu0 0.0
      %1905 = vmatmul.mubr.f32.gmra.mrb[0].mxu0 %v1717
      %v1906 = vpop.f32.mrb[0].mxu0
      %v1907 = vadd.f32 %v1677, %v1906
      %v1908 = vpop.f32.mrb[0].mxu0
      %1909 = vmatprep.mubr.f32.mxu0 0.0
      %1910 = vmatmul.mubr.f32.gmra.mrb[0].mxu0 %v1720
      %v1911 = vpop.f32.mrb[0].mxu0
      %v1912 = vadd.f32 %v1677, %v1911
      %v1913 = vpop.f32.mrb[0].mxu0
      %1914 = vmatprep.mubr.f32.mxu0 0.0
      %1915 = vmatmul.mubr.f32.gmra.mrb[0].mxu0 %v1723
      %v1916 = vpop.f32.mrb[0].mxu0
      %v1917 = vadd.f32 %v1677, %v1916
      %v1918 = vpop.f32.mrb[0].mxu0
      %1919 = vmatprep.mubr.f32.mxu0 0.0
      %1920 = vmatmul.mubr.f32.gmra.mrb[0].mxu0 %v1726
      %v1921 = vpop.f32.mrb[0].mxu0
      %v1922 = vadd.f32 %v1677, %v1921
      %v1923 = vpop.f32.mrb[0].mxu0
      %1924 = vmatprep.mubr.f32.mxu0 0.0
      %1925 = vmatmul.mubr.f32.gmra.mrb[0].mxu0 %v1729
      %v1926 = vpop.f32.mrb[0].mxu0
      %v1927 = vadd.f32 %v1677, %v1926
      %v1928 = vpop.f32.mrb[0].mxu0
      %1929 = vmatprep.mubr.f32.mxu0 0.0
      %1930 = vmatmul.mubr.f32.gmra.mrb[0].mxu0 %v1732
      %v1931 = vpop.f32.mrb[0].mxu0
      %v1932 = vadd.f32 %v1677, %v1931
      %v1933 = vpop.f32.mrb[0].mxu0
      %1934 = vmatprep.mubr.f32.mxu0 0.0
      %1935 = vmatmul.mubr.f32.gmra.mrb[0].mxu0 %v1735
      %v1936 = vpop.f32.mrb[0].mxu0
      %v1937 = vadd.f32 %v1677, %v1936
      %v1938 = vpop.f32.mrb[0].mxu0
      %1939 = vmatprep.mubr.f32.mxu0 0.0
      %1940 = vmatmul.mubr.f32.gmra.mrb[0].mxu0 %v1738
      %v1941 = vpop.f32.mrb[0].mxu0
      %v1942 = vadd.f32 %v1677, %v1941
      %v1943 = vpop.f32.mrb[0].mxu0
      %1944 = vmatprep.mubr.f32.mxu0 0.0
      %1945 = vmatmul.mubr.f32.gmra.mrb[0].mxu0 %v1741
      %v1946 = vpop.f32.mrb[0].mxu0
      %v1947 = vadd.f32 %v1677, %v1946
      %v1948 = vpop.f32.mrb[0].mxu0
      %1949 = vmatprep.mubr.f32.mxu0 0.0
      %1950 = vmatmul.mubr.f32.gmra.mrb[0].mxu0 %v1744
      %v1951 = vpop.f32.mrb[0].mxu0
      %v1952 = vadd.f32 %v1677, %v1951
      %v1953 = vpop.f32.mrb[0].mxu0
      %1954 = vmatprep.mubr.f32.mxu0 0.0
      %1955 = vmatmul.mubr.f32.gmra.mrb[0].mxu0 %v1747
      %v1956 = vpop.f32.mrb[0].mxu0
      %v1957 = vadd.f32 %v1677, %v1956
      %v1958 = vpop.f32.mrb[0].mxu0
      %1959 = vmatprep.mubr.f32.mxu0 0.0
      %1960 = vmatmul.mubr.f32.gmra.mrb[0].mxu0 %v1750
      %v1961 = vpop.f32.mrb[0].mxu0
      %v1962 = vadd.f32 %v1677, %v1961
      %v1963 = vpop.f32.mrb[0].mxu0
      %1964 = vmatprep.mubr.f32.mxu0 0.0
      %1965 = vmatmul.mubr.f32.gmra.mrb[0].mxu0 %v1753
      %v1966 = vpop.f32.mrb[0].mxu0
      %v1967 = vadd.f32 %v1677, %v1966
      %v1968 = vpop.f32.mrb[0].mxu0
      %1969 = vmatprep.mubr.f32.mxu0 0.0
      %1970 = vmatmul.mubr.f32.gmra.mrb[0].mxu0 %v1756
      %v1971 = vpop.f32.mrb[0].mxu0
      %v1972 = vadd.f32 %v1677, %v1971
      %v1973 = vpop.f32.mrb[0].mxu0
      %1974 = vmatprep.mubr.f32.mxu0 0.0
      %1975 = vmatmul.mubr.f32.gmra.mrb[0].mxu0 %v1759
      %v1976 = vpop.f32.mrb[0].mxu0
      %v1977 = vadd.f32 %v1677, %v1976
      %v1978 = vpop.f32.mrb[0].mxu0
      %1979 = vmatprep.mubr.f32.mxu0 0.0
      %1980 = vmatmul.mubr.f32.gmra.mrb[0].mxu0 %v1762
      %v1981 = vpop.f32.mrb[0].mxu0
      %v1982 = vadd.f32 %v1677, %v1981
      %v1983 = vpop.f32.mrb[0].mxu0
      %1984 = vmatprep.mubr.f32.mxu0 0.0
      %1985 = vmatmul.mubr.f32.gmra.mrb[0].mxu0 %v1765
      %v1986 = vpop.f32.mrb[0].mxu0
      %v1987 = vadd.f32 %v1677, %v1986
      %v1988 = vpop.f32.mrb[0].mxu0
      %1989 = vmatprep.mubr.f32.mxu0 0.0
      %1990 = vmatmul.mubr.f32.gmra.mrb[0].mxu0 %v1768
      %v1991 = vpop.f32.mrb[0].mxu0
      %v1992 = vadd.f32 %v1677, %v1991
      %v1993 = vpop.f32.mrb[0].mxu0
      %1994 = vmatprep.mubr.f32.mxu0 0.0
      %1995 = vmatmul.mubr.f32.gmra.mrb[0].mxu0 %v1771
      %v1996 = vpop.f32.mrb[0].mxu0
      %v1997 = vadd.f32 %v1677, %v1996
      %v1998 = vpop.f32.mrb[0].mxu0
      %1999 = vmatprep.mubr.f32.mxu0 0.0
      %2000 = vmatmul.mubr.f32.gmra.mrb[0].mxu0 %v1774
      %v2001 = vpop.f32.mrb[0].mxu0
      %v2002 = vadd.f32 %v1677, %v2001
      %v2003 = vpop.f32.mrb[0].mxu0
      %2004 = vdwg.mxu0
      %v2005 = vmax.f32 %v1847, 0.0
      %v2006 = vmax.f32 %v1852, 0.0
      %v2007 = vmax.f32 %v1857, 0.0
      %v2008 = vmax.f32 %v1862, 0.0
      %v2009 = vmax.f32 %v1867, 0.0
      %v2010 = vmax.f32 %v1872, 0.0
      %v2011 = vmax.f32 %v1877, 0.0
      %v2012 = vmax.f32 %v1882, 0.0
      %v2013 = vmax.f32 %v1887, 0.0
      %v2014 = vmax.f32 %v1892, 0.0
      %v2015 = vmax.f32 %v1897, 0.0
      %v2016 = vmax.f32 %v1902, 0.0
      %v2017 = vmax.f32 %v1907, 0.0
      %v2018 = vmax.f32 %v1912, 0.0
      %v2019 = vmax.f32 %v1917, 0.0
      %v2020 = vmax.f32 %v1922, 0.0
      %v2021 = vmax.f32 %v1927, 0.0
      %v2022 = vmax.f32 %v1932, 0.0
      %v2023 = vmax.f32 %v1937, 0.0
      %v2024 = vmax.f32 %v1942, 0.0
      %v2025 = vmax.f32 %v1947, 0.0
      %v2026 = vmax.f32 %v1952, 0.0
      %v2027 = vmax.f32 %v1957, 0.0
      %v2028 = vmax.f32 %v1962, 0.0
      %v2029 = vmax.f32 %v1967, 0.0
      %v2030 = vmax.f32 %v1972, 0.0
      %v2031 = vmax.f32 %v1977, 0.0
      %v2032 = vmax.f32 %v1982, 0.0
      %v2033 = vmax.f32 %v1987, 0.0
      %v2034 = vmax.f32 %v1992, 0.0
      %v2035 = vmax.f32 %v1997, 0.0
      %v2036 = vmax.f32 %v2002, 0.0
      %s2037 = scalar_lea.vmem [#allocation3], 24
      %2038 = vst.msk [vmem:[%s2037 + $0x1] sm:$0xff] %vm171, %v2005
      %2039 = vst.msk [vmem:[%s2037 + $0x9] sm:$0xff] %vm171, %v2006
      %2040 = vst.msk [vmem:[%s2037 + $0x19] sm:$0xff] %vm171, %v2007
      %2041 = vst.msk [vmem:[%s2037 + $0x21] sm:$0xff] %vm171, %v2008
      %2042 = vst.msk [vmem:[%s2037 + $0x31] sm:$0xff] %vm171, %v2009
      %2043 = vst.msk [vmem:[%s2037 + $0x39] sm:$0xff] %vm171, %v2010
      %2044 = vst.msk [vmem:[%s2037 + $0x49] sm:$0xff] %vm171, %v2011
      %2045 = vst.msk [vmem:[%s2037 + $0x51] sm:$0xff] %vm171, %v2012
      %2046 = vst.msk [vmem:[%s2037 + $0x61] sm:$0xff] %vm171, %v2013
      %2047 = vst.msk [vmem:[%s2037 + $0x69] sm:$0xff] %vm171, %v2014
      %2048 = vst.msk [vmem:[%s2037 + $0x79] sm:$0xff] %vm171, %v2015
      %2049 = vst.msk [vmem:[%s2037 + $0x81] sm:$0xff] %vm171, %v2016
      %2050 = vst.msk [vmem:[%s2037 + $0x91] sm:$0xff] %vm171, %v2017
      %2051 = vst.msk [vmem:[%s2037 + $0x99] sm:$0xff] %vm171, %v2018
      %2052 = vst.msk [vmem:[%s2037 + $0xa9] sm:$0xff] %vm171, %v2019
      %2053 = vst.msk [vmem:[%s2037 + $0xb1] sm:$0xff] %vm171, %v2020
      %2054 = vst.msk [vmem:[%s2037 + $0xc1] sm:$0xff] %vm171, %v2021
      %2055 = vst.msk [vmem:[%s2037 + $0xc9] sm:$0xff] %vm171, %v2022
      %2056 = vst.msk [vmem:[%s2037 + $0xd9] sm:$0xff] %vm171, %v2023
      %2057 = vst.msk [vmem:[%s2037 + $0xe1] sm:$0xff] %vm171, %v2024
      %2058 = vst.msk [vmem:[%s2037 + $0xf1] sm:$0xff] %vm171, %v2025
      %2059 = vst.msk [vmem:[%s2037 + $0xf9] sm:$0xff] %vm171, %v2026
      %2060 = vst.msk [vmem:[%s2037 + $0x109] sm:$0xff] %vm171, %v2027
      %2061 = vst.msk [vmem:[%s2037 + $0x111] sm:$0xff] %vm171, %v2028
      %2062 = vst.msk [vmem:[%s2037 + $0x121] sm:$0xff] %vm171, %v2029
      %2063 = vst.msk [vmem:[%s2037 + $0x129] sm:$0xff] %vm171, %v2030
      %2064 = vst.msk [vmem:[%s2037 + $0x139] sm:$0xff] %vm171, %v2031
      %2065 = vst.msk [vmem:[%s2037 + $0x141] sm:$0xff] %vm171, %v2032
      %2066 = vst.msk [vmem:[%s2037 + $0x151] sm:$0xff] %vm171, %v2033
      %2067 = vst.msk [vmem:[%s2037 + $0x159] sm:$0xff] %vm171, %v2034
      %2068 = vst.msk [vmem:[%s2037 + $0x169] sm:$0xff] %vm171, %v2035
      %2069 = vst.msk [vmem:[%s2037 + $0x171] sm:$0xff] %vm171, %v2036
      %v2070 = vld [vmem:[#allocation3] sm:$0xff]
      %v2071 = vld [vmem:[#allocation3 + $0x8] sm:$0xff]
      %v2072 = vld [vmem:[#allocation3 + $0x10] sm:$0x3]
      %v2073 = vld [vmem:[#allocation3 + $0x18] sm:$0xff]
      %v2074 = vld [vmem:[#allocation3 + $0x20] sm:$0xff]
      %v2075 = vld [vmem:[#allocation3 + $0x28] sm:$0x3]
      %v2076 = vld [vmem:[#allocation3 + $0x30] sm:$0xff]
      %v2077 = vld [vmem:[#allocation3 + $0x38] sm:$0xff]
      %v2078 = vld [vmem:[#allocation3 + $0x40] sm:$0x3]
      %v2079 = vld [vmem:[#allocation3 + $0x48] sm:$0xff]
      %v2080 = vld [vmem:[#allocation3 + $0x50] sm:$0xff]
      %v2081 = vld [vmem:[#allocation3 + $0x58] sm:$0x3]
      %v2082 = vld [vmem:[#allocation3 + $0x60] sm:$0xff]
      %v2083 = vld [vmem:[#allocation3 + $0x68] sm:$0xff]
      %v2084 = vld [vmem:[#allocation3 + $0x70] sm:$0x3]
      %v2085 = vld [vmem:[#allocation3 + $0x78] sm:$0xff]
      %v2086 = vld [vmem:[#allocation3 + $0x80] sm:$0xff]
      %v2087 = vld [vmem:[#allocation3 + $0x88] sm:$0x3]
      %v2088 = vld [vmem:[#allocation3 + $0x90] sm:$0xff]
      %v2089 = vld [vmem:[#allocation3 + $0x98] sm:$0xff]
      %v2090 = vld [vmem:[#allocation3 + $0xa0] sm:$0x3]
      %v2091 = vld [vmem:[#allocation3 + $0xa8] sm:$0xff]
      %v2092 = vld [vmem:[#allocation3 + $0xb0] sm:$0xff]
      %v2093 = vld [vmem:[#allocation3 + $0xb8] sm:$0x3]
      %v2094 = vld [vmem:[#allocation3 + $0xc0] sm:$0xff]
      %v2095 = vld [vmem:[#allocation3 + $0xc8] sm:$0xff]
      %v2096 = vld [vmem:[#allocation3 + $0xd0] sm:$0x3]
      %v2097 = vld [vmem:[#allocation3 + $0xd8] sm:$0xff]
      %v2098 = vld [vmem:[#allocation3 + $0xe0] sm:$0xff]
      %v2099 = vld [vmem:[#allocation3 + $0xe8] sm:$0x3]
      %v2100 = vld [vmem:[#allocation3 + $0xf0] sm:$0xff]
      %v2101 = vld [vmem:[#allocation3 + $0xf8] sm:$0xff]
      %v2102 = vld [vmem:[#allocation3 + $0x100] sm:$0x3]
      %v2103 = vld [vmem:[#allocation3 + $0x108] sm:$0xff]
      %v2104 = vld [vmem:[#allocation3 + $0x110] sm:$0xff]
      %v2105 = vld [vmem:[#allocation3 + $0x118] sm:$0x3]
      %v2106 = vld [vmem:[#allocation3 + $0x120] sm:$0xff]
      %v2107 = vld [vmem:[#allocation3 + $0x128] sm:$0xff]
      %v2108 = vld [vmem:[#allocation3 + $0x130] sm:$0x3]
      %v2109 = vld [vmem:[#allocation3 + $0x138] sm:$0xff]
      %v2110 = vld [vmem:[#allocation3 + $0x140] sm:$0xff]
      %v2111 = vld [vmem:[#allocation3 + $0x148] sm:$0x3]
      %v2112 = vld [vmem:[#allocation3 + $0x150] sm:$0xff]
      %v2113 = vld [vmem:[#allocation3 + $0x158] sm:$0xff]
      %v2114 = vld [vmem:[#allocation3 + $0x160] sm:$0x3]
      %v2115 = vld [vmem:[#allocation3 + $0x168] sm:$0xff]
      %v2116 = vld [vmem:[#allocation3 + $0x170] sm:$0xff]
      %v2117 = vld [vmem:[#allocation3 + $0x178] sm:$0x3]
      %v2118 = vld [vmem:[#allocation3 + $0x180] sm:$0xff]
      %v2119 = vld [vmem:[#allocation3 + $0x188] sm:$0xff]
      %v2120 = vld [vmem:[#allocation3 + $0x190] sm:$0x3]
      %v2121 = vld [vmem:[#allocation3 + $0x198] sm:$0xff]
      %v2122 = vld [vmem:[#allocation3 + $0x1a0] sm:$0xff]
      %v2123 = vld [vmem:[#allocation3 + $0x1a8] sm:$0x3]
      %v2172 = vrot.slane %v2070, 1
      %v2173 = vrot.slane %v2071, 1
      %v2174 = vsel %vm448, %v2172, %v2173
      %v2175 = vrot.slane %v2072, 1
      %v2176 = vsel %vm448, %v2173, %v2175
      %v2177 = vrot.slane %v2073, 1
      %v2178 = vrot.slane %v2074, 1
      %v2179 = vsel %vm448, %v2177, %v2178
      %v2180 = vrot.slane %v2075, 1
      %v2181 = vsel %vm448, %v2178, %v2180
      %v2182 = vrot.slane %v2076, 1
      %v2183 = vrot.slane %v2077, 1
      %v2184 = vsel %vm448, %v2182, %v2183
      %v2185 = vrot.slane %v2078, 1
      %v2186 = vsel %vm448, %v2183, %v2185
      %v2187 = vrot.slane %v2079, 1
      %v2188 = vrot.slane %v2080, 1
      %v2189 = vsel %vm448, %v2187, %v2188
      %v2190 = vrot.slane %v2081, 1
      %v2191 = vsel %vm448, %v2188, %v2190
      %v2192 = vrot.slane %v2082, 1
      %v2193 = vrot.slane %v2083, 1
      %v2194 = vsel %vm448, %v2192, %v2193
      %v2195 = vrot.slane %v2084, 1
      %v2196 = vsel %vm448, %v2193, %v2195
      %v2197 = vrot.slane %v2085, 1
      %v2198 = vrot.slane %v2086, 1
      %v2199 = vsel %vm448, %v2197, %v2198
      %v2200 = vrot.slane %v2087, 1
      %v2201 = vsel %vm448, %v2198, %v2200
      %v2202 = vrot.slane %v2088, 1
      %v2203 = vrot.slane %v2089, 1
      %v2204 = vsel %vm448, %v2202, %v2203
      %v2205 = vrot.slane %v2090, 1
      %v2206 = vsel %vm448, %v2203, %v2205
      %v2207 = vrot.slane %v2091, 1
      %v2208 = vrot.slane %v2092, 1
      %v2209 = vsel %vm448, %v2207, %v2208
      %v2210 = vrot.slane %v2093, 1
      %v2211 = vsel %vm448, %v2208, %v2210
      %v2212 = vrot.slane %v2094, 1
      %v2213 = vrot.slane %v2095, 1
      %v2214 = vsel %vm448, %v2212, %v2213
      %v2215 = vrot.slane %v2096, 1
      %v2216 = vsel %vm448, %v2213, %v2215
      %v2217 = vrot.slane %v2097, 1
      %v2218 = vrot.slane %v2098, 1
      %v2219 = vsel %vm448, %v2217, %v2218
      %v2220 = vrot.slane %v2099, 1
      %v2221 = vsel %vm448, %v2218, %v2220
      %v2222 = vrot.slane %v2100, 1
      %v2223 = vrot.slane %v2101, 1
      %v2224 = vsel %vm448, %v2222, %v2223
      %v2225 = vrot.slane %v2102, 1
      %v2226 = vsel %vm448, %v2223, %v2225
      %v2227 = vrot.slane %v2103, 1
      %v2228 = vrot.slane %v2104, 1
      %v2229 = vsel %vm448, %v2227, %v2228
      %v2230 = vrot.slane %v2105, 1
      %v2231 = vsel %vm448, %v2228, %v2230
      %v2232 = vrot.slane %v2106, 1
      %v2233 = vrot.slane %v2107, 1
      %v2234 = vsel %vm448, %v2232, %v2233
      %v2235 = vrot.slane %v2108, 1
      %v2236 = vsel %vm448, %v2233, %v2235
      %v2237 = vrot.slane %v2109, 1
      %v2238 = vrot.slane %v2110, 1
      %v2239 = vsel %vm448, %v2237, %v2238
      %v2240 = vrot.slane %v2111, 1
      %v2241 = vsel %vm448, %v2238, %v2240
      %v2242 = vrot.slane %v2112, 1
      %v2243 = vrot.slane %v2113, 1
      %v2244 = vsel %vm448, %v2242, %v2243
      %v2245 = vrot.slane %v2114, 1
      %v2246 = vsel %vm448, %v2243, %v2245
      %v2247 = vrot.slane %v2115, 1
      %v2248 = vrot.slane %v2116, 1
      %v2249 = vsel %vm448, %v2247, %v2248
      %v2250 = vrot.slane %v2117, 1
      %v2251 = vsel %vm448, %v2248, %v2250
      %v2252 = vrot.slane %v2070, 2
      %v2253 = vrot.slane %v2071, 2
      %v2254 = vsel %vm529, %v2252, %v2253
      %v2255 = vrot.slane %v2072, 2
      %v2256 = vsel %vm529, %v2253, %v2255
      %v2257 = vrot.slane %v2073, 2
      %v2258 = vrot.slane %v2074, 2
      %v2259 = vsel %vm529, %v2257, %v2258
      %v2260 = vrot.slane %v2075, 2
      %v2261 = vsel %vm529, %v2258, %v2260
      %v2262 = vrot.slane %v2076, 2
      %v2263 = vrot.slane %v2077, 2
      %v2264 = vsel %vm529, %v2262, %v2263
      %v2265 = vrot.slane %v2078, 2
      %v2266 = vsel %vm529, %v2263, %v2265
      %v2267 = vrot.slane %v2079, 2
      %v2268 = vrot.slane %v2080, 2
      %v2269 = vsel %vm529, %v2267, %v2268
      %v2270 = vrot.slane %v2081, 2
      %v2271 = vsel %vm529, %v2268, %v2270
      %v2272 = vrot.slane %v2082, 2
      %v2273 = vrot.slane %v2083, 2
      %v2274 = vsel %vm529, %v2272, %v2273
      %v2275 = vrot.slane %v2084, 2
      %v2276 = vsel %vm529, %v2273, %v2275
      %v2277 = vrot.slane %v2085, 2
      %v2278 = vrot.slane %v2086, 2
      %v2279 = vsel %vm529, %v2277, %v2278
      %v2280 = vrot.slane %v2087, 2
      %v2281 = vsel %vm529, %v2278, %v2280
      %v2282 = vrot.slane %v2088, 2
      %v2283 = vrot.slane %v2089, 2
      %v2284 = vsel %vm529, %v2282, %v2283
      %v2285 = vrot.slane %v2090, 2
      %v2286 = vsel %vm529, %v2283, %v2285
      %v2287 = vrot.slane %v2091, 2
      %v2288 = vrot.slane %v2092, 2
      %v2289 = vsel %vm529, %v2287, %v2288
      %v2290 = vrot.slane %v2093, 2
      %v2291 = vsel %vm529, %v2288, %v2290
      %v2292 = vrot.slane %v2094, 2
      %v2293 = vrot.slane %v2095, 2
      %v2294 = vsel %vm529, %v2292, %v2293
      %v2295 = vrot.slane %v2096, 2
      %v2296 = vsel %vm529, %v2293, %v2295
      %v2297 = vrot.slane %v2097, 2
      %v2298 = vrot.slane %v2098, 2
      %v2299 = vsel %vm529, %v2297, %v2298
      %v2300 = vrot.slane %v2099, 2
      %v2301 = vsel %vm529, %v2298, %v2300
      %v2302 = vrot.slane %v2100, 2
      %v2303 = vrot.slane %v2101, 2
      %v2304 = vsel %vm529, %v2302, %v2303
      %v2305 = vrot.slane %v2102, 2
      %v2306 = vsel %vm529, %v2303, %v2305
      %v2307 = vrot.slane %v2103, 2
      %v2308 = vrot.slane %v2104, 2
      %v2309 = vsel %vm529, %v2307, %v2308
      %v2310 = vrot.slane %v2105, 2
      %v2311 = vsel %vm529, %v2308, %v2310
      %v2312 = vrot.slane %v2106, 2
      %v2313 = vrot.slane %v2107, 2
      %v2314 = vsel %vm529, %v2312, %v2313
      %v2315 = vrot.slane %v2108, 2
      %v2316 = vsel %vm529, %v2313, %v2315
      %v2317 = vrot.slane %v2109, 2
      %v2318 = vrot.slane %v2110, 2
      %v2319 = vsel %vm529, %v2317, %v2318
      %v2320 = vrot.slane %v2111, 2
      %v2321 = vsel %vm529, %v2318, %v2320
      %v2322 = vrot.slane %v2112, 2
      %v2323 = vrot.slane %v2113, 2
      %v2324 = vsel %vm529, %v2322, %v2323
      %v2325 = vrot.slane %v2114, 2
      %v2326 = vsel %vm529, %v2323, %v2325
      %v2327 = vrot.slane %v2115, 2
      %v2328 = vrot.slane %v2116, 2
      %v2329 = vsel %vm529, %v2327, %v2328
      %v2330 = vrot.slane %v2117, 2
      %v2331 = vsel %vm529, %v2328, %v2330
      %v2335 = vrot.slane %v2118, 1
      %v2336 = vrot.slane %v2119, 1
      %v2337 = vsel %vm448, %v2335, %v2336
      %v2338 = vrot.slane %v2120, 1
      %v2339 = vsel %vm448, %v2336, %v2338
      %v2340 = vrot.slane %v2118, 2
      %v2341 = vrot.slane %v2119, 2
      %v2342 = vsel %vm529, %v2340, %v2341
      %v2343 = vrot.slane %v2120, 2
      %v2344 = vsel %vm529, %v2341, %v2343
      %v2348 = vrot.slane %v2121, 1
      %v2349 = vrot.slane %v2122, 1
      %v2350 = vsel %vm448, %v2348, %v2349
      %v2351 = vrot.slane %v2123, 1
      %v2352 = vsel %vm448, %v2349, %v2351
      %v2353 = vrot.slane %v2121, 2
      %v2354 = vrot.slane %v2122, 2
      %v2355 = vsel %vm529, %v2353, %v2354
      %v2356 = vrot.slane %v2123, 2
      %v2357 = vsel %vm529, %v2354, %v2356
      %2358 = vrot.lane.b32.xlu0 %v2174, 4
      %v2359 = vpop.permute.xlu0 %2358
      %2360 = vrot.lane.b32.xlu0 %v2176, 4
      %v2361 = vpop.permute.xlu0 %2360
      %2362 = vrot.lane.b32.xlu0 %v2179, 4
      %v2363 = vpop.permute.xlu0 %2362
      %2364 = vrot.lane.b32.xlu0 %v2181, 4
      %v2365 = vpop.permute.xlu0 %2364
      %2366 = vrot.lane.b32.xlu0 %v2184, 4
      %v2367 = vpop.permute.xlu0 %2366
      %2368 = vrot.lane.b32.xlu0 %v2186, 4
      %v2369 = vpop.permute.xlu0 %2368
      %2370 = vrot.lane.b32.xlu0 %v2189, 4
      %v2371 = vpop.permute.xlu0 %2370
      %2372 = vrot.lane.b32.xlu0 %v2191, 4
      %v2373 = vpop.permute.xlu0 %2372
      %2374 = vrot.lane.b32.xlu0 %v2194, 4
      %v2375 = vpop.permute.xlu0 %2374
      %2376 = vrot.lane.b32.xlu0 %v2196, 4
      %v2377 = vpop.permute.xlu0 %2376
      %2378 = vrot.lane.b32.xlu0 %v2199, 4
      %v2379 = vpop.permute.xlu0 %2378
      %2380 = vrot.lane.b32.xlu0 %v2201, 4
      %v2381 = vpop.permute.xlu0 %2380
      %2382 = vrot.lane.b32.xlu0 %v2204, 4
      %v2383 = vpop.permute.xlu0 %2382
      %2384 = vrot.lane.b32.xlu0 %v2206, 4
      %v2385 = vpop.permute.xlu0 %2384
      %2386 = vrot.lane.b32.xlu0 %v2209, 4
      %v2387 = vpop.permute.xlu0 %2386
      %2388 = vrot.lane.b32.xlu0 %v2211, 4
      %v2389 = vpop.permute.xlu0 %2388
      %2390 = vrot.lane.b32.xlu0 %v2214, 4
      %v2391 = vpop.permute.xlu0 %2390
      %2392 = vrot.lane.b32.xlu0 %v2216, 4
      %v2393 = vpop.permute.xlu0 %2392
      %2394 = vrot.lane.b32.xlu0 %v2219, 4
      %v2395 = vpop.permute.xlu0 %2394
      %2396 = vrot.lane.b32.xlu0 %v2221, 4
      %v2397 = vpop.permute.xlu0 %2396
      %2398 = vrot.lane.b32.xlu0 %v2224, 4
      %v2399 = vpop.permute.xlu0 %2398
      %2400 = vrot.lane.b32.xlu0 %v2226, 4
      %v2401 = vpop.permute.xlu0 %2400
      %2402 = vrot.lane.b32.xlu0 %v2229, 4
      %v2403 = vpop.permute.xlu0 %2402
      %2404 = vrot.lane.b32.xlu0 %v2231, 4
      %v2405 = vpop.permute.xlu0 %2404
      %2406 = vrot.lane.b32.xlu0 %v2234, 4
      %v2407 = vpop.permute.xlu0 %2406
      %2408 = vrot.lane.b32.xlu0 %v2236, 4
      %v2409 = vpop.permute.xlu0 %2408
      %2410 = vrot.lane.b32.xlu0 %v2239, 4
      %v2411 = vpop.permute.xlu0 %2410
      %2412 = vrot.lane.b32.xlu0 %v2241, 4
      %v2413 = vpop.permute.xlu0 %2412
      %2414 = vrot.lane.b32.xlu0 %v2244, 4
      %v2415 = vpop.permute.xlu0 %2414
      %2416 = vrot.lane.b32.xlu0 %v2246, 4
      %v2417 = vpop.permute.xlu0 %2416
      %2418 = vrot.lane.b32.xlu0 %v2249, 4
      %v2419 = vpop.permute.xlu0 %2418
      %2420 = vrot.lane.b32.xlu0 %v2251, 4
      %v2421 = vpop.permute.xlu0 %2420
      %2454 = vrot.lane.b32.xlu0 %v2254, 8
      %v2455 = vpop.permute.xlu0 %2454
      %2456 = vrot.lane.b32.xlu0 %v2256, 8
      %v2457 = vpop.permute.xlu0 %2456
      %2458 = vrot.lane.b32.xlu0 %v2259, 8
      %v2459 = vpop.permute.xlu0 %2458
      %2460 = vrot.lane.b32.xlu0 %v2261, 8
      %v2461 = vpop.permute.xlu0 %2460
      %2462 = vrot.lane.b32.xlu0 %v2264, 8
      %v2463 = vpop.permute.xlu0 %2462
      %2464 = vrot.lane.b32.xlu0 %v2266, 8
      %v2465 = vpop.permute.xlu0 %2464
      %2466 = vrot.lane.b32.xlu0 %v2269, 8
      %v2467 = vpop.permute.xlu0 %2466
      %2468 = vrot.lane.b32.xlu0 %v2271, 8
      %v2469 = vpop.permute.xlu0 %2468
      %2470 = vrot.lane.b32.xlu0 %v2274, 8
      %v2471 = vpop.permute.xlu0 %2470
      %2472 = vrot.lane.b32.xlu0 %v2276, 8
      %v2473 = vpop.permute.xlu0 %2472
      %2474 = vrot.lane.b32.xlu0 %v2279, 8
      %v2475 = vpop.permute.xlu0 %2474
      %2476 = vrot.lane.b32.xlu0 %v2281, 8
      %v2477 = vpop.permute.xlu0 %2476
      %2478 = vrot.lane.b32.xlu0 %v2284, 8
      %v2479 = vpop.permute.xlu0 %2478
      %2480 = vrot.lane.b32.xlu0 %v2286, 8
      %v2481 = vpop.permute.xlu0 %2480
      %2482 = vrot.lane.b32.xlu0 %v2289, 8
      %v2483 = vpop.permute.xlu0 %2482
      %2484 = vrot.lane.b32.xlu0 %v2291, 8
      %v2485 = vpop.permute.xlu0 %2484
      %2486 = vrot.lane.b32.xlu0 %v2294, 8
      %v2487 = vpop.permute.xlu0 %2486
      %2488 = vrot.lane.b32.xlu0 %v2296, 8
      %v2489 = vpop.permute.xlu0 %2488
      %2490 = vrot.lane.b32.xlu0 %v2299, 8
      %v2491 = vpop.permute.xlu0 %2490
      %2492 = vrot.lane.b32.xlu0 %v2301, 8
      %v2493 = vpop.permute.xlu0 %2492
      %2494 = vrot.lane.b32.xlu0 %v2304, 8
      %v2495 = vpop.permute.xlu0 %2494
      %2496 = vrot.lane.b32.xlu0 %v2306, 8
      %v2497 = vpop.permute.xlu0 %2496
      %2498 = vrot.lane.b32.xlu0 %v2309, 8
      %v2499 = vpop.permute.xlu0 %2498
      %2500 = vrot.lane.b32.xlu0 %v2311, 8
      %v2501 = vpop.permute.xlu0 %2500
      %2502 = vrot.lane.b32.xlu0 %v2314, 8
      %v2503 = vpop.permute.xlu0 %2502
      %2504 = vrot.lane.b32.xlu0 %v2316, 8
      %v2505 = vpop.permute.xlu0 %2504
      %2506 = vrot.lane.b32.xlu0 %v2319, 8
      %v2507 = vpop.permute.xlu0 %2506
      %2508 = vrot.lane.b32.xlu0 %v2321, 8
      %v2509 = vpop.permute.xlu0 %2508
      %2510 = vrot.lane.b32.xlu0 %v2324, 8
      %v2511 = vpop.permute.xlu0 %2510
      %2512 = vrot.lane.b32.xlu0 %v2326, 8
      %v2513 = vpop.permute.xlu0 %2512
      %2514 = vrot.lane.b32.xlu0 %v2329, 8
      %v2515 = vpop.permute.xlu0 %2514
      %2516 = vrot.lane.b32.xlu0 %v2331, 8
      %v2517 = vpop.permute.xlu0 %2516
      %2550 = vrot.lane.b32.xlu0 %v2073, 12
      %v2551 = vpop.permute.xlu0 %2550
      %2552 = vrot.lane.b32.xlu0 %v2074, 12
      %v2553 = vpop.permute.xlu0 %2552
      %2554 = vrot.lane.b32.xlu0 %v2076, 12
      %v2555 = vpop.permute.xlu0 %2554
      %2556 = vrot.lane.b32.xlu0 %v2077, 12
      %v2557 = vpop.permute.xlu0 %2556
      %2558 = vrot.lane.b32.xlu0 %v2079, 12
      %v2559 = vpop.permute.xlu0 %2558
      %2560 = vrot.lane.b32.xlu0 %v2080, 12
      %v2561 = vpop.permute.xlu0 %2560
      %2562 = vrot.lane.b32.xlu0 %v2082, 12
      %v2563 = vpop.permute.xlu0 %2562
      %2564 = vrot.lane.b32.xlu0 %v2083, 12
      %v2565 = vpop.permute.xlu0 %2564
      %2566 = vrot.lane.b32.xlu0 %v2085, 12
      %v2567 = vpop.permute.xlu0 %2566
      %2568 = vrot.lane.b32.xlu0 %v2086, 12
      %v2569 = vpop.permute.xlu0 %2568
      %2570 = vrot.lane.b32.xlu0 %v2088, 12
      %v2571 = vpop.permute.xlu0 %2570
      %2572 = vrot.lane.b32.xlu0 %v2089, 12
      %v2573 = vpop.permute.xlu0 %2572
      %2574 = vrot.lane.b32.xlu0 %v2091, 12
      %v2575 = vpop.permute.xlu0 %2574
      %2576 = vrot.lane.b32.xlu0 %v2092, 12
      %v2577 = vpop.permute.xlu0 %2576
      %2578 = vrot.lane.b32.xlu0 %v2094, 12
      %v2579 = vpop.permute.xlu0 %2578
      %2580 = vrot.lane.b32.xlu0 %v2095, 12
      %v2581 = vpop.permute.xlu0 %2580
      %2582 = vrot.lane.b32.xlu0 %v2097, 12
      %v2583 = vpop.permute.xlu0 %2582
      %2584 = vrot.lane.b32.xlu0 %v2098, 12
      %v2585 = vpop.permute.xlu0 %2584
      %2586 = vrot.lane.b32.xlu0 %v2100, 12
      %v2587 = vpop.permute.xlu0 %2586
      %2588 = vrot.lane.b32.xlu0 %v2101, 12
      %v2589 = vpop.permute.xlu0 %2588
      %2590 = vrot.lane.b32.xlu0 %v2103, 12
      %v2591 = vpop.permute.xlu0 %2590
      %2592 = vrot.lane.b32.xlu0 %v2104, 12
      %v2593 = vpop.permute.xlu0 %2592
      %2594 = vrot.lane.b32.xlu0 %v2106, 12
      %v2595 = vpop.permute.xlu0 %2594
      %2596 = vrot.lane.b32.xlu0 %v2107, 12
      %v2597 = vpop.permute.xlu0 %2596
      %2598 = vrot.lane.b32.xlu0 %v2109, 12
      %v2599 = vpop.permute.xlu0 %2598
      %2600 = vrot.lane.b32.xlu0 %v2110, 12
      %v2601 = vpop.permute.xlu0 %2600
      %2602 = vrot.lane.b32.xlu0 %v2112, 12
      %v2603 = vpop.permute.xlu0 %2602
      %2604 = vrot.lane.b32.xlu0 %v2113, 12
      %v2605 = vpop.permute.xlu0 %2604
      %2606 = vrot.lane.b32.xlu0 %v2115, 12
      %v2607 = vpop.permute.xlu0 %2606
      %2608 = vrot.lane.b32.xlu0 %v2116, 12
      %v2609 = vpop.permute.xlu0 %2608
      %2610 = vrot.lane.b32.xlu0 %v2118, 12
      %v2611 = vpop.permute.xlu0 %2610
      %2612 = vrot.lane.b32.xlu0 %v2119, 12
      %v2613 = vpop.permute.xlu0 %2612
      %2646 = vrot.lane.b32.xlu0 %v2179, 16
      %v2647 = vpop.permute.xlu0 %2646
      %2648 = vrot.lane.b32.xlu0 %v2181, 16
      %v2649 = vpop.permute.xlu0 %2648
      %2650 = vrot.lane.b32.xlu0 %v2184, 16
      %v2651 = vpop.permute.xlu0 %2650
      %2652 = vrot.lane.b32.xlu0 %v2186, 16
      %v2653 = vpop.permute.xlu0 %2652
      %2654 = vrot.lane.b32.xlu0 %v2189, 16
      %v2655 = vpop.permute.xlu0 %2654
      %2656 = vrot.lane.b32.xlu0 %v2191, 16
      %v2657 = vpop.permute.xlu0 %2656
      %2658 = vrot.lane.b32.xlu0 %v2194, 16
      %v2659 = vpop.permute.xlu0 %2658
      %2660 = vrot.lane.b32.xlu0 %v2196, 16
      %v2661 = vpop.permute.xlu0 %2660
      %2662 = vrot.lane.b32.xlu0 %v2199, 16
      %v2663 = vpop.permute.xlu0 %2662
      %2664 = vrot.lane.b32.xlu0 %v2201, 16
      %v2665 = vpop.permute.xlu0 %2664
      %2666 = vrot.lane.b32.xlu0 %v2204, 16
      %v2667 = vpop.permute.xlu0 %2666
      %2668 = vrot.lane.b32.xlu0 %v2206, 16
      %v2669 = vpop.permute.xlu0 %2668
      %2670 = vrot.lane.b32.xlu0 %v2209, 16
      %v2671 = vpop.permute.xlu0 %2670
      %2672 = vrot.lane.b32.xlu0 %v2211, 16
      %v2673 = vpop.permute.xlu0 %2672
      %2674 = vrot.lane.b32.xlu0 %v2214, 16
      %v2675 = vpop.permute.xlu0 %2674
      %2676 = vrot.lane.b32.xlu0 %v2216, 16
      %v2677 = vpop.permute.xlu0 %2676
      %2678 = vrot.lane.b32.xlu0 %v2219, 16
      %v2679 = vpop.permute.xlu0 %2678
      %2680 = vrot.lane.b32.xlu0 %v2221, 16
      %v2681 = vpop.permute.xlu0 %2680
      %2682 = vrot.lane.b32.xlu0 %v2224, 16
      %v2683 = vpop.permute.xlu0 %2682
      %2684 = vrot.lane.b32.xlu0 %v2226, 16
      %v2685 = vpop.permute.xlu0 %2684
      %2686 = vrot.lane.b32.xlu0 %v2229, 16
      %v2687 = vpop.permute.xlu0 %2686
      %2688 = vrot.lane.b32.xlu0 %v2231, 16
      %v2689 = vpop.permute.xlu0 %2688
      %2690 = vrot.lane.b32.xlu0 %v2234, 16
      %v2691 = vpop.permute.xlu0 %2690
      %2692 = vrot.lane.b32.xlu0 %v2236, 16
      %v2693 = vpop.permute.xlu0 %2692
      %2694 = vrot.lane.b32.xlu0 %v2239, 16
      %v2695 = vpop.permute.xlu0 %2694
      %2696 = vrot.lane.b32.xlu0 %v2241, 16
      %v2697 = vpop.permute.xlu0 %2696
      %2698 = vrot.lane.b32.xlu0 %v2244, 16
      %v2699 = vpop.permute.xlu0 %2698
      %2700 = vrot.lane.b32.xlu0 %v2246, 16
      %v2701 = vpop.permute.xlu0 %2700
      %2702 = vrot.lane.b32.xlu0 %v2249, 16
      %v2703 = vpop.permute.xlu0 %2702
      %2704 = vrot.lane.b32.xlu0 %v2251, 16
      %v2705 = vpop.permute.xlu0 %2704
      %2706 = vrot.lane.b32.xlu0 %v2337, 16
      %v2707 = vpop.permute.xlu0 %2706
      %2708 = vrot.lane.b32.xlu0 %v2339, 16
      %v2709 = vpop.permute.xlu0 %2708
      %2742 = vrot.lane.b32.xlu0 %v2259, 20
      %v2743 = vpop.permute.xlu0 %2742
      %2744 = vrot.lane.b32.xlu0 %v2261, 20
      %v2745 = vpop.permute.xlu0 %2744
      %2746 = vrot.lane.b32.xlu0 %v2264, 20
      %v2747 = vpop.permute.xlu0 %2746
      %2748 = vrot.lane.b32.xlu0 %v2266, 20
      %v2749 = vpop.permute.xlu0 %2748
      %2750 = vrot.lane.b32.xlu0 %v2269, 20
      %v2751 = vpop.permute.xlu0 %2750
      %2752 = vrot.lane.b32.xlu0 %v2271, 20
      %v2753 = vpop.permute.xlu0 %2752
      %2754 = vrot.lane.b32.xlu0 %v2274, 20
      %v2755 = vpop.permute.xlu0 %2754
      %2756 = vrot.lane.b32.xlu0 %v2276, 20
      %v2757 = vpop.permute.xlu0 %2756
      %2758 = vrot.lane.b32.xlu0 %v2279, 20
      %v2759 = vpop.permute.xlu0 %2758
      %2760 = vrot.lane.b32.xlu0 %v2281, 20
      %v2761 = vpop.permute.xlu0 %2760
      %2762 = vrot.lane.b32.xlu0 %v2284, 20
      %v2763 = vpop.permute.xlu0 %2762
      %2764 = vrot.lane.b32.xlu0 %v2286, 20
      %v2765 = vpop.permute.xlu0 %2764
      %2766 = vrot.lane.b32.xlu0 %v2289, 20
      %v2767 = vpop.permute.xlu0 %2766
      %2768 = vrot.lane.b32.xlu0 %v2291, 20
      %v2769 = vpop.permute.xlu0 %2768
      %2770 = vrot.lane.b32.xlu0 %v2294, 20
      %v2771 = vpop.permute.xlu0 %2770
      %2772 = vrot.lane.b32.xlu0 %v2296, 20
      %v2773 = vpop.permute.xlu0 %2772
      %2774 = vrot.lane.b32.xlu0 %v2299, 20
      %v2775 = vpop.permute.xlu0 %2774
      %2776 = vrot.lane.b32.xlu0 %v2301, 20
      %v2777 = vpop.permute.xlu0 %2776
      %2778 = vrot.lane.b32.xlu0 %v2304, 20
      %v2779 = vpop.permute.xlu0 %2778
      %2780 = vrot.lane.b32.xlu0 %v2306, 20
      %v2781 = vpop.permute.xlu0 %2780
      %2782 = vrot.lane.b32.xlu0 %v2309, 20
      %v2783 = vpop.permute.xlu0 %2782
      %2784 = vrot.lane.b32.xlu0 %v2311, 20
      %v2785 = vpop.permute.xlu0 %2784
      %2786 = vrot.lane.b32.xlu0 %v2314, 20
      %v2787 = vpop.permute.xlu0 %2786
      %2788 = vrot.lane.b32.xlu0 %v2316, 20
      %v2789 = vpop.permute.xlu0 %2788
      %2790 = vrot.lane.b32.xlu0 %v2319, 20
      %v2791 = vpop.permute.xlu0 %2790
      %2792 = vrot.lane.b32.xlu0 %v2321, 20
      %v2793 = vpop.permute.xlu0 %2792
      %2794 = vrot.lane.b32.xlu0 %v2324, 20
      %v2795 = vpop.permute.xlu0 %2794
      %2796 = vrot.lane.b32.xlu0 %v2326, 20
      %v2797 = vpop.permute.xlu0 %2796
      %2798 = vrot.lane.b32.xlu0 %v2329, 20
      %v2799 = vpop.permute.xlu0 %2798
      %2800 = vrot.lane.b32.xlu0 %v2331, 20
      %v2801 = vpop.permute.xlu0 %2800
      %2802 = vrot.lane.b32.xlu0 %v2342, 20
      %v2803 = vpop.permute.xlu0 %2802
      %2804 = vrot.lane.b32.xlu0 %v2344, 20
      %v2805 = vpop.permute.xlu0 %2804
      %2838 = vrot.lane.b32.xlu0 %v2076, 24
      %v2839 = vpop.permute.xlu0 %2838
      %2840 = vrot.lane.b32.xlu0 %v2077, 24
      %v2841 = vpop.permute.xlu0 %2840
      %2842 = vrot.lane.b32.xlu0 %v2079, 24
      %v2843 = vpop.permute.xlu0 %2842
      %2844 = vrot.lane.b32.xlu0 %v2080, 24
      %v2845 = vpop.permute.xlu0 %2844
      %2846 = vrot.lane.b32.xlu0 %v2082, 24
      %v2847 = vpop.permute.xlu0 %2846
      %2848 = vrot.lane.b32.xlu0 %v2083, 24
      %v2849 = vpop.permute.xlu0 %2848
      %2850 = vrot.lane.b32.xlu0 %v2085, 24
      %v2851 = vpop.permute.xlu0 %2850
      %2852 = vrot.lane.b32.xlu0 %v2086, 24
      %v2853 = vpop.permute.xlu0 %2852
      %2854 = vrot.lane.b32.xlu0 %v2088, 24
      %v2855 = vpop.permute.xlu0 %2854
      %2856 = vrot.lane.b32.xlu0 %v2089, 24
      %v2857 = vpop.permute.xlu0 %2856
      %2858 = vrot.lane.b32.xlu0 %v2091, 24
      %v2859 = vpop.permute.xlu0 %2858
      %2860 = vrot.lane.b32.xlu0 %v2092, 24
      %v2861 = vpop.permute.xlu0 %2860
      %2862 = vrot.lane.b32.xlu0 %v2094, 24
      %v2863 = vpop.permute.xlu0 %2862
      %2864 = vrot.lane.b32.xlu0 %v2095, 24
      %v2865 = vpop.permute.xlu0 %2864
      %2866 = vrot.lane.b32.xlu0 %v2097, 24
      %v2867 = vpop.permute.xlu0 %2866
      %2868 = vrot.lane.b32.xlu0 %v2098, 24
      %v2869 = vpop.permute.xlu0 %2868
      %2870 = vrot.lane.b32.xlu0 %v2100, 24
      %v2871 = vpop.permute.xlu0 %2870
      %2872 = vrot.lane.b32.xlu0 %v2101, 24
      %v2873 = vpop.permute.xlu0 %2872
      %2874 = vrot.lane.b32.xlu0 %v2103, 24
      %v2875 = vpop.permute.xlu0 %2874
      %2876 = vrot.lane.b32.xlu0 %v2104, 24
      %v2877 = vpop.permute.xlu0 %2876
      %2878 = vrot.lane.b32.xlu0 %v2106, 24
      %v2879 = vpop.permute.xlu0 %2878
      %2880 = vrot.lane.b32.xlu0 %v2107, 24
      %v2881 = vpop.permute.xlu0 %2880
      %2882 = vrot.lane.b32.xlu0 %v2109, 24
      %v2883 = vpop.permute.xlu0 %2882
      %2884 = vrot.lane.b32.xlu0 %v2110, 24
      %v2885 = vpop.permute.xlu0 %2884
      %2886 = vrot.lane.b32.xlu0 %v2112, 24
      %v2887 = vpop.permute.xlu0 %2886
      %2888 = vrot.lane.b32.xlu0 %v2113, 24
      %v2889 = vpop.permute.xlu0 %2888
      %2890 = vrot.lane.b32.xlu0 %v2115, 24
      %v2891 = vpop.permute.xlu0 %2890
      %2892 = vrot.lane.b32.xlu0 %v2116, 24
      %v2893 = vpop.permute.xlu0 %2892
      %2894 = vrot.lane.b32.xlu0 %v2118, 24
      %v2895 = vpop.permute.xlu0 %2894
      %2896 = vrot.lane.b32.xlu0 %v2119, 24
      %v2897 = vpop.permute.xlu0 %2896
      %2898 = vrot.lane.b32.xlu0 %v2121, 24
      %v2899 = vpop.permute.xlu0 %2898
      %2900 = vrot.lane.b32.xlu0 %v2122, 24
      %v2901 = vpop.permute.xlu0 %2900
      %2934 = vrot.lane.b32.xlu0 %v2184, 28
      %v2935 = vpop.permute.xlu0 %2934
      %2936 = vrot.lane.b32.xlu0 %v2186, 28
      %v2937 = vpop.permute.xlu0 %2936
      %2938 = vrot.lane.b32.xlu0 %v2189, 28
      %v2939 = vpop.permute.xlu0 %2938
      %2940 = vrot.lane.b32.xlu0 %v2191, 28
      %v2941 = vpop.permute.xlu0 %2940
      %2942 = vrot.lane.b32.xlu0 %v2194, 28
      %v2943 = vpop.permute.xlu0 %2942
      %2944 = vrot.lane.b32.xlu0 %v2196, 28
      %v2945 = vpop.permute.xlu0 %2944
      %2946 = vrot.lane.b32.xlu0 %v2199, 28
      %v2947 = vpop.permute.xlu0 %2946
      %2948 = vrot.lane.b32.xlu0 %v2201, 28
      %v2949 = vpop.permute.xlu0 %2948
      %2950 = vrot.lane.b32.xlu0 %v2204, 28
      %v2951 = vpop.permute.xlu0 %2950
      %2952 = vrot.lane.b32.xlu0 %v2206, 28
      %v2953 = vpop.permute.xlu0 %2952
      %2954 = vrot.lane.b32.xlu0 %v2209, 28
      %v2955 = vpop.permute.xlu0 %2954
      %2956 = vrot.lane.b32.xlu0 %v2211, 28
      %v2957 = vpop.permute.xlu0 %2956
      %2958 = vrot.lane.b32.xlu0 %v2214, 28
      %v2959 = vpop.permute.xlu0 %2958
      %2960 = vrot.lane.b32.xlu0 %v2216, 28
      %v2961 = vpop.permute.xlu0 %2960
      %2962 = vrot.lane.b32.xlu0 %v2219, 28
      %v2963 = vpop.permute.xlu0 %2962
      %2964 = vrot.lane.b32.xlu0 %v2221, 28
      %v2965 = vpop.permute.xlu0 %2964
      %2966 = vrot.lane.b32.xlu0 %v2224, 28
      %v2967 = vpop.permute.xlu0 %2966
      %2968 = vrot.lane.b32.xlu0 %v2226, 28
      %v2969 = vpop.permute.xlu0 %2968
      %2970 = vrot.lane.b32.xlu0 %v2229, 28
      %v2971 = vpop.permute.xlu0 %2970
      %2972 = vrot.lane.b32.xlu0 %v2231, 28
      %v2973 = vpop.permute.xlu0 %2972
      %2974 = vrot.lane.b32.xlu0 %v2234, 28
      %v2975 = vpop.permute.xlu0 %2974
      %2976 = vrot.lane.b32.xlu0 %v2236, 28
      %v2977 = vpop.permute.xlu0 %2976
      %2978 = vrot.lane.b32.xlu0 %v2239, 28
      %v2979 = vpop.permute.xlu0 %2978
      %2980 = vrot.lane.b32.xlu0 %v2241, 28
      %v2981 = vpop.permute.xlu0 %2980
      %2982 = vrot.lane.b32.xlu0 %v2244, 28
      %v2983 = vpop.permute.xlu0 %2982
      %2984 = vrot.lane.b32.xlu0 %v2246, 28
      %v2985 = vpop.permute.xlu0 %2984
      %2986 = vrot.lane.b32.xlu0 %v2249, 28
      %v2987 = vpop.permute.xlu0 %2986
      %2988 = vrot.lane.b32.xlu0 %v2251, 28
      %v2989 = vpop.permute.xlu0 %2988
      %2990 = vrot.lane.b32.xlu0 %v2337, 28
      %v2991 = vpop.permute.xlu0 %2990
      %2992 = vrot.lane.b32.xlu0 %v2339, 28
      %v2993 = vpop.permute.xlu0 %2992
      %2994 = vrot.lane.b32.xlu0 %v2350, 28
      %v2995 = vpop.permute.xlu0 %2994
      %2996 = vrot.lane.b32.xlu0 %v2352, 28
      %v2997 = vpop.permute.xlu0 %2996
      %3030 = vrot.lane.b32.xlu0 %v2264, 32
      %v3031 = vpop.permute.xlu0 %3030
      %3032 = vrot.lane.b32.xlu0 %v2266, 32
      %v3033 = vpop.permute.xlu0 %3032
      %3034 = vrot.lane.b32.xlu0 %v2269, 32
      %v3035 = vpop.permute.xlu0 %3034
      %3036 = vrot.lane.b32.xlu0 %v2271, 32
      %v3037 = vpop.permute.xlu0 %3036
      %3038 = vrot.lane.b32.xlu0 %v2274, 32
      %v3039 = vpop.permute.xlu0 %3038
      %3040 = vrot.lane.b32.xlu0 %v2276, 32
      %v3041 = vpop.permute.xlu0 %3040
      %3042 = vrot.lane.b32.xlu0 %v2279, 32
      %v3043 = vpop.permute.xlu0 %3042
      %3044 = vrot.lane.b32.xlu0 %v2281, 32
      %v3045 = vpop.permute.xlu0 %3044
      %3046 = vrot.lane.b32.xlu0 %v2284, 32
      %v3047 = vpop.permute.xlu0 %3046
      %3048 = vrot.lane.b32.xlu0 %v2286, 32
      %v3049 = vpop.permute.xlu0 %3048
      %3050 = vrot.lane.b32.xlu0 %v2289, 32
      %v3051 = vpop.permute.xlu0 %3050
      %3052 = vrot.lane.b32.xlu0 %v2291, 32
      %v3053 = vpop.permute.xlu0 %3052
      %3054 = vrot.lane.b32.xlu0 %v2294, 32
      %v3055 = vpop.permute.xlu0 %3054
      %3056 = vrot.lane.b32.xlu0 %v2296, 32
      %v3057 = vpop.permute.xlu0 %3056
      %3058 = vrot.lane.b32.xlu0 %v2299, 32
      %v3059 = vpop.permute.xlu0 %3058
      %3060 = vrot.lane.b32.xlu0 %v2301, 32
      %v3061 = vpop.permute.xlu0 %3060
      %3062 = vrot.lane.b32.xlu0 %v2304, 32
      %v3063 = vpop.permute.xlu0 %3062
      %3064 = vrot.lane.b32.xlu0 %v2306, 32
      %v3065 = vpop.permute.xlu0 %3064
      %3066 = vrot.lane.b32.xlu0 %v2309, 32
      %v3067 = vpop.permute.xlu0 %3066
      %3068 = vrot.lane.b32.xlu0 %v2311, 32
      %v3069 = vpop.permute.xlu0 %3068
      %3070 = vrot.lane.b32.xlu0 %v2314, 32
      %v3071 = vpop.permute.xlu0 %3070
      %3072 = vrot.lane.b32.xlu0 %v2316, 32
      %v3073 = vpop.permute.xlu0 %3072
      %3074 = vrot.lane.b32.xlu0 %v2319, 32
      %v3075 = vpop.permute.xlu0 %3074
      %3076 = vrot.lane.b32.xlu0 %v2321, 32
      %v3077 = vpop.permute.xlu0 %3076
      %3078 = vrot.lane.b32.xlu0 %v2324, 32
      %v3079 = vpop.permute.xlu0 %3078
      %3080 = vrot.lane.b32.xlu0 %v2326, 32
      %v3081 = vpop.permute.xlu0 %3080
      %3082 = vrot.lane.b32.xlu0 %v2329, 32
      %v3083 = vpop.permute.xlu0 %3082
      %3084 = vrot.lane.b32.xlu0 %v2331, 32
      %v3085 = vpop.permute.xlu0 %3084
      %3086 = vrot.lane.b32.xlu0 %v2342, 32
      %v3087 = vpop.permute.xlu0 %3086
      %3088 = vrot.lane.b32.xlu0 %v2344, 32
      %v3089 = vpop.permute.xlu0 %3088
      %3090 = vrot.lane.b32.xlu0 %v2355, 32
      %v3091 = vpop.permute.xlu0 %3090
      %3092 = vrot.lane.b32.xlu0 %v2357, 32
      %v3093 = vpop.permute.xlu0 %3092
      %v3126 = vsel %vm171, %v2070, %v2359
      %v3127 = vsel %vm171, %v2071, %v2361
      %v3128 = vsel %vm171, %v2073, %v2363
      %v3129 = vsel %vm171, %v2074, %v2365
      %v3130 = vsel %vm171, %v2076, %v2367
      %v3131 = vsel %vm171, %v2077, %v2369
      %v3132 = vsel %vm171, %v2079, %v2371
      %v3133 = vsel %vm171, %v2080, %v2373
      %v3134 = vsel %vm171, %v2082, %v2375
      %v3135 = vsel %vm171, %v2083, %v2377
      %v3136 = vsel %vm171, %v2085, %v2379
      %v3137 = vsel %vm171, %v2086, %v2381
      %v3138 = vsel %vm171, %v2088, %v2383
      %v3139 = vsel %vm171, %v2089, %v2385
      %v3140 = vsel %vm171, %v2091, %v2387
      %v3141 = vsel %vm171, %v2092, %v2389
      %v3142 = vsel %vm171, %v2094, %v2391
      %v3143 = vsel %vm171, %v2095, %v2393
      %v3144 = vsel %vm171, %v2097, %v2395
      %v3145 = vsel %vm171, %v2098, %v2397
      %v3146 = vsel %vm171, %v2100, %v2399
      %v3147 = vsel %vm171, %v2101, %v2401
      %v3148 = vsel %vm171, %v2103, %v2403
      %v3149 = vsel %vm171, %v2104, %v2405
      %v3150 = vsel %vm171, %v2106, %v2407
      %v3151 = vsel %vm171, %v2107, %v2409
      %v3152 = vsel %vm171, %v2109, %v2411
      %v3153 = vsel %vm171, %v2110, %v2413
      %v3154 = vsel %vm171, %v2112, %v2415
      %v3155 = vsel %vm171, %v2113, %v2417
      %v3156 = vsel %vm171, %v2115, %v2419
      %v3157 = vsel %vm171, %v2116, %v2421
      %v3158 = vsel %vm1436, %v3126, %v2455
      %v3159 = vsel %vm1436, %v3127, %v2457
      %v3160 = vsel %vm1436, %v3128, %v2459
      %v3161 = vsel %vm1436, %v3129, %v2461
      %v3162 = vsel %vm1436, %v3130, %v2463
      %v3163 = vsel %vm1436, %v3131, %v2465
      %v3164 = vsel %vm1436, %v3132, %v2467
      %v3165 = vsel %vm1436, %v3133, %v2469
      %v3166 = vsel %vm1436, %v3134, %v2471
      %v3167 = vsel %vm1436, %v3135, %v2473
      %v3168 = vsel %vm1436, %v3136, %v2475
      %v3169 = vsel %vm1436, %v3137, %v2477
      %v3170 = vsel %vm1436, %v3138, %v2479
      %v3171 = vsel %vm1436, %v3139, %v2481
      %v3172 = vsel %vm1436, %v3140, %v2483
      %v3173 = vsel %vm1436, %v3141, %v2485
      %v3174 = vsel %vm1436, %v3142, %v2487
      %v3175 = vsel %vm1436, %v3143, %v2489
      %v3176 = vsel %vm1436, %v3144, %v2491
      %v3177 = vsel %vm1436, %v3145, %v2493
      %v3178 = vsel %vm1436, %v3146, %v2495
      %v3179 = vsel %vm1436, %v3147, %v2497
      %v3180 = vsel %vm1436, %v3148, %v2499
      %v3181 = vsel %vm1436, %v3149, %v2501
      %v3182 = vsel %vm1436, %v3150, %v2503
      %v3183 = vsel %vm1436, %v3151, %v2505
      %v3184 = vsel %vm1436, %v3152, %v2507
      %v3185 = vsel %vm1436, %v3153, %v2509
      %v3186 = vsel %vm1436, %v3154, %v2511
      %v3187 = vsel %vm1436, %v3155, %v2513
      %v3188 = vsel %vm1436, %v3156, %v2515
      %v3189 = vsel %vm1436, %v3157, %v2517
      %v3190 = vsel %vm1469, %v3158, %v2551
      %v3191 = vsel %vm1469, %v3159, %v2553
      %v3192 = vsel %vm1469, %v3160, %v2555
      %v3193 = vsel %vm1469, %v3161, %v2557
      %v3194 = vsel %vm1469, %v3162, %v2559
      %v3195 = vsel %vm1469, %v3163, %v2561
      %v3196 = vsel %vm1469, %v3164, %v2563
      %v3197 = vsel %vm1469, %v3165, %v2565
      %v3198 = vsel %vm1469, %v3166, %v2567
      %v3199 = vsel %vm1469, %v3167, %v2569
      %v3200 = vsel %vm1469, %v3168, %v2571
      %v3201 = vsel %vm1469, %v3169, %v2573
      %v3202 = vsel %vm1469, %v3170, %v2575
      %v3203 = vsel %vm1469, %v3171, %v2577
      %v3204 = vsel %vm1469, %v3172, %v2579
      %v3205 = vsel %vm1469, %v3173, %v2581
      %v3206 = vsel %vm1469, %v3174, %v2583
      %v3207 = vsel %vm1469, %v3175, %v2585
      %v3208 = vsel %vm1469, %v3176, %v2587
      %v3209 = vsel %vm1469, %v3177, %v2589
      %v3210 = vsel %vm1469, %v3178, %v2591
      %v3211 = vsel %vm1469, %v3179, %v2593
      %v3212 = vsel %vm1469, %v3180, %v2595
      %v3213 = vsel %vm1469, %v3181, %v2597
      %v3214 = vsel %vm1469, %v3182, %v2599
      %v3215 = vsel %vm1469, %v3183, %v2601
      %v3216 = vsel %vm1469, %v3184, %v2603
      %v3217 = vsel %vm1469, %v3185, %v2605
      %v3218 = vsel %vm1469, %v3186, %v2607
      %v3219 = vsel %vm1469, %v3187, %v2609
      %v3220 = vsel %vm1469, %v3188, %v2611
      %v3221 = vsel %vm1469, %v3189, %v2613
      %v3222 = vsel %vm1502, %v3190, %v2647
      %v3223 = vsel %vm1502, %v3191, %v2649
      %v3224 = vsel %vm1502, %v3192, %v2651
      %v3225 = vsel %vm1502, %v3193, %v2653
      %v3226 = vsel %vm1502, %v3194, %v2655
      %v3227 = vsel %vm1502, %v3195, %v2657
      %v3228 = vsel %vm1502, %v3196, %v2659
      %v3229 = vsel %vm1502, %v3197, %v2661
      %v3230 = vsel %vm1502, %v3198, %v2663
      %v3231 = vsel %vm1502, %v3199, %v2665
      %v3232 = vsel %vm1502, %v3200, %v2667
      %v3233 = vsel %vm1502, %v3201, %v2669
      %v3234 = vsel %vm1502, %v3202, %v2671
      %v3235 = vsel %vm1502, %v3203, %v2673
      %v3236 = vsel %vm1502, %v3204, %v2675
      %v3237 = vsel %vm1502, %v3205, %v2677
      %v3238 = vsel %vm1502, %v3206, %v2679
      %v3239 = vsel %vm1502, %v3207, %v2681
      %v3240 = vsel %vm1502, %v3208, %v2683
      %v3241 = vsel %vm1502, %v3209, %v2685
      %v3242 = vsel %vm1502, %v3210, %v2687
      %v3243 = vsel %vm1502, %v3211, %v2689
      %v3244 = vsel %vm1502, %v3212, %v2691
      %v3245 = vsel %vm1502, %v3213, %v2693
      %v3246 = vsel %vm1502, %v3214, %v2695
      %v3247 = vsel %vm1502, %v3215, %v2697
      %v3248 = vsel %vm1502, %v3216, %v2699
      %v3249 = vsel %vm1502, %v3217, %v2701
      %v3250 = vsel %vm1502, %v3218, %v2703
      %v3251 = vsel %vm1502, %v3219, %v2705
      %v3252 = vsel %vm1502, %v3220, %v2707
      %v3253 = vsel %vm1502, %v3221, %v2709
      %v3254 = vsel %vm1535, %v3222, %v2743
      %v3255 = vsel %vm1535, %v3223, %v2745
      %v3256 = vsel %vm1535, %v3224, %v2747
      %v3257 = vsel %vm1535, %v3225, %v2749
      %v3258 = vsel %vm1535, %v3226, %v2751
      %v3259 = vsel %vm1535, %v3227, %v2753
      %v3260 = vsel %vm1535, %v3228, %v2755
      %v3261 = vsel %vm1535, %v3229, %v2757
      %v3262 = vsel %vm1535, %v3230, %v2759
      %v3263 = vsel %vm1535, %v3231, %v2761
      %v3264 = vsel %vm1535, %v3232, %v2763
      %v3265 = vsel %vm1535, %v3233, %v2765
      %v3266 = vsel %vm1535, %v3234, %v2767
      %v3267 = vsel %vm1535, %v3235, %v2769
      %v3268 = vsel %vm1535, %v3236, %v2771
      %v3269 = vsel %vm1535, %v3237, %v2773
      %v3270 = vsel %vm1535, %v3238, %v2775
      %v3271 = vsel %vm1535, %v3239, %v2777
      %v3272 = vsel %vm1535, %v3240, %v2779
      %v3273 = vsel %vm1535, %v3241, %v2781
      %v3274 = vsel %vm1535, %v3242, %v2783
      %v3275 = vsel %vm1535, %v3243, %v2785
      %v3276 = vsel %vm1535, %v3244, %v2787
      %v3277 = vsel %vm1535, %v3245, %v2789
      %v3278 = vsel %vm1535, %v3246, %v2791
      %v3279 = vsel %vm1535, %v3247, %v2793
      %v3280 = vsel %vm1535, %v3248, %v2795
      %v3281 = vsel %vm1535, %v3249, %v2797
      %v3282 = vsel %vm1535, %v3250, %v2799
      %v3283 = vsel %vm1535, %v3251, %v2801
      %v3284 = vsel %vm1535, %v3252, %v2803
      %v3285 = vsel %vm1535, %v3253, %v2805
      %v3286 = vsel %vm1568, %v3254, %v2839
      %v3287 = vsel %vm1568, %v3255, %v2841
      %v3288 = vsel %vm1568, %v3256, %v2843
      %v3289 = vsel %vm1568, %v3257, %v2845
      %v3290 = vsel %vm1568, %v3258, %v2847
      %v3291 = vsel %vm1568, %v3259, %v2849
      %v3292 = vsel %vm1568, %v3260, %v2851
      %v3293 = vsel %vm1568, %v3261, %v2853
      %v3294 = vsel %vm1568, %v3262, %v2855
      %v3295 = vsel %vm1568, %v3263, %v2857
      %v3296 = vsel %vm1568, %v3264, %v2859
      %v3297 = vsel %vm1568, %v3265, %v2861
      %v3298 = vsel %vm1568, %v3266, %v2863
      %v3299 = vsel %vm1568, %v3267, %v2865
      %v3300 = vsel %vm1568, %v3268, %v2867
      %v3301 = vsel %vm1568, %v3269, %v2869
      %v3302 = vsel %vm1568, %v3270, %v2871
      %v3303 = vsel %vm1568, %v3271, %v2873
      %v3304 = vsel %vm1568, %v3272, %v2875
      %v3305 = vsel %vm1568, %v3273, %v2877
      %v3306 = vsel %vm1568, %v3274, %v2879
      %v3307 = vsel %vm1568, %v3275, %v2881
      %v3308 = vsel %vm1568, %v3276, %v2883
      %v3309 = vsel %vm1568, %v3277, %v2885
      %v3310 = vsel %vm1568, %v3278, %v2887
      %v3311 = vsel %vm1568, %v3279, %v2889
      %v3312 = vsel %vm1568, %v3280, %v2891
      %v3313 = vsel %vm1568, %v3281, %v2893
      %v3314 = vsel %vm1568, %v3282, %v2895
      %v3315 = vsel %vm1568, %v3283, %v2897
      %v3316 = vsel %vm1568, %v3284, %v2899
      %v3317 = vsel %vm1568, %v3285, %v2901
      %v3318 = vsel %vm1601, %v3286, %v2935
      %v3319 = vsel %vm1601, %v3287, %v2937
      %v3320 = vsel %vm1601, %v3288, %v2939
      %v3321 = vsel %vm1601, %v3289, %v2941
      %v3322 = vsel %vm1601, %v3290, %v2943
      %v3323 = vsel %vm1601, %v3291, %v2945
      %v3324 = vsel %vm1601, %v3292, %v2947
      %v3325 = vsel %vm1601, %v3293, %v2949
      %v3326 = vsel %vm1601, %v3294, %v2951
      %v3327 = vsel %vm1601, %v3295, %v2953
      %v3328 = vsel %vm1601, %v3296, %v2955
      %v3329 = vsel %vm1601, %v3297, %v2957
      %v3330 = vsel %vm1601, %v3298, %v2959
      %v3331 = vsel %vm1601, %v3299, %v2961
      %v3332 = vsel %vm1601, %v3300, %v2963
      %v3333 = vsel %vm1601, %v3301, %v2965
      %v3334 = vsel %vm1601, %v3302, %v2967
      %v3335 = vsel %vm1601, %v3303, %v2969
      %v3336 = vsel %vm1601, %v3304, %v2971
      %v3337 = vsel %vm1601, %v3305, %v2973
      %v3338 = vsel %vm1601, %v3306, %v2975
      %v3339 = vsel %vm1601, %v3307, %v2977
      %v3340 = vsel %vm1601, %v3308, %v2979
      %v3341 = vsel %vm1601, %v3309, %v2981
      %v3342 = vsel %vm1601, %v3310, %v2983
      %v3343 = vsel %vm1601, %v3311, %v2985
      %v3344 = vsel %vm1601, %v3312, %v2987
      %v3345 = vsel %vm1601, %v3313, %v2989
      %v3346 = vsel %vm1601, %v3314, %v2991
      %v3347 = vsel %vm1601, %v3315, %v2993
      %v3348 = vsel %vm1601, %v3316, %v2995
      %v3349 = vsel %vm1601, %v3317, %v2997
      %v3350 = vsel %vm1634, %v3318, %v3031
      %v3351 = vsel %vm1634, %v3319, %v3033
      %v3352 = vsel %vm1634, %v3320, %v3035
      %v3353 = vsel %vm1634, %v3321, %v3037
      %v3354 = vsel %vm1634, %v3322, %v3039
      %v3355 = vsel %vm1634, %v3323, %v3041
      %v3356 = vsel %vm1634, %v3324, %v3043
      %v3357 = vsel %vm1634, %v3325, %v3045
      %v3358 = vsel %vm1634, %v3326, %v3047
      %v3359 = vsel %vm1634, %v3327, %v3049
      %v3360 = vsel %vm1634, %v3328, %v3051
      %v3361 = vsel %vm1634, %v3329, %v3053
      %v3362 = vsel %vm1634, %v3330, %v3055
      %v3363 = vsel %vm1634, %v3331, %v3057
      %v3364 = vsel %vm1634, %v3332, %v3059
      %v3365 = vsel %vm1634, %v3333, %v3061
      %v3366 = vsel %vm1634, %v3334, %v3063
      %v3367 = vsel %vm1634, %v3335, %v3065
      %v3368 = vsel %vm1634, %v3336, %v3067
      %v3369 = vsel %vm1634, %v3337, %v3069
      %v3370 = vsel %vm1634, %v3338, %v3071
      %v3371 = vsel %vm1634, %v3339, %v3073
      %v3372 = vsel %vm1634, %v3340, %v3075
      %v3373 = vsel %vm1634, %v3341, %v3077
      %v3374 = vsel %vm1634, %v3342, %v3079
      %v3375 = vsel %vm1634, %v3343, %v3081
      %v3376 = vsel %vm1634, %v3344, %v3083
      %v3377 = vsel %vm1634, %v3345, %v3085
      %v3378 = vsel %vm1634, %v3346, %v3087
      %v3379 = vsel %vm1634, %v3347, %v3089
      %v3380 = vsel %vm1634, %v3348, %v3091
      %v3381 = vsel %vm1634, %v3349, %v3093
      %s3382 = scalar_lea.vmem %s1, 40
      %v3383 = vld [vmem:[%s3382] sm:$0xff]
      %v3384 = vld [vmem:[%s3382 + $0x8] sm:$0xff]
      %v3385 = vld [vmem:[%s3382 + $0x10] sm:$0xff]
      %v3386 = vld [vmem:[%s3382 + $0x18] sm:$0xff]
      %v3387 = vld [vmem:[%s3382 + $0x20] sm:$0xf]
      %s3388 = scalar_lea.vmem %s2, 1
      %v3389 = vld [vmem:[%s3388] sm:$0x1]
      %v3391 = vlaneseq
      %v3392 = vshrl.u32 %v3391, 7
      %v3393 = vsub.s32 0, %v3392
      %v3394 = vrot.slane %v3389, %v3393
      %v3397 = vsel %vm1679, %v3350, 0
      %v3400 = vsel %vm1679, %v3351, 0
      %v3403 = vsel %vm1679, %v3352, 0
      %v3406 = vsel %vm1679, %v3353, 0
      %v3409 = vsel %vm1679, %v3354, 0
      %v3412 = vsel %vm1679, %v3355, 0
      %v3415 = vsel %vm1679, %v3356, 0
      %v3418 = vsel %vm1679, %v3357, 0
      %v3421 = vsel %vm1679, %v3358, 0
      %v3424 = vsel %vm1679, %v3359, 0
      %v3427 = vsel %vm1679, %v3360, 0
      %v3430 = vsel %vm1679, %v3361, 0
      %v3433 = vsel %vm1679, %v3362, 0
      %v3436 = vsel %vm1679, %v3363, 0
      %v3439 = vsel %vm1679, %v3364, 0
      %v3442 = vsel %vm1679, %v3365, 0
      %v3445 = vsel %vm1679, %v3366, 0
      %v3448 = vsel %vm1679, %v3367, 0
      %v3451 = vsel %vm1679, %v3368, 0
      %v3454 = vsel %vm1679, %v3369, 0
      %v3457 = vsel %vm1679, %v3370, 0
      %v3460 = vsel %vm1679, %v3371, 0
      %v3463 = vsel %vm1679, %v3372, 0
      %v3466 = vsel %vm1679, %v3373, 0
      %v3469 = vsel %vm1679, %v3374, 0
      %v3472 = vsel %vm1679, %v3375, 0
      %v3475 = vsel %vm1679, %v3376, 0
      %v3478 = vsel %vm1679, %v3377, 0
      %v3481 = vsel %vm1679, %v3378, 0
      %v3484 = vsel %vm1679, %v3379, 0
      %v3487 = vsel %vm1679, %v3380, 0
      %v3490 = vsel %vm1679, %v3381, 0
      %v3493 = vsel %vm1776, %v3387, 0
      %3495 = vmatprep.subr.mxu0 0.0
      %3496 = vmatpush1.msra.mxu0 %v3383
      %3497 = vmatprep.subr.mxu0 0.0
      %3498 = vmatpush1.msra.mxu0 %v3384
      %3499 = vmatprep.subr.mxu0 0.0
      %3500 = vmatpush1.msra.mxu0 %v3385
      %3501 = vmatprep.subr.mxu0 0.0
      %3502 = vmatpush1.msra.mxu0 %v3386
      %3503 = vmatprep.subr.mxu0 0.0
      %3504 = vmatpush1.msra.mxu0 %v3493
      %3505 = vmatprep.subr.mxu0 0.0
      %3506 = vmatpush1.msra.mxu0 0.0
      %3507 = vmatprep.subr.mxu0 0.0
      %3508 = vmatpush1.msra.mxu0 0.0
      %3509 = vmatprep.subr.mxu0 0.0
      %3510 = vmatpush1.msra.mxu0 0.0
      %3511 = vmatprep.subr.mxu0 0.0
      %3512 = vmatpush1.msra.mxu0 0.0
      %3513 = vmatprep.subr.mxu0 0.0
      %3514 = vmatpush1.msra.mxu0 0.0
      %3515 = vmatprep.subr.mxu0 0.0
      %3516 = vmatpush1.msra.mxu0 0.0
      %3517 = vmatprep.subr.mxu0 0.0
      %3518 = vmatpush1.msra.mxu0 0.0
      %3519 = vmatprep.subr.mxu0 0.0
      %3520 = vmatpush1.msra.mxu0 0.0
      %3521 = vmatprep.subr.mxu0 0.0
      %3522 = vmatpush1.msra.mxu0 0.0
      %3523 = vmatprep.subr.mxu0 0.0
      %3524 = vmatpush1.msra.mxu0 0.0
      %3525 = vmatprep.subr.mxu0 0.0
      %3526 = vmatpush1.msra.mxu0 0.0
      %3527 = vmatprep.subr.mxu0 0.0
      %3528 = vmatpush1.msra.mxu0 0.0
      %3529 = vmatprep.subr.mxu0 0.0
      %3530 = vmatpush1.msra.mxu0 0.0
      %3531 = vmatprep.subr.mxu0 0.0
      %3532 = vmatpush1.msra.mxu0 0.0
      %3533 = vmatprep.subr.mxu0 0.0
      %3534 = vmatpush1.msra.mxu0 0.0
      %3535 = vmatprep.subr.mxu0 0.0
      %3536 = vmatpush1.msra.mxu0 0.0
      %3537 = vmatprep.subr.mxu0 0.0
      %3538 = vmatpush1.msra.mxu0 0.0
      %3539 = vmatprep.subr.mxu0 0.0
      %3540 = vmatpush1.msra.mxu0 0.0
      %3541 = vmatprep.subr.mxu0 0.0
      %3542 = vmatpush1.msra.mxu0 0.0
      %3543 = vmatprep.subr.mxu0 0.0
      %3544 = vmatpush1.msra.mxu0 0.0
      %3545 = vmatprep.subr.mxu0 0.0
      %3546 = vmatpush1.msra.mxu0 0.0
      %3547 = vmatprep.subr.mxu0 0.0
      %3548 = vmatpush1.msra.mxu0 0.0
      %3549 = vmatprep.subr.mxu0 0.0
      %3550 = vmatpush1.msra.mxu0 0.0
      %3551 = vmatprep.subr.mxu0 0.0
      %3552 = vmatpush1.msra.mxu0 0.0
      %3553 = vmatprep.subr.mxu0 0.0
      %3554 = vmatpush1.msra.mxu0 0.0
      %3555 = vmatprep.subr.mxu0 0.0
      %3556 = vmatpush1.msra.mxu0 0.0
      %3557 = vmatprep.subr.mxu0 0.0
      %3558 = vmatpush1.msra.mxu0 0.0
      %3559 = vmatprep.mubr.f32.mxu0 0.0
      %3560 = vmatmul.mubr.f32.gmra.mrb[0].mxu0 %v3397
      %v3561 = vpop.f32.mrb[0].mxu0
      %v3562 = vadd.f32 %v3394, %v3561
      %v3563 = vpop.f32.mrb[0].mxu0
      %3564 = vmatprep.mubr.f32.mxu0 0.0
      %3565 = vmatmul.mubr.f32.gmra.mrb[0].mxu0 %v3400
      %v3566 = vpop.f32.mrb[0].mxu0
      %v3567 = vadd.f32 %v3394, %v3566
      %v3568 = vpop.f32.mrb[0].mxu0
      %3569 = vmatprep.mubr.f32.mxu0 0.0
      %3570 = vmatmul.mubr.f32.gmra.mrb[0].mxu0 %v3403
      %v3571 = vpop.f32.mrb[0].mxu0
      %v3572 = vadd.f32 %v3394, %v3571
      %v3573 = vpop.f32.mrb[0].mxu0
      %3574 = vmatprep.mubr.f32.mxu0 0.0
      %3575 = vmatmul.mubr.f32.gmra.mrb[0].mxu0 %v3406
      %v3576 = vpop.f32.mrb[0].mxu0
      %v3577 = vadd.f32 %v3394, %v3576
      %v3578 = vpop.f32.mrb[0].mxu0
      %3579 = vmatprep.mubr.f32.mxu0 0.0
      %3580 = vmatmul.mubr.f32.gmra.mrb[0].mxu0 %v3409
      %v3581 = vpop.f32.mrb[0].mxu0
      %v3582 = vadd.f32 %v3394, %v3581
      %v3583 = vpop.f32.mrb[0].mxu0
      %3584 = vmatprep.mubr.f32.mxu0 0.0
      %3585 = vmatmul.mubr.f32.gmra.mrb[0].mxu0 %v3412
      %v3586 = vpop.f32.mrb[0].mxu0
      %v3587 = vadd.f32 %v3394, %v3586
      %v3588 = vpop.f32.mrb[0].mxu0
      %3589 = vmatprep.mubr.f32.mxu0 0.0
      %3590 = vmatmul.mubr.f32.gmra.mrb[0].mxu0 %v3415
      %v3591 = vpop.f32.mrb[0].mxu0
      %v3592 = vadd.f32 %v3394, %v3591
      %v3593 = vpop.f32.mrb[0].mxu0
      %3594 = vmatprep.mubr.f32.mxu0 0.0
      %3595 = vmatmul.mubr.f32.gmra.mrb[0].mxu0 %v3418
      %v3596 = vpop.f32.mrb[0].mxu0
      %v3597 = vadd.f32 %v3394, %v3596
      %v3598 = vpop.f32.mrb[0].mxu0
      %3599 = vmatprep.mubr.f32.mxu0 0.0
      %3600 = vmatmul.mubr.f32.gmra.mrb[0].mxu0 %v3421
      %v3601 = vpop.f32.mrb[0].mxu0
      %v3602 = vadd.f32 %v3394, %v3601
      %v3603 = vpop.f32.mrb[0].mxu0
      %3604 = vmatprep.mubr.f32.mxu0 0.0
      %3605 = vmatmul.mubr.f32.gmra.mrb[0].mxu0 %v3424
      %v3606 = vpop.f32.mrb[0].mxu0
      %v3607 = vadd.f32 %v3394, %v3606
      %v3608 = vpop.f32.mrb[0].mxu0
      %3609 = vmatprep.mubr.f32.mxu0 0.0
      %3610 = vmatmul.mubr.f32.gmra.mrb[0].mxu0 %v3427
      %v3611 = vpop.f32.mrb[0].mxu0
      %v3612 = vadd.f32 %v3394, %v3611
      %v3613 = vpop.f32.mrb[0].mxu0
      %3614 = vmatprep.mubr.f32.mxu0 0.0
      %3615 = vmatmul.mubr.f32.gmra.mrb[0].mxu0 %v3430
      %v3616 = vpop.f32.mrb[0].mxu0
      %v3617 = vadd.f32 %v3394, %v3616
      %v3618 = vpop.f32.mrb[0].mxu0
      %3619 = vmatprep.mubr.f32.mxu0 0.0
      %3620 = vmatmul.mubr.f32.gmra.mrb[0].mxu0 %v3433
      %v3621 = vpop.f32.mrb[0].mxu0
      %v3622 = vadd.f32 %v3394, %v3621
      %v3623 = vpop.f32.mrb[0].mxu0
      %3624 = vmatprep.mubr.f32.mxu0 0.0
      %3625 = vmatmul.mubr.f32.gmra.mrb[0].mxu0 %v3436
      %v3626 = vpop.f32.mrb[0].mxu0
      %v3627 = vadd.f32 %v3394, %v3626
      %v3628 = vpop.f32.mrb[0].mxu0
      %3629 = vmatprep.mubr.f32.mxu0 0.0
      %3630 = vmatmul.mubr.f32.gmra.mrb[0].mxu0 %v3439
      %v3631 = vpop.f32.mrb[0].mxu0
      %v3632 = vadd.f32 %v3394, %v3631
      %v3633 = vpop.f32.mrb[0].mxu0
      %3634 = vmatprep.mubr.f32.mxu0 0.0
      %3635 = vmatmul.mubr.f32.gmra.mrb[0].mxu0 %v3442
      %v3636 = vpop.f32.mrb[0].mxu0
      %v3637 = vadd.f32 %v3394, %v3636
      %v3638 = vpop.f32.mrb[0].mxu0
      %3639 = vmatprep.mubr.f32.mxu0 0.0
      %3640 = vmatmul.mubr.f32.gmra.mrb[0].mxu0 %v3445
      %v3641 = vpop.f32.mrb[0].mxu0
      %v3642 = vadd.f32 %v3394, %v3641
      %v3643 = vpop.f32.mrb[0].mxu0
      %3644 = vmatprep.mubr.f32.mxu0 0.0
      %3645 = vmatmul.mubr.f32.gmra.mrb[0].mxu0 %v3448
      %v3646 = vpop.f32.mrb[0].mxu0
      %v3647 = vadd.f32 %v3394, %v3646
      %v3648 = vpop.f32.mrb[0].mxu0
      %3649 = vmatprep.mubr.f32.mxu0 0.0
      %3650 = vmatmul.mubr.f32.gmra.mrb[0].mxu0 %v3451
      %v3651 = vpop.f32.mrb[0].mxu0
      %v3652 = vadd.f32 %v3394, %v3651
      %v3653 = vpop.f32.mrb[0].mxu0
      %3654 = vmatprep.mubr.f32.mxu0 0.0
      %3655 = vmatmul.mubr.f32.gmra.mrb[0].mxu0 %v3454
      %v3656 = vpop.f32.mrb[0].mxu0
      %v3657 = vadd.f32 %v3394, %v3656
      %v3658 = vpop.f32.mrb[0].mxu0
      %3659 = vmatprep.mubr.f32.mxu0 0.0
      %3660 = vmatmul.mubr.f32.gmra.mrb[0].mxu0 %v3457
      %v3661 = vpop.f32.mrb[0].mxu0
      %v3662 = vadd.f32 %v3394, %v3661
      %v3663 = vpop.f32.mrb[0].mxu0
      %3664 = vmatprep.mubr.f32.mxu0 0.0
      %3665 = vmatmul.mubr.f32.gmra.mrb[0].mxu0 %v3460
      %v3666 = vpop.f32.mrb[0].mxu0
      %v3667 = vadd.f32 %v3394, %v3666
      %v3668 = vpop.f32.mrb[0].mxu0
      %3669 = vmatprep.mubr.f32.mxu0 0.0
      %3670 = vmatmul.mubr.f32.gmra.mrb[0].mxu0 %v3463
      %v3671 = vpop.f32.mrb[0].mxu0
      %v3672 = vadd.f32 %v3394, %v3671
      %v3673 = vpop.f32.mrb[0].mxu0
      %3674 = vmatprep.mubr.f32.mxu0 0.0
      %3675 = vmatmul.mubr.f32.gmra.mrb[0].mxu0 %v3466
      %v3676 = vpop.f32.mrb[0].mxu0
      %v3677 = vadd.f32 %v3394, %v3676
      %v3678 = vpop.f32.mrb[0].mxu0
      %3679 = vmatprep.mubr.f32.mxu0 0.0
      %3680 = vmatmul.mubr.f32.gmra.mrb[0].mxu0 %v3469
      %v3681 = vpop.f32.mrb[0].mxu0
      %v3682 = vadd.f32 %v3394, %v3681
      %v3683 = vpop.f32.mrb[0].mxu0
      %3684 = vmatprep.mubr.f32.mxu0 0.0
      %3685 = vmatmul.mubr.f32.gmra.mrb[0].mxu0 %v3472
      %v3686 = vpop.f32.mrb[0].mxu0
      %v3687 = vadd.f32 %v3394, %v3686
      %v3688 = vpop.f32.mrb[0].mxu0
      %3689 = vmatprep.mubr.f32.mxu0 0.0
      %3690 = vmatmul.mubr.f32.gmra.mrb[0].mxu0 %v3475
      %v3691 = vpop.f32.mrb[0].mxu0
      %v3692 = vadd.f32 %v3394, %v3691
      %v3693 = vpop.f32.mrb[0].mxu0
      %3694 = vmatprep.mubr.f32.mxu0 0.0
      %3695 = vmatmul.mubr.f32.gmra.mrb[0].mxu0 %v3478
      %v3696 = vpop.f32.mrb[0].mxu0
      %v3697 = vadd.f32 %v3394, %v3696
      %v3698 = vpop.f32.mrb[0].mxu0
      %3699 = vmatprep.mubr.f32.mxu0 0.0
      %3700 = vmatmul.mubr.f32.gmra.mrb[0].mxu0 %v3481
      %v3701 = vpop.f32.mrb[0].mxu0
      %v3702 = vadd.f32 %v3394, %v3701
      %v3703 = vpop.f32.mrb[0].mxu0
      %3704 = vmatprep.mubr.f32.mxu0 0.0
      %3705 = vmatmul.mubr.f32.gmra.mrb[0].mxu0 %v3484
      %v3706 = vpop.f32.mrb[0].mxu0
      %v3707 = vadd.f32 %v3394, %v3706
      %v3708 = vpop.f32.mrb[0].mxu0
      %3709 = vmatprep.mubr.f32.mxu0 0.0
      %3710 = vmatmul.mubr.f32.gmra.mrb[0].mxu0 %v3487
      %v3711 = vpop.f32.mrb[0].mxu0
      %v3712 = vadd.f32 %v3394, %v3711
      %v3713 = vpop.f32.mrb[0].mxu0
      %3714 = vmatprep.mubr.f32.mxu0 0.0
      %3715 = vmatmul.mubr.f32.gmra.mrb[0].mxu0 %v3490
      %v3716 = vpop.f32.mrb[0].mxu0
      %v3717 = vadd.f32 %v3394, %v3716
      %v3718 = vpop.f32.mrb[0].mxu0
      %3719 = vdwg.mxu0
      %vm3752 = vcmask 1040384
      %v3753 = vrot.slane %v3562, 7
      %v3754 = vrot.slane %v3567, 7
      %v3755 = vsel %vm3752, %v3753, %v3754
      %v3756 = vrot.slane %v3572, 7
      %v3757 = vrot.slane %v3577, 7
      %v3758 = vsel %vm3752, %v3756, %v3757
      %v3759 = vrot.slane %v3582, 7
      %v3760 = vrot.slane %v3587, 7
      %v3761 = vsel %vm3752, %v3759, %v3760
      %v3762 = vrot.slane %v3592, 7
      %v3763 = vrot.slane %v3597, 7
      %v3764 = vsel %vm3752, %v3762, %v3763
      %v3765 = vrot.slane %v3602, 7
      %v3766 = vrot.slane %v3607, 7
      %v3767 = vsel %vm3752, %v3765, %v3766
      %v3768 = vrot.slane %v3612, 7
      %v3769 = vrot.slane %v3617, 7
      %v3770 = vsel %vm3752, %v3768, %v3769
      %v3771 = vrot.slane %v3622, 7
      %v3772 = vrot.slane %v3627, 7
      %v3773 = vsel %vm3752, %v3771, %v3772
      %v3774 = vrot.slane %v3632, 7
      %v3775 = vrot.slane %v3637, 7
      %v3776 = vsel %vm3752, %v3774, %v3775
      %v3777 = vrot.slane %v3642, 7
      %v3778 = vrot.slane %v3647, 7
      %v3779 = vsel %vm3752, %v3777, %v3778
      %v3780 = vrot.slane %v3652, 7
      %v3781 = vrot.slane %v3657, 7
      %v3782 = vsel %vm3752, %v3780, %v3781
      %v3783 = vrot.slane %v3662, 7
      %v3784 = vrot.slane %v3667, 7
      %v3785 = vsel %vm3752, %v3783, %v3784
      %v3786 = vrot.slane %v3672, 7
      %v3787 = vrot.slane %v3677, 7
      %v3788 = vsel %vm3752, %v3786, %v3787
      %v3789 = vrot.slane %v3682, 7
      %v3790 = vrot.slane %v3687, 7
      %v3791 = vsel %vm3752, %v3789, %v3790
      %v3792 = vrot.slane %v3692, 7
      %v3793 = vrot.slane %v3697, 7
      %v3794 = vsel %vm3752, %v3792, %v3793
      %v3795 = vrot.slane %v3702, 7
      %v3796 = vrot.slane %v3707, 7
      %v3797 = vsel %vm3752, %v3795, %v3796
      %v3798 = vrot.slane %v3712, 7
      %v3799 = vrot.slane %v3717, 7
      %v3800 = vsel %vm3752, %v3798, %v3799
      %v3849 = vadd.f32 %v349, %v3753
      %v3850 = vadd.f32 %v350, %v3755
      %v3851 = vadd.f32 %v351, %v3754
      %v3852 = vadd.f32 %v352, %v3756
      %v3853 = vadd.f32 %v353, %v3758
      %v3854 = vadd.f32 %v354, %v3757
      %v3855 = vadd.f32 %v355, %v3759
      %v3856 = vadd.f32 %v356, %v3761
      %v3857 = vadd.f32 %v357, %v3760
      %v3858 = vadd.f32 %v358, %v3762
      %v3859 = vadd.f32 %v359, %v3764
      %v3860 = vadd.f32 %v360, %v3763
      %v3861 = vadd.f32 %v361, %v3765
      %v3862 = vadd.f32 %v362, %v3767
      %v3863 = vadd.f32 %v363, %v3766
      %v3864 = vadd.f32 %v364, %v3768
      %v3865 = vadd.f32 %v365, %v3770
      %v3866 = vadd.f32 %v366, %v3769
      %v3867 = vadd.f32 %v367, %v3771
      %v3868 = vadd.f32 %v368, %v3773
      %v3869 = vadd.f32 %v369, %v3772
      %v3870 = vadd.f32 %v370, %v3774
      %v3871 = vadd.f32 %v371, %v3776
      %v3872 = vadd.f32 %v372, %v3775
      %v3873 = vadd.f32 %v373, %v3777
      %v3874 = vadd.f32 %v374, %v3779
      %v3875 = vadd.f32 %v375, %v3778
      %v3876 = vadd.f32 %v376, %v3780
      %v3877 = vadd.f32 %v377, %v3782
      %v3878 = vadd.f32 %v378, %v3781
      %v3879 = vadd.f32 %v379, %v3783
      %v3880 = vadd.f32 %v380, %v3785
      %v3881 = vadd.f32 %v381, %v3784
      %v3882 = vadd.f32 %v382, %v3786
      %v3883 = vadd.f32 %v383, %v3788
      %v3884 = vadd.f32 %v384, %v3787
      %v3885 = vadd.f32 %v385, %v3789
      %v3886 = vadd.f32 %v386, %v3791
      %v3887 = vadd.f32 %v387, %v3790
      %v3888 = vadd.f32 %v388, %v3792
      %v3889 = vadd.f32 %v389, %v3794
      %v3890 = vadd.f32 %v390, %v3793
      %v3891 = vadd.f32 %v391, %v3795
      %v3892 = vadd.f32 %v392, %v3797
      %v3893 = vadd.f32 %v393, %v3796
      %v3894 = vadd.f32 %v394, %v3798
      %v3895 = vadd.f32 %v395, %v3800
      %v3896 = vadd.f32 %v396, %v3799
      %vm3897 = vcmask 31745
      %3898 = vst.msk [vmem:[%s313] sm:$0xfe] %vm3897, %v3849
      %3899 = vst.msk [vmem:[%s313 + $0x8] sm:$0xff] %vm171, %v3850
      %vm3900 = vcmask 24576
      %3901 = vst.msk [vmem:[%s313 + $0x10] sm:$0x1] %vm3900, %v3851
      %3902 = vst.msk [vmem:[%s313 + $0x18] sm:$0xfe] %vm3897, %v3852
      %3903 = vst.msk [vmem:[%s313 + $0x20] sm:$0xff] %vm171, %v3853
      %3904 = vst.msk [vmem:[%s313 + $0x28] sm:$0x1] %vm3900, %v3854
      %3905 = vst.msk [vmem:[%s313 + $0x30] sm:$0xfe] %vm3897, %v3855
      %3906 = vst.msk [vmem:[%s313 + $0x38] sm:$0xff] %vm171, %v3856
      %3907 = vst.msk [vmem:[%s313 + $0x40] sm:$0x1] %vm3900, %v3857
      %3908 = vst.msk [vmem:[%s313 + $0x48] sm:$0xfe] %vm3897, %v3858
      %3909 = vst.msk [vmem:[%s313 + $0x50] sm:$0xff] %vm171, %v3859
      %3910 = vst.msk [vmem:[%s313 + $0x58] sm:$0x1] %vm3900, %v3860
      %3911 = vst.msk [vmem:[%s313 + $0x60] sm:$0xfe] %vm3897, %v3861
      %3912 = vst.msk [vmem:[%s313 + $0x68] sm:$0xff] %vm171, %v3862
      %3913 = vst.msk [vmem:[%s313 + $0x70] sm:$0x1] %vm3900, %v3863
      %3914 = vst.msk [vmem:[%s313 + $0x78] sm:$0xfe] %vm3897, %v3864
      %3915 = vst.msk [vmem:[%s313 + $0x80] sm:$0xff] %vm171, %v3865
      %3916 = vst.msk [vmem:[%s313 + $0x88] sm:$0x1] %vm3900, %v3866
      %3917 = vst.msk [vmem:[%s313 + $0x90] sm:$0xfe] %vm3897, %v3867
      %3918 = vst.msk [vmem:[%s313 + $0x98] sm:$0xff] %vm171, %v3868
      %3919 = vst.msk [vmem:[%s313 + $0xa0] sm:$0x1] %vm3900, %v3869
      %3920 = vst.msk [vmem:[%s313 + $0xa8] sm:$0xfe] %vm3897, %v3870
      %3921 = vst.msk [vmem:[%s313 + $0xb0] sm:$0xff] %vm171, %v3871
      %3922 = vst.msk [vmem:[%s313 + $0xb8] sm:$0x1] %vm3900, %v3872
      %3923 = vst.msk [vmem:[%s313 + $0xc0] sm:$0xfe] %vm3897, %v3873
      %3924 = vst.msk [vmem:[%s313 + $0xc8] sm:$0xff] %vm171, %v3874
      %3925 = vst.msk [vmem:[%s313 + $0xd0] sm:$0x1] %vm3900, %v3875
      %3926 = vst.msk [vmem:[%s313 + $0xd8] sm:$0xfe] %vm3897, %v3876
      %3927 = vst.msk [vmem:[%s313 + $0xe0] sm:$0xff] %vm171, %v3877
      %3928 = vst.msk [vmem:[%s313 + $0xe8] sm:$0x1] %vm3900, %v3878
      %3929 = vst.msk [vmem:[%s313 + $0xf0] sm:$0xfe] %vm3897, %v3879
      %3930 = vst.msk [vmem:[%s313 + $0xf8] sm:$0xff] %vm171, %v3880
      %3931 = vst.msk [vmem:[%s313 + $0x100] sm:$0x1] %vm3900, %v3881
      %3932 = vst.msk [vmem:[%s313 + $0x108] sm:$0xfe] %vm3897, %v3882
      %3933 = vst.msk [vmem:[%s313 + $0x110] sm:$0xff] %vm171, %v3883
      %3934 = vst.msk [vmem:[%s313 + $0x118] sm:$0x1] %vm3900, %v3884
      %3935 = vst.msk [vmem:[%s313 + $0x120] sm:$0xfe] %vm3897, %v3885
      %3936 = vst.msk [vmem:[%s313 + $0x128] sm:$0xff] %vm171, %v3886
      %3937 = vst.msk [vmem:[%s313 + $0x130] sm:$0x1] %vm3900, %v3887
      %3938 = vst.msk [vmem:[%s313 + $0x138] sm:$0xfe] %vm3897, %v3888
      %3939 = vst.msk [vmem:[%s313 + $0x140] sm:$0xff] %vm171, %v3889
      %3940 = vst.msk [vmem:[%s313 + $0x148] sm:$0x1] %vm3900, %v3890
      %3941 = vst.msk [vmem:[%s313 + $0x150] sm:$0xfe] %vm3897, %v3891
      %3942 = vst.msk [vmem:[%s313 + $0x158] sm:$0xff] %vm171, %v3892
      %3943 = vst.msk [vmem:[%s313 + $0x160] sm:$0x1] %vm3900, %v3893
      %3944 = vst.msk [vmem:[%s313 + $0x168] sm:$0xfe] %vm3897, %v3894
      %3945 = vst.msk [vmem:[%s313 + $0x170] sm:$0xff] %vm171, %v3895
      %3946 = vst.msk [vmem:[%s313 + $0x178] sm:$0x1] %vm3900, %v3896
      %v3947 = vld [vmem:[#allocation2] sm:$0xff]
      %v3948 = vld [vmem:[#allocation2 + $0x8] sm:$0xff]
      %v3949 = vld [vmem:[#allocation2 + $0x10] sm:$0x3]
      %v3950 = vld [vmem:[#allocation2 + $0x18] sm:$0xff]
      %v3951 = vld [vmem:[#allocation2 + $0x20] sm:$0xff]
      %v3952 = vld [vmem:[#allocation2 + $0x28] sm:$0x3]
      %v3953 = vld [vmem:[#allocation2 + $0x30] sm:$0xff]
      %v3954 = vld [vmem:[#allocation2 + $0x38] sm:$0xff]
      %v3955 = vld [vmem:[#allocation2 + $0x40] sm:$0x3]
      %v3956 = vld [vmem:[#allocation2 + $0x48] sm:$0xff]
      %v3957 = vld [vmem:[#allocation2 + $0x50] sm:$0xff]
      %v3958 = vld [vmem:[#allocation2 + $0x58] sm:$0x3]
      %v3959 = vld [vmem:[#allocation2 + $0x60] sm:$0xff]
      %v3960 = vld [vmem:[#allocation2 + $0x68] sm:$0xff]
      %v3961 = vld [vmem:[#allocation2 + $0x70] sm:$0x3]
      %v3962 = vld [vmem:[#allocation2 + $0x78] sm:$0xff]
      %v3963 = vld [vmem:[#allocation2 + $0x80] sm:$0xff]
      %v3964 = vld [vmem:[#allocation2 + $0x88] sm:$0x3]
      %v3965 = vld [vmem:[#allocation2 + $0x90] sm:$0xff]
      %v3966 = vld [vmem:[#allocation2 + $0x98] sm:$0xff]
      %v3967 = vld [vmem:[#allocation2 + $0xa0] sm:$0x3]
      %v3968 = vld [vmem:[#allocation2 + $0xa8] sm:$0xff]
      %v3969 = vld [vmem:[#allocation2 + $0xb0] sm:$0xff]
      %v3970 = vld [vmem:[#allocation2 + $0xb8] sm:$0x3]
      %v3971 = vld [vmem:[#allocation2 + $0xc0] sm:$0xff]
      %v3972 = vld [vmem:[#allocation2 + $0xc8] sm:$0xff]
      %v3973 = vld [vmem:[#allocation2 + $0xd0] sm:$0x3]
      %v3974 = vld [vmem:[#allocation2 + $0xd8] sm:$0xff]
      %v3975 = vld [vmem:[#allocation2 + $0xe0] sm:$0xff]
      %v3976 = vld [vmem:[#allocation2 + $0xe8] sm:$0x3]
      %v3977 = vld [vmem:[#allocation2 + $0xf0] sm:$0xff]
      %v3978 = vld [vmem:[#allocation2 + $0xf8] sm:$0xff]
      %v3979 = vld [vmem:[#allocation2 + $0x100] sm:$0x3]
      %v3980 = vld [vmem:[#allocation2 + $0x108] sm:$0xff]
      %v3981 = vld [vmem:[#allocation2 + $0x110] sm:$0xff]
      %v3982 = vld [vmem:[#allocation2 + $0x118] sm:$0x3]
      %v3983 = vld [vmem:[#allocation2 + $0x120] sm:$0xff]
      %v3984 = vld [vmem:[#allocation2 + $0x128] sm:$0xff]
      %v3985 = vld [vmem:[#allocation2 + $0x130] sm:$0x3]
      %v3986 = vld [vmem:[#allocation2 + $0x138] sm:$0xff]
      %v3987 = vld [vmem:[#allocation2 + $0x140] sm:$0xff]
      %v3988 = vld [vmem:[#allocation2 + $0x148] sm:$0x3]
      %v3989 = vld [vmem:[#allocation2 + $0x150] sm:$0xff]
      %v3990 = vld [vmem:[#allocation2 + $0x158] sm:$0xff]
      %v3991 = vld [vmem:[#allocation2 + $0x160] sm:$0x3]
      %v3992 = vld [vmem:[#allocation2 + $0x168] sm:$0xff]
      %v3993 = vld [vmem:[#allocation2 + $0x170] sm:$0xff]
      %v3994 = vld [vmem:[#allocation2 + $0x178] sm:$0x3]
      %v3995 = vld [vmem:[#allocation2 + $0x180] sm:$0xff]
      %v3996 = vld [vmem:[#allocation2 + $0x188] sm:$0xff]
      %v3997 = vld [vmem:[#allocation2 + $0x190] sm:$0x3]
      %v3998 = vld [vmem:[#allocation2 + $0x198] sm:$0xff]
      %v3999 = vld [vmem:[#allocation2 + $0x1a0] sm:$0xff]
      %v4000 = vld [vmem:[#allocation2 + $0x1a8] sm:$0x3]
      %v4049 = vrot.slane %v3947, 1
      %v4050 = vrot.slane %v3948, 1
      %v4051 = vsel %vm448, %v4049, %v4050
      %v4052 = vrot.slane %v3949, 1
      %v4053 = vsel %vm448, %v4050, %v4052
      %v4054 = vrot.slane %v3950, 1
      %v4055 = vrot.slane %v3951, 1
      %v4056 = vsel %vm448, %v4054, %v4055
      %v4057 = vrot.slane %v3952, 1
      %v4058 = vsel %vm448, %v4055, %v4057
      %v4059 = vrot.slane %v3953, 1
      %v4060 = vrot.slane %v3954, 1
      %v4061 = vsel %vm448, %v4059, %v4060
      %v4062 = vrot.slane %v3955, 1
      %v4063 = vsel %vm448, %v4060, %v4062
      %v4064 = vrot.slane %v3956, 1
      %v4065 = vrot.slane %v3957, 1
      %v4066 = vsel %vm448, %v4064, %v4065
      %v4067 = vrot.slane %v3958, 1
      %v4068 = vsel %vm448, %v4065, %v4067
      %v4069 = vrot.slane %v3959, 1
      %v4070 = vrot.slane %v3960, 1
      %v4071 = vsel %vm448, %v4069, %v4070
      %v4072 = vrot.slane %v3961, 1
      %v4073 = vsel %vm448, %v4070, %v4072
      %v4074 = vrot.slane %v3962, 1
      %v4075 = vrot.slane %v3963, 1
      %v4076 = vsel %vm448, %v4074, %v4075
      %v4077 = vrot.slane %v3964, 1
      %v4078 = vsel %vm448, %v4075, %v4077
      %v4079 = vrot.slane %v3965, 1
      %v4080 = vrot.slane %v3966, 1
      %v4081 = vsel %vm448, %v4079, %v4080
      %v4082 = vrot.slane %v3967, 1
      %v4083 = vsel %vm448, %v4080, %v4082
      %v4084 = vrot.slane %v3968, 1
      %v4085 = vrot.slane %v3969, 1
      %v4086 = vsel %vm448, %v4084, %v4085
      %v4087 = vrot.slane %v3970, 1
      %v4088 = vsel %vm448, %v4085, %v4087
      %v4089 = vrot.slane %v3971, 1
      %v4090 = vrot.slane %v3972, 1
      %v4091 = vsel %vm448, %v4089, %v4090
      %v4092 = vrot.slane %v3973, 1
      %v4093 = vsel %vm448, %v4090, %v4092
      %v4094 = vrot.slane %v3974, 1
      %v4095 = vrot.slane %v3975, 1
      %v4096 = vsel %vm448, %v4094, %v4095
      %v4097 = vrot.slane %v3976, 1
      %v4098 = vsel %vm448, %v4095, %v4097
      %v4099 = vrot.slane %v3977, 1
      %v4100 = vrot.slane %v3978, 1
      %v4101 = vsel %vm448, %v4099, %v4100
      %v4102 = vrot.slane %v3979, 1
      %v4103 = vsel %vm448, %v4100, %v4102
      %v4104 = vrot.slane %v3980, 1
      %v4105 = vrot.slane %v3981, 1
      %v4106 = vsel %vm448, %v4104, %v4105
      %v4107 = vrot.slane %v3982, 1
      %v4108 = vsel %vm448, %v4105, %v4107
      %v4109 = vrot.slane %v3983, 1
      %v4110 = vrot.slane %v3984, 1
      %v4111 = vsel %vm448, %v4109, %v4110
      %v4112 = vrot.slane %v3985, 1
      %v4113 = vsel %vm448, %v4110, %v4112
      %v4114 = vrot.slane %v3986, 1
      %v4115 = vrot.slane %v3987, 1
      %v4116 = vsel %vm448, %v4114, %v4115
      %v4117 = vrot.slane %v3988, 1
      %v4118 = vsel %vm448, %v4115, %v4117
      %v4119 = vrot.slane %v3989, 1
      %v4120 = vrot.slane %v3990, 1
      %v4121 = vsel %vm448, %v4119, %v4120
      %v4122 = vrot.slane %v3991, 1
      %v4123 = vsel %vm448, %v4120, %v4122
      %v4124 = vrot.slane %v3992, 1
      %v4125 = vrot.slane %v3993, 1
      %v4126 = vsel %vm448, %v4124, %v4125
      %v4127 = vrot.slane %v3994, 1
      %v4128 = vsel %vm448, %v4125, %v4127
      %v4129 = vrot.slane %v3947, 2
      %v4130 = vrot.slane %v3948, 2
      %v4131 = vsel %vm529, %v4129, %v4130
      %v4132 = vrot.slane %v3949, 2
      %v4133 = vsel %vm529, %v4130, %v4132
      %v4134 = vrot.slane %v3950, 2
      %v4135 = vrot.slane %v3951, 2
      %v4136 = vsel %vm529, %v4134, %v4135
      %v4137 = vrot.slane %v3952, 2
      %v4138 = vsel %vm529, %v4135, %v4137
      %v4139 = vrot.slane %v3953, 2
      %v4140 = vrot.slane %v3954, 2
      %v4141 = vsel %vm529, %v4139, %v4140
      %v4142 = vrot.slane %v3955, 2
      %v4143 = vsel %vm529, %v4140, %v4142
      %v4144 = vrot.slane %v3956, 2
      %v4145 = vrot.slane %v3957, 2
      %v4146 = vsel %vm529, %v4144, %v4145
      %v4147 = vrot.slane %v3958, 2
      %v4148 = vsel %vm529, %v4145, %v4147
      %v4149 = vrot.slane %v3959, 2
      %v4150 = vrot.slane %v3960, 2
      %v4151 = vsel %vm529, %v4149, %v4150
      %v4152 = vrot.slane %v3961, 2
      %v4153 = vsel %vm529, %v4150, %v4152
      %v4154 = vrot.slane %v3962, 2
      %v4155 = vrot.slane %v3963, 2
      %v4156 = vsel %vm529, %v4154, %v4155
      %v4157 = vrot.slane %v3964, 2
      %v4158 = vsel %vm529, %v4155, %v4157
      %v4159 = vrot.slane %v3965, 2
      %v4160 = vrot.slane %v3966, 2
      %v4161 = vsel %vm529, %v4159, %v4160
      %v4162 = vrot.slane %v3967, 2
      %v4163 = vsel %vm529, %v4160, %v4162
      %v4164 = vrot.slane %v3968, 2
      %v4165 = vrot.slane %v3969, 2
      %v4166 = vsel %vm529, %v4164, %v4165
      %v4167 = vrot.slane %v3970, 2
      %v4168 = vsel %vm529, %v4165, %v4167
      %v4169 = vrot.slane %v3971, 2
      %v4170 = vrot.slane %v3972, 2
      %v4171 = vsel %vm529, %v4169, %v4170
      %v4172 = vrot.slane %v3973, 2
      %v4173 = vsel %vm529, %v4170, %v4172
      %v4174 = vrot.slane %v3974, 2
      %v4175 = vrot.slane %v3975, 2
      %v4176 = vsel %vm529, %v4174, %v4175
      %v4177 = vrot.slane %v3976, 2
      %v4178 = vsel %vm529, %v4175, %v4177
      %v4179 = vrot.slane %v3977, 2
      %v4180 = vrot.slane %v3978, 2
      %v4181 = vsel %vm529, %v4179, %v4180
      %v4182 = vrot.slane %v3979, 2
      %v4183 = vsel %vm529, %v4180, %v4182
      %v4184 = vrot.slane %v3980, 2
      %v4185 = vrot.slane %v3981, 2
      %v4186 = vsel %vm529, %v4184, %v4185
      %v4187 = vrot.slane %v3982, 2
      %v4188 = vsel %vm529, %v4185, %v4187
      %v4189 = vrot.slane %v3983, 2
      %v4190 = vrot.slane %v3984, 2
      %v4191 = vsel %vm529, %v4189, %v4190
      %v4192 = vrot.slane %v3985, 2
      %v4193 = vsel %vm529, %v4190, %v4192
      %v4194 = vrot.slane %v3986, 2
      %v4195 = vrot.slane %v3987, 2
      %v4196 = vsel %vm529, %v4194, %v4195
      %v4197 = vrot.slane %v3988, 2
      %v4198 = vsel %vm529, %v4195, %v4197
      %v4199 = vrot.slane %v3989, 2
      %v4200 = vrot.slane %v3990, 2
      %v4201 = vsel %vm529, %v4199, %v4200
      %v4202 = vrot.slane %v3991, 2
      %v4203 = vsel %vm529, %v4200, %v4202
      %v4204 = vrot.slane %v3992, 2
      %v4205 = vrot.slane %v3993, 2
      %v4206 = vsel %vm529, %v4204, %v4205
      %v4207 = vrot.slane %v3994, 2
      %v4208 = vsel %vm529, %v4205, %v4207
      %v4212 = vrot.slane %v3995, 1
      %v4213 = vrot.slane %v3996, 1
      %v4214 = vsel %vm448, %v4212, %v4213
      %v4215 = vrot.slane %v3997, 1
      %v4216 = vsel %vm448, %v4213, %v4215
      %v4217 = vrot.slane %v3995, 2
      %v4218 = vrot.slane %v3996, 2
      %v4219 = vsel %vm529, %v4217, %v4218
      %v4220 = vrot.slane %v3997, 2
      %v4221 = vsel %vm529, %v4218, %v4220
      %v4225 = vrot.slane %v3998, 1
      %v4226 = vrot.slane %v3999, 1
      %v4227 = vsel %vm448, %v4225, %v4226
      %v4228 = vrot.slane %v4000, 1
      %v4229 = vsel %vm448, %v4226, %v4228
      %v4230 = vrot.slane %v3998, 2
      %v4231 = vrot.slane %v3999, 2
      %v4232 = vsel %vm529, %v4230, %v4231
      %v4233 = vrot.slane %v4000, 2
      %v4234 = vsel %vm529, %v4231, %v4233
      %4235 = vrot.lane.b32.xlu0 %v4051, 4
      %v4236 = vpop.permute.xlu0 %4235
      %4237 = vrot.lane.b32.xlu0 %v4053, 4
      %v4238 = vpop.permute.xlu0 %4237
      %4239 = vrot.lane.b32.xlu0 %v4056, 4
      %v4240 = vpop.permute.xlu0 %4239
      %4241 = vrot.lane.b32.xlu0 %v4058, 4
      %v4242 = vpop.permute.xlu0 %4241
      %4243 = vrot.lane.b32.xlu0 %v4061, 4
      %v4244 = vpop.permute.xlu0 %4243
      %4245 = vrot.lane.b32.xlu0 %v4063, 4
      %v4246 = vpop.permute.xlu0 %4245
      %4247 = vrot.lane.b32.xlu0 %v4066, 4
      %v4248 = vpop.permute.xlu0 %4247
      %4249 = vrot.lane.b32.xlu0 %v4068, 4
      %v4250 = vpop.permute.xlu0 %4249
      %4251 = vrot.lane.b32.xlu0 %v4071, 4
      %v4252 = vpop.permute.xlu0 %4251
      %4253 = vrot.lane.b32.xlu0 %v4073, 4
      %v4254 = vpop.permute.xlu0 %4253
      %4255 = vrot.lane.b32.xlu0 %v4076, 4
      %v4256 = vpop.permute.xlu0 %4255
      %4257 = vrot.lane.b32.xlu0 %v4078, 4
      %v4258 = vpop.permute.xlu0 %4257
      %4259 = vrot.lane.b32.xlu0 %v4081, 4
      %v4260 = vpop.permute.xlu0 %4259
      %4261 = vrot.lane.b32.xlu0 %v4083, 4
      %v4262 = vpop.permute.xlu0 %4261
      %4263 = vrot.lane.b32.xlu0 %v4086, 4
      %v4264 = vpop.permute.xlu0 %4263
      %4265 = vrot.lane.b32.xlu0 %v4088, 4
      %v4266 = vpop.permute.xlu0 %4265
      %4267 = vrot.lane.b32.xlu0 %v4091, 4
      %v4268 = vpop.permute.xlu0 %4267
      %4269 = vrot.lane.b32.xlu0 %v4093, 4
      %v4270 = vpop.permute.xlu0 %4269
      %4271 = vrot.lane.b32.xlu0 %v4096, 4
      %v4272 = vpop.permute.xlu0 %4271
      %4273 = vrot.lane.b32.xlu0 %v4098, 4
      %v4274 = vpop.permute.xlu0 %4273
      %4275 = vrot.lane.b32.xlu0 %v4101, 4
      %v4276 = vpop.permute.xlu0 %4275
      %4277 = vrot.lane.b32.xlu0 %v4103, 4
      %v4278 = vpop.permute.xlu0 %4277
      %4279 = vrot.lane.b32.xlu0 %v4106, 4
      %v4280 = vpop.permute.xlu0 %4279
      %4281 = vrot.lane.b32.xlu0 %v4108, 4
      %v4282 = vpop.permute.xlu0 %4281
      %4283 = vrot.lane.b32.xlu0 %v4111, 4
      %v4284 = vpop.permute.xlu0 %4283
      %4285 = vrot.lane.b32.xlu0 %v4113, 4
      %v4286 = vpop.permute.xlu0 %4285
      %4287 = vrot.lane.b32.xlu0 %v4116, 4
      %v4288 = vpop.permute.xlu0 %4287
      %4289 = vrot.lane.b32.xlu0 %v4118, 4
      %v4290 = vpop.permute.xlu0 %4289
      %4291 = vrot.lane.b32.xlu0 %v4121, 4
      %v4292 = vpop.permute.xlu0 %4291
      %4293 = vrot.lane.b32.xlu0 %v4123, 4
      %v4294 = vpop.permute.xlu0 %4293
      %4295 = vrot.lane.b32.xlu0 %v4126, 4
      %v4296 = vpop.permute.xlu0 %4295
      %4297 = vrot.lane.b32.xlu0 %v4128, 4
      %v4298 = vpop.permute.xlu0 %4297
      %4331 = vrot.lane.b32.xlu0 %v4131, 8
      %v4332 = vpop.permute.xlu0 %4331
      %4333 = vrot.lane.b32.xlu0 %v4133, 8
      %v4334 = vpop.permute.xlu0 %4333
      %4335 = vrot.lane.b32.xlu0 %v4136, 8
      %v4336 = vpop.permute.xlu0 %4335
      %4337 = vrot.lane.b32.xlu0 %v4138, 8
      %v4338 = vpop.permute.xlu0 %4337
      %4339 = vrot.lane.b32.xlu0 %v4141, 8
      %v4340 = vpop.permute.xlu0 %4339
      %4341 = vrot.lane.b32.xlu0 %v4143, 8
      %v4342 = vpop.permute.xlu0 %4341
      %4343 = vrot.lane.b32.xlu0 %v4146, 8
      %v4344 = vpop.permute.xlu0 %4343
      %4345 = vrot.lane.b32.xlu0 %v4148, 8
      %v4346 = vpop.permute.xlu0 %4345
      %4347 = vrot.lane.b32.xlu0 %v4151, 8
      %v4348 = vpop.permute.xlu0 %4347
      %4349 = vrot.lane.b32.xlu0 %v4153, 8
      %v4350 = vpop.permute.xlu0 %4349
      %4351 = vrot.lane.b32.xlu0 %v4156, 8
      %v4352 = vpop.permute.xlu0 %4351
      %4353 = vrot.lane.b32.xlu0 %v4158, 8
      %v4354 = vpop.permute.xlu0 %4353
      %4355 = vrot.lane.b32.xlu0 %v4161, 8
      %v4356 = vpop.permute.xlu0 %4355
      %4357 = vrot.lane.b32.xlu0 %v4163, 8
      %v4358 = vpop.permute.xlu0 %4357
      %4359 = vrot.lane.b32.xlu0 %v4166, 8
      %v4360 = vpop.permute.xlu0 %4359
      %4361 = vrot.lane.b32.xlu0 %v4168, 8
      %v4362 = vpop.permute.xlu0 %4361
      %4363 = vrot.lane.b32.xlu0 %v4171, 8
      %v4364 = vpop.permute.xlu0 %4363
      %4365 = vrot.lane.b32.xlu0 %v4173, 8
      %v4366 = vpop.permute.xlu0 %4365
      %4367 = vrot.lane.b32.xlu0 %v4176, 8
      %v4368 = vpop.permute.xlu0 %4367
      %4369 = vrot.lane.b32.xlu0 %v4178, 8
      %v4370 = vpop.permute.xlu0 %4369
      %4371 = vrot.lane.b32.xlu0 %v4181, 8
      %v4372 = vpop.permute.xlu0 %4371
      %4373 = vrot.lane.b32.xlu0 %v4183, 8
      %v4374 = vpop.permute.xlu0 %4373
      %4375 = vrot.lane.b32.xlu0 %v4186, 8
      %v4376 = vpop.permute.xlu0 %4375
      %4377 = vrot.lane.b32.xlu0 %v4188, 8
      %v4378 = vpop.permute.xlu0 %4377
      %4379 = vrot.lane.b32.xlu0 %v4191, 8
      %v4380 = vpop.permute.xlu0 %4379
      %4381 = vrot.lane.b32.xlu0 %v4193, 8
      %v4382 = vpop.permute.xlu0 %4381
      %4383 = vrot.lane.b32.xlu0 %v4196, 8
      %v4384 = vpop.permute.xlu0 %4383
      %4385 = vrot.lane.b32.xlu0 %v4198, 8
      %v4386 = vpop.permute.xlu0 %4385
      %4387 = vrot.lane.b32.xlu0 %v4201, 8
      %v4388 = vpop.permute.xlu0 %4387
      %4389 = vrot.lane.b32.xlu0 %v4203, 8
      %v4390 = vpop.permute.xlu0 %4389
      %4391 = vrot.lane.b32.xlu0 %v4206, 8
      %v4392 = vpop.permute.xlu0 %4391
      %4393 = vrot.lane.b32.xlu0 %v4208, 8
      %v4394 = vpop.permute.xlu0 %4393
      %4427 = vrot.lane.b32.xlu0 %v3950, 12
      %v4428 = vpop.permute.xlu0 %4427
      %4429 = vrot.lane.b32.xlu0 %v3951, 12
      %v4430 = vpop.permute.xlu0 %4429
      %4431 = vrot.lane.b32.xlu0 %v3953, 12
      %v4432 = vpop.permute.xlu0 %4431
      %4433 = vrot.lane.b32.xlu0 %v3954, 12
      %v4434 = vpop.permute.xlu0 %4433
      %4435 = vrot.lane.b32.xlu0 %v3956, 12
      %v4436 = vpop.permute.xlu0 %4435
      %4437 = vrot.lane.b32.xlu0 %v3957, 12
      %v4438 = vpop.permute.xlu0 %4437
      %4439 = vrot.lane.b32.xlu0 %v3959, 12
      %v4440 = vpop.permute.xlu0 %4439
      %4441 = vrot.lane.b32.xlu0 %v3960, 12
      %v4442 = vpop.permute.xlu0 %4441
      %4443 = vrot.lane.b32.xlu0 %v3962, 12
      %v4444 = vpop.permute.xlu0 %4443
      %4445 = vrot.lane.b32.xlu0 %v3963, 12
      %v4446 = vpop.permute.xlu0 %4445
      %4447 = vrot.lane.b32.xlu0 %v3965, 12
      %v4448 = vpop.permute.xlu0 %4447
      %4449 = vrot.lane.b32.xlu0 %v3966, 12
      %v4450 = vpop.permute.xlu0 %4449
      %4451 = vrot.lane.b32.xlu0 %v3968, 12
      %v4452 = vpop.permute.xlu0 %4451
      %4453 = vrot.lane.b32.xlu0 %v3969, 12
      %v4454 = vpop.permute.xlu0 %4453
      %4455 = vrot.lane.b32.xlu0 %v3971, 12
      %v4456 = vpop.permute.xlu0 %4455
      %4457 = vrot.lane.b32.xlu0 %v3972, 12
      %v4458 = vpop.permute.xlu0 %4457
      %4459 = vrot.lane.b32.xlu0 %v3974, 12
      %v4460 = vpop.permute.xlu0 %4459
      %4461 = vrot.lane.b32.xlu0 %v3975, 12
      %v4462 = vpop.permute.xlu0 %4461
      %4463 = vrot.lane.b32.xlu0 %v3977, 12
      %v4464 = vpop.permute.xlu0 %4463
      %4465 = vrot.lane.b32.xlu0 %v3978, 12
      %v4466 = vpop.permute.xlu0 %4465
      %4467 = vrot.lane.b32.xlu0 %v3980, 12
      %v4468 = vpop.permute.xlu0 %4467
      %4469 = vrot.lane.b32.xlu0 %v3981, 12
      %v4470 = vpop.permute.xlu0 %4469
      %4471 = vrot.lane.b32.xlu0 %v3983, 12
      %v4472 = vpop.permute.xlu0 %4471
      %4473 = vrot.lane.b32.xlu0 %v3984, 12
      %v4474 = vpop.permute.xlu0 %4473
      %4475 = vrot.lane.b32.xlu0 %v3986, 12
      %v4476 = vpop.permute.xlu0 %4475
      %4477 = vrot.lane.b32.xlu0 %v3987, 12
      %v4478 = vpop.permute.xlu0 %4477
      %4479 = vrot.lane.b32.xlu0 %v3989, 12
      %v4480 = vpop.permute.xlu0 %4479
      %4481 = vrot.lane.b32.xlu0 %v3990, 12
      %v4482 = vpop.permute.xlu0 %4481
      %4483 = vrot.lane.b32.xlu0 %v3992, 12
      %v4484 = vpop.permute.xlu0 %4483
      %4485 = vrot.lane.b32.xlu0 %v3993, 12
      %v4486 = vpop.permute.xlu0 %4485
      %4487 = vrot.lane.b32.xlu0 %v3995, 12
      %v4488 = vpop.permute.xlu0 %4487
      %4489 = vrot.lane.b32.xlu0 %v3996, 12
      %v4490 = vpop.permute.xlu0 %4489
      %4523 = vrot.lane.b32.xlu0 %v4056, 16
      %v4524 = vpop.permute.xlu0 %4523
      %4525 = vrot.lane.b32.xlu0 %v4058, 16
      %v4526 = vpop.permute.xlu0 %4525
      %4527 = vrot.lane.b32.xlu0 %v4061, 16
      %v4528 = vpop.permute.xlu0 %4527
      %4529 = vrot.lane.b32.xlu0 %v4063, 16
      %v4530 = vpop.permute.xlu0 %4529
      %4531 = vrot.lane.b32.xlu0 %v4066, 16
      %v4532 = vpop.permute.xlu0 %4531
      %4533 = vrot.lane.b32.xlu0 %v4068, 16
      %v4534 = vpop.permute.xlu0 %4533
      %4535 = vrot.lane.b32.xlu0 %v4071, 16
      %v4536 = vpop.permute.xlu0 %4535
      %4537 = vrot.lane.b32.xlu0 %v4073, 16
      %v4538 = vpop.permute.xlu0 %4537
      %4539 = vrot.lane.b32.xlu0 %v4076, 16
      %v4540 = vpop.permute.xlu0 %4539
      %4541 = vrot.lane.b32.xlu0 %v4078, 16
      %v4542 = vpop.permute.xlu0 %4541
      %4543 = vrot.lane.b32.xlu0 %v4081, 16
      %v4544 = vpop.permute.xlu0 %4543
      %4545 = vrot.lane.b32.xlu0 %v4083, 16
      %v4546 = vpop.permute.xlu0 %4545
      %4547 = vrot.lane.b32.xlu0 %v4086, 16
      %v4548 = vpop.permute.xlu0 %4547
      %4549 = vrot.lane.b32.xlu0 %v4088, 16
      %v4550 = vpop.permute.xlu0 %4549
      %4551 = vrot.lane.b32.xlu0 %v4091, 16
      %v4552 = vpop.permute.xlu0 %4551
      %4553 = vrot.lane.b32.xlu0 %v4093, 16
      %v4554 = vpop.permute.xlu0 %4553
      %4555 = vrot.lane.b32.xlu0 %v4096, 16
      %v4556 = vpop.permute.xlu0 %4555
      %4557 = vrot.lane.b32.xlu0 %v4098, 16
      %v4558 = vpop.permute.xlu0 %4557
      %4559 = vrot.lane.b32.xlu0 %v4101, 16
      %v4560 = vpop.permute.xlu0 %4559
      %4561 = vrot.lane.b32.xlu0 %v4103, 16
      %v4562 = vpop.permute.xlu0 %4561
      %4563 = vrot.lane.b32.xlu0 %v4106, 16
      %v4564 = vpop.permute.xlu0 %4563
      %4565 = vrot.lane.b32.xlu0 %v4108, 16
      %v4566 = vpop.permute.xlu0 %4565
      %4567 = vrot.lane.b32.xlu0 %v4111, 16
      %v4568 = vpop.permute.xlu0 %4567
      %4569 = vrot.lane.b32.xlu0 %v4113, 16
      %v4570 = vpop.permute.xlu0 %4569
      %4571 = vrot.lane.b32.xlu0 %v4116, 16
      %v4572 = vpop.permute.xlu0 %4571
      %4573 = vrot.lane.b32.xlu0 %v4118, 16
      %v4574 = vpop.permute.xlu0 %4573
      %4575 = vrot.lane.b32.xlu0 %v4121, 16
      %v4576 = vpop.permute.xlu0 %4575
      %4577 = vrot.lane.b32.xlu0 %v4123, 16
      %v4578 = vpop.permute.xlu0 %4577
      %4579 = vrot.lane.b32.xlu0 %v4126, 16
      %v4580 = vpop.permute.xlu0 %4579
      %4581 = vrot.lane.b32.xlu0 %v4128, 16
      %v4582 = vpop.permute.xlu0 %4581
      %4583 = vrot.lane.b32.xlu0 %v4214, 16
      %v4584 = vpop.permute.xlu0 %4583
      %4585 = vrot.lane.b32.xlu0 %v4216, 16
      %v4586 = vpop.permute.xlu0 %4585
      %4619 = vrot.lane.b32.xlu0 %v4136, 20
      %v4620 = vpop.permute.xlu0 %4619
      %4621 = vrot.lane.b32.xlu0 %v4138, 20
      %v4622 = vpop.permute.xlu0 %4621
      %4623 = vrot.lane.b32.xlu0 %v4141, 20
      %v4624 = vpop.permute.xlu0 %4623
      %4625 = vrot.lane.b32.xlu0 %v4143, 20
      %v4626 = vpop.permute.xlu0 %4625
      %4627 = vrot.lane.b32.xlu0 %v4146, 20
      %v4628 = vpop.permute.xlu0 %4627
      %4629 = vrot.lane.b32.xlu0 %v4148, 20
      %v4630 = vpop.permute.xlu0 %4629
      %4631 = vrot.lane.b32.xlu0 %v4151, 20
      %v4632 = vpop.permute.xlu0 %4631
      %4633 = vrot.lane.b32.xlu0 %v4153, 20
      %v4634 = vpop.permute.xlu0 %4633
      %4635 = vrot.lane.b32.xlu0 %v4156, 20
      %v4636 = vpop.permute.xlu0 %4635
      %4637 = vrot.lane.b32.xlu0 %v4158, 20
      %v4638 = vpop.permute.xlu0 %4637
      %4639 = vrot.lane.b32.xlu0 %v4161, 20
      %v4640 = vpop.permute.xlu0 %4639
      %4641 = vrot.lane.b32.xlu0 %v4163, 20
      %v4642 = vpop.permute.xlu0 %4641
      %4643 = vrot.lane.b32.xlu0 %v4166, 20
      %v4644 = vpop.permute.xlu0 %4643
      %4645 = vrot.lane.b32.xlu0 %v4168, 20
      %v4646 = vpop.permute.xlu0 %4645
      %4647 = vrot.lane.b32.xlu0 %v4171, 20
      %v4648 = vpop.permute.xlu0 %4647
      %4649 = vrot.lane.b32.xlu0 %v4173, 20
      %v4650 = vpop.permute.xlu0 %4649
      %4651 = vrot.lane.b32.xlu0 %v4176, 20
      %v4652 = vpop.permute.xlu0 %4651
      %4653 = vrot.lane.b32.xlu0 %v4178, 20
      %v4654 = vpop.permute.xlu0 %4653
      %4655 = vrot.lane.b32.xlu0 %v4181, 20
      %v4656 = vpop.permute.xlu0 %4655
      %4657 = vrot.lane.b32.xlu0 %v4183, 20
      %v4658 = vpop.permute.xlu0 %4657
      %4659 = vrot.lane.b32.xlu0 %v4186, 20
      %v4660 = vpop.permute.xlu0 %4659
      %4661 = vrot.lane.b32.xlu0 %v4188, 20
      %v4662 = vpop.permute.xlu0 %4661
      %4663 = vrot.lane.b32.xlu0 %v4191, 20
      %v4664 = vpop.permute.xlu0 %4663
      %4665 = vrot.lane.b32.xlu0 %v4193, 20
      %v4666 = vpop.permute.xlu0 %4665
      %4667 = vrot.lane.b32.xlu0 %v4196, 20
      %v4668 = vpop.permute.xlu0 %4667
      %4669 = vrot.lane.b32.xlu0 %v4198, 20
      %v4670 = vpop.permute.xlu0 %4669
      %4671 = vrot.lane.b32.xlu0 %v4201, 20
      %v4672 = vpop.permute.xlu0 %4671
      %4673 = vrot.lane.b32.xlu0 %v4203, 20
      %v4674 = vpop.permute.xlu0 %4673
      %4675 = vrot.lane.b32.xlu0 %v4206, 20
      %v4676 = vpop.permute.xlu0 %4675
      %4677 = vrot.lane.b32.xlu0 %v4208, 20
      %v4678 = vpop.permute.xlu0 %4677
      %4679 = vrot.lane.b32.xlu0 %v4219, 20
      %v4680 = vpop.permute.xlu0 %4679
      %4681 = vrot.lane.b32.xlu0 %v4221, 20
      %v4682 = vpop.permute.xlu0 %4681
      %4715 = vrot.lane.b32.xlu0 %v3953, 24
      %v4716 = vpop.permute.xlu0 %4715
      %4717 = vrot.lane.b32.xlu0 %v3954, 24
      %v4718 = vpop.permute.xlu0 %4717
      %4719 = vrot.lane.b32.xlu0 %v3956, 24
      %v4720 = vpop.permute.xlu0 %4719
      %4721 = vrot.lane.b32.xlu0 %v3957, 24
      %v4722 = vpop.permute.xlu0 %4721
      %4723 = vrot.lane.b32.xlu0 %v3959, 24
      %v4724 = vpop.permute.xlu0 %4723
      %4725 = vrot.lane.b32.xlu0 %v3960, 24
      %v4726 = vpop.permute.xlu0 %4725
      %4727 = vrot.lane.b32.xlu0 %v3962, 24
      %v4728 = vpop.permute.xlu0 %4727
      %4729 = vrot.lane.b32.xlu0 %v3963, 24
      %v4730 = vpop.permute.xlu0 %4729
      %4731 = vrot.lane.b32.xlu0 %v3965, 24
      %v4732 = vpop.permute.xlu0 %4731
      %4733 = vrot.lane.b32.xlu0 %v3966, 24
      %v4734 = vpop.permute.xlu0 %4733
      %4735 = vrot.lane.b32.xlu0 %v3968, 24
      %v4736 = vpop.permute.xlu0 %4735
      %4737 = vrot.lane.b32.xlu0 %v3969, 24
      %v4738 = vpop.permute.xlu0 %4737
      %4739 = vrot.lane.b32.xlu0 %v3971, 24
      %v4740 = vpop.permute.xlu0 %4739
      %4741 = vrot.lane.b32.xlu0 %v3972, 24
      %v4742 = vpop.permute.xlu0 %4741
      %4743 = vrot.lane.b32.xlu0 %v3974, 24
      %v4744 = vpop.permute.xlu0 %4743
      %4745 = vrot.lane.b32.xlu0 %v3975, 24
      %v4746 = vpop.permute.xlu0 %4745
      %4747 = vrot.lane.b32.xlu0 %v3977, 24
      %v4748 = vpop.permute.xlu0 %4747
      %4749 = vrot.lane.b32.xlu0 %v3978, 24
      %v4750 = vpop.permute.xlu0 %4749
      %4751 = vrot.lane.b32.xlu0 %v3980, 24
      %v4752 = vpop.permute.xlu0 %4751
      %4753 = vrot.lane.b32.xlu0 %v3981, 24
      %v4754 = vpop.permute.xlu0 %4753
      %4755 = vrot.lane.b32.xlu0 %v3983, 24
      %v4756 = vpop.permute.xlu0 %4755
      %4757 = vrot.lane.b32.xlu0 %v3984, 24
      %v4758 = vpop.permute.xlu0 %4757
      %4759 = vrot.lane.b32.xlu0 %v3986, 24
      %v4760 = vpop.permute.xlu0 %4759
      %4761 = vrot.lane.b32.xlu0 %v3987, 24
      %v4762 = vpop.permute.xlu0 %4761
      %4763 = vrot.lane.b32.xlu0 %v3989, 24
      %v4764 = vpop.permute.xlu0 %4763
      %4765 = vrot.lane.b32.xlu0 %v3990, 24
      %v4766 = vpop.permute.xlu0 %4765
      %4767 = vrot.lane.b32.xlu0 %v3992, 24
      %v4768 = vpop.permute.xlu0 %4767
      %4769 = vrot.lane.b32.xlu0 %v3993, 24
      %v4770 = vpop.permute.xlu0 %4769
      %4771 = vrot.lane.b32.xlu0 %v3995, 24
      %v4772 = vpop.permute.xlu0 %4771
      %4773 = vrot.lane.b32.xlu0 %v3996, 24
      %v4774 = vpop.permute.xlu0 %4773
      %4775 = vrot.lane.b32.xlu0 %v3998, 24
      %v4776 = vpop.permute.xlu0 %4775
      %4777 = vrot.lane.b32.xlu0 %v3999, 24
      %v4778 = vpop.permute.xlu0 %4777
      %4811 = vrot.lane.b32.xlu0 %v4061, 28
      %v4812 = vpop.permute.xlu0 %4811
      %4813 = vrot.lane.b32.xlu0 %v4063, 28
      %v4814 = vpop.permute.xlu0 %4813
      %4815 = vrot.lane.b32.xlu0 %v4066, 28
      %v4816 = vpop.permute.xlu0 %4815
      %4817 = vrot.lane.b32.xlu0 %v4068, 28
      %v4818 = vpop.permute.xlu0 %4817
      %4819 = vrot.lane.b32.xlu0 %v4071, 28
      %v4820 = vpop.permute.xlu0 %4819
      %4821 = vrot.lane.b32.xlu0 %v4073, 28
      %v4822 = vpop.permute.xlu0 %4821
      %4823 = vrot.lane.b32.xlu0 %v4076, 28
      %v4824 = vpop.permute.xlu0 %4823
      %4825 = vrot.lane.b32.xlu0 %v4078, 28
      %v4826 = vpop.permute.xlu0 %4825
      %4827 = vrot.lane.b32.xlu0 %v4081, 28
      %v4828 = vpop.permute.xlu0 %4827
      %4829 = vrot.lane.b32.xlu0 %v4083, 28
      %v4830 = vpop.permute.xlu0 %4829
      %4831 = vrot.lane.b32.xlu0 %v4086, 28
      %v4832 = vpop.permute.xlu0 %4831
      %4833 = vrot.lane.b32.xlu0 %v4088, 28
      %v4834 = vpop.permute.xlu0 %4833
      %4835 = vrot.lane.b32.xlu0 %v4091, 28
      %v4836 = vpop.permute.xlu0 %4835
      %4837 = vrot.lane.b32.xlu0 %v4093, 28
      %v4838 = vpop.permute.xlu0 %4837
      %4839 = vrot.lane.b32.xlu0 %v4096, 28
      %v4840 = vpop.permute.xlu0 %4839
      %4841 = vrot.lane.b32.xlu0 %v4098, 28
      %v4842 = vpop.permute.xlu0 %4841
      %4843 = vrot.lane.b32.xlu0 %v4101, 28
      %v4844 = vpop.permute.xlu0 %4843
      %4845 = vrot.lane.b32.xlu0 %v4103, 28
      %v4846 = vpop.permute.xlu0 %4845
      %4847 = vrot.lane.b32.xlu0 %v4106, 28
      %v4848 = vpop.permute.xlu0 %4847
      %4849 = vrot.lane.b32.xlu0 %v4108, 28
      %v4850 = vpop.permute.xlu0 %4849
      %4851 = vrot.lane.b32.xlu0 %v4111, 28
      %v4852 = vpop.permute.xlu0 %4851
      %4853 = vrot.lane.b32.xlu0 %v4113, 28
      %v4854 = vpop.permute.xlu0 %4853
      %4855 = vrot.lane.b32.xlu0 %v4116, 28
      %v4856 = vpop.permute.xlu0 %4855
      %4857 = vrot.lane.b32.xlu0 %v4118, 28
      %v4858 = vpop.permute.xlu0 %4857
      %4859 = vrot.lane.b32.xlu0 %v4121, 28
      %v4860 = vpop.permute.xlu0 %4859
      %4861 = vrot.lane.b32.xlu0 %v4123, 28
      %v4862 = vpop.permute.xlu0 %4861
      %4863 = vrot.lane.b32.xlu0 %v4126, 28
      %v4864 = vpop.permute.xlu0 %4863
      %4865 = vrot.lane.b32.xlu0 %v4128, 28
      %v4866 = vpop.permute.xlu0 %4865
      %4867 = vrot.lane.b32.xlu0 %v4214, 28
      %v4868 = vpop.permute.xlu0 %4867
      %4869 = vrot.lane.b32.xlu0 %v4216, 28
      %v4870 = vpop.permute.xlu0 %4869
      %4871 = vrot.lane.b32.xlu0 %v4227, 28
      %v4872 = vpop.permute.xlu0 %4871
      %4873 = vrot.lane.b32.xlu0 %v4229, 28
      %v4874 = vpop.permute.xlu0 %4873
      %4907 = vrot.lane.b32.xlu0 %v4141, 32
      %v4908 = vpop.permute.xlu0 %4907
      %4909 = vrot.lane.b32.xlu0 %v4143, 32
      %v4910 = vpop.permute.xlu0 %4909
      %4911 = vrot.lane.b32.xlu0 %v4146, 32
      %v4912 = vpop.permute.xlu0 %4911
      %4913 = vrot.lane.b32.xlu0 %v4148, 32
      %v4914 = vpop.permute.xlu0 %4913
      %4915 = vrot.lane.b32.xlu0 %v4151, 32
      %v4916 = vpop.permute.xlu0 %4915
      %4917 = vrot.lane.b32.xlu0 %v4153, 32
      %v4918 = vpop.permute.xlu0 %4917
      %4919 = vrot.lane.b32.xlu0 %v4156, 32
      %v4920 = vpop.permute.xlu0 %4919
      %4921 = vrot.lane.b32.xlu0 %v4158, 32
      %v4922 = vpop.permute.xlu0 %4921
      %4923 = vrot.lane.b32.xlu0 %v4161, 32
      %v4924 = vpop.permute.xlu0 %4923
      %4925 = vrot.lane.b32.xlu0 %v4163, 32
      %v4926 = vpop.permute.xlu0 %4925
      %4927 = vrot.lane.b32.xlu0 %v4166, 32
      %v4928 = vpop.permute.xlu0 %4927
      %4929 = vrot.lane.b32.xlu0 %v4168, 32
      %v4930 = vpop.permute.xlu0 %4929
      %4931 = vrot.lane.b32.xlu0 %v4171, 32
      %v4932 = vpop.permute.xlu0 %4931
      %4933 = vrot.lane.b32.xlu0 %v4173, 32
      %v4934 = vpop.permute.xlu0 %4933
      %4935 = vrot.lane.b32.xlu0 %v4176, 32
      %v4936 = vpop.permute.xlu0 %4935
      %4937 = vrot.lane.b32.xlu0 %v4178, 32
      %v4938 = vpop.permute.xlu0 %4937
      %4939 = vrot.lane.b32.xlu0 %v4181, 32
      %v4940 = vpop.permute.xlu0 %4939
      %4941 = vrot.lane.b32.xlu0 %v4183, 32
      %v4942 = vpop.permute.xlu0 %4941
      %4943 = vrot.lane.b32.xlu0 %v4186, 32
      %v4944 = vpop.permute.xlu0 %4943
      %4945 = vrot.lane.b32.xlu0 %v4188, 32
      %v4946 = vpop.permute.xlu0 %4945
      %4947 = vrot.lane.b32.xlu0 %v4191, 32
      %v4948 = vpop.permute.xlu0 %4947
      %4949 = vrot.lane.b32.xlu0 %v4193, 32
      %v4950 = vpop.permute.xlu0 %4949
      %4951 = vrot.lane.b32.xlu0 %v4196, 32
      %v4952 = vpop.permute.xlu0 %4951
      %4953 = vrot.lane.b32.xlu0 %v4198, 32
      %v4954 = vpop.permute.xlu0 %4953
      %4955 = vrot.lane.b32.xlu0 %v4201, 32
      %v4956 = vpop.permute.xlu0 %4955
      %4957 = vrot.lane.b32.xlu0 %v4203, 32
      %v4958 = vpop.permute.xlu0 %4957
      %4959 = vrot.lane.b32.xlu0 %v4206, 32
      %v4960 = vpop.permute.xlu0 %4959
      %4961 = vrot.lane.b32.xlu0 %v4208, 32
      %v4962 = vpop.permute.xlu0 %4961
      %4963 = vrot.lane.b32.xlu0 %v4219, 32
      %v4964 = vpop.permute.xlu0 %4963
      %4965 = vrot.lane.b32.xlu0 %v4221, 32
      %v4966 = vpop.permute.xlu0 %4965
      %4967 = vrot.lane.b32.xlu0 %v4232, 32
      %v4968 = vpop.permute.xlu0 %4967
      %4969 = vrot.lane.b32.xlu0 %v4234, 32
      %v4970 = vpop.permute.xlu0 %4969
      %v5003 = vsel %vm171, %v3947, %v4236
      %v5004 = vsel %vm171, %v3948, %v4238
      %v5005 = vsel %vm171, %v3950, %v4240
      %v5006 = vsel %vm171, %v3951, %v4242
      %v5007 = vsel %vm171, %v3953, %v4244
      %v5008 = vsel %vm171, %v3954, %v4246
      %v5009 = vsel %vm171, %v3956, %v4248
      %v5010 = vsel %vm171, %v3957, %v4250
      %v5011 = vsel %vm171, %v3959, %v4252
      %v5012 = vsel %vm171, %v3960, %v4254
      %v5013 = vsel %vm171, %v3962, %v4256
      %v5014 = vsel %vm171, %v3963, %v4258
      %v5015 = vsel %vm171, %v3965, %v4260
      %v5016 = vsel %vm171, %v3966, %v4262
      %v5017 = vsel %vm171, %v3968, %v4264
      %v5018 = vsel %vm171, %v3969, %v4266
      %v5019 = vsel %vm171, %v3971, %v4268
      %v5020 = vsel %vm171, %v3972, %v4270
      %v5021 = vsel %vm171, %v3974, %v4272
      %v5022 = vsel %vm171, %v3975, %v4274
      %v5023 = vsel %vm171, %v3977, %v4276
      %v5024 = vsel %vm171, %v3978, %v4278
      %v5025 = vsel %vm171, %v3980, %v4280
      %v5026 = vsel %vm171, %v3981, %v4282
      %v5027 = vsel %vm171, %v3983, %v4284
      %v5028 = vsel %vm171, %v3984, %v4286
      %v5029 = vsel %vm171, %v3986, %v4288
      %v5030 = vsel %vm171, %v3987, %v4290
      %v5031 = vsel %vm171, %v3989, %v4292
      %v5032 = vsel %vm171, %v3990, %v4294
      %v5033 = vsel %vm171, %v3992, %v4296
      %v5034 = vsel %vm171, %v3993, %v4298
      %v5035 = vsel %vm1436, %v5003, %v4332
      %v5036 = vsel %vm1436, %v5004, %v4334
      %v5037 = vsel %vm1436, %v5005, %v4336
      %v5038 = vsel %vm1436, %v5006, %v4338
      %v5039 = vsel %vm1436, %v5007, %v4340
      %v5040 = vsel %vm1436, %v5008, %v4342
      %v5041 = vsel %vm1436, %v5009, %v4344
      %v5042 = vsel %vm1436, %v5010, %v4346
      %v5043 = vsel %vm1436, %v5011, %v4348
      %v5044 = vsel %vm1436, %v5012, %v4350
      %v5045 = vsel %vm1436, %v5013, %v4352
      %v5046 = vsel %vm1436, %v5014, %v4354
      %v5047 = vsel %vm1436, %v5015, %v4356
      %v5048 = vsel %vm1436, %v5016, %v4358
      %v5049 = vsel %vm1436, %v5017, %v4360
      %v5050 = vsel %vm1436, %v5018, %v4362
      %v5051 = vsel %vm1436, %v5019, %v4364
      %v5052 = vsel %vm1436, %v5020, %v4366
      %v5053 = vsel %vm1436, %v5021, %v4368
      %v5054 = vsel %vm1436, %v5022, %v4370
      %v5055 = vsel %vm1436, %v5023, %v4372
      %v5056 = vsel %vm1436, %v5024, %v4374
      %v5057 = vsel %vm1436, %v5025, %v4376
      %v5058 = vsel %vm1436, %v5026, %v4378
      %v5059 = vsel %vm1436, %v5027, %v4380
      %v5060 = vsel %vm1436, %v5028, %v4382
      %v5061 = vsel %vm1436, %v5029, %v4384
      %v5062 = vsel %vm1436, %v5030, %v4386
      %v5063 = vsel %vm1436, %v5031, %v4388
      %v5064 = vsel %vm1436, %v5032, %v4390
      %v5065 = vsel %vm1436, %v5033, %v4392
      %v5066 = vsel %vm1436, %v5034, %v4394
      %v5067 = vsel %vm1469, %v5035, %v4428
      %v5068 = vsel %vm1469, %v5036, %v4430
      %v5069 = vsel %vm1469, %v5037, %v4432
      %v5070 = vsel %vm1469, %v5038, %v4434
      %v5071 = vsel %vm1469, %v5039, %v4436
      %v5072 = vsel %vm1469, %v5040, %v4438
      %v5073 = vsel %vm1469, %v5041, %v4440
      %v5074 = vsel %vm1469, %v5042, %v4442
      %v5075 = vsel %vm1469, %v5043, %v4444
      %v5076 = vsel %vm1469, %v5044, %v4446
      %v5077 = vsel %vm1469, %v5045, %v4448
      %v5078 = vsel %vm1469, %v5046, %v4450
      %v5079 = vsel %vm1469, %v5047, %v4452
      %v5080 = vsel %vm1469, %v5048, %v4454
      %v5081 = vsel %vm1469, %v5049, %v4456
      %v5082 = vsel %vm1469, %v5050, %v4458
      %v5083 = vsel %vm1469, %v5051, %v4460
      %v5084 = vsel %vm1469, %v5052, %v4462
      %v5085 = vsel %vm1469, %v5053, %v4464
      %v5086 = vsel %vm1469, %v5054, %v4466
      %v5087 = vsel %vm1469, %v5055, %v4468
      %v5088 = vsel %vm1469, %v5056, %v4470
      %v5089 = vsel %vm1469, %v5057, %v4472
      %v5090 = vsel %vm1469, %v5058, %v4474
      %v5091 = vsel %vm1469, %v5059, %v4476
      %v5092 = vsel %vm1469, %v5060, %v4478
      %v5093 = vsel %vm1469, %v5061, %v4480
      %v5094 = vsel %vm1469, %v5062, %v4482
      %v5095 = vsel %vm1469, %v5063, %v4484
      %v5096 = vsel %vm1469, %v5064, %v4486
      %v5097 = vsel %vm1469, %v5065, %v4488
      %v5098 = vsel %vm1469, %v5066, %v4490
      %v5099 = vsel %vm1502, %v5067, %v4524
      %v5100 = vsel %vm1502, %v5068, %v4526
      %v5101 = vsel %vm1502, %v5069, %v4528
      %v5102 = vsel %vm1502, %v5070, %v4530
      %v5103 = vsel %vm1502, %v5071, %v4532
      %v5104 = vsel %vm1502, %v5072, %v4534
      %v5105 = vsel %vm1502, %v5073, %v4536
      %v5106 = vsel %vm1502, %v5074, %v4538
      %v5107 = vsel %vm1502, %v5075, %v4540
      %v5108 = vsel %vm1502, %v5076, %v4542
      %v5109 = vsel %vm1502, %v5077, %v4544
      %v5110 = vsel %vm1502, %v5078, %v4546
      %v5111 = vsel %vm1502, %v5079, %v4548
      %v5112 = vsel %vm1502, %v5080, %v4550
      %v5113 = vsel %vm1502, %v5081, %v4552
      %v5114 = vsel %vm1502, %v5082, %v4554
      %v5115 = vsel %vm1502, %v5083, %v4556
      %v5116 = vsel %vm1502, %v5084, %v4558
      %v5117 = vsel %vm1502, %v5085, %v4560
      %v5118 = vsel %vm1502, %v5086, %v4562
      %v5119 = vsel %vm1502, %v5087, %v4564
      %v5120 = vsel %vm1502, %v5088, %v4566
      %v5121 = vsel %vm1502, %v5089, %v4568
      %v5122 = vsel %vm1502, %v5090, %v4570
      %v5123 = vsel %vm1502, %v5091, %v4572
      %v5124 = vsel %vm1502, %v5092, %v4574
      %v5125 = vsel %vm1502, %v5093, %v4576
      %v5126 = vsel %vm1502, %v5094, %v4578
      %v5127 = vsel %vm1502, %v5095, %v4580
      %v5128 = vsel %vm1502, %v5096, %v4582
      %v5129 = vsel %vm1502, %v5097, %v4584
      %v5130 = vsel %vm1502, %v5098, %v4586
      %v5131 = vsel %vm1535, %v5099, %v4620
      %v5132 = vsel %vm1535, %v5100, %v4622
      %v5133 = vsel %vm1535, %v5101, %v4624
      %v5134 = vsel %vm1535, %v5102, %v4626
      %v5135 = vsel %vm1535, %v5103, %v4628
      %v5136 = vsel %vm1535, %v5104, %v4630
      %v5137 = vsel %vm1535, %v5105, %v4632
      %v5138 = vsel %vm1535, %v5106, %v4634
      %v5139 = vsel %vm1535, %v5107, %v4636
      %v5140 = vsel %vm1535, %v5108, %v4638
      %v5141 = vsel %vm1535, %v5109, %v4640
      %v5142 = vsel %vm1535, %v5110, %v4642
      %v5143 = vsel %vm1535, %v5111, %v4644
      %v5144 = vsel %vm1535, %v5112, %v4646
      %v5145 = vsel %vm1535, %v5113, %v4648
      %v5146 = vsel %vm1535, %v5114, %v4650
      %v5147 = vsel %vm1535, %v5115, %v4652
      %v5148 = vsel %vm1535, %v5116, %v4654
      %v5149 = vsel %vm1535, %v5117, %v4656
      %v5150 = vsel %vm1535, %v5118, %v4658
      %v5151 = vsel %vm1535, %v5119, %v4660
      %v5152 = vsel %vm1535, %v5120, %v4662
      %v5153 = vsel %vm1535, %v5121, %v4664
      %v5154 = vsel %vm1535, %v5122, %v4666
      %v5155 = vsel %vm1535, %v5123, %v4668
      %v5156 = vsel %vm1535, %v5124, %v4670
      %v5157 = vsel %vm1535, %v5125, %v4672
      %v5158 = vsel %vm1535, %v5126, %v4674
      %v5159 = vsel %vm1535, %v5127, %v4676
      %v5160 = vsel %vm1535, %v5128, %v4678
      %v5161 = vsel %vm1535, %v5129, %v4680
      %v5162 = vsel %vm1535, %v5130, %v4682
      %v5163 = vsel %vm1568, %v5131, %v4716
      %v5164 = vsel %vm1568, %v5132, %v4718
      %v5165 = vsel %vm1568, %v5133, %v4720
      %v5166 = vsel %vm1568, %v5134, %v4722
      %v5167 = vsel %vm1568, %v5135, %v4724
      %v5168 = vsel %vm1568, %v5136, %v4726
      %v5169 = vsel %vm1568, %v5137, %v4728
      %v5170 = vsel %vm1568, %v5138, %v4730
      %v5171 = vsel %vm1568, %v5139, %v4732
      %v5172 = vsel %vm1568, %v5140, %v4734
      %v5173 = vsel %vm1568, %v5141, %v4736
      %v5174 = vsel %vm1568, %v5142, %v4738
      %v5175 = vsel %vm1568, %v5143, %v4740
      %v5176 = vsel %vm1568, %v5144, %v4742
      %v5177 = vsel %vm1568, %v5145, %v4744
      %v5178 = vsel %vm1568, %v5146, %v4746
      %v5179 = vsel %vm1568, %v5147, %v4748
      %v5180 = vsel %vm1568, %v5148, %v4750
      %v5181 = vsel %vm1568, %v5149, %v4752
      %v5182 = vsel %vm1568, %v5150, %v4754
      %v5183 = vsel %vm1568, %v5151, %v4756
      %v5184 = vsel %vm1568, %v5152, %v4758
      %v5185 = vsel %vm1568, %v5153, %v4760
      %v5186 = vsel %vm1568, %v5154, %v4762
      %v5187 = vsel %vm1568, %v5155, %v4764
      %v5188 = vsel %vm1568, %v5156, %v4766
      %v5189 = vsel %vm1568, %v5157, %v4768
      %v5190 = vsel %vm1568, %v5158, %v4770
      %v5191 = vsel %vm1568, %v5159, %v4772
      %v5192 = vsel %vm1568, %v5160, %v4774
      %v5193 = vsel %vm1568, %v5161, %v4776
      %v5194 = vsel %vm1568, %v5162, %v4778
      %v5195 = vsel %vm1601, %v5163, %v4812
      %v5196 = vsel %vm1601, %v5164, %v4814
      %v5197 = vsel %vm1601, %v5165, %v4816
      %v5198 = vsel %vm1601, %v5166, %v4818
      %v5199 = vsel %vm1601, %v5167, %v4820
      %v5200 = vsel %vm1601, %v5168, %v4822
      %v5201 = vsel %vm1601, %v5169, %v4824
      %v5202 = vsel %vm1601, %v5170, %v4826
      %v5203 = vsel %vm1601, %v5171, %v4828
      %v5204 = vsel %vm1601, %v5172, %v4830
      %v5205 = vsel %vm1601, %v5173, %v4832
      %v5206 = vsel %vm1601, %v5174, %v4834
      %v5207 = vsel %vm1601, %v5175, %v4836
      %v5208 = vsel %vm1601, %v5176, %v4838
      %v5209 = vsel %vm1601, %v5177, %v4840
      %v5210 = vsel %vm1601, %v5178, %v4842
      %v5211 = vsel %vm1601, %v5179, %v4844
      %v5212 = vsel %vm1601, %v5180, %v4846
      %v5213 = vsel %vm1601, %v5181, %v4848
      %v5214 = vsel %vm1601, %v5182, %v4850
      %v5215 = vsel %vm1601, %v5183, %v4852
      %v5216 = vsel %vm1601, %v5184, %v4854
      %v5217 = vsel %vm1601, %v5185, %v4856
      %v5218 = vsel %vm1601, %v5186, %v4858
      %v5219 = vsel %vm1601, %v5187, %v4860
      %v5220 = vsel %vm1601, %v5188, %v4862
      %v5221 = vsel %vm1601, %v5189, %v4864
      %v5222 = vsel %vm1601, %v5190, %v4866
      %v5223 = vsel %vm1601, %v5191, %v4868
      %v5224 = vsel %vm1601, %v5192, %v4870
      %v5225 = vsel %vm1601, %v5193, %v4872
      %v5226 = vsel %vm1601, %v5194, %v4874
      %v5227 = vsel %vm1634, %v5195, %v4908
      %v5228 = vsel %vm1634, %v5196, %v4910
      %v5229 = vsel %vm1634, %v5197, %v4912
      %v5230 = vsel %vm1634, %v5198, %v4914
      %v5231 = vsel %vm1634, %v5199, %v4916
      %v5232 = vsel %vm1634, %v5200, %v4918
      %v5233 = vsel %vm1634, %v5201, %v4920
      %v5234 = vsel %vm1634, %v5202, %v4922
      %v5235 = vsel %vm1634, %v5203, %v4924
      %v5236 = vsel %vm1634, %v5204, %v4926
      %v5237 = vsel %vm1634, %v5205, %v4928
      %v5238 = vsel %vm1634, %v5206, %v4930
      %v5239 = vsel %vm1634, %v5207, %v4932
      %v5240 = vsel %vm1634, %v5208, %v4934
      %v5241 = vsel %vm1634, %v5209, %v4936
      %v5242 = vsel %vm1634, %v5210, %v4938
      %v5243 = vsel %vm1634, %v5211, %v4940
      %v5244 = vsel %vm1634, %v5212, %v4942
      %v5245 = vsel %vm1634, %v5213, %v4944
      %v5246 = vsel %vm1634, %v5214, %v4946
      %v5247 = vsel %vm1634, %v5215, %v4948
      %v5248 = vsel %vm1634, %v5216, %v4950
      %v5249 = vsel %vm1634, %v5217, %v4952
      %v5250 = vsel %vm1634, %v5218, %v4954
      %v5251 = vsel %vm1634, %v5219, %v4956
      %v5252 = vsel %vm1634, %v5220, %v4958
      %v5253 = vsel %vm1634, %v5221, %v4960
      %v5254 = vsel %vm1634, %v5222, %v4962
      %v5255 = vsel %vm1634, %v5223, %v4964
      %v5256 = vsel %vm1634, %v5224, %v4966
      %v5257 = vsel %vm1634, %v5225, %v4968
      %v5258 = vsel %vm1634, %v5226, %v4970
      %s5259 = scalar_lea.vmem %s1, 80
      %v5260 = vld [vmem:[%s5259] sm:$0xff]
      %v5261 = vld [vmem:[%s5259 + $0x8] sm:$0xff]
      %v5262 = vld [vmem:[%s5259 + $0x10] sm:$0xff]
      %v5263 = vld [vmem:[%s5259 + $0x18] sm:$0xff]
      %v5264 = vld [vmem:[%s5259 + $0x20] sm:$0xf]
      %s5265 = scalar_lea.vmem %s2, 2
      %v5266 = vld [vmem:[%s5265] sm:$0x1]
      %v5268 = vlaneseq
      %v5269 = vshrl.u32 %v5268, 7
      %v5270 = vsub.s32 0, %v5269
      %v5271 = vrot.slane %v5266, %v5270
      %v5274 = vsel %vm1679, %v5227, 0
      %v5277 = vsel %vm1679, %v5228, 0
      %v5280 = vsel %vm1679, %v5229, 0
      %v5283 = vsel %vm1679, %v5230, 0
      %v5286 = vsel %vm1679, %v5231, 0
      %v5289 = vsel %vm1679, %v5232, 0
      %v5292 = vsel %vm1679, %v5233, 0
      %v5295 = vsel %vm1679, %v5234, 0
      %v5298 = vsel %vm1679, %v5235, 0
      %v5301 = vsel %vm1679, %v5236, 0
      %v5304 = vsel %vm1679, %v5237, 0
      %v5307 = vsel %vm1679, %v5238, 0
      %v5310 = vsel %vm1679, %v5239, 0
      %v5313 = vsel %vm1679, %v5240, 0
      %v5316 = vsel %vm1679, %v5241, 0
      %v5319 = vsel %vm1679, %v5242, 0
      %v5322 = vsel %vm1679, %v5243, 0
      %v5325 = vsel %vm1679, %v5244, 0
      %v5328 = vsel %vm1679, %v5245, 0
      %v5331 = vsel %vm1679, %v5246, 0
      %v5334 = vsel %vm1679, %v5247, 0
      %v5337 = vsel %vm1679, %v5248, 0
      %v5340 = vsel %vm1679, %v5249, 0
      %v5343 = vsel %vm1679, %v5250, 0
      %v5346 = vsel %vm1679, %v5251, 0
      %v5349 = vsel %vm1679, %v5252, 0
      %v5352 = vsel %vm1679, %v5253, 0
      %v5355 = vsel %vm1679, %v5254, 0
      %v5358 = vsel %vm1679, %v5255, 0
      %v5361 = vsel %vm1679, %v5256, 0
      %v5364 = vsel %vm1679, %v5257, 0
      %v5367 = vsel %vm1679, %v5258, 0
      %v5370 = vsel %vm1776, %v5264, 0
      %5372 = vmatprep.subr.mxu0 0.0
      %5373 = vmatpush1.msra.mxu0 %v5260
      %5374 = vmatprep.subr.mxu0 0.0
      %5375 = vmatpush1.msra.mxu0 %v5261
      %5376 = vmatprep.subr.mxu0 0.0
      %5377 = vmatpush1.msra.mxu0 %v5262
      %5378 = vmatprep.subr.mxu0 0.0
      %5379 = vmatpush1.msra.mxu0 %v5263
      %5380 = vmatprep.subr.mxu0 0.0
      %5381 = vmatpush1.msra.mxu0 %v5370
      %5382 = vmatprep.subr.mxu0 0.0
      %5383 = vmatpush1.msra.mxu0 0.0
      %5384 = vmatprep.subr.mxu0 0.0
      %5385 = vmatpush1.msra.mxu0 0.0
      %5386 = vmatprep.subr.mxu0 0.0
      %5387 = vmatpush1.msra.mxu0 0.0
      %5388 = vmatprep.subr.mxu0 0.0
      %5389 = vmatpush1.msra.mxu0 0.0
      %5390 = vmatprep.subr.mxu0 0.0
      %5391 = vmatpush1.msra.mxu0 0.0
      %5392 = vmatprep.subr.mxu0 0.0
      %5393 = vmatpush1.msra.mxu0 0.0
      %5394 = vmatprep.subr.mxu0 0.0
      %5395 = vmatpush1.msra.mxu0 0.0
      %5396 = vmatprep.subr.mxu0 0.0
      %5397 = vmatpush1.msra.mxu0 0.0
      %5398 = vmatprep.subr.mxu0 0.0
      %5399 = vmatpush1.msra.mxu0 0.0
      %5400 = vmatprep.subr.mxu0 0.0
      %5401 = vmatpush1.msra.mxu0 0.0
      %5402 = vmatprep.subr.mxu0 0.0
      %5403 = vmatpush1.msra.mxu0 0.0
      %5404 = vmatprep.subr.mxu0 0.0
      %5405 = vmatpush1.msra.mxu0 0.0
      %5406 = vmatprep.subr.mxu0 0.0
      %5407 = vmatpush1.msra.mxu0 0.0
      %5408 = vmatprep.subr.mxu0 0.0
      %5409 = vmatpush1.msra.mxu0 0.0
      %5410 = vmatprep.subr.mxu0 0.0
      %5411 = vmatpush1.msra.mxu0 0.0
      %5412 = vmatprep.subr.mxu0 0.0
      %5413 = vmatpush1.msra.mxu0 0.0
      %5414 = vmatprep.subr.mxu0 0.0
      %5415 = vmatpush1.msra.mxu0 0.0
      %5416 = vmatprep.subr.mxu0 0.0
      %5417 = vmatpush1.msra.mxu0 0.0
      %5418 = vmatprep.subr.mxu0 0.0
      %5419 = vmatpush1.msra.mxu0 0.0
      %5420 = vmatprep.subr.mxu0 0.0
      %5421 = vmatpush1.msra.mxu0 0.0
      %5422 = vmatprep.subr.mxu0 0.0
      %5423 = vmatpush1.msra.mxu0 0.0
      %5424 = vmatprep.subr.mxu0 0.0
      %5425 = vmatpush1.msra.mxu0 0.0
      %5426 = vmatprep.subr.mxu0 0.0
      %5427 = vmatpush1.msra.mxu0 0.0
      %5428 = vmatprep.subr.mxu0 0.0
      %5429 = vmatpush1.msra.mxu0 0.0
      %5430 = vmatprep.subr.mxu0 0.0
      %5431 = vmatpush1.msra.mxu0 0.0
      %5432 = vmatprep.subr.mxu0 0.0
      %5433 = vmatpush1.msra.mxu0 0.0
      %5434 = vmatprep.subr.mxu0 0.0
      %5435 = vmatpush1.msra.mxu0 0.0
      %5436 = vmatprep.mubr.f32.mxu0 0.0
      %5437 = vmatmul.mubr.f32.gmra.mrb[0].mxu0 %v5274
      %v5438 = vpop.f32.mrb[0].mxu0
      %v5439 = vadd.f32 %v5271, %v5438
      %v5440 = vpop.f32.mrb[0].mxu0
      %5441 = vmatprep.mubr.f32.mxu0 0.0
      %5442 = vmatmul.mubr.f32.gmra.mrb[0].mxu0 %v5277
      %v5443 = vpop.f32.mrb[0].mxu0
      %v5444 = vadd.f32 %v5271, %v5443
      %v5445 = vpop.f32.mrb[0].mxu0
      %5446 = vmatprep.mubr.f32.mxu0 0.0
      %5447 = vmatmul.mubr.f32.gmra.mrb[0].mxu0 %v5280
      %v5448 = vpop.f32.mrb[0].mxu0
      %v5449 = vadd.f32 %v5271, %v5448
      %v5450 = vpop.f32.mrb[0].mxu0
      %5451 = vmatprep.mubr.f32.mxu0 0.0
      %5452 = vmatmul.mubr.f32.gmra.mrb[0].mxu0 %v5283
      %v5453 = vpop.f32.mrb[0].mxu0
      %v5454 = vadd.f32 %v5271, %v5453
      %v5455 = vpop.f32.mrb[0].mxu0
      %5456 = vmatprep.mubr.f32.mxu0 0.0
      %5457 = vmatmul.mubr.f32.gmra.mrb[0].mxu0 %v5286
      %v5458 = vpop.f32.mrb[0].mxu0
      %v5459 = vadd.f32 %v5271, %v5458
      %v5460 = vpop.f32.mrb[0].mxu0
      %5461 = vmatprep.mubr.f32.mxu0 0.0
      %5462 = vmatmul.mubr.f32.gmra.mrb[0].mxu0 %v5289
      %v5463 = vpop.f32.mrb[0].mxu0
      %v5464 = vadd.f32 %v5271, %v5463
      %v5465 = vpop.f32.mrb[0].mxu0
      %5466 = vmatprep.mubr.f32.mxu0 0.0
      %5467 = vmatmul.mubr.f32.gmra.mrb[0].mxu0 %v5292
      %v5468 = vpop.f32.mrb[0].mxu0
      %v5469 = vadd.f32 %v5271, %v5468
      %v5470 = vpop.f32.mrb[0].mxu0
      %5471 = vmatprep.mubr.f32.mxu0 0.0
      %5472 = vmatmul.mubr.f32.gmra.mrb[0].mxu0 %v5295
      %v5473 = vpop.f32.mrb[0].mxu0
      %v5474 = vadd.f32 %v5271, %v5473
      %v5475 = vpop.f32.mrb[0].mxu0
      %5476 = vmatprep.mubr.f32.mxu0 0.0
      %5477 = vmatmul.mubr.f32.gmra.mrb[0].mxu0 %v5298
      %v5478 = vpop.f32.mrb[0].mxu0
      %v5479 = vadd.f32 %v5271, %v5478
      %v5480 = vpop.f32.mrb[0].mxu0
      %5481 = vmatprep.mubr.f32.mxu0 0.0
      %5482 = vmatmul.mubr.f32.gmra.mrb[0].mxu0 %v5301
      %v5483 = vpop.f32.mrb[0].mxu0
      %v5484 = vadd.f32 %v5271, %v5483
      %v5485 = vpop.f32.mrb[0].mxu0
      %5486 = vmatprep.mubr.f32.mxu0 0.0
      %5487 = vmatmul.mubr.f32.gmra.mrb[0].mxu0 %v5304
      %v5488 = vpop.f32.mrb[0].mxu0
      %v5489 = vadd.f32 %v5271, %v5488
      %v5490 = vpop.f32.mrb[0].mxu0
      %5491 = vmatprep.mubr.f32.mxu0 0.0
      %5492 = vmatmul.mubr.f32.gmra.mrb[0].mxu0 %v5307
      %v5493 = vpop.f32.mrb[0].mxu0
      %v5494 = vadd.f32 %v5271, %v5493
      %v5495 = vpop.f32.mrb[0].mxu0
      %5496 = vmatprep.mubr.f32.mxu0 0.0
      %5497 = vmatmul.mubr.f32.gmra.mrb[0].mxu0 %v5310
      %v5498 = vpop.f32.mrb[0].mxu0
      %v5499 = vadd.f32 %v5271, %v5498
      %v5500 = vpop.f32.mrb[0].mxu0
      %5501 = vmatprep.mubr.f32.mxu0 0.0
      %5502 = vmatmul.mubr.f32.gmra.mrb[0].mxu0 %v5313
      %v5503 = vpop.f32.mrb[0].mxu0
      %v5504 = vadd.f32 %v5271, %v5503
      %v5505 = vpop.f32.mrb[0].mxu0
      %5506 = vmatprep.mubr.f32.mxu0 0.0
      %5507 = vmatmul.mubr.f32.gmra.mrb[0].mxu0 %v5316
      %v5508 = vpop.f32.mrb[0].mxu0
      %v5509 = vadd.f32 %v5271, %v5508
      %v5510 = vpop.f32.mrb[0].mxu0
      %5511 = vmatprep.mubr.f32.mxu0 0.0
      %5512 = vmatmul.mubr.f32.gmra.mrb[0].mxu0 %v5319
      %v5513 = vpop.f32.mrb[0].mxu0
      %v5514 = vadd.f32 %v5271, %v5513
      %v5515 = vpop.f32.mrb[0].mxu0
      %5516 = vmatprep.mubr.f32.mxu0 0.0
      %5517 = vmatmul.mubr.f32.gmra.mrb[0].mxu0 %v5322
      %v5518 = vpop.f32.mrb[0].mxu0
      %v5519 = vadd.f32 %v5271, %v5518
      %v5520 = vpop.f32.mrb[0].mxu0
      %5521 = vmatprep.mubr.f32.mxu0 0.0
      %5522 = vmatmul.mubr.f32.gmra.mrb[0].mxu0 %v5325
      %v5523 = vpop.f32.mrb[0].mxu0
      %v5524 = vadd.f32 %v5271, %v5523
      %v5525 = vpop.f32.mrb[0].mxu0
      %5526 = vmatprep.mubr.f32.mxu0 0.0
      %5527 = vmatmul.mubr.f32.gmra.mrb[0].mxu0 %v5328
      %v5528 = vpop.f32.mrb[0].mxu0
      %v5529 = vadd.f32 %v5271, %v5528
      %v5530 = vpop.f32.mrb[0].mxu0
      %5531 = vmatprep.mubr.f32.mxu0 0.0
      %5532 = vmatmul.mubr.f32.gmra.mrb[0].mxu0 %v5331
      %v5533 = vpop.f32.mrb[0].mxu0
      %v5534 = vadd.f32 %v5271, %v5533
      %v5535 = vpop.f32.mrb[0].mxu0
      %5536 = vmatprep.mubr.f32.mxu0 0.0
      %5537 = vmatmul.mubr.f32.gmra.mrb[0].mxu0 %v5334
      %v5538 = vpop.f32.mrb[0].mxu0
      %v5539 = vadd.f32 %v5271, %v5538
      %v5540 = vpop.f32.mrb[0].mxu0
      %5541 = vmatprep.mubr.f32.mxu0 0.0
      %5542 = vmatmul.mubr.f32.gmra.mrb[0].mxu0 %v5337
      %v5543 = vpop.f32.mrb[0].mxu0
      %v5544 = vadd.f32 %v5271, %v5543
      %v5545 = vpop.f32.mrb[0].mxu0
      %5546 = vmatprep.mubr.f32.mxu0 0.0
      %5547 = vmatmul.mubr.f32.gmra.mrb[0].mxu0 %v5340
      %v5548 = vpop.f32.mrb[0].mxu0
      %v5549 = vadd.f32 %v5271, %v5548
      %v5550 = vpop.f32.mrb[0].mxu0
      %5551 = vmatprep.mubr.f32.mxu0 0.0
      %5552 = vmatmul.mubr.f32.gmra.mrb[0].mxu0 %v5343
      %v5553 = vpop.f32.mrb[0].mxu0
      %v5554 = vadd.f32 %v5271, %v5553
      %v5555 = vpop.f32.mrb[0].mxu0
      %5556 = vmatprep.mubr.f32.mxu0 0.0
      %5557 = vmatmul.mubr.f32.gmra.mrb[0].mxu0 %v5346
      %v5558 = vpop.f32.mrb[0].mxu0
      %v5559 = vadd.f32 %v5271, %v5558
      %v5560 = vpop.f32.mrb[0].mxu0
      %5561 = vmatprep.mubr.f32.mxu0 0.0
      %5562 = vmatmul.mubr.f32.gmra.mrb[0].mxu0 %v5349
      %v5563 = vpop.f32.mrb[0].mxu0
      %v5564 = vadd.f32 %v5271, %v5563
      %v5565 = vpop.f32.mrb[0].mxu0
      %5566 = vmatprep.mubr.f32.mxu0 0.0
      %5567 = vmatmul.mubr.f32.gmra.mrb[0].mxu0 %v5352
      %v5568 = vpop.f32.mrb[0].mxu0
      %v5569 = vadd.f32 %v5271, %v5568
      %v5570 = vpop.f32.mrb[0].mxu0
      %5571 = vmatprep.mubr.f32.mxu0 0.0
      %5572 = vmatmul.mubr.f32.gmra.mrb[0].mxu0 %v5355
      %v5573 = vpop.f32.mrb[0].mxu0
      %v5574 = vadd.f32 %v5271, %v5573
      %v5575 = vpop.f32.mrb[0].mxu0
      %5576 = vmatprep.mubr.f32.mxu0 0.0
      %5577 = vmatmul.mubr.f32.gmra.mrb[0].mxu0 %v5358
      %v5578 = vpop.f32.mrb[0].mxu0
      %v5579 = vadd.f32 %v5271, %v5578
      %v5580 = vpop.f32.mrb[0].mxu0
      %5581 = vmatprep.mubr.f32.mxu0 0.0
      %5582 = vmatmul.mubr.f32.gmra.mrb[0].mxu0 %v5361
      %v5583 = vpop.f32.mrb[0].mxu0
      %v5584 = vadd.f32 %v5271, %v5583
      %v5585 = vpop.f32.mrb[0].mxu0
      %5586 = vmatprep.mubr.f32.mxu0 0.0
      %5587 = vmatmul.mubr.f32.gmra.mrb[0].mxu0 %v5364
      %v5588 = vpop.f32.mrb[0].mxu0
      %v5589 = vadd.f32 %v5271, %v5588
      %v5590 = vpop.f32.mrb[0].mxu0
      %5591 = vmatprep.mubr.f32.mxu0 0.0
      %5592 = vmatmul.mubr.f32.gmra.mrb[0].mxu0 %v5367
      %v5593 = vpop.f32.mrb[0].mxu0
      %v5594 = vadd.f32 %v5271, %v5593
      %v5595 = vpop.f32.mrb[0].mxu0
      %5596 = vdwg.mxu0
      %v5597 = vmax.f32 %v5439, 0.0
      %v5598 = vmax.f32 %v5444, 0.0
      %v5599 = vmax.f32 %v5449, 0.0
      %v5600 = vmax.f32 %v5454, 0.0
      %v5601 = vmax.f32 %v5459, 0.0
      %v5602 = vmax.f32 %v5464, 0.0
      %v5603 = vmax.f32 %v5469, 0.0
      %v5604 = vmax.f32 %v5474, 0.0
      %v5605 = vmax.f32 %v5479, 0.0
      %v5606 = vmax.f32 %v5484, 0.0
      %v5607 = vmax.f32 %v5489, 0.0
      %v5608 = vmax.f32 %v5494, 0.0
      %v5609 = vmax.f32 %v5499, 0.0
      %v5610 = vmax.f32 %v5504, 0.0
      %v5611 = vmax.f32 %v5509, 0.0
      %v5612 = vmax.f32 %v5514, 0.0
      %v5613 = vmax.f32 %v5519, 0.0
      %v5614 = vmax.f32 %v5524, 0.0
      %v5615 = vmax.f32 %v5529, 0.0
      %v5616 = vmax.f32 %v5534, 0.0
      %v5617 = vmax.f32 %v5539, 0.0
      %v5618 = vmax.f32 %v5544, 0.0
      %v5619 = vmax.f32 %v5549, 0.0
      %v5620 = vmax.f32 %v5554, 0.0
      %v5621 = vmax.f32 %v5559, 0.0
      %v5622 = vmax.f32 %v5564, 0.0
      %v5623 = vmax.f32 %v5569, 0.0
      %v5624 = vmax.f32 %v5574, 0.0
      %v5625 = vmax.f32 %v5579, 0.0
      %v5626 = vmax.f32 %v5584, 0.0
      %v5627 = vmax.f32 %v5589, 0.0
      %v5628 = vmax.f32 %v5594, 0.0
      %5629 = vst.msk [vmem:[%s2037 + $0x1] sm:$0xff] %vm171, %v5597
      %5630 = vst.msk [vmem:[%s2037 + $0x9] sm:$0xff] %vm171, %v5598
      %5631 = vst.msk [vmem:[%s2037 + $0x19] sm:$0xff] %vm171, %v5599
      %5632 = vst.msk [vmem:[%s2037 + $0x21] sm:$0xff] %vm171, %v5600
      %5633 = vst.msk [vmem:[%s2037 + $0x31] sm:$0xff] %vm171, %v5601
      %5634 = vst.msk [vmem:[%s2037 + $0x39] sm:$0xff] %vm171, %v5602
      %5635 = vst.msk [vmem:[%s2037 + $0x49] sm:$0xff] %vm171, %v5603
      %5636 = vst.msk [vmem:[%s2037 + $0x51] sm:$0xff] %vm171, %v5604
      %5637 = vst.msk [vmem:[%s2037 + $0x61] sm:$0xff] %vm171, %v5605
      %5638 = vst.msk [vmem:[%s2037 + $0x69] sm:$0xff] %vm171, %v5606
      %5639 = vst.msk [vmem:[%s2037 + $0x79] sm:$0xff] %vm171, %v5607
      %5640 = vst.msk [vmem:[%s2037 + $0x81] sm:$0xff] %vm171, %v5608
      %5641 = vst.msk [vmem:[%s2037 + $0x91] sm:$0xff] %vm171, %v5609
      %5642 = vst.msk [vmem:[%s2037 + $0x99] sm:$0xff] %vm171, %v5610
      %5643 = vst.msk [vmem:[%s2037 + $0xa9] sm:$0xff] %vm171, %v5611
      %5644 = vst.msk [vmem:[%s2037 + $0xb1] sm:$0xff] %vm171, %v5612
      %5645 = vst.msk [vmem:[%s2037 + $0xc1] sm:$0xff] %vm171, %v5613
      %5646 = vst.msk [vmem:[%s2037 + $0xc9] sm:$0xff] %vm171, %v5614
      %5647 = vst.msk [vmem:[%s2037 + $0xd9] sm:$0xff] %vm171, %v5615
      %5648 = vst.msk [vmem:[%s2037 + $0xe1] sm:$0xff] %vm171, %v5616
      %5649 = vst.msk [vmem:[%s2037 + $0xf1] sm:$0xff] %vm171, %v5617
      %5650 = vst.msk [vmem:[%s2037 + $0xf9] sm:$0xff] %vm171, %v5618
      %5651 = vst.msk [vmem:[%s2037 + $0x109] sm:$0xff] %vm171, %v5619
      %5652 = vst.msk [vmem:[%s2037 + $0x111] sm:$0xff] %vm171, %v5620
      %5653 = vst.msk [vmem:[%s2037 + $0x121] sm:$0xff] %vm171, %v5621
      %5654 = vst.msk [vmem:[%s2037 + $0x129] sm:$0xff] %vm171, %v5622
      %5655 = vst.msk [vmem:[%s2037 + $0x139] sm:$0xff] %vm171, %v5623
      %5656 = vst.msk [vmem:[%s2037 + $0x141] sm:$0xff] %vm171, %v5624
      %5657 = vst.msk [vmem:[%s2037 + $0x151] sm:$0xff] %vm171, %v5625
      %5658 = vst.msk [vmem:[%s2037 + $0x159] sm:$0xff] %vm171, %v5626
      %5659 = vst.msk [vmem:[%s2037 + $0x169] sm:$0xff] %vm171, %v5627
      %5660 = vst.msk [vmem:[%s2037 + $0x171] sm:$0xff] %vm171, %v5628
      %v5661 = vld [vmem:[#allocation3] sm:$0xff]
      %v5662 = vld [vmem:[#allocation3 + $0x8] sm:$0xff]
      %v5663 = vld [vmem:[#allocation3 + $0x10] sm:$0x3]
      %v5664 = vld [vmem:[#allocation3 + $0x18] sm:$0xff]
      %v5665 = vld [vmem:[#allocation3 + $0x20] sm:$0xff]
      %v5666 = vld [vmem:[#allocation3 + $0x28] sm:$0x3]
      %v5667 = vld [vmem:[#allocation3 + $0x30] sm:$0xff]
      %v5668 = vld [vmem:[#allocation3 + $0x38] sm:$0xff]
      %v5669 = vld [vmem:[#allocation3 + $0x40] sm:$0x3]
      %v5670 = vld [vmem:[#allocation3 + $0x48] sm:$0xff]
      %v5671 = vld [vmem:[#allocation3 + $0x50] sm:$0xff]
      %v5672 = vld [vmem:[#allocation3 + $0x58] sm:$0x3]
      %v5673 = vld [vmem:[#allocation3 + $0x60] sm:$0xff]
      %v5674 = vld [vmem:[#allocation3 + $0x68] sm:$0xff]
      %v5675 = vld [vmem:[#allocation3 + $0x70] sm:$0x3]
      %v5676 = vld [vmem:[#allocation3 + $0x78] sm:$0xff]
      %v5677 = vld [vmem:[#allocation3 + $0x80] sm:$0xff]
      %v5678 = vld [vmem:[#allocation3 + $0x88] sm:$0x3]
      %v5679 = vld [vmem:[#allocation3 + $0x90] sm:$0xff]
      %v5680 = vld [vmem:[#allocation3 + $0x98] sm:$0xff]
      %v5681 = vld [vmem:[#allocation3 + $0xa0] sm:$0x3]
      %v5682 = vld [vmem:[#allocation3 + $0xa8] sm:$0xff]
      %v5683 = vld [vmem:[#allocation3 + $0xb0] sm:$0xff]
      %v5684 = vld [vmem:[#allocation3 + $0xb8] sm:$0x3]
      %v5685 = vld [vmem:[#allocation3 + $0xc0] sm:$0xff]
      %v5686 = vld [vmem:[#allocation3 + $0xc8] sm:$0xff]
      %v5687 = vld [vmem:[#allocation3 + $0xd0] sm:$0x3]
      %v5688 = vld [vmem:[#allocation3 + $0xd8] sm:$0xff]
      %v5689 = vld [vmem:[#allocation3 + $0xe0] sm:$0xff]
      %v5690 = vld [vmem:[#allocation3 + $0xe8] sm:$0x3]
      %v5691 = vld [vmem:[#allocation3 + $0xf0] sm:$0xff]
      %v5692 = vld [vmem:[#allocation3 + $0xf8] sm:$0xff]
      %v5693 = vld [vmem:[#allocation3 + $0x100] sm:$0x3]
      %v5694 = vld [vmem:[#allocation3 + $0x108] sm:$0xff]
      %v5695 = vld [vmem:[#allocation3 + $0x110] sm:$0xff]
      %v5696 = vld [vmem:[#allocation3 + $0x118] sm:$0x3]
      %v5697 = vld [vmem:[#allocation3 + $0x120] sm:$0xff]
      %v5698 = vld [vmem:[#allocation3 + $0x128] sm:$0xff]
      %v5699 = vld [vmem:[#allocation3 + $0x130] sm:$0x3]
      %v5700 = vld [vmem:[#allocation3 + $0x138] sm:$0xff]
      %v5701 = vld [vmem:[#allocation3 + $0x140] sm:$0xff]
      %v5702 = vld [vmem:[#allocation3 + $0x148] sm:$0x3]
      %v5703 = vld [vmem:[#allocation3 + $0x150] sm:$0xff]
      %v5704 = vld [vmem:[#allocation3 + $0x158] sm:$0xff]
      %v5705 = vld [vmem:[#allocation3 + $0x160] sm:$0x3]
      %v5706 = vld [vmem:[#allocation3 + $0x168] sm:$0xff]
      %v5707 = vld [vmem:[#allocation3 + $0x170] sm:$0xff]
      %v5708 = vld [vmem:[#allocation3 + $0x178] sm:$0x3]
      %v5709 = vld [vmem:[#allocation3 + $0x180] sm:$0xff]
      %v5710 = vld [vmem:[#allocation3 + $0x188] sm:$0xff]
      %v5711 = vld [vmem:[#allocation3 + $0x190] sm:$0x3]
      %v5712 = vld [vmem:[#allocation3 + $0x198] sm:$0xff]
      %v5713 = vld [vmem:[#allocation3 + $0x1a0] sm:$0xff]
      %v5714 = vld [vmem:[#allocation3 + $0x1a8] sm:$0x3]
      %v5763 = vrot.slane %v5661, 1
      %v5764 = vrot.slane %v5662, 1
      %v5765 = vsel %vm448, %v5763, %v5764
      %v5766 = vrot.slane %v5663, 1
      %v5767 = vsel %vm448, %v5764, %v5766
      %v5768 = vrot.slane %v5664, 1
      %v5769 = vrot.slane %v5665, 1
      %v5770 = vsel %vm448, %v5768, %v5769
      %v5771 = vrot.slane %v5666, 1
      %v5772 = vsel %vm448, %v5769, %v5771
      %v5773 = vrot.slane %v5667, 1
      %v5774 = vrot.slane %v5668, 1
      %v5775 = vsel %vm448, %v5773, %v5774
      %v5776 = vrot.slane %v5669, 1
      %v5777 = vsel %vm448, %v5774, %v5776
      %v5778 = vrot.slane %v5670, 1
      %v5779 = vrot.slane %v5671, 1
      %v5780 = vsel %vm448, %v5778, %v5779
      %v5781 = vrot.slane %v5672, 1
      %v5782 = vsel %vm448, %v5779, %v5781
      %v5783 = vrot.slane %v5673, 1
      %v5784 = vrot.slane %v5674, 1
      %v5785 = vsel %vm448, %v5783, %v5784
      %v5786 = vrot.slane %v5675, 1
      %v5787 = vsel %vm448, %v5784, %v5786
      %v5788 = vrot.slane %v5676, 1
      %v5789 = vrot.slane %v5677, 1
      %v5790 = vsel %vm448, %v5788, %v5789
      %v5791 = vrot.slane %v5678, 1
      %v5792 = vsel %vm448, %v5789, %v5791
      %v5793 = vrot.slane %v5679, 1
      %v5794 = vrot.slane %v5680, 1
      %v5795 = vsel %vm448, %v5793, %v5794
      %v5796 = vrot.slane %v5681, 1
      %v5797 = vsel %vm448, %v5794, %v5796
      %v5798 = vrot.slane %v5682, 1
      %v5799 = vrot.slane %v5683, 1
      %v5800 = vsel %vm448, %v5798, %v5799
      %v5801 = vrot.slane %v5684, 1
      %v5802 = vsel %vm448, %v5799, %v5801
      %v5803 = vrot.slane %v5685, 1
      %v5804 = vrot.slane %v5686, 1
      %v5805 = vsel %vm448, %v5803, %v5804
      %v5806 = vrot.slane %v5687, 1
      %v5807 = vsel %vm448, %v5804, %v5806
      %v5808 = vrot.slane %v5688, 1
      %v5809 = vrot.slane %v5689, 1
      %v5810 = vsel %vm448, %v5808, %v5809
      %v5811 = vrot.slane %v5690, 1
      %v5812 = vsel %vm448, %v5809, %v5811
      %v5813 = vrot.slane %v5691, 1
      %v5814 = vrot.slane %v5692, 1
      %v5815 = vsel %vm448, %v5813, %v5814
      %v5816 = vrot.slane %v5693, 1
      %v5817 = vsel %vm448, %v5814, %v5816
      %v5818 = vrot.slane %v5694, 1
      %v5819 = vrot.slane %v5695, 1
      %v5820 = vsel %vm448, %v5818, %v5819
      %v5821 = vrot.slane %v5696, 1
      %v5822 = vsel %vm448, %v5819, %v5821
      %v5823 = vrot.slane %v5697, 1
      %v5824 = vrot.slane %v5698, 1
      %v5825 = vsel %vm448, %v5823, %v5824
      %v5826 = vrot.slane %v5699, 1
      %v5827 = vsel %vm448, %v5824, %v5826
      %v5828 = vrot.slane %v5700, 1
      %v5829 = vrot.slane %v5701, 1
      %v5830 = vsel %vm448, %v5828, %v5829
      %v5831 = vrot.slane %v5702, 1
      %v5832 = vsel %vm448, %v5829, %v5831
      %v5833 = vrot.slane %v5703, 1
      %v5834 = vrot.slane %v5704, 1
      %v5835 = vsel %vm448, %v5833, %v5834
      %v5836 = vrot.slane %v5705, 1
      %v5837 = vsel %vm448, %v5834, %v5836
      %v5838 = vrot.slane %v5706, 1
      %v5839 = vrot.slane %v5707, 1
      %v5840 = vsel %vm448, %v5838, %v5839
      %v5841 = vrot.slane %v5708, 1
      %v5842 = vsel %vm448, %v5839, %v5841
      %v5843 = vrot.slane %v5661, 2
      %v5844 = vrot.slane %v5662, 2
      %v5845 = vsel %vm529, %v5843, %v5844
      %v5846 = vrot.slane %v5663, 2
      %v5847 = vsel %vm529, %v5844, %v5846
      %v5848 = vrot.slane %v5664, 2
      %v5849 = vrot.slane %v5665, 2
      %v5850 = vsel %vm529, %v5848, %v5849
      %v5851 = vrot.slane %v5666, 2
      %v5852 = vsel %vm529, %v5849, %v5851
      %v5853 = vrot.slane %v5667, 2
      %v5854 = vrot.slane %v5668, 2
      %v5855 = vsel %vm529, %v5853, %v5854
      %v5856 = vrot.slane %v5669, 2
      %v5857 = vsel %vm529, %v5854, %v5856
      %v5858 = vrot.slane %v5670, 2
      %v5859 = vrot.slane %v5671, 2
      %v5860 = vsel %vm529, %v5858, %v5859
      %v5861 = vrot.slane %v5672, 2
      %v5862 = vsel %vm529, %v5859, %v5861
      %v5863 = vrot.slane %v5673, 2
      %v5864 = vrot.slane %v5674, 2
      %v5865 = vsel %vm529, %v5863, %v5864
      %v5866 = vrot.slane %v5675, 2
      %v5867 = vsel %vm529, %v5864, %v5866
      %v5868 = vrot.slane %v5676, 2
      %v5869 = vrot.slane %v5677, 2
      %v5870 = vsel %vm529, %v5868, %v5869
      %v5871 = vrot.slane %v5678, 2
      %v5872 = vsel %vm529, %v5869, %v5871
      %v5873 = vrot.slane %v5679, 2
      %v5874 = vrot.slane %v5680, 2
      %v5875 = vsel %vm529, %v5873, %v5874
      %v5876 = vrot.slane %v5681, 2
      %v5877 = vsel %vm529, %v5874, %v5876
      %v5878 = vrot.slane %v5682, 2
      %v5879 = vrot.slane %v5683, 2
      %v5880 = vsel %vm529, %v5878, %v5879
      %v5881 = vrot.slane %v5684, 2
      %v5882 = vsel %vm529, %v5879, %v5881
      %v5883 = vrot.slane %v5685, 2
      %v5884 = vrot.slane %v5686, 2
      %v5885 = vsel %vm529, %v5883, %v5884
      %v5886 = vrot.slane %v5687, 2
      %v5887 = vsel %vm529, %v5884, %v5886
      %v5888 = vrot.slane %v5688, 2
      %v5889 = vrot.slane %v5689, 2
      %v5890 = vsel %vm529, %v5888, %v5889
      %v5891 = vrot.slane %v5690, 2
      %v5892 = vsel %vm529, %v5889, %v5891
      %v5893 = vrot.slane %v5691, 2
      %v5894 = vrot.slane %v5692, 2
      %v5895 = vsel %vm529, %v5893, %v5894
      %v5896 = vrot.slane %v5693, 2
      %v5897 = vsel %vm529, %v5894, %v5896
      %v5898 = vrot.slane %v5694, 2
      %v5899 = vrot.slane %v5695, 2
      %v5900 = vsel %vm529, %v5898, %v5899
      %v5901 = vrot.slane %v5696, 2
      %v5902 = vsel %vm529, %v5899, %v5901
      %v5903 = vrot.slane %v5697, 2
      %v5904 = vrot.slane %v5698, 2
      %v5905 = vsel %vm529, %v5903, %v5904
      %v5906 = vrot.slane %v5699, 2
      %v5907 = vsel %vm529, %v5904, %v5906
      %v5908 = vrot.slane %v5700, 2
      %v5909 = vrot.slane %v5701, 2
      %v5910 = vsel %vm529, %v5908, %v5909
      %v5911 = vrot.slane %v5702, 2
      %v5912 = vsel %vm529, %v5909, %v5911
      %v5913 = vrot.slane %v5703, 2
      %v5914 = vrot.slane %v5704, 2
      %v5915 = vsel %vm529, %v5913, %v5914
      %v5916 = vrot.slane %v5705, 2
      %v5917 = vsel %vm529, %v5914, %v5916
      %v5918 = vrot.slane %v5706, 2
      %v5919 = vrot.slane %v5707, 2
      %v5920 = vsel %vm529, %v5918, %v5919
      %v5921 = vrot.slane %v5708, 2
      %v5922 = vsel %vm529, %v5919, %v5921
      %v5926 = vrot.slane %v5709, 1
      %v5927 = vrot.slane %v5710, 1
      %v5928 = vsel %vm448, %v5926, %v5927
      %v5929 = vrot.slane %v5711, 1
      %v5930 = vsel %vm448, %v5927, %v5929
      %v5931 = vrot.slane %v5709, 2
      %v5932 = vrot.slane %v5710, 2
      %v5933 = vsel %vm529, %v5931, %v5932
      %v5934 = vrot.slane %v5711, 2
      %v5935 = vsel %vm529, %v5932, %v5934
      %v5939 = vrot.slane %v5712, 1
      %v5940 = vrot.slane %v5713, 1
      %v5941 = vsel %vm448, %v5939, %v5940
      %v5942 = vrot.slane %v5714, 1
      %v5943 = vsel %vm448, %v5940, %v5942
      %v5944 = vrot.slane %v5712, 2
      %v5945 = vrot.slane %v5713, 2
      %v5946 = vsel %vm529, %v5944, %v5945
      %v5947 = vrot.slane %v5714, 2
      %v5948 = vsel %vm529, %v5945, %v5947
      %5949 = vrot.lane.b32.xlu0 %v5765, 4
      %v5950 = vpop.permute.xlu0 %5949
      %5951 = vrot.lane.b32.xlu0 %v5767, 4
      %v5952 = vpop.permute.xlu0 %5951
      %5953 = vrot.lane.b32.xlu0 %v5770, 4
      %v5954 = vpop.permute.xlu0 %5953
      %5955 = vrot.lane.b32.xlu0 %v5772, 4
      %v5956 = vpop.permute.xlu0 %5955
      %5957 = vrot.lane.b32.xlu0 %v5775, 4
      %v5958 = vpop.permute.xlu0 %5957
      %5959 = vrot.lane.b32.xlu0 %v5777, 4
      %v5960 = vpop.permute.xlu0 %5959
      %5961 = vrot.lane.b32.xlu0 %v5780, 4
      %v5962 = vpop.permute.xlu0 %5961
      %5963 = vrot.lane.b32.xlu0 %v5782, 4
      %v5964 = vpop.permute.xlu0 %5963
      %5965 = vrot.lane.b32.xlu0 %v5785, 4
      %v5966 = vpop.permute.xlu0 %5965
      %5967 = vrot.lane.b32.xlu0 %v5787, 4
      %v5968 = vpop.permute.xlu0 %5967
      %5969 = vrot.lane.b32.xlu0 %v5790, 4
      %v5970 = vpop.permute.xlu0 %5969
      %5971 = vrot.lane.b32.xlu0 %v5792, 4
      %v5972 = vpop.permute.xlu0 %5971
      %5973 = vrot.lane.b32.xlu0 %v5795, 4
      %v5974 = vpop.permute.xlu0 %5973
      %5975 = vrot.lane.b32.xlu0 %v5797, 4
      %v5976 = vpop.permute.xlu0 %5975
      %5977 = vrot.lane.b32.xlu0 %v5800, 4
      %v5978 = vpop.permute.xlu0 %5977
      %5979 = vrot.lane.b32.xlu0 %v5802, 4
      %v5980 = vpop.permute.xlu0 %5979
      %5981 = vrot.lane.b32.xlu0 %v5805, 4
      %v5982 = vpop.permute.xlu0 %5981
      %5983 = vrot.lane.b32.xlu0 %v5807, 4
      %v5984 = vpop.permute.xlu0 %5983
      %5985 = vrot.lane.b32.xlu0 %v5810, 4
      %v5986 = vpop.permute.xlu0 %5985
      %5987 = vrot.lane.b32.xlu0 %v5812, 4
      %v5988 = vpop.permute.xlu0 %5987
      %5989 = vrot.lane.b32.xlu0 %v5815, 4
      %v5990 = vpop.permute.xlu0 %5989
      %5991 = vrot.lane.b32.xlu0 %v5817, 4
      %v5992 = vpop.permute.xlu0 %5991
      %5993 = vrot.lane.b32.xlu0 %v5820, 4
      %v5994 = vpop.permute.xlu0 %5993
      %5995 = vrot.lane.b32.xlu0 %v5822, 4
      %v5996 = vpop.permute.xlu0 %5995
      %5997 = vrot.lane.b32.xlu0 %v5825, 4
      %v5998 = vpop.permute.xlu0 %5997
      %5999 = vrot.lane.b32.xlu0 %v5827, 4
      %v6000 = vpop.permute.xlu0 %5999
      %6001 = vrot.lane.b32.xlu0 %v5830, 4
      %v6002 = vpop.permute.xlu0 %6001
      %6003 = vrot.lane.b32.xlu0 %v5832, 4
      %v6004 = vpop.permute.xlu0 %6003
      %6005 = vrot.lane.b32.xlu0 %v5835, 4
      %v6006 = vpop.permute.xlu0 %6005
      %6007 = vrot.lane.b32.xlu0 %v5837, 4
      %v6008 = vpop.permute.xlu0 %6007
      %6009 = vrot.lane.b32.xlu0 %v5840, 4
      %v6010 = vpop.permute.xlu0 %6009
      %6011 = vrot.lane.b32.xlu0 %v5842, 4
      %v6012 = vpop.permute.xlu0 %6011
      %6045 = vrot.lane.b32.xlu0 %v5845, 8
      %v6046 = vpop.permute.xlu0 %6045
      %6047 = vrot.lane.b32.xlu0 %v5847, 8
      %v6048 = vpop.permute.xlu0 %6047
      %6049 = vrot.lane.b32.xlu0 %v5850, 8
      %v6050 = vpop.permute.xlu0 %6049
      %6051 = vrot.lane.b32.xlu0 %v5852, 8
      %v6052 = vpop.permute.xlu0 %6051
      %6053 = vrot.lane.b32.xlu0 %v5855, 8
      %v6054 = vpop.permute.xlu0 %6053
      %6055 = vrot.lane.b32.xlu0 %v5857, 8
      %v6056 = vpop.permute.xlu0 %6055
      %6057 = vrot.lane.b32.xlu0 %v5860, 8
      %v6058 = vpop.permute.xlu0 %6057
      %6059 = vrot.lane.b32.xlu0 %v5862, 8
      %v6060 = vpop.permute.xlu0 %6059
      %6061 = vrot.lane.b32.xlu0 %v5865, 8
      %v6062 = vpop.permute.xlu0 %6061
      %6063 = vrot.lane.b32.xlu0 %v5867, 8
      %v6064 = vpop.permute.xlu0 %6063
      %6065 = vrot.lane.b32.xlu0 %v5870, 8
      %v6066 = vpop.permute.xlu0 %6065
      %6067 = vrot.lane.b32.xlu0 %v5872, 8
      %v6068 = vpop.permute.xlu0 %6067
      %6069 = vrot.lane.b32.xlu0 %v5875, 8
      %v6070 = vpop.permute.xlu0 %6069
      %6071 = vrot.lane.b32.xlu0 %v5877, 8
      %v6072 = vpop.permute.xlu0 %6071
      %6073 = vrot.lane.b32.xlu0 %v5880, 8
      %v6074 = vpop.permute.xlu0 %6073
      %6075 = vrot.lane.b32.xlu0 %v5882, 8
      %v6076 = vpop.permute.xlu0 %6075
      %6077 = vrot.lane.b32.xlu0 %v5885, 8
      %v6078 = vpop.permute.xlu0 %6077
      %6079 = vrot.lane.b32.xlu0 %v5887, 8
      %v6080 = vpop.permute.xlu0 %6079
      %6081 = vrot.lane.b32.xlu0 %v5890, 8
      %v6082 = vpop.permute.xlu0 %6081
      %6083 = vrot.lane.b32.xlu0 %v5892, 8
      %v6084 = vpop.permute.xlu0 %6083
      %6085 = vrot.lane.b32.xlu0 %v5895, 8
      %v6086 = vpop.permute.xlu0 %6085
      %6087 = vrot.lane.b32.xlu0 %v5897, 8
      %v6088 = vpop.permute.xlu0 %6087
      %6089 = vrot.lane.b32.xlu0 %v5900, 8
      %v6090 = vpop.permute.xlu0 %6089
      %6091 = vrot.lane.b32.xlu0 %v5902, 8
      %v6092 = vpop.permute.xlu0 %6091
      %6093 = vrot.lane.b32.xlu0 %v5905, 8
      %v6094 = vpop.permute.xlu0 %6093
      %6095 = vrot.lane.b32.xlu0 %v5907, 8
      %v6096 = vpop.permute.xlu0 %6095
      %6097 = vrot.lane.b32.xlu0 %v5910, 8
      %v6098 = vpop.permute.xlu0 %6097
      %6099 = vrot.lane.b32.xlu0 %v5912, 8
      %v6100 = vpop.permute.xlu0 %6099
      %6101 = vrot.lane.b32.xlu0 %v5915, 8
      %v6102 = vpop.permute.xlu0 %6101
      %6103 = vrot.lane.b32.xlu0 %v5917, 8
      %v6104 = vpop.permute.xlu0 %6103
      %6105 = vrot.lane.b32.xlu0 %v5920, 8
      %v6106 = vpop.permute.xlu0 %6105
      %6107 = vrot.lane.b32.xlu0 %v5922, 8
      %v6108 = vpop.permute.xlu0 %6107
      %6141 = vrot.lane.b32.xlu0 %v5664, 12
      %v6142 = vpop.permute.xlu0 %6141
      %6143 = vrot.lane.b32.xlu0 %v5665, 12
      %v6144 = vpop.permute.xlu0 %6143
      %6145 = vrot.lane.b32.xlu0 %v5667, 12
      %v6146 = vpop.permute.xlu0 %6145
      %6147 = vrot.lane.b32.xlu0 %v5668, 12
      %v6148 = vpop.permute.xlu0 %6147
      %6149 = vrot.lane.b32.xlu0 %v5670, 12
      %v6150 = vpop.permute.xlu0 %6149
      %6151 = vrot.lane.b32.xlu0 %v5671, 12
      %v6152 = vpop.permute.xlu0 %6151
      %6153 = vrot.lane.b32.xlu0 %v5673, 12
      %v6154 = vpop.permute.xlu0 %6153
      %6155 = vrot.lane.b32.xlu0 %v5674, 12
      %v6156 = vpop.permute.xlu0 %6155
      %6157 = vrot.lane.b32.xlu0 %v5676, 12
      %v6158 = vpop.permute.xlu0 %6157
      %6159 = vrot.lane.b32.xlu0 %v5677, 12
      %v6160 = vpop.permute.xlu0 %6159
      %6161 = vrot.lane.b32.xlu0 %v5679, 12
      %v6162 = vpop.permute.xlu0 %6161
      %6163 = vrot.lane.b32.xlu0 %v5680, 12
      %v6164 = vpop.permute.xlu0 %6163
      %6165 = vrot.lane.b32.xlu0 %v5682, 12
      %v6166 = vpop.permute.xlu0 %6165
      %6167 = vrot.lane.b32.xlu0 %v5683, 12
      %v6168 = vpop.permute.xlu0 %6167
      %6169 = vrot.lane.b32.xlu0 %v5685, 12
      %v6170 = vpop.permute.xlu0 %6169
      %6171 = vrot.lane.b32.xlu0 %v5686, 12
      %v6172 = vpop.permute.xlu0 %6171
      %6173 = vrot.lane.b32.xlu0 %v5688, 12
      %v6174 = vpop.permute.xlu0 %6173
      %6175 = vrot.lane.b32.xlu0 %v5689, 12
      %v6176 = vpop.permute.xlu0 %6175
      %6177 = vrot.lane.b32.xlu0 %v5691, 12
      %v6178 = vpop.permute.xlu0 %6177
      %6179 = vrot.lane.b32.xlu0 %v5692, 12
      %v6180 = vpop.permute.xlu0 %6179
      %6181 = vrot.lane.b32.xlu0 %v5694, 12
      %v6182 = vpop.permute.xlu0 %6181
      %6183 = vrot.lane.b32.xlu0 %v5695, 12
      %v6184 = vpop.permute.xlu0 %6183
      %6185 = vrot.lane.b32.xlu0 %v5697, 12
      %v6186 = vpop.permute.xlu0 %6185
      %6187 = vrot.lane.b32.xlu0 %v5698, 12
      %v6188 = vpop.permute.xlu0 %6187
      %6189 = vrot.lane.b32.xlu0 %v5700, 12
      %v6190 = vpop.permute.xlu0 %6189
      %6191 = vrot.lane.b32.xlu0 %v5701, 12
      %v6192 = vpop.permute.xlu0 %6191
      %6193 = vrot.lane.b32.xlu0 %v5703, 12
      %v6194 = vpop.permute.xlu0 %6193
      %6195 = vrot.lane.b32.xlu0 %v5704, 12
      %v6196 = vpop.permute.xlu0 %6195
      %6197 = vrot.lane.b32.xlu0 %v5706, 12
      %v6198 = vpop.permute.xlu0 %6197
      %6199 = vrot.lane.b32.xlu0 %v5707, 12
      %v6200 = vpop.permute.xlu0 %6199
      %6201 = vrot.lane.b32.xlu0 %v5709, 12
      %v6202 = vpop.permute.xlu0 %6201
      %6203 = vrot.lane.b32.xlu0 %v5710, 12
      %v6204 = vpop.permute.xlu0 %6203
      %6237 = vrot.lane.b32.xlu0 %v5770, 16
      %v6238 = vpop.permute.xlu0 %6237
      %6239 = vrot.lane.b32.xlu0 %v5772, 16
      %v6240 = vpop.permute.xlu0 %6239
      %6241 = vrot.lane.b32.xlu0 %v5775, 16
      %v6242 = vpop.permute.xlu0 %6241
      %6243 = vrot.lane.b32.xlu0 %v5777, 16
      %v6244 = vpop.permute.xlu0 %6243
      %6245 = vrot.lane.b32.xlu0 %v5780, 16
      %v6246 = vpop.permute.xlu0 %6245
      %6247 = vrot.lane.b32.xlu0 %v5782, 16
      %v6248 = vpop.permute.xlu0 %6247
      %6249 = vrot.lane.b32.xlu0 %v5785, 16
      %v6250 = vpop.permute.xlu0 %6249
      %6251 = vrot.lane.b32.xlu0 %v5787, 16
      %v6252 = vpop.permute.xlu0 %6251
      %6253 = vrot.lane.b32.xlu0 %v5790, 16
      %v6254 = vpop.permute.xlu0 %6253
      %6255 = vrot.lane.b32.xlu0 %v5792, 16
      %v6256 = vpop.permute.xlu0 %6255
      %6257 = vrot.lane.b32.xlu0 %v5795, 16
      %v6258 = vpop.permute.xlu0 %6257
      %6259 = vrot.lane.b32.xlu0 %v5797, 16
      %v6260 = vpop.permute.xlu0 %6259
      %6261 = vrot.lane.b32.xlu0 %v5800, 16
      %v6262 = vpop.permute.xlu0 %6261
      %6263 = vrot.lane.b32.xlu0 %v5802, 16
      %v6264 = vpop.permute.xlu0 %6263
      %6265 = vrot.lane.b32.xlu0 %v5805, 16
      %v6266 = vpop.permute.xlu0 %6265
      %6267 = vrot.lane.b32.xlu0 %v5807, 16
      %v6268 = vpop.permute.xlu0 %6267
      %6269 = vrot.lane.b32.xlu0 %v5810, 16
      %v6270 = vpop.permute.xlu0 %6269
      %6271 = vrot.lane.b32.xlu0 %v5812, 16
      %v6272 = vpop.permute.xlu0 %6271
      %6273 = vrot.lane.b32.xlu0 %v5815, 16
      %v6274 = vpop.permute.xlu0 %6273
      %6275 = vrot.lane.b32.xlu0 %v5817, 16
      %v6276 = vpop.permute.xlu0 %6275
      %6277 = vrot.lane.b32.xlu0 %v5820, 16
      %v6278 = vpop.permute.xlu0 %6277
      %6279 = vrot.lane.b32.xlu0 %v5822, 16
      %v6280 = vpop.permute.xlu0 %6279
      %6281 = vrot.lane.b32.xlu0 %v5825, 16
      %v6282 = vpop.permute.xlu0 %6281
      %6283 = vrot.lane.b32.xlu0 %v5827, 16
      %v6284 = vpop.permute.xlu0 %6283
      %6285 = vrot.lane.b32.xlu0 %v5830, 16
      %v6286 = vpop.permute.xlu0 %6285
      %6287 = vrot.lane.b32.xlu0 %v5832, 16
      %v6288 = vpop.permute.xlu0 %6287
      %6289 = vrot.lane.b32.xlu0 %v5835, 16
      %v6290 = vpop.permute.xlu0 %6289
      %6291 = vrot.lane.b32.xlu0 %v5837, 16
      %v6292 = vpop.permute.xlu0 %6291
      %6293 = vrot.lane.b32.xlu0 %v5840, 16
      %v6294 = vpop.permute.xlu0 %6293
      %6295 = vrot.lane.b32.xlu0 %v5842, 16
      %v6296 = vpop.permute.xlu0 %6295
      %6297 = vrot.lane.b32.xlu0 %v5928, 16
      %v6298 = vpop.permute.xlu0 %6297
      %6299 = vrot.lane.b32.xlu0 %v5930, 16
      %v6300 = vpop.permute.xlu0 %6299
      %6333 = vrot.lane.b32.xlu0 %v5850, 20
      %v6334 = vpop.permute.xlu0 %6333
      %6335 = vrot.lane.b32.xlu0 %v5852, 20
      %v6336 = vpop.permute.xlu0 %6335
      %6337 = vrot.lane.b32.xlu0 %v5855, 20
      %v6338 = vpop.permute.xlu0 %6337
      %6339 = vrot.lane.b32.xlu0 %v5857, 20
      %v6340 = vpop.permute.xlu0 %6339
      %6341 = vrot.lane.b32.xlu0 %v5860, 20
      %v6342 = vpop.permute.xlu0 %6341
      %6343 = vrot.lane.b32.xlu0 %v5862, 20
      %v6344 = vpop.permute.xlu0 %6343
      %6345 = vrot.lane.b32.xlu0 %v5865, 20
      %v6346 = vpop.permute.xlu0 %6345
      %6347 = vrot.lane.b32.xlu0 %v5867, 20
      %v6348 = vpop.permute.xlu0 %6347
      %6349 = vrot.lane.b32.xlu0 %v5870, 20
      %v6350 = vpop.permute.xlu0 %6349
      %6351 = vrot.lane.b32.xlu0 %v5872, 20
      %v6352 = vpop.permute.xlu0 %6351
      %6353 = vrot.lane.b32.xlu0 %v5875, 20
      %v6354 = vpop.permute.xlu0 %6353
      %6355 = vrot.lane.b32.xlu0 %v5877, 20
      %v6356 = vpop.permute.xlu0 %6355
      %6357 = vrot.lane.b32.xlu0 %v5880, 20
      %v6358 = vpop.permute.xlu0 %6357
      %6359 = vrot.lane.b32.xlu0 %v5882, 20
      %v6360 = vpop.permute.xlu0 %6359
      %6361 = vrot.lane.b32.xlu0 %v5885, 20
      %v6362 = vpop.permute.xlu0 %6361
      %6363 = vrot.lane.b32.xlu0 %v5887, 20
      %v6364 = vpop.permute.xlu0 %6363
      %6365 = vrot.lane.b32.xlu0 %v5890, 20
      %v6366 = vpop.permute.xlu0 %6365
      %6367 = vrot.lane.b32.xlu0 %v5892, 20
      %v6368 = vpop.permute.xlu0 %6367
      %6369 = vrot.lane.b32.xlu0 %v5895, 20
      %v6370 = vpop.permute.xlu0 %6369
      %6371 = vrot.lane.b32.xlu0 %v5897, 20
      %v6372 = vpop.permute.xlu0 %6371
      %6373 = vrot.lane.b32.xlu0 %v5900, 20
      %v6374 = vpop.permute.xlu0 %6373
      %6375 = vrot.lane.b32.xlu0 %v5902, 20
      %v6376 = vpop.permute.xlu0 %6375
      %6377 = vrot.lane.b32.xlu0 %v5905, 20
      %v6378 = vpop.permute.xlu0 %6377
      %6379 = vrot.lane.b32.xlu0 %v5907, 20
      %v6380 = vpop.permute.xlu0 %6379
      %6381 = vrot.lane.b32.xlu0 %v5910, 20
      %v6382 = vpop.permute.xlu0 %6381
      %6383 = vrot.lane.b32.xlu0 %v5912, 20
      %v6384 = vpop.permute.xlu0 %6383
      %6385 = vrot.lane.b32.xlu0 %v5915, 20
      %v6386 = vpop.permute.xlu0 %6385
      %6387 = vrot.lane.b32.xlu0 %v5917, 20
      %v6388 = vpop.permute.xlu0 %6387
      %6389 = vrot.lane.b32.xlu0 %v5920, 20
      %v6390 = vpop.permute.xlu0 %6389
      %6391 = vrot.lane.b32.xlu0 %v5922, 20
      %v6392 = vpop.permute.xlu0 %6391
      %6393 = vrot.lane.b32.xlu0 %v5933, 20
      %v6394 = vpop.permute.xlu0 %6393
      %6395 = vrot.lane.b32.xlu0 %v5935, 20
      %v6396 = vpop.permute.xlu0 %6395
      %6429 = vrot.lane.b32.xlu0 %v5667, 24
      %v6430 = vpop.permute.xlu0 %6429
      %6431 = vrot.lane.b32.xlu0 %v5668, 24
      %v6432 = vpop.permute.xlu0 %6431
      %6433 = vrot.lane.b32.xlu0 %v5670, 24
      %v6434 = vpop.permute.xlu0 %6433
      %6435 = vrot.lane.b32.xlu0 %v5671, 24
      %v6436 = vpop.permute.xlu0 %6435
      %6437 = vrot.lane.b32.xlu0 %v5673, 24
      %v6438 = vpop.permute.xlu0 %6437
      %6439 = vrot.lane.b32.xlu0 %v5674, 24
      %v6440 = vpop.permute.xlu0 %6439
      %6441 = vrot.lane.b32.xlu0 %v5676, 24
      %v6442 = vpop.permute.xlu0 %6441
      %6443 = vrot.lane.b32.xlu0 %v5677, 24
      %v6444 = vpop.permute.xlu0 %6443
      %6445 = vrot.lane.b32.xlu0 %v5679, 24
      %v6446 = vpop.permute.xlu0 %6445
      %6447 = vrot.lane.b32.xlu0 %v5680, 24
      %v6448 = vpop.permute.xlu0 %6447
      %6449 = vrot.lane.b32.xlu0 %v5682, 24
      %v6450 = vpop.permute.xlu0 %6449
      %6451 = vrot.lane.b32.xlu0 %v5683, 24
      %v6452 = vpop.permute.xlu0 %6451
      %6453 = vrot.lane.b32.xlu0 %v5685, 24
      %v6454 = vpop.permute.xlu0 %6453
      %6455 = vrot.lane.b32.xlu0 %v5686, 24
      %v6456 = vpop.permute.xlu0 %6455
      %6457 = vrot.lane.b32.xlu0 %v5688, 24
      %v6458 = vpop.permute.xlu0 %6457
      %6459 = vrot.lane.b32.xlu0 %v5689, 24
      %v6460 = vpop.permute.xlu0 %6459
      %6461 = vrot.lane.b32.xlu0 %v5691, 24
      %v6462 = vpop.permute.xlu0 %6461
      %6463 = vrot.lane.b32.xlu0 %v5692, 24
      %v6464 = vpop.permute.xlu0 %6463
      %6465 = vrot.lane.b32.xlu0 %v5694, 24
      %v6466 = vpop.permute.xlu0 %6465
      %6467 = vrot.lane.b32.xlu0 %v5695, 24
      %v6468 = vpop.permute.xlu0 %6467
      %6469 = vrot.lane.b32.xlu0 %v5697, 24
      %v6470 = vpop.permute.xlu0 %6469
      %6471 = vrot.lane.b32.xlu0 %v5698, 24
      %v6472 = vpop.permute.xlu0 %6471
      %6473 = vrot.lane.b32.xlu0 %v5700, 24
      %v6474 = vpop.permute.xlu0 %6473
      %6475 = vrot.lane.b32.xlu0 %v5701, 24
      %v6476 = vpop.permute.xlu0 %6475
      %6477 = vrot.lane.b32.xlu0 %v5703, 24
      %v6478 = vpop.permute.xlu0 %6477
      %6479 = vrot.lane.b32.xlu0 %v5704, 24
      %v6480 = vpop.permute.xlu0 %6479
      %6481 = vrot.lane.b32.xlu0 %v5706, 24
      %v6482 = vpop.permute.xlu0 %6481
      %6483 = vrot.lane.b32.xlu0 %v5707, 24
      %v6484 = vpop.permute.xlu0 %6483
      %6485 = vrot.lane.b32.xlu0 %v5709, 24
      %v6486 = vpop.permute.xlu0 %6485
      %6487 = vrot.lane.b32.xlu0 %v5710, 24
      %v6488 = vpop.permute.xlu0 %6487
      %6489 = vrot.lane.b32.xlu0 %v5712, 24
      %v6490 = vpop.permute.xlu0 %6489
      %6491 = vrot.lane.b32.xlu0 %v5713, 24
      %v6492 = vpop.permute.xlu0 %6491
      %6525 = vrot.lane.b32.xlu0 %v5775, 28
      %v6526 = vpop.permute.xlu0 %6525
      %6527 = vrot.lane.b32.xlu0 %v5777, 28
      %v6528 = vpop.permute.xlu0 %6527
      %6529 = vrot.lane.b32.xlu0 %v5780, 28
      %v6530 = vpop.permute.xlu0 %6529
      %6531 = vrot.lane.b32.xlu0 %v5782, 28
      %v6532 = vpop.permute.xlu0 %6531
      %6533 = vrot.lane.b32.xlu0 %v5785, 28
      %v6534 = vpop.permute.xlu0 %6533
      %6535 = vrot.lane.b32.xlu0 %v5787, 28
      %v6536 = vpop.permute.xlu0 %6535
      %6537 = vrot.lane.b32.xlu0 %v5790, 28
      %v6538 = vpop.permute.xlu0 %6537
      %6539 = vrot.lane.b32.xlu0 %v5792, 28
      %v6540 = vpop.permute.xlu0 %6539
      %6541 = vrot.lane.b32.xlu0 %v5795, 28
      %v6542 = vpop.permute.xlu0 %6541
      %6543 = vrot.lane.b32.xlu0 %v5797, 28
      %v6544 = vpop.permute.xlu0 %6543
      %6545 = vrot.lane.b32.xlu0 %v5800, 28
      %v6546 = vpop.permute.xlu0 %6545
      %6547 = vrot.lane.b32.xlu0 %v5802, 28
      %v6548 = vpop.permute.xlu0 %6547
      %6549 = vrot.lane.b32.xlu0 %v5805, 28
      %v6550 = vpop.permute.xlu0 %6549
      %6551 = vrot.lane.b32.xlu0 %v5807, 28
      %v6552 = vpop.permute.xlu0 %6551
      %6553 = vrot.lane.b32.xlu0 %v5810, 28
      %v6554 = vpop.permute.xlu0 %6553
      %6555 = vrot.lane.b32.xlu0 %v5812, 28
      %v6556 = vpop.permute.xlu0 %6555
      %6557 = vrot.lane.b32.xlu0 %v5815, 28
      %v6558 = vpop.permute.xlu0 %6557
      %6559 = vrot.lane.b32.xlu0 %v5817, 28
      %v6560 = vpop.permute.xlu0 %6559
      %6561 = vrot.lane.b32.xlu0 %v5820, 28
      %v6562 = vpop.permute.xlu0 %6561
      %6563 = vrot.lane.b32.xlu0 %v5822, 28
      %v6564 = vpop.permute.xlu0 %6563
      %6565 = vrot.lane.b32.xlu0 %v5825, 28
      %v6566 = vpop.permute.xlu0 %6565
      %6567 = vrot.lane.b32.xlu0 %v5827, 28
      %v6568 = vpop.permute.xlu0 %6567
      %6569 = vrot.lane.b32.xlu0 %v5830, 28
      %v6570 = vpop.permute.xlu0 %6569
      %6571 = vrot.lane.b32.xlu0 %v5832, 28
      %v6572 = vpop.permute.xlu0 %6571
      %6573 = vrot.lane.b32.xlu0 %v5835, 28
      %v6574 = vpop.permute.xlu0 %6573
      %6575 = vrot.lane.b32.xlu0 %v5837, 28
      %v6576 = vpop.permute.xlu0 %6575
      %6577 = vrot.lane.b32.xlu0 %v5840, 28
      %v6578 = vpop.permute.xlu0 %6577
      %6579 = vrot.lane.b32.xlu0 %v5842, 28
      %v6580 = vpop.permute.xlu0 %6579
      %6581 = vrot.lane.b32.xlu0 %v5928, 28
      %v6582 = vpop.permute.xlu0 %6581
      %6583 = vrot.lane.b32.xlu0 %v5930, 28
      %v6584 = vpop.permute.xlu0 %6583
      %6585 = vrot.lane.b32.xlu0 %v5941, 28
      %v6586 = vpop.permute.xlu0 %6585
      %6587 = vrot.lane.b32.xlu0 %v5943, 28
      %v6588 = vpop.permute.xlu0 %6587
      %6621 = vrot.lane.b32.xlu0 %v5855, 32
      %v6622 = vpop.permute.xlu0 %6621
      %6623 = vrot.lane.b32.xlu0 %v5857, 32
      %v6624 = vpop.permute.xlu0 %6623
      %6625 = vrot.lane.b32.xlu0 %v5860, 32
      %v6626 = vpop.permute.xlu0 %6625
      %6627 = vrot.lane.b32.xlu0 %v5862, 32
      %v6628 = vpop.permute.xlu0 %6627
      %6629 = vrot.lane.b32.xlu0 %v5865, 32
      %v6630 = vpop.permute.xlu0 %6629
      %6631 = vrot.lane.b32.xlu0 %v5867, 32
      %v6632 = vpop.permute.xlu0 %6631
      %6633 = vrot.lane.b32.xlu0 %v5870, 32
      %v6634 = vpop.permute.xlu0 %6633
      %6635 = vrot.lane.b32.xlu0 %v5872, 32
      %v6636 = vpop.permute.xlu0 %6635
      %6637 = vrot.lane.b32.xlu0 %v5875, 32
      %v6638 = vpop.permute.xlu0 %6637
      %6639 = vrot.lane.b32.xlu0 %v5877, 32
      %v6640 = vpop.permute.xlu0 %6639
      %6641 = vrot.lane.b32.xlu0 %v5880, 32
      %v6642 = vpop.permute.xlu0 %6641
      %6643 = vrot.lane.b32.xlu0 %v5882, 32
      %v6644 = vpop.permute.xlu0 %6643
      %6645 = vrot.lane.b32.xlu0 %v5885, 32
      %v6646 = vpop.permute.xlu0 %6645
      %6647 = vrot.lane.b32.xlu0 %v5887, 32
      %v6648 = vpop.permute.xlu0 %6647
      %6649 = vrot.lane.b32.xlu0 %v5890, 32
      %v6650 = vpop.permute.xlu0 %6649
      %6651 = vrot.lane.b32.xlu0 %v5892, 32
      %v6652 = vpop.permute.xlu0 %6651
      %6653 = vrot.lane.b32.xlu0 %v5895, 32
      %v6654 = vpop.permute.xlu0 %6653
      %6655 = vrot.lane.b32.xlu0 %v5897, 32
      %v6656 = vpop.permute.xlu0 %6655
      %6657 = vrot.lane.b32.xlu0 %v5900, 32
      %v6658 = vpop.permute.xlu0 %6657
      %6659 = vrot.lane.b32.xlu0 %v5902, 32
      %v6660 = vpop.permute.xlu0 %6659
      %6661 = vrot.lane.b32.xlu0 %v5905, 32
      %v6662 = vpop.permute.xlu0 %6661
      %6663 = vrot.lane.b32.xlu0 %v5907, 32
      %v6664 = vpop.permute.xlu0 %6663
      %6665 = vrot.lane.b32.xlu0 %v5910, 32
      %v6666 = vpop.permute.xlu0 %6665
      %6667 = vrot.lane.b32.xlu0 %v5912, 32
      %v6668 = vpop.permute.xlu0 %6667
      %6669 = vrot.lane.b32.xlu0 %v5915, 32
      %v6670 = vpop.permute.xlu0 %6669
      %6671 = vrot.lane.b32.xlu0 %v5917, 32
      %v6672 = vpop.permute.xlu0 %6671
      %6673 = vrot.lane.b32.xlu0 %v5920, 32
      %v6674 = vpop.permute.xlu0 %6673
      %6675 = vrot.lane.b32.xlu0 %v5922, 32
      %v6676 = vpop.permute.xlu0 %6675
      %6677 = vrot.lane.b32.xlu0 %v5933, 32
      %v6678 = vpop.permute.xlu0 %6677
      %6679 = vrot.lane.b32.xlu0 %v5935, 32
      %v6680 = vpop.permute.xlu0 %6679
      %6681 = vrot.lane.b32.xlu0 %v5946, 32
      %v6682 = vpop.permute.xlu0 %6681
      %6683 = vrot.lane.b32.xlu0 %v5948, 32
      %v6684 = vpop.permute.xlu0 %6683
      %v6717 = vsel %vm171, %v5661, %v5950
      %v6718 = vsel %vm171, %v5662, %v5952
      %v6719 = vsel %vm171, %v5664, %v5954
      %v6720 = vsel %vm171, %v5665, %v5956
      %v6721 = vsel %vm171, %v5667, %v5958
      %v6722 = vsel %vm171, %v5668, %v5960
      %v6723 = vsel %vm171, %v5670, %v5962
      %v6724 = vsel %vm171, %v5671, %v5964
      %v6725 = vsel %vm171, %v5673, %v5966
      %v6726 = vsel %vm171, %v5674, %v5968
      %v6727 = vsel %vm171, %v5676, %v5970
      %v6728 = vsel %vm171, %v5677, %v5972
      %v6729 = vsel %vm171, %v5679, %v5974
      %v6730 = vsel %vm171, %v5680, %v5976
      %v6731 = vsel %vm171, %v5682, %v5978
      %v6732 = vsel %vm171, %v5683, %v5980
      %v6733 = vsel %vm171, %v5685, %v5982
      %v6734 = vsel %vm171, %v5686, %v5984
      %v6735 = vsel %vm171, %v5688, %v5986
      %v6736 = vsel %vm171, %v5689, %v5988
      %v6737 = vsel %vm171, %v5691, %v5990
      %v6738 = vsel %vm171, %v5692, %v5992
      %v6739 = vsel %vm171, %v5694, %v5994
      %v6740 = vsel %vm171, %v5695, %v5996
      %v6741 = vsel %vm171, %v5697, %v5998
      %v6742 = vsel %vm171, %v5698, %v6000
      %v6743 = vsel %vm171, %v5700, %v6002
      %v6744 = vsel %vm171, %v5701, %v6004
      %v6745 = vsel %vm171, %v5703, %v6006
      %v6746 = vsel %vm171, %v5704, %v6008
      %v6747 = vsel %vm171, %v5706, %v6010
      %v6748 = vsel %vm171, %v5707, %v6012
      %v6749 = vsel %vm1436, %v6717, %v6046
      %v6750 = vsel %vm1436, %v6718, %v6048
      %v6751 = vsel %vm1436, %v6719, %v6050
      %v6752 = vsel %vm1436, %v6720, %v6052
      %v6753 = vsel %vm1436, %v6721, %v6054
      %v6754 = vsel %vm1436, %v6722, %v6056
      %v6755 = vsel %vm1436, %v6723, %v6058
      %v6756 = vsel %vm1436, %v6724, %v6060
      %v6757 = vsel %vm1436, %v6725, %v6062
      %v6758 = vsel %vm1436, %v6726, %v6064
      %v6759 = vsel %vm1436, %v6727, %v6066
      %v6760 = vsel %vm1436, %v6728, %v6068
      %v6761 = vsel %vm1436, %v6729, %v6070
      %v6762 = vsel %vm1436, %v6730, %v6072
      %v6763 = vsel %vm1436, %v6731, %v6074
      %v6764 = vsel %vm1436, %v6732, %v6076
      %v6765 = vsel %vm1436, %v6733, %v6078
      %v6766 = vsel %vm1436, %v6734, %v6080
      %v6767 = vsel %vm1436, %v6735, %v6082
      %v6768 = vsel %vm1436, %v6736, %v6084
      %v6769 = vsel %vm1436, %v6737, %v6086
      %v6770 = vsel %vm1436, %v6738, %v6088
      %v6771 = vsel %vm1436, %v6739, %v6090
      %v6772 = vsel %vm1436, %v6740, %v6092
      %v6773 = vsel %vm1436, %v6741, %v6094
      %v6774 = vsel %vm1436, %v6742, %v6096
      %v6775 = vsel %vm1436, %v6743, %v6098
      %v6776 = vsel %vm1436, %v6744, %v6100
      %v6777 = vsel %vm1436, %v6745, %v6102
      %v6778 = vsel %vm1436, %v6746, %v6104
      %v6779 = vsel %vm1436, %v6747, %v6106
      %v6780 = vsel %vm1436, %v6748, %v6108
      %v6781 = vsel %vm1469, %v6749, %v6142
      %v6782 = vsel %vm1469, %v6750, %v6144
      %v6783 = vsel %vm1469, %v6751, %v6146
      %v6784 = vsel %vm1469, %v6752, %v6148
      %v6785 = vsel %vm1469, %v6753, %v6150
      %v6786 = vsel %vm1469, %v6754, %v6152
      %v6787 = vsel %vm1469, %v6755, %v6154
      %v6788 = vsel %vm1469, %v6756, %v6156
      %v6789 = vsel %vm1469, %v6757, %v6158
      %v6790 = vsel %vm1469, %v6758, %v6160
      %v6791 = vsel %vm1469, %v6759, %v6162
      %v6792 = vsel %vm1469, %v6760, %v6164
      %v6793 = vsel %vm1469, %v6761, %v6166
      %v6794 = vsel %vm1469, %v6762, %v6168
      %v6795 = vsel %vm1469, %v6763, %v6170
      %v6796 = vsel %vm1469, %v6764, %v6172
      %v6797 = vsel %vm1469, %v6765, %v6174
      %v6798 = vsel %vm1469, %v6766, %v6176
      %v6799 = vsel %vm1469, %v6767, %v6178
      %v6800 = vsel %vm1469, %v6768, %v6180
      %v6801 = vsel %vm1469, %v6769, %v6182
      %v6802 = vsel %vm1469, %v6770, %v6184
      %v6803 = vsel %vm1469, %v6771, %v6186
      %v6804 = vsel %vm1469, %v6772, %v6188
      %v6805 = vsel %vm1469, %v6773, %v6190
      %v6806 = vsel %vm1469, %v6774, %v6192
      %v6807 = vsel %vm1469, %v6775, %v6194
      %v6808 = vsel %vm1469, %v6776, %v6196
      %v6809 = vsel %vm1469, %v6777, %v6198
      %v6810 = vsel %vm1469, %v6778, %v6200
      %v6811 = vsel %vm1469, %v6779, %v6202
      %v6812 = vsel %vm1469, %v6780, %v6204
      %v6813 = vsel %vm1502, %v6781, %v6238
      %v6814 = vsel %vm1502, %v6782, %v6240
      %v6815 = vsel %vm1502, %v6783, %v6242
      %v6816 = vsel %vm1502, %v6784, %v6244
      %v6817 = vsel %vm1502, %v6785, %v6246
      %v6818 = vsel %vm1502, %v6786, %v6248
      %v6819 = vsel %vm1502, %v6787, %v6250
      %v6820 = vsel %vm1502, %v6788, %v6252
      %v6821 = vsel %vm1502, %v6789, %v6254
      %v6822 = vsel %vm1502, %v6790, %v6256
      %v6823 = vsel %vm1502, %v6791, %v6258
      %v6824 = vsel %vm1502, %v6792, %v6260
      %v6825 = vsel %vm1502, %v6793, %v6262
      %v6826 = vsel %vm1502, %v6794, %v6264
      %v6827 = vsel %vm1502, %v6795, %v6266
      %v6828 = vsel %vm1502, %v6796, %v6268
      %v6829 = vsel %vm1502, %v6797, %v6270
      %v6830 = vsel %vm1502, %v6798, %v6272
      %v6831 = vsel %vm1502, %v6799, %v6274
      %v6832 = vsel %vm1502, %v6800, %v6276
      %v6833 = vsel %vm1502, %v6801, %v6278
      %v6834 = vsel %vm1502, %v6802, %v6280
      %v6835 = vsel %vm1502, %v6803, %v6282
      %v6836 = vsel %vm1502, %v6804, %v6284
      %v6837 = vsel %vm1502, %v6805, %v6286
      %v6838 = vsel %vm1502, %v6806, %v6288
      %v6839 = vsel %vm1502, %v6807, %v6290
      %v6840 = vsel %vm1502, %v6808, %v6292
      %v6841 = vsel %vm1502, %v6809, %v6294
      %v6842 = vsel %vm1502, %v6810, %v6296
      %v6843 = vsel %vm1502, %v6811, %v6298
      %v6844 = vsel %vm1502, %v6812, %v6300
      %v6845 = vsel %vm1535, %v6813, %v6334
      %v6846 = vsel %vm1535, %v6814, %v6336
      %v6847 = vsel %vm1535, %v6815, %v6338
      %v6848 = vsel %vm1535, %v6816, %v6340
      %v6849 = vsel %vm1535, %v6817, %v6342
      %v6850 = vsel %vm1535, %v6818, %v6344
      %v6851 = vsel %vm1535, %v6819, %v6346
      %v6852 = vsel %vm1535, %v6820, %v6348
      %v6853 = vsel %vm1535, %v6821, %v6350
      %v6854 = vsel %vm1535, %v6822, %v6352
      %v6855 = vsel %vm1535, %v6823, %v6354
      %v6856 = vsel %vm1535, %v6824, %v6356
      %v6857 = vsel %vm1535, %v6825, %v6358
      %v6858 = vsel %vm1535, %v6826, %v6360
      %v6859 = vsel %vm1535, %v6827, %v6362
      %v6860 = vsel %vm1535, %v6828, %v6364
      %v6861 = vsel %vm1535, %v6829, %v6366
      %v6862 = vsel %vm1535, %v6830, %v6368
      %v6863 = vsel %vm1535, %v6831, %v6370
      %v6864 = vsel %vm1535, %v6832, %v6372
      %v6865 = vsel %vm1535, %v6833, %v6374
      %v6866 = vsel %vm1535, %v6834, %v6376
      %v6867 = vsel %vm1535, %v6835, %v6378
      %v6868 = vsel %vm1535, %v6836, %v6380
      %v6869 = vsel %vm1535, %v6837, %v6382
      %v6870 = vsel %vm1535, %v6838, %v6384
      %v6871 = vsel %vm1535, %v6839, %v6386
      %v6872 = vsel %vm1535, %v6840, %v6388
      %v6873 = vsel %vm1535, %v6841, %v6390
      %v6874 = vsel %vm1535, %v6842, %v6392
      %v6875 = vsel %vm1535, %v6843, %v6394
      %v6876 = vsel %vm1535, %v6844, %v6396
      %v6877 = vsel %vm1568, %v6845, %v6430
      %v6878 = vsel %vm1568, %v6846, %v6432
      %v6879 = vsel %vm1568, %v6847, %v6434
      %v6880 = vsel %vm1568, %v6848, %v6436
      %v6881 = vsel %vm1568, %v6849, %v6438
      %v6882 = vsel %vm1568, %v6850, %v6440
      %v6883 = vsel %vm1568, %v6851, %v6442
      %v6884 = vsel %vm1568, %v6852, %v6444
      %v6885 = vsel %vm1568, %v6853, %v6446
      %v6886 = vsel %vm1568, %v6854, %v6448
      %v6887 = vsel %vm1568, %v6855, %v6450
      %v6888 = vsel %vm1568, %v6856, %v6452
      %v6889 = vsel %vm1568, %v6857, %v6454
      %v6890 = vsel %vm1568, %v6858, %v6456
      %v6891 = vsel %vm1568, %v6859, %v6458
      %v6892 = vsel %vm1568, %v6860, %v6460
      %v6893 = vsel %vm1568, %v6861, %v6462
      %v6894 = vsel %vm1568, %v6862, %v6464
      %v6895 = vsel %vm1568, %v6863, %v6466
      %v6896 = vsel %vm1568, %v6864, %v6468
      %v6897 = vsel %vm1568, %v6865, %v6470
      %v6898 = vsel %vm1568, %v6866, %v6472
      %v6899 = vsel %vm1568, %v6867, %v6474
      %v6900 = vsel %vm1568, %v6868, %v6476
      %v6901 = vsel %vm1568, %v6869, %v6478
      %v6902 = vsel %vm1568, %v6870, %v6480
      %v6903 = vsel %vm1568, %v6871, %v6482
      %v6904 = vsel %vm1568, %v6872, %v6484
      %v6905 = vsel %vm1568, %v6873, %v6486
      %v6906 = vsel %vm1568, %v6874, %v6488
      %v6907 = vsel %vm1568, %v6875, %v6490
      %v6908 = vsel %vm1568, %v6876, %v6492
      %v6909 = vsel %vm1601, %v6877, %v6526
      %v6910 = vsel %vm1601, %v6878, %v6528
      %v6911 = vsel %vm1601, %v6879, %v6530
      %v6912 = vsel %vm1601, %v6880, %v6532
      %v6913 = vsel %vm1601, %v6881, %v6534
      %v6914 = vsel %vm1601, %v6882, %v6536
      %v6915 = vsel %vm1601, %v6883, %v6538
      %v6916 = vsel %vm1601, %v6884, %v6540
      %v6917 = vsel %vm1601, %v6885, %v6542
      %v6918 = vsel %vm1601, %v6886, %v6544
      %v6919 = vsel %vm1601, %v6887, %v6546
      %v6920 = vsel %vm1601, %v6888, %v6548
      %v6921 = vsel %vm1601, %v6889, %v6550
      %v6922 = vsel %vm1601, %v6890, %v6552
      %v6923 = vsel %vm1601, %v6891, %v6554
      %v6924 = vsel %vm1601, %v6892, %v6556
      %v6925 = vsel %vm1601, %v6893, %v6558
      %v6926 = vsel %vm1601, %v6894, %v6560
      %v6927 = vsel %vm1601, %v6895, %v6562
      %v6928 = vsel %vm1601, %v6896, %v6564
      %v6929 = vsel %vm1601, %v6897, %v6566
      %v6930 = vsel %vm1601, %v6898, %v6568
      %v6931 = vsel %vm1601, %v6899, %v6570
      %v6932 = vsel %vm1601, %v6900, %v6572
      %v6933 = vsel %vm1601, %v6901, %v6574
      %v6934 = vsel %vm1601, %v6902, %v6576
      %v6935 = vsel %vm1601, %v6903, %v6578
      %v6936 = vsel %vm1601, %v6904, %v6580
      %v6937 = vsel %vm1601, %v6905, %v6582
      %v6938 = vsel %vm1601, %v6906, %v6584
      %v6939 = vsel %vm1601, %v6907, %v6586
      %v6940 = vsel %vm1601, %v6908, %v6588
      %v6941 = vsel %vm1634, %v6909, %v6622
      %v6942 = vsel %vm1634, %v6910, %v6624
      %v6943 = vsel %vm1634, %v6911, %v6626
      %v6944 = vsel %vm1634, %v6912, %v6628
      %v6945 = vsel %vm1634, %v6913, %v6630
      %v6946 = vsel %vm1634, %v6914, %v6632
      %v6947 = vsel %vm1634, %v6915, %v6634
      %v6948 = vsel %vm1634, %v6916, %v6636
      %v6949 = vsel %vm1634, %v6917, %v6638
      %v6950 = vsel %vm1634, %v6918, %v6640
      %v6951 = vsel %vm1634, %v6919, %v6642
      %v6952 = vsel %vm1634, %v6920, %v6644
      %v6953 = vsel %vm1634, %v6921, %v6646
      %v6954 = vsel %vm1634, %v6922, %v6648
      %v6955 = vsel %vm1634, %v6923, %v6650
      %v6956 = vsel %vm1634, %v6924, %v6652
      %v6957 = vsel %vm1634, %v6925, %v6654
      %v6958 = vsel %vm1634, %v6926, %v6656
      %v6959 = vsel %vm1634, %v6927, %v6658
      %v6960 = vsel %vm1634, %v6928, %v6660
      %v6961 = vsel %vm1634, %v6929, %v6662
      %v6962 = vsel %vm1634, %v6930, %v6664
      %v6963 = vsel %vm1634, %v6931, %v6666
      %v6964 = vsel %vm1634, %v6932, %v6668
      %v6965 = vsel %vm1634, %v6933, %v6670
      %v6966 = vsel %vm1634, %v6934, %v6672
      %v6967 = vsel %vm1634, %v6935, %v6674
      %v6968 = vsel %vm1634, %v6936, %v6676
      %v6969 = vsel %vm1634, %v6937, %v6678
      %v6970 = vsel %vm1634, %v6938, %v6680
      %v6971 = vsel %vm1634, %v6939, %v6682
      %v6972 = vsel %vm1634, %v6940, %v6684
      %s6973 = scalar_lea.vmem %s1, 120
      %v6974 = vld [vmem:[%s6973] sm:$0xff]
      %v6975 = vld [vmem:[%s6973 + $0x8] sm:$0xff]
      %v6976 = vld [vmem:[%s6973 + $0x10] sm:$0xff]
      %v6977 = vld [vmem:[%s6973 + $0x18] sm:$0xff]
      %v6978 = vld [vmem:[%s6973 + $0x20] sm:$0xf]
      %s6979 = scalar_lea.vmem %s2, 3
      %v6980 = vld [vmem:[%s6979] sm:$0x1]
      %v6982 = vlaneseq
      %v6983 = vshrl.u32 %v6982, 7
      %v6984 = vsub.s32 0, %v6983
      %v6985 = vrot.slane %v6980, %v6984
      %v6988 = vsel %vm1679, %v6941, 0
      %v6991 = vsel %vm1679, %v6942, 0
      %v6994 = vsel %vm1679, %v6943, 0
      %v6997 = vsel %vm1679, %v6944, 0
      %v7000 = vsel %vm1679, %v6945, 0
      %v7003 = vsel %vm1679, %v6946, 0
      %v7006 = vsel %vm1679, %v6947, 0
      %v7009 = vsel %vm1679, %v6948, 0
      %v7012 = vsel %vm1679, %v6949, 0
      %v7015 = vsel %vm1679, %v6950, 0
      %v7018 = vsel %vm1679, %v6951, 0
      %v7021 = vsel %vm1679, %v6952, 0
      %v7024 = vsel %vm1679, %v6953, 0
      %v7027 = vsel %vm1679, %v6954, 0
      %v7030 = vsel %vm1679, %v6955, 0
      %v7033 = vsel %vm1679, %v6956, 0
      %v7036 = vsel %vm1679, %v6957, 0
      %v7039 = vsel %vm1679, %v6958, 0
      %v7042 = vsel %vm1679, %v6959, 0
      %v7045 = vsel %vm1679, %v6960, 0
      %v7048 = vsel %vm1679, %v6961, 0
      %v7051 = vsel %vm1679, %v6962, 0
      %v7054 = vsel %vm1679, %v6963, 0
      %v7057 = vsel %vm1679, %v6964, 0
      %v7060 = vsel %vm1679, %v6965, 0
      %v7063 = vsel %vm1679, %v6966, 0
      %v7066 = vsel %vm1679, %v6967, 0
      %v7069 = vsel %vm1679, %v6968, 0
      %v7072 = vsel %vm1679, %v6969, 0
      %v7075 = vsel %vm1679, %v6970, 0
      %v7078 = vsel %vm1679, %v6971, 0
      %v7081 = vsel %vm1679, %v6972, 0
      %v7084 = vsel %vm1776, %v6978, 0
      %7086 = vmatprep.subr.mxu0 0.0
      %7087 = vmatpush1.msra.mxu0 %v6974
      %7088 = vmatprep.subr.mxu0 0.0
      %7089 = vmatpush1.msra.mxu0 %v6975
      %7090 = vmatprep.subr.mxu0 0.0
      %7091 = vmatpush1.msra.mxu0 %v6976
      %7092 = vmatprep.subr.mxu0 0.0
      %7093 = vmatpush1.msra.mxu0 %v6977
      %7094 = vmatprep.subr.mxu0 0.0
      %7095 = vmatpush1.msra.mxu0 %v7084
      %7096 = vmatprep.subr.mxu0 0.0
      %7097 = vmatpush1.msra.mxu0 0.0
      %7098 = vmatprep.subr.mxu0 0.0
      %7099 = vmatpush1.msra.mxu0 0.0
      %7100 = vmatprep.subr.mxu0 0.0
      %7101 = vmatpush1.msra.mxu0 0.0
      %7102 = vmatprep.subr.mxu0 0.0
      %7103 = vmatpush1.msra.mxu0 0.0
      %7104 = vmatprep.subr.mxu0 0.0
      %7105 = vmatpush1.msra.mxu0 0.0
      %7106 = vmatprep.subr.mxu0 0.0
      %7107 = vmatpush1.msra.mxu0 0.0
      %7108 = vmatprep.subr.mxu0 0.0
      %7109 = vmatpush1.msra.mxu0 0.0
      %7110 = vmatprep.subr.mxu0 0.0
      %7111 = vmatpush1.msra.mxu0 0.0
      %7112 = vmatprep.subr.mxu0 0.0
      %7113 = vmatpush1.msra.mxu0 0.0
      %7114 = vmatprep.subr.mxu0 0.0
      %7115 = vmatpush1.msra.mxu0 0.0
      %7116 = vmatprep.subr.mxu0 0.0
      %7117 = vmatpush1.msra.mxu0 0.0
      %7118 = vmatprep.subr.mxu0 0.0
      %7119 = vmatpush1.msra.mxu0 0.0
      %7120 = vmatprep.subr.mxu0 0.0
      %7121 = vmatpush1.msra.mxu0 0.0
      %7122 = vmatprep.subr.mxu0 0.0
      %7123 = vmatpush1.msra.mxu0 0.0
      %7124 = vmatprep.subr.mxu0 0.0
      %7125 = vmatpush1.msra.mxu0 0.0
      %7126 = vmatprep.subr.mxu0 0.0
      %7127 = vmatpush1.msra.mxu0 0.0
      %7128 = vmatprep.subr.mxu0 0.0
      %7129 = vmatpush1.msra.mxu0 0.0
      %7130 = vmatprep.subr.mxu0 0.0
      %7131 = vmatpush1.msra.mxu0 0.0
      %7132 = vmatprep.subr.mxu0 0.0
      %7133 = vmatpush1.msra.mxu0 0.0
      %7134 = vmatprep.subr.mxu0 0.0
      %7135 = vmatpush1.msra.mxu0 0.0
      %7136 = vmatprep.subr.mxu0 0.0
      %7137 = vmatpush1.msra.mxu0 0.0
      %7138 = vmatprep.subr.mxu0 0.0
      %7139 = vmatpush1.msra.mxu0 0.0
      %7140 = vmatprep.subr.mxu0 0.0
      %7141 = vmatpush1.msra.mxu0 0.0
      %7142 = vmatprep.subr.mxu0 0.0
      %7143 = vmatpush1.msra.mxu0 0.0
      %7144 = vmatprep.subr.mxu0 0.0
      %7145 = vmatpush1.msra.mxu0 0.0
      %7146 = vmatprep.subr.mxu0 0.0
      %7147 = vmatpush1.msra.mxu0 0.0
      %7148 = vmatprep.subr.mxu0 0.0
      %7149 = vmatpush1.msra.mxu0 0.0
      %7150 = vmatprep.mubr.f32.mxu0 0.0
      %7151 = vmatmul.mubr.f32.gmra.mrb[0].mxu0 %v6988
      %v7152 = vpop.f32.mrb[0].mxu0
      %v7153 = vadd.f32 %v6985, %v7152
      %v7154 = vpop.f32.mrb[0].mxu0
      %7155 = vmatprep.mubr.f32.mxu0 0.0
      %7156 = vmatmul.mubr.f32.gmra.mrb[0].mxu0 %v6991
      %v7157 = vpop.f32.mrb[0].mxu0
      %v7158 = vadd.f32 %v6985, %v7157
      %v7159 = vpop.f32.mrb[0].mxu0
      %7160 = vmatprep.mubr.f32.mxu0 0.0
      %7161 = vmatmul.mubr.f32.gmra.mrb[0].mxu0 %v6994
      %v7162 = vpop.f32.mrb[0].mxu0
      %v7163 = vadd.f32 %v6985, %v7162
      %v7164 = vpop.f32.mrb[0].mxu0
      %7165 = vmatprep.mubr.f32.mxu0 0.0
      %7166 = vmatmul.mubr.f32.gmra.mrb[0].mxu0 %v6997
      %v7167 = vpop.f32.mrb[0].mxu0
      %v7168 = vadd.f32 %v6985, %v7167
      %v7169 = vpop.f32.mrb[0].mxu0
      %7170 = vmatprep.mubr.f32.mxu0 0.0
      %7171 = vmatmul.mubr.f32.gmra.mrb[0].mxu0 %v7000
      %v7172 = vpop.f32.mrb[0].mxu0
      %v7173 = vadd.f32 %v6985, %v7172
      %v7174 = vpop.f32.mrb[0].mxu0
      %7175 = vmatprep.mubr.f32.mxu0 0.0
      %7176 = vmatmul.mubr.f32.gmra.mrb[0].mxu0 %v7003
      %v7177 = vpop.f32.mrb[0].mxu0
      %v7178 = vadd.f32 %v6985, %v7177
      %v7179 = vpop.f32.mrb[0].mxu0
      %7180 = vmatprep.mubr.f32.mxu0 0.0
      %7181 = vmatmul.mubr.f32.gmra.mrb[0].mxu0 %v7006
      %v7182 = vpop.f32.mrb[0].mxu0
      %v7183 = vadd.f32 %v6985, %v7182
      %v7184 = vpop.f32.mrb[0].mxu0
      %7185 = vmatprep.mubr.f32.mxu0 0.0
      %7186 = vmatmul.mubr.f32.gmra.mrb[0].mxu0 %v7009
      %v7187 = vpop.f32.mrb[0].mxu0
      %v7188 = vadd.f32 %v6985, %v7187
      %v7189 = vpop.f32.mrb[0].mxu0
      %7190 = vmatprep.mubr.f32.mxu0 0.0
      %7191 = vmatmul.mubr.f32.gmra.mrb[0].mxu0 %v7012
      %v7192 = vpop.f32.mrb[0].mxu0
      %v7193 = vadd.f32 %v6985, %v7192
      %v7194 = vpop.f32.mrb[0].mxu0
      %7195 = vmatprep.mubr.f32.mxu0 0.0
      %7196 = vmatmul.mubr.f32.gmra.mrb[0].mxu0 %v7015
      %v7197 = vpop.f32.mrb[0].mxu0
      %v7198 = vadd.f32 %v6985, %v7197
      %v7199 = vpop.f32.mrb[0].mxu0
      %7200 = vmatprep.mubr.f32.mxu0 0.0
      %7201 = vmatmul.mubr.f32.gmra.mrb[0].mxu0 %v7018
      %v7202 = vpop.f32.mrb[0].mxu0
      %v7203 = vadd.f32 %v6985, %v7202
      %v7204 = vpop.f32.mrb[0].mxu0
      %7205 = vmatprep.mubr.f32.mxu0 0.0
      %7206 = vmatmul.mubr.f32.gmra.mrb[0].mxu0 %v7021
      %v7207 = vpop.f32.mrb[0].mxu0
      %v7208 = vadd.f32 %v6985, %v7207
      %v7209 = vpop.f32.mrb[0].mxu0
      %7210 = vmatprep.mubr.f32.mxu0 0.0
      %7211 = vmatmul.mubr.f32.gmra.mrb[0].mxu0 %v7024
      %v7212 = vpop.f32.mrb[0].mxu0
      %v7213 = vadd.f32 %v6985, %v7212
      %v7214 = vpop.f32.mrb[0].mxu0
      %7215 = vmatprep.mubr.f32.mxu0 0.0
      %7216 = vmatmul.mubr.f32.gmra.mrb[0].mxu0 %v7027
      %v7217 = vpop.f32.mrb[0].mxu0
      %v7218 = vadd.f32 %v6985, %v7217
      %v7219 = vpop.f32.mrb[0].mxu0
      %7220 = vmatprep.mubr.f32.mxu0 0.0
      %7221 = vmatmul.mubr.f32.gmra.mrb[0].mxu0 %v7030
      %v7222 = vpop.f32.mrb[0].mxu0
      %v7223 = vadd.f32 %v6985, %v7222
      %v7224 = vpop.f32.mrb[0].mxu0
      %7225 = vmatprep.mubr.f32.mxu0 0.0
      %7226 = vmatmul.mubr.f32.gmra.mrb[0].mxu0 %v7033
      %v7227 = vpop.f32.mrb[0].mxu0
      %v7228 = vadd.f32 %v6985, %v7227
      %v7229 = vpop.f32.mrb[0].mxu0
      %7230 = vmatprep.mubr.f32.mxu0 0.0
      %7231 = vmatmul.mubr.f32.gmra.mrb[0].mxu0 %v7036
      %v7232 = vpop.f32.mrb[0].mxu0
      %v7233 = vadd.f32 %v6985, %v7232
      %v7234 = vpop.f32.mrb[0].mxu0
      %7235 = vmatprep.mubr.f32.mxu0 0.0
      %7236 = vmatmul.mubr.f32.gmra.mrb[0].mxu0 %v7039
      %v7237 = vpop.f32.mrb[0].mxu0
      %v7238 = vadd.f32 %v6985, %v7237
      %v7239 = vpop.f32.mrb[0].mxu0
      %7240 = vmatprep.mubr.f32.mxu0 0.0
      %7241 = vmatmul.mubr.f32.gmra.mrb[0].mxu0 %v7042
      %v7242 = vpop.f32.mrb[0].mxu0
      %v7243 = vadd.f32 %v6985, %v7242
      %v7244 = vpop.f32.mrb[0].mxu0
      %7245 = vmatprep.mubr.f32.mxu0 0.0
      %7246 = vmatmul.mubr.f32.gmra.mrb[0].mxu0 %v7045
      %v7247 = vpop.f32.mrb[0].mxu0
      %v7248 = vadd.f32 %v6985, %v7247
      %v7249 = vpop.f32.mrb[0].mxu0
      %7250 = vmatprep.mubr.f32.mxu0 0.0
      %7251 = vmatmul.mubr.f32.gmra.mrb[0].mxu0 %v7048
      %v7252 = vpop.f32.mrb[0].mxu0
      %v7253 = vadd.f32 %v6985, %v7252
      %v7254 = vpop.f32.mrb[0].mxu0
      %7255 = vmatprep.mubr.f32.mxu0 0.0
      %7256 = vmatmul.mubr.f32.gmra.mrb[0].mxu0 %v7051
      %v7257 = vpop.f32.mrb[0].mxu0
      %v7258 = vadd.f32 %v6985, %v7257
      %v7259 = vpop.f32.mrb[0].mxu0
      %7260 = vmatprep.mubr.f32.mxu0 0.0
      %7261 = vmatmul.mubr.f32.gmra.mrb[0].mxu0 %v7054
      %v7262 = vpop.f32.mrb[0].mxu0
      %v7263 = vadd.f32 %v6985, %v7262
      %v7264 = vpop.f32.mrb[0].mxu0
      %7265 = vmatprep.mubr.f32.mxu0 0.0
      %7266 = vmatmul.mubr.f32.gmra.mrb[0].mxu0 %v7057
      %v7267 = vpop.f32.mrb[0].mxu0
      %v7268 = vadd.f32 %v6985, %v7267
      %v7269 = vpop.f32.mrb[0].mxu0
      %7270 = vmatprep.mubr.f32.mxu0 0.0
      %7271 = vmatmul.mubr.f32.gmra.mrb[0].mxu0 %v7060
      %v7272 = vpop.f32.mrb[0].mxu0
      %v7273 = vadd.f32 %v6985, %v7272
      %v7274 = vpop.f32.mrb[0].mxu0
      %7275 = vmatprep.mubr.f32.mxu0 0.0
      %7276 = vmatmul.mubr.f32.gmra.mrb[0].mxu0 %v7063
      %v7277 = vpop.f32.mrb[0].mxu0
      %v7278 = vadd.f32 %v6985, %v7277
      %v7279 = vpop.f32.mrb[0].mxu0
      %7280 = vmatprep.mubr.f32.mxu0 0.0
      %7281 = vmatmul.mubr.f32.gmra.mrb[0].mxu0 %v7066
      %v7282 = vpop.f32.mrb[0].mxu0
      %v7283 = vadd.f32 %v6985, %v7282
      %v7284 = vpop.f32.mrb[0].mxu0
      %7285 = vmatprep.mubr.f32.mxu0 0.0
      %7286 = vmatmul.mubr.f32.gmra.mrb[0].mxu0 %v7069
      %v7287 = vpop.f32.mrb[0].mxu0
      %v7288 = vadd.f32 %v6985, %v7287
      %v7289 = vpop.f32.mrb[0].mxu0
      %7290 = vmatprep.mubr.f32.mxu0 0.0
      %7291 = vmatmul.mubr.f32.gmra.mrb[0].mxu0 %v7072
      %v7292 = vpop.f32.mrb[0].mxu0
      %v7293 = vadd.f32 %v6985, %v7292
      %v7294 = vpop.f32.mrb[0].mxu0
      %7295 = vmatprep.mubr.f32.mxu0 0.0
      %7296 = vmatmul.mubr.f32.gmra.mrb[0].mxu0 %v7075
      %v7297 = vpop.f32.mrb[0].mxu0
      %v7298 = vadd.f32 %v6985, %v7297
      %v7299 = vpop.f32.mrb[0].mxu0
      %7300 = vmatprep.mubr.f32.mxu0 0.0
      %7301 = vmatmul.mubr.f32.gmra.mrb[0].mxu0 %v7078
      %v7302 = vpop.f32.mrb[0].mxu0
      %v7303 = vadd.f32 %v6985, %v7302
      %v7304 = vpop.f32.mrb[0].mxu0
      %7305 = vmatprep.mubr.f32.mxu0 0.0
      %7306 = vmatmul.mubr.f32.gmra.mrb[0].mxu0 %v7081
      %v7307 = vpop.f32.mrb[0].mxu0
      %v7308 = vadd.f32 %v6985, %v7307
      %v7309 = vpop.f32.mrb[0].mxu0
      %7310 = vdwg.mxu0
      %v7343 = vrot.slane %v7153, 7
      %v7344 = vrot.slane %v7158, 7
      %v7345 = vsel %vm3752, %v7343, %v7344
      %v7346 = vrot.slane %v7163, 7
      %v7347 = vrot.slane %v7168, 7
      %v7348 = vsel %vm3752, %v7346, %v7347
      %v7349 = vrot.slane %v7173, 7
      %v7350 = vrot.slane %v7178, 7
      %v7351 = vsel %vm3752, %v7349, %v7350
      %v7352 = vrot.slane %v7183, 7
      %v7353 = vrot.slane %v7188, 7
      %v7354 = vsel %vm3752, %v7352, %v7353
      %v7355 = vrot.slane %v7193, 7
      %v7356 = vrot.slane %v7198, 7
      %v7357 = vsel %vm3752, %v7355, %v7356
      %v7358 = vrot.slane %v7203, 7
      %v7359 = vrot.slane %v7208, 7
      %v7360 = vsel %vm3752, %v7358, %v7359
      %v7361 = vrot.slane %v7213, 7
      %v7362 = vrot.slane %v7218, 7
      %v7363 = vsel %vm3752, %v7361, %v7362
      %v7364 = vrot.slane %v7223, 7
      %v7365 = vrot.slane %v7228, 7
      %v7366 = vsel %vm3752, %v7364, %v7365
      %v7367 = vrot.slane %v7233, 7
      %v7368 = vrot.slane %v7238, 7
      %v7369 = vsel %vm3752, %v7367, %v7368
      %v7370 = vrot.slane %v7243, 7
      %v7371 = vrot.slane %v7248, 7
      %v7372 = vsel %vm3752, %v7370, %v7371
      %v7373 = vrot.slane %v7253, 7
      %v7374 = vrot.slane %v7258, 7
      %v7375 = vsel %vm3752, %v7373, %v7374
      %v7376 = vrot.slane %v7263, 7
      %v7377 = vrot.slane %v7268, 7
      %v7378 = vsel %vm3752, %v7376, %v7377
      %v7379 = vrot.slane %v7273, 7
      %v7380 = vrot.slane %v7278, 7
      %v7381 = vsel %vm3752, %v7379, %v7380
      %v7382 = vrot.slane %v7283, 7
      %v7383 = vrot.slane %v7288, 7
      %v7384 = vsel %vm3752, %v7382, %v7383
      %v7385 = vrot.slane %v7293, 7
      %v7386 = vrot.slane %v7298, 7
      %v7387 = vsel %vm3752, %v7385, %v7386
      %v7388 = vrot.slane %v7303, 7
      %v7389 = vrot.slane %v7308, 7
      %v7390 = vsel %vm3752, %v7388, %v7389
      %v7439 = vadd.f32 %v3950, %v7343
      %v7440 = vadd.f32 %v3951, %v7345
      %v7441 = vadd.f32 %v3952, %v7344
      %v7442 = vadd.f32 %v3953, %v7346
      %v7443 = vadd.f32 %v3954, %v7348
      %v7444 = vadd.f32 %v3955, %v7347
      %v7445 = vadd.f32 %v3956, %v7349
      %v7446 = vadd.f32 %v3957, %v7351
      %v7447 = vadd.f32 %v3958, %v7350
      %v7448 = vadd.f32 %v3959, %v7352
      %v7449 = vadd.f32 %v3960, %v7354
      %v7450 = vadd.f32 %v3961, %v7353
      %v7451 = vadd.f32 %v3962, %v7355
      %v7452 = vadd.f32 %v3963, %v7357
      %v7453 = vadd.f32 %v3964, %v7356
      %v7454 = vadd.f32 %v3965, %v7358
      %v7455 = vadd.f32 %v3966, %v7360
      %v7456 = vadd.f32 %v3967, %v7359
      %v7457 = vadd.f32 %v3968, %v7361
      %v7458 = vadd.f32 %v3969, %v7363
      %v7459 = vadd.f32 %v3970, %v7362
      %v7460 = vadd.f32 %v3971, %v7364
      %v7461 = vadd.f32 %v3972, %v7366
      %v7462 = vadd.f32 %v3973, %v7365
      %v7463 = vadd.f32 %v3974, %v7367
      %v7464 = vadd.f32 %v3975, %v7369
      %v7465 = vadd.f32 %v3976, %v7368
      %v7466 = vadd.f32 %v3977, %v7370
      %v7467 = vadd.f32 %v3978, %v7372
      %v7468 = vadd.f32 %v3979, %v7371
      %v7469 = vadd.f32 %v3980, %v7373
      %v7470 = vadd.f32 %v3981, %v7375
      %v7471 = vadd.f32 %v3982, %v7374
      %v7472 = vadd.f32 %v3983, %v7376
      %v7473 = vadd.f32 %v3984, %v7378
      %v7474 = vadd.f32 %v3985, %v7377
      %v7475 = vadd.f32 %v3986, %v7379
      %v7476 = vadd.f32 %v3987, %v7381
      %v7477 = vadd.f32 %v3988, %v7380
      %v7478 = vadd.f32 %v3989, %v7382
      %v7479 = vadd.f32 %v3990, %v7384
      %v7480 = vadd.f32 %v3991, %v7383
      %v7481 = vadd.f32 %v3992, %v7385
      %v7482 = vadd.f32 %v3993, %v7387
      %v7483 = vadd.f32 %v3994, %v7386
      %v7484 = vadd.f32 %v3995, %v7388
      %v7485 = vadd.f32 %v3996, %v7390
      %v7486 = vadd.f32 %v3997, %v7389
      %7487 = vst.msk [vmem:[%s313] sm:$0xfe] %vm3897, %v7439
      %7488 = vst.msk [vmem:[%s313 + $0x8] sm:$0xff] %vm171, %v7440
      %7489 = vst.msk [vmem:[%s313 + $0x10] sm:$0x1] %vm3900, %v7441
      %7490 = vst.msk [vmem:[%s313 + $0x18] sm:$0xfe] %vm3897, %v7442
      %7491 = vst.msk [vmem:[%s313 + $0x20] sm:$0xff] %vm171, %v7443
      %7492 = vst.msk [vmem:[%s313 + $0x28] sm:$0x1] %vm3900, %v7444
      %7493 = vst.msk [vmem:[%s313 + $0x30] sm:$0xfe] %vm3897, %v7445
      %7494 = vst.msk [vmem:[%s313 + $0x38] sm:$0xff] %vm171, %v7446
      %7495 = vst.msk [vmem:[%s313 + $0x40] sm:$0x1] %vm3900, %v7447
      %7496 = vst.msk [vmem:[%s313 + $0x48] sm:$0xfe] %vm3897, %v7448
      %7497 = vst.msk [vmem:[%s313 + $0x50] sm:$0xff] %vm171, %v7449
      %7498 = vst.msk [vmem:[%s313 + $0x58] sm:$0x1] %vm3900, %v7450
      %7499 = vst.msk [vmem:[%s313 + $0x60] sm:$0xfe] %vm3897, %v7451
      %7500 = vst.msk [vmem:[%s313 + $0x68] sm:$0xff] %vm171, %v7452
      %7501 = vst.msk [vmem:[%s313 + $0x70] sm:$0x1] %vm3900, %v7453
      %7502 = vst.msk [vmem:[%s313 + $0x78] sm:$0xfe] %vm3897, %v7454
      %7503 = vst.msk [vmem:[%s313 + $0x80] sm:$0xff] %vm171, %v7455
      %7504 = vst.msk [vmem:[%s313 + $0x88] sm:$0x1] %vm3900, %v7456
      %7505 = vst.msk [vmem:[%s313 + $0x90] sm:$0xfe] %vm3897, %v7457
      %7506 = vst.msk [vmem:[%s313 + $0x98] sm:$0xff] %vm171, %v7458
      %7507 = vst.msk [vmem:[%s313 + $0xa0] sm:$0x1] %vm3900, %v7459
      %7508 = vst.msk [vmem:[%s313 + $0xa8] sm:$0xfe] %vm3897, %v7460
      %7509 = vst.msk [vmem:[%s313 + $0xb0] sm:$0xff] %vm171, %v7461
      %7510 = vst.msk [vmem:[%s313 + $0xb8] sm:$0x1] %vm3900, %v7462
      %7511 = vst.msk [vmem:[%s313 + $0xc0] sm:$0xfe] %vm3897, %v7463
      %7512 = vst.msk [vmem:[%s313 + $0xc8] sm:$0xff] %vm171, %v7464
      %7513 = vst.msk [vmem:[%s313 + $0xd0] sm:$0x1] %vm3900, %v7465
      %7514 = vst.msk [vmem:[%s313 + $0xd8] sm:$0xfe] %vm3897, %v7466
      %7515 = vst.msk [vmem:[%s313 + $0xe0] sm:$0xff] %vm171, %v7467
      %7516 = vst.msk [vmem:[%s313 + $0xe8] sm:$0x1] %vm3900, %v7468
      %7517 = vst.msk [vmem:[%s313 + $0xf0] sm:$0xfe] %vm3897, %v7469
      %7518 = vst.msk [vmem:[%s313 + $0xf8] sm:$0xff] %vm171, %v7470
      %7519 = vst.msk [vmem:[%s313 + $0x100] sm:$0x1] %vm3900, %v7471
      %7520 = vst.msk [vmem:[%s313 + $0x108] sm:$0xfe] %vm3897, %v7472
      %7521 = vst.msk [vmem:[%s313 + $0x110] sm:$0xff] %vm171, %v7473
      %7522 = vst.msk [vmem:[%s313 + $0x118] sm:$0x1] %vm3900, %v7474
      %7523 = vst.msk [vmem:[%s313 + $0x120] sm:$0xfe] %vm3897, %v7475
      %7524 = vst.msk [vmem:[%s313 + $0x128] sm:$0xff] %vm171, %v7476
      %7525 = vst.msk [vmem:[%s313 + $0x130] sm:$0x1] %vm3900, %v7477
      %7526 = vst.msk [vmem:[%s313 + $0x138] sm:$0xfe] %vm3897, %v7478
      %7527 = vst.msk [vmem:[%s313 + $0x140] sm:$0xff] %vm171, %v7479
      %7528 = vst.msk [vmem:[%s313 + $0x148] sm:$0x1] %vm3900, %v7480
      %7529 = vst.msk [vmem:[%s313 + $0x150] sm:$0xfe] %vm3897, %v7481
      %7530 = vst.msk [vmem:[%s313 + $0x158] sm:$0xff] %vm171, %v7482
      %7531 = vst.msk [vmem:[%s313 + $0x160] sm:$0x1] %vm3900, %v7483
      %7532 = vst.msk [vmem:[%s313 + $0x168] sm:$0xfe] %vm3897, %v7484
      %7533 = vst.msk [vmem:[%s313 + $0x170] sm:$0xff] %vm171, %v7485
      %7534 = vst.msk [vmem:[%s313 + $0x178] sm:$0x1] %vm3900, %v7486
      %v7535 = vld [vmem:[%s313 + $0x1] sm:$0xff]
      %v7536 = vld [vmem:[%s313 + $0x9] sm:$0xff]
      %v7537 = vld [vmem:[%s313 + $0x19] sm:$0xff]
      %v7538 = vld [vmem:[%s313 + $0x21] sm:$0xff]
      %v7539 = vld [vmem:[%s313 + $0x31] sm:$0xff]
      %v7540 = vld [vmem:[%s313 + $0x39] sm:$0xff]
      %v7541 = vld [vmem:[%s313 + $0x49] sm:$0xff]
      %v7542 = vld [vmem:[%s313 + $0x51] sm:$0xff]
      %v7543 = vld [vmem:[%s313 + $0x61] sm:$0xff]
      %v7544 = vld [vmem:[%s313 + $0x69] sm:$0xff]
      %v7545 = vld [vmem:[%s313 + $0x79] sm:$0xff]
      %v7546 = vld [vmem:[%s313 + $0x81] sm:$0xff]
      %v7547 = vld [vmem:[%s313 + $0x91] sm:$0xff]
      %v7548 = vld [vmem:[%s313 + $0x99] sm:$0xff]
      %v7549 = vld [vmem:[%s313 + $0xa9] sm:$0xff]
      %v7550 = vld [vmem:[%s313 + $0xb1] sm:$0xff]
      %v7551 = vld [vmem:[%s313 + $0xc1] sm:$0xff]
      %v7552 = vld [vmem:[%s313 + $0xc9] sm:$0xff]
      %v7553 = vld [vmem:[%s313 + $0xd9] sm:$0xff]
      %v7554 = vld [vmem:[%s313 + $0xe1] sm:$0xff]
      %v7555 = vld [vmem:[%s313 + $0xf1] sm:$0xff]
      %v7556 = vld [vmem:[%s313 + $0xf9] sm:$0xff]
      %v7557 = vld [vmem:[%s313 + $0x109] sm:$0xff]
      %v7558 = vld [vmem:[%s313 + $0x111] sm:$0xff]
      %v7559 = vld [vmem:[%s313 + $0x121] sm:$0xff]
      %v7560 = vld [vmem:[%s313 + $0x129] sm:$0xff]
      %v7561 = vld [vmem:[%s313 + $0x139] sm:$0xff]
      %v7562 = vld [vmem:[%s313 + $0x141] sm:$0xff]
      %v7563 = vld [vmem:[%s313 + $0x151] sm:$0xff]
      %v7564 = vld [vmem:[%s313 + $0x159] sm:$0xff]
      %v7565 = vld [vmem:[%s313 + $0x169] sm:$0xff]
      %v7566 = vld [vmem:[%s313 + $0x171] sm:$0xff]
      %7567 = vst.msk [vmem:[%s170] sm:$0xff] %vm171, %v7535
      %7568 = vst.msk [vmem:[%s170 + $0x8] sm:$0xff] %vm171, %v7536
      %7569 = vst.msk [vmem:[%s170 + $0x10] sm:$0xff] %vm171, %v7537
      %7570 = vst.msk [vmem:[%s170 + $0x18] sm:$0xff] %vm171, %v7538
      %7571 = vst.msk [vmem:[%s170 + $0x20] sm:$0xff] %vm171, %v7539
      %7572 = vst.msk [vmem:[%s170 + $0x28] sm:$0xff] %vm171, %v7540
      %7573 = vst.msk [vmem:[%s170 + $0x30] sm:$0xff] %vm171, %v7541
      %7574 = vst.msk [vmem:[%s170 + $0x38] sm:$0xff] %vm171, %v7542
      %7575 = vst.msk [vmem:[%s170 + $0x40] sm:$0xff] %vm171, %v7543
      %7576 = vst.msk [vmem:[%s170 + $0x48] sm:$0xff] %vm171, %v7544
      %7577 = vst.msk [vmem:[%s170 + $0x50] sm:$0xff] %vm171, %v7545
      %7578 = vst.msk [vmem:[%s170 + $0x58] sm:$0xff] %vm171, %v7546
      %7579 = vst.msk [vmem:[%s170 + $0x60] sm:$0xff] %vm171, %v7547
      %7580 = vst.msk [vmem:[%s170 + $0x68] sm:$0xff] %vm171, %v7548
      %7581 = vst.msk [vmem:[%s170 + $0x70] sm:$0xff] %vm171, %v7549
      %7582 = vst.msk [vmem:[%s170 + $0x78] sm:$0xff] %vm171, %v7550
      %7583 = vst.msk [vmem:[%s170 + $0x80] sm:$0xff] %vm171, %v7551
      %7584 = vst.msk [vmem:[%s170 + $0x88] sm:$0xff] %vm171, %v7552
      %7585 = vst.msk [vmem:[%s170 + $0x90] sm:$0xff] %vm171, %v7553
      %7586 = vst.msk [vmem:[%s170 + $0x98] sm:$0xff] %vm171, %v7554
      %7587 = vst.msk [vmem:[%s170 + $0xa0] sm:$0xff] %vm171, %v7555
      %7588 = vst.msk [vmem:[%s170 + $0xa8] sm:$0xff] %vm171, %v7556
      %7589 = vst.msk [vmem:[%s170 + $0xb0] sm:$0xff] %vm171, %v7557
      %7590 = vst.msk [vmem:[%s170 + $0xb8] sm:$0xff] %vm171, %v7558
      %7591 = vst.msk [vmem:[%s170 + $0xc0] sm:$0xff] %vm171, %v7559
      %7592 = vst.msk [vmem:[%s170 + $0xc8] sm:$0xff] %vm171, %v7560
      %7593 = vst.msk [vmem:[%s170 + $0xd0] sm:$0xff] %vm171, %v7561
      %7594 = vst.msk [vmem:[%s170 + $0xd8] sm:$0xff] %vm171, %v7562
      %7595 = vst.msk [vmem:[%s170 + $0xe0] sm:$0xff] %vm171, %v7563
      %7596 = vst.msk [vmem:[%s170 + $0xe8] sm:$0xff] %vm171, %v7564
      %7597 = vst.msk [vmem:[%s170 + $0xf0] sm:$0xff] %vm171, %v7565
      %7598 = vst.msk [vmem:[%s170 + $0xf8] sm:$0xff] %vm171, %v7566
      %p7599 = scmp.lt.s32.totalorder %s14, 1
      %s7600 = scalar_select %p7599, %s14, 1
      %s7601 = smul.addr %s7600, 32
      %s7602 = smul.addr %s7601, 8
      %s7603 = scalar_lea.vmem %s3, %s7602
      // Predicated region
      $region33: #{tpu_custom_call.1} parent=31 // pred_check
        %p7604 = pneg %p100
      $region34: #{tpu_custom_call.1} parent=31 // pred_check_branch
        %7606 = sbr.rel (%p7604) target = $region36
      $region35: #{tpu_custom_call.1} parent=31 // pred_region
        _
      $region36: #{tpu_custom_call.1} parent=31 // pred_fallthru
        _
    $region32: #{tpu_custom_call.1} parent=5 // pred_fallthru
      _
    %p7607 = scmp.le.s32.totalorder 2, %s9
    // Predicated region
    $region37: #{tpu_custom_call.1} parent=5 // pred_check
      %p7608 = pneg %p7607
    $region38: #{tpu_custom_call.1} parent=5 // pred_check_branch
      %7610 = sbr.rel (%p7608) target = $region40
    $region39: #{tpu_custom_call.1} parent=5 // pred_region
      %s7611 = ssub.s32 %s9, 2
      // Predicated region
      $region41: #{tpu_custom_call.1} parent=39 // pred_check
        %p7612 = pneg %p106
      $region42: #{tpu_custom_call.1} parent=39 // pred_check_branch
        %7614 = sbr.rel (%p7612) target = $region44
      $region43: #{tpu_custom_call.1} parent=39 // pred_region
        %p7615 = scmp.lt.s32.totalorder %s15, 1
        %s7616 = scalar_select %p7615, %s15, 1
        %s7617 = smul.addr %s7616, 32
        %s7618 = smul.addr %s7617, 8
        %s7619 = scalar_lea.vmem %s3, %s7618
      $region44: #{tpu_custom_call.1} parent=39 // pred_fallthru
        _
    $region40: #{tpu_custom_call.1} parent=5 // pred_fallthru
      _
  $region6: #{tpu_custom_call.1} parent=0 // loop_footer
    %s13 = sadd.s32 1, %s9
  $region7: #{tpu_custom_call.1} parent=0 // loop_footer_branch
    %8 = sbr.rel target = $region3
  $region8: #{tpu_custom_call.1} parent=0 // loop_exit
    _

</llo_original>
